<compile_context>
chip_gen: v7x
topology: tpu7x:2x2x1
jax: 0.10.0
libtpu: 0.0.40
codegen_flags: <defaults>
</compile_context>

<pallas_src>
import jax
import jax.numpy as jnp
import numpy as np
from jax import lax
from jax.experimental import pallas as pl
from jax.experimental.pallas import tpu as pltpu


def _round_up(x, m):
    return (x + m - 1) // m * m


# --------------------------------------------------------------------------------------
# Conv2d (+ bias + fused per-channel BN-stat accumulation) kernel
# --------------------------------------------------------------------------------------
def _make_conv_kernel(KH, KW, stride, OH, OW):
    M = OH * OW

    def kernel(x_ref, w_ref, b_ref, o_ref, sum_ref, sq_ref):
        # x_ref : (1, stride*stride, Hq, Wq, Cin)   bf16  (stride-phase decomposed image)
        # w_ref : (KH, KW, Cin, TN)                 bf16
        # b_ref : (1, TN)                           f32
        # o_ref : (1, M, TN)                        f32
        # sum_ref / sq_ref : (1, 1, TN)             f32   (per-channel partial BN stats)
        tn = o_ref.shape[-1]
        acc = jnp.zeros((M, tn), jnp.float32)
        for kh in range(KH):
            for kw in range(KW):
                ph = (kh % stride) * stride + (kw % stride)
                patch = x_ref[0, ph,
                              pl.ds(kh // stride, OH),
                              pl.ds(kw // stride, OW), :]          # (OH, OW, Cin)
                patch = patch.reshape(M, patch.shape[-1])          # (M, Cin)
                acc = acc + jnp.dot(patch, w_ref[kh, kw],
                                    preferred_element_type=jnp.float32)
        acc = acc + b_ref[...]                                     # (1, TN) broadcast
        o_ref[...] = acc[None].astype(o_ref.dtype)
        # fused epilogue: per-channel sum / sum-of-squares from the f32 accumulator
        sum_ref[...] = jnp.sum(acc, axis=0, keepdims=True)[None]
        sq_ref[...] = jnp.sum(acc * acc, axis=0, keepdims=True)[None]

    return kernel


def conv2d_bias_stats(x, w, b, stride, padding, *, compute_dtype=jnp.bfloat16):
    """x: (N, H, W, Cin)   w: (KH, KW, Cin, CO)  (CO multiple of 128)   b: (CO,) f32.
    Returns (y[N, OH, OW, CO] f32, ch_sum[N, 1, CO] f32, ch_sumsq[N, 1, CO] f32)."""
    N, H, W, Cin = x.shape
    KH, KW, wcin, CO = w.shape
    assert wcin == Cin and CO % 128 == 0
    s = int(stride)

    Hp, Wp = H + 2 * padding, W + 2 * padding
    OH = (Hp - KH) // s + 1
    OW = (Wp - KW) // s + 1
    Hq = OH + (KH - 1) // s
    Wq = OW + (KW - 1) // s
    TH, TW = Hq * s, Wq * s

    xp = jnp.pad(x, ((0, 0),
                     (padding, padding + max(0, TH - Hp)),
                     (padding, padding + max(0, TW - Wp)),
                     (0, 0)))
    xp = xp[:, :TH, :TW, :]
    # stride-phase decomposition so every in-kernel patch read is a contiguous slice.
    x_ph = jnp.stack([xp[:, rh::s, rw::s, :] for rh in range(s) for rw in range(s)],
                     axis=1).astype(compute_dtype)                 # (N, s*s, Hq, Wq, Cin)
    wb = w.astype(compute_dtype)
    b2 = b.reshape(1, CO).astype(jnp.float32)

    TN = 256 if CO % 256 == 0 else 128
    n_co = CO // TN
    M = OH * OW
    kernel = _make_conv_kernel(KH, KW, s, OH, OW)

    flops = 2 * N * M * KH * KW * Cin * CO
    bytes_accessed = (x_ph.size * x_ph.dtype.itemsize * n_co
                      + wb.size * wb.dtype.itemsize * N
                      + N * M * CO * 4)

    y, ssum, ssq = pl.pallas_call(
        kernel,
        out_shape=(
            jax.ShapeDtypeStruct((N, M, CO), jnp.float32),
            jax.ShapeDtypeStruct((N, 1, CO), jnp.float32),
            jax.ShapeDtypeStruct((N, 1, CO), jnp.float32),
        ),
        grid=(N, n_co),
        in_specs=[
            pl.BlockSpec((1, s * s, Hq, Wq, Cin), lambda n, j: (n, 0, 0, 0, 0)),
            pl.BlockSpec((KH, KW, Cin, TN), lambda n, j: (0, 0, 0, j)),
            pl.BlockSpec((1, TN), lambda n, j: (0, j)),
        ],
        out_specs=(
            pl.BlockSpec((1, M, TN), lambda n, j: (n, 0, j)),
            pl.BlockSpec((1, 1, TN), lambda n, j: (n, 0, j)),
            pl.BlockSpec((1, 1, TN), lambda n, j: (n, 0, j)),
        ),
        compiler_params=pltpu.CompilerParams(
            dimension_semantics=("parallel", "parallel"),
            vmem_limit_bytes=32 * 1024 * 1024),
        cost_estimate=pl.CostEstimate(flops=flops, transcendentals=0,
                                      bytes_accessed=bytes_accessed),
    )(x_ph, wb, b2)
    return y.reshape(N, OH, OW, CO), ssum, ssq


# --------------------------------------------------------------------------------------
# BatchNorm-apply (affine) + ReLU elementwise kernel
# --------------------------------------------------------------------------------------
def _affine_relu_kernel(y_ref, sc_ref, sh_ref, o_ref):
    y = y_ref[...].astype(jnp.float32)                 # (1, RM, C)
    out = y * sc_ref[...] + sh_ref[...]                # scale/shift are (1, C)
    o_ref[...] = jnp.maximum(out, 0.0).astype(o_ref.dtype)


def affine_relu(y, scale, shift, out_dtype=jnp.bfloat16):
    """y: (N, OH, OW, C) f32; scale, shift: (C,) f32.  Returns (N, OH, OW, C) out_dtype."""
    N, OH, OW, C = y.shape
    M = OH * OW
    y2 = y.reshape(N, M, C)
    RM = 512 if M % 512 == 0 else M
    n_m = M // RM
    sc = scale.reshape(1, C).astype(jnp.float32)
    sh = shift.reshape(1, C).astype(jnp.float32)

    out = pl.pallas_call(
        _affine_relu_kernel,
        out_shape=jax.ShapeDtypeStruct((N, M, C), out_dtype),
        grid=(N, n_m),
        in_specs=[
            pl.BlockSpec((1, RM, C), lambda n, m: (n, m, 0)),
            pl.BlockSpec((1, C), lambda n, m: (0, 0)),
            pl.BlockSpec((1, C), lambda n, m: (0, 0)),
        ],
        out_specs=pl.BlockSpec((1, RM, C), lambda n, m: (n, m, 0)),
        compiler_params=pltpu.CompilerParams(
            dimension_semantics=("parallel", "parallel"),
            vmem_limit_bytes=32 * 1024 * 1024),
        cost_estimate=pl.CostEstimate(
            flops=3 * N * M * C, transcendentals=0,
            bytes_accessed=N * M * C * (y.dtype.itemsize + jnp.dtype(out_dtype).itemsize)),
    )(y2, sc, sh)
    return out.reshape(N, OH, OW, C)


# --------------------------------------------------------------------------------------
# Model wrapper (mirrors the PyTorch module's forward pass)
# --------------------------------------------------------------------------------------
class ImageGenerationModelPallas:
    def __init__(self, in_channels, out_channels, hidden_channels, kernel_sizes,
                 strides, paddings, use_batch_norm=True, *, key,
                 compute_dtype=jnp.bfloat16):
        assert len(hidden_channels) == len(kernel_sizes) == len(strides) == len(paddings)
        self.in_channels = in_channels
        self.out_channels = out_channels
        self.hidden_channels = list(hidden_channels)
        self.kernel_sizes = list(kernel_sizes)
        self.strides = list(strides)
        self.paddings = list(paddings)
        self.use_batch_norm = use_batch_norm
        self.compute_dtype = compute_dtype
        self.eps = 1e-5

        # PyTorch-style default init: U(-1/sqrt(fan_in), 1/sqrt(fan_in)); BN gamma=1, beta=0.
        self.params = []
        in_ch = in_channels
        for i, out_ch in enumerate(hidden_channels):
            k = kernel_sizes[i]
            key, k1, k2 = jax.random.split(key, 3)
            bound = 1.0 / np.sqrt(in_ch * k * k)
            w = jax.random.uniform(k1, (k, k, in_ch, out_ch), jnp.float32, -bound, bound)
            b = jax.random.uniform(k2, (out_ch,), jnp.float32, -bound, bound)
            self.params.append(dict(w=w, b=b,
                                    gamma=jnp.ones((out_ch,), jnp.float32),
                                    beta=jnp.zeros((out_ch,), jnp.float32)))
            in_ch = out_ch
        key, k1, k2 = jax.random.split(key, 3)
        bound = 1.0 / np.sqrt(in_ch)
        self.final = dict(
            w=jax.random.uniform(k1, (1, 1, in_ch, out_channels), jnp.float32, -bound, bound),
            b=jax.random.uniform(k2, (out_channels,), jnp.float32, -bound, bound))

    def __call__(self, x_nchw):
        # Single NCHW -> NHWC transpose at the model boundary.
        x = jnp.transpose(x_nchw, (0, 2, 3, 1)).astype(jnp.float32)
        N = x.shape[0]
        in_pad = _round_up(x.shape[-1], 8)
        x = jnp.pad(x, ((0, 0), (0, 0), (0, 0), (0, in_pad - x.shape[-1])))
        x = x.astype(self.compute_dtype)

        for i, p in enumerate(self.params):
            k, s, pad = self.kernel_sizes[i], self.strides[i], self.paddings[i]
            out_ch = self.hidden_channels[i]
            co_pad = _round_up(out_ch, 128)            # lane-dense output channels
            real_cin = p['w'].shape[2]
            w = jnp.zeros((k, k, in_pad, co_pad), jnp.float32)
            w = w.at[:, :, :real_cin, :out_ch].set(p['w'])
            b = jnp.zeros((co_pad,), jnp.float32).at[:out_ch].set(p['b'])

            y, ssum, ssq = conv2d_bias_stats(x, w, b, s, pad,
                                             compute_dtype=self.compute_dtype)

            if self.use_batch_norm:
                cnt = N * y.shape[1] * y.shape[2]
                mean = jnp.sum(ssum, axis=(0, 1)) / cnt
                var = jnp.maximum(jnp.sum(ssq, axis=(0, 1)) / cnt - mean * mean, 0.0)
                gamma = jnp.zeros((co_pad,), jnp.float32).at[:out_ch].set(p['gamma'])
                beta = jnp.zeros((co_pad,), jnp.float32).at[:out_ch].set(p['beta'])
                scale = gamma * lax.rsqrt(var + self.eps)
                shift = beta - mean * scale
            else:
                scale = jnp.ones((co_pad,), jnp.float32)
                shift = jnp.zeros((co_pad,), jnp.float32)

            x = affine_relu(y, scale, shift, out_dtype=self.compute_dtype)
            in_pad = co_pad

        # Final 1x1 conv (no BN / activation) reuses the conv kernel; stats are ignored.
        co_pad = _round_up(self.out_channels, 128)
        real_cin = self.final['w'].shape[2]
        wf = jnp.zeros((1, 1, in_pad, co_pad), jnp.float32)
        wf = wf.at[:, :, :real_cin, :self.out_channels].set(self.final['w'])
        bf = jnp.zeros((co_pad,), jnp.float32).at[:self.out_channels].set(self.final['b'])
        y, _, _ = conv2d_bias_stats(x, wf, bf, 1, 0, compute_dtype=self.compute_dtype)
        y = y[..., :self.out_channels]
        return jnp.transpose(y, (0, 3, 1, 2))          # back to NCHW, f32


# --------------------------------------------------------------------------------------
# Plain-JAX f32 reference (for a sanity check against the bf16 Pallas path)
# --------------------------------------------------------------------------------------
def _reference_forward(model, x_nchw):
    x = jnp.transpose(x_nchw, (0, 2, 3, 1)).astype(jnp.float32)
    for i, p in enumerate(model.params):
        s, pad = model.strides[i], model.paddings[i]
        x = lax.conv_general_dilated(x, p['w'], (s, s), [(pad, pad), (pad, pad)],
                                     dimension_numbers=('NHWC', 'HWIO', 'NHWC'),
                                     precision=lax.Precision.HIGHEST)
        x = x + p['b']
        if model.use_batch_norm:
            mean = jnp.mean(x, axis=(0, 1, 2))
            var = jnp.mean((x - mean) ** 2, axis=(0, 1, 2))
            x = (x - mean) * lax.rsqrt(var + model.eps) * p['gamma'] + p['beta']
        x = jnp.maximum(x, 0.0)
    x = lax.conv_general_dilated(x, model.final['w'], (1, 1), [(0, 0), (0, 0)],
                                 dimension_numbers=('NHWC', 'HWIO', 'NHWC'),
                                 precision=lax.Precision.HIGHEST)
    x = x + model.final['b']
    return jnp.transpose(x, (0, 3, 1, 2))


if __name__ == "__main__":
    key = jax.random.PRNGKey(0)
    key, mkey, xkey = jax.random.split(key, 3)

    N, C_in, H, W = 2, 4, 16, 16
    hidden = [32, 64]
    ksizes = [3, 3]
    strides = [1, 2]
    pads = [1, 1]
    C_out = 3

    model = ImageGenerationModelPallas(C_in, C_out, hidden, ksizes, strides, pads,
                                       use_batch_norm=True, key=mkey)
    x = jax.random.normal(xkey, (N, C_in, H, W), jnp.float32)

    y = jax.jit(model.__call__)(x)
    y = jax.block_until_ready(y)

    y_ref = jax.block_until_ready(_reference_forward(model, x))
    assert y.shape == y_ref.shape == (N, C_out, 8, 8), (y.shape, y_ref.shape)
    err = float(jnp.max(jnp.abs(y - y_ref)))
    assert err < 0.2, f"max abs err vs f32 reference too large: {err}"

    print("KERNEL_OK")
</pallas_src>

<mosaic_0001>
module attributes {stable_mosaic.version = 11 : i64} {
  func.func @kernel(%arg0: i32, %arg1: i32, %arg2: memref<1x1x18x18x8xbf16, #tpu.memory_space<vmem>>, %arg3: memref<3x3x8x128xbf16, #tpu.memory_space<vmem>>, %arg4: memref<1x128xf32, #tpu.memory_space<vmem>>, %arg5: memref<1x256x128xf32, #tpu.memory_space<vmem>>, %arg6: memref<1x1x128xf32, #tpu.memory_space<vmem>>, %arg7: memref<1x1x128xf32, #tpu.memory_space<vmem>>) attributes {dimension_semantics = [#tpu.dimension_semantics<parallel>, #tpu.dimension_semantics<parallel>], iteration_bounds = array<i64: 2, 1>, scalar_prefetch = 0 : i64, scratch_operands = 0 : i64, tpu.core_type = #tpu.core_type<tc>, window_params = [{transform_indices = @transform_0, window_bounds = array<i64: 1, 1, 18, 18, 8>}, {transform_indices = @transform_1, window_bounds = array<i64: 3, 3, 8, 128>}, {transform_indices = @transform_2, window_bounds = array<i64: 1, 128>}, {transform_indices = @transform_3, window_bounds = array<i64: 1, 256, 128>}, {transform_indices = @transform_4, window_bounds = array<i64: 1, 1, 128>}, {transform_indices = @transform_5, window_bounds = array<i64: 1, 1, 128>}]} {
    %cst = arith.constant 0.000000e+00 : f32
    %0 = vector.broadcast %cst : f32 to vector<256x128xf32>
    %c0 = arith.constant 0 : index
    %c0_0 = arith.constant 0 : index
    %c0_1 = arith.constant 0 : index
    %c0_2 = arith.constant 0 : index
    %c0_3 = arith.constant 0 : index
    %1 = vector.load %arg2[%c0, %c0_0, %c0_1, %c0_2, %c0_3] : memref<1x1x18x18x8xbf16, #tpu.memory_space<vmem>>, vector<1x1x16x16x8xbf16>
    %2 = vector.shape_cast %1 : vector<1x1x16x16x8xbf16> to vector<16x16x8xbf16>
    %3 = vector.shape_cast %2 : vector<16x16x8xbf16> to vector<256x8xbf16>
    %c0_4 = arith.constant 0 : index
    %c0_5 = arith.constant 0 : index
    %c0_6 = arith.constant 0 : index
    %c0_7 = arith.constant 0 : index
    %4 = vector.load %arg3[%c0_4, %c0_5, %c0_6, %c0_7] : memref<3x3x8x128xbf16, #tpu.memory_space<vmem>>, vector<1x1x8x128xbf16>
    %5 = vector.shape_cast %4 : vector<1x1x8x128xbf16> to vector<8x128xbf16>
    %cst_8 = arith.constant dense<0.000000e+00> : vector<256x128xf32>
    %6 = tpu.matmul %3, %5, %cst_8 {dimension_numbers = #tpu.dot_dimension_numbers<[1], [0], [0], [1], [0, 0, 1, 1], [], []>} : vector<256x8xbf16>, vector<8x128xbf16>, vector<256x128xf32> -> vector<256x128xf32>
    %7 = arith.addf %0, %6 : vector<256x128xf32>
    %c0_9 = arith.constant 0 : index
    %c0_10 = arith.constant 0 : index
    %c0_11 = arith.constant 0 : index
    %c1 = arith.constant 1 : index
    %c0_12 = arith.constant 0 : index
    %8 = vector.load %arg2[%c0_9, %c0_10, %c0_11, %c1, %c0_12] : memref<1x1x18x18x8xbf16, #tpu.memory_space<vmem>>, vector<1x1x16x16x8xbf16>
    %9 = vector.shape_cast %8 : vector<1x1x16x16x8xbf16> to vector<16x16x8xbf16>
    %10 = vector.shape_cast %9 : vector<16x16x8xbf16> to vector<256x8xbf16>
    %c0_13 = arith.constant 0 : index
    %c1_14 = arith.constant 1 : index
    %c0_15 = arith.constant 0 : index
    %c0_16 = arith.constant 0 : index
    %11 = vector.load %arg3[%c0_13, %c1_14, %c0_15, %c0_16] : memref<3x3x8x128xbf16, #tpu.memory_space<vmem>>, vector<1x1x8x128xbf16>
    %12 = vector.shape_cast %11 : vector<1x1x8x128xbf16> to vector<8x128xbf16>
    %cst_17 = arith.constant dense<0.000000e+00> : vector<256x128xf32>
    %13 = tpu.matmul %10, %12, %cst_17 {dimension_numbers = #tpu.dot_dimension_numbers<[1], [0], [0], [1], [0, 0, 1, 1], [], []>} : vector<256x8xbf16>, vector<8x128xbf16>, vector<256x128xf32> -> vector<256x128xf32>
    %14 = arith.addf %7, %13 : vector<256x128xf32>
    %c0_18 = arith.constant 0 : index
    %c0_19 = arith.constant 0 : index
    %c0_20 = arith.constant 0 : index
    %c2 = arith.constant 2 : index
    %c0_21 = arith.constant 0 : index
    %15 = vector.load %arg2[%c0_18, %c0_19, %c0_20, %c2, %c0_21] : memref<1x1x18x18x8xbf16, #tpu.memory_space<vmem>>, vector<1x1x16x16x8xbf16>
    %16 = vector.shape_cast %15 : vector<1x1x16x16x8xbf16> to vector<16x16x8xbf16>
    %17 = vector.shape_cast %16 : vector<16x16x8xbf16> to vector<256x8xbf16>
    %c0_22 = arith.constant 0 : index
    %c2_23 = arith.constant 2 : index
    %c0_24 = arith.constant 0 : index
    %c0_25 = arith.constant 0 : index
    %18 = vector.load %arg3[%c0_22, %c2_23, %c0_24, %c0_25] : memref<3x3x8x128xbf16, #tpu.memory_space<vmem>>, vector<1x1x8x128xbf16>
    %19 = vector.shape_cast %18 : vector<1x1x8x128xbf16> to vector<8x128xbf16>
    %cst_26 = arith.constant dense<0.000000e+00> : vector<256x128xf32>
    %20 = tpu.matmul %17, %19, %cst_26 {dimension_numbers = #tpu.dot_dimension_numbers<[1], [0], [0], [1], [0, 0, 1, 1], [], []>} : vector<256x8xbf16>, vector<8x128xbf16>, vector<256x128xf32> -> vector<256x128xf32>
    %21 = arith.addf %14, %20 : vector<256x128xf32>
    %c0_27 = arith.constant 0 : index
    %c0_28 = arith.constant 0 : index
    %c1_29 = arith.constant 1 : index
    %c0_30 = arith.constant 0 : index
    %c0_31 = arith.constant 0 : index
    %22 = vector.load %arg2[%c0_27, %c0_28, %c1_29, %c0_30, %c0_31] : memref<1x1x18x18x8xbf16, #tpu.memory_space<vmem>>, vector<1x1x16x16x8xbf16>
    %23 = vector.shape_cast %22 : vector<1x1x16x16x8xbf16> to vector<16x16x8xbf16>
    %24 = vector.shape_cast %23 : vector<16x16x8xbf16> to vector<256x8xbf16>
    %c1_32 = arith.constant 1 : index
    %c0_33 = arith.constant 0 : index
    %c0_34 = arith.constant 0 : index
    %c0_35 = arith.constant 0 : index
    %25 = vector.load %arg3[%c1_32, %c0_33, %c0_34, %c0_35] : memref<3x3x8x128xbf16, #tpu.memory_space<vmem>>, vector<1x1x8x128xbf16>
    %26 = vector.shape_cast %25 : vector<1x1x8x128xbf16> to vector<8x128xbf16>
    %cst_36 = arith.constant dense<0.000000e+00> : vector<256x128xf32>
    %27 = tpu.matmul %24, %26, %cst_36 {dimension_numbers = #tpu.dot_dimension_numbers<[1], [0], [0], [1], [0, 0, 1, 1], [], []>} : vector<256x8xbf16>, vector<8x128xbf16>, vector<256x128xf32> -> vector<256x128xf32>
    %28 = arith.addf %21, %27 : vector<256x128xf32>
    %c0_37 = arith.constant 0 : index
    %c0_38 = arith.constant 0 : index
    %c1_39 = arith.constant 1 : index
    %c1_40 = arith.constant 1 : index
    %c0_41 = arith.constant 0 : index
    %29 = vector.load %arg2[%c0_37, %c0_38, %c1_39, %c1_40, %c0_41] : memref<1x1x18x18x8xbf16, #tpu.memory_space<vmem>>, vector<1x1x16x16x8xbf16>
    %30 = vector.shape_cast %29 : vector<1x1x16x16x8xbf16> to vector<16x16x8xbf16>
    %31 = vector.shape_cast %30 : vector<16x16x8xbf16> to vector<256x8xbf16>
    %c1_42 = arith.constant 1 : index
    %c1_43 = arith.constant 1 : index
    %c0_44 = arith.constant 0 : index
    %c0_45 = arith.constant 0 : index
    %32 = vector.load %arg3[%c1_42, %c1_43, %c0_44, %c0_45] : memref<3x3x8x128xbf16, #tpu.memory_space<vmem>>, vector<1x1x8x128xbf16>
    %33 = vector.shape_cast %32 : vector<1x1x8x128xbf16> to vector<8x128xbf16>
    %cst_46 = arith.constant dense<0.000000e+00> : vector<256x128xf32>
    %34 = tpu.matmul %31, %33, %cst_46 {dimension_numbers = #tpu.dot_dimension_numbers<[1], [0], [0], [1], [0, 0, 1, 1], [], []>} : vector<256x8xbf16>, vector<8x128xbf16>, vector<256x128xf32> -> vector<256x128xf32>
    %35 = arith.addf %28, %34 : vector<256x128xf32>
    %c0_47 = arith.constant 0 : index
    %c0_48 = arith.constant 0 : index
    %c1_49 = arith.constant 1 : index
    %c2_50 = arith.constant 2 : index
    %c0_51 = arith.constant 0 : index
    %36 = vector.load %arg2[%c0_47, %c0_48, %c1_49, %c2_50, %c0_51] : memref<1x1x18x18x8xbf16, #tpu.memory_space<vmem>>, vector<1x1x16x16x8xbf16>
    %37 = vector.shape_cast %36 : vector<1x1x16x16x8xbf16> to vector<16x16x8xbf16>
    %38 = vector.shape_cast %37 : vector<16x16x8xbf16> to vector<256x8xbf16>
    %c1_52 = arith.constant 1 : index
    %c2_53 = arith.constant 2 : index
    %c0_54 = arith.constant 0 : index
    %c0_55 = arith.constant 0 : index
    %39 = vector.load %arg3[%c1_52, %c2_53, %c0_54, %c0_55] : memref<3x3x8x128xbf16, #tpu.memory_space<vmem>>, vector<1x1x8x128xbf16>
    %40 = vector.shape_cast %39 : vector<1x1x8x128xbf16> to vector<8x128xbf16>
    %cst_56 = arith.constant dense<0.000000e+00> : vector<256x128xf32>
    %41 = tpu.matmul %38, %40, %cst_56 {dimension_numbers = #tpu.dot_dimension_numbers<[1], [0], [0], [1], [0, 0, 1, 1], [], []>} : vector<256x8xbf16>, vector<8x128xbf16>, vector<256x128xf32> -> vector<256x128xf32>
    %42 = arith.addf %35, %41 : vector<256x128xf32>
    %c0_57 = arith.constant 0 : index
    %c0_58 = arith.constant 0 : index
    %c2_59 = arith.constant 2 : index
    %c0_60 = arith.constant 0 : index
    %c0_61 = arith.constant 0 : index
    %43 = vector.load %arg2[%c0_57, %c0_58, %c2_59, %c0_60, %c0_61] : memref<1x1x18x18x8xbf16, #tpu.memory_space<vmem>>, vector<1x1x16x16x8xbf16>
    %44 = vector.shape_cast %43 : vector<1x1x16x16x8xbf16> to vector<16x16x8xbf16>
    %45 = vector.shape_cast %44 : vector<16x16x8xbf16> to vector<256x8xbf16>
    %c2_62 = arith.constant 2 : index
    %c0_63 = arith.constant 0 : index
    %c0_64 = arith.constant 0 : index
    %c0_65 = arith.constant 0 : index
    %46 = vector.load %arg3[%c2_62, %c0_63, %c0_64, %c0_65] : memref<3x3x8x128xbf16, #tpu.memory_space<vmem>>, vector<1x1x8x128xbf16>
    %47 = vector.shape_cast %46 : vector<1x1x8x128xbf16> to vector<8x128xbf16>
    %cst_66 = arith.constant dense<0.000000e+00> : vector<256x128xf32>
    %48 = tpu.matmul %45, %47, %cst_66 {dimension_numbers = #tpu.dot_dimension_numbers<[1], [0], [0], [1], [0, 0, 1, 1], [], []>} : vector<256x8xbf16>, vector<8x128xbf16>, vector<256x128xf32> -> vector<256x128xf32>
    %49 = arith.addf %42, %48 : vector<256x128xf32>
    %c0_67 = arith.constant 0 : index
    %c0_68 = arith.constant 0 : index
    %c2_69 = arith.constant 2 : index
    %c1_70 = arith.constant 1 : index
    %c0_71 = arith.constant 0 : index
    %50 = vector.load %arg2[%c0_67, %c0_68, %c2_69, %c1_70, %c0_71] : memref<1x1x18x18x8xbf16, #tpu.memory_space<vmem>>, vector<1x1x16x16x8xbf16>
    %51 = vector.shape_cast %50 : vector<1x1x16x16x8xbf16> to vector<16x16x8xbf16>
    %52 = vector.shape_cast %51 : vector<16x16x8xbf16> to vector<256x8xbf16>
    %c2_72 = arith.constant 2 : index
    %c1_73 = arith.constant 1 : index
    %c0_74 = arith.constant 0 : index
    %c0_75 = arith.constant 0 : index
    %53 = vector.load %arg3[%c2_72, %c1_73, %c0_74, %c0_75] : memref<3x3x8x128xbf16, #tpu.memory_space<vmem>>, vector<1x1x8x128xbf16>
    %54 = vector.shape_cast %53 : vector<1x1x8x128xbf16> to vector<8x128xbf16>
    %cst_76 = arith.constant dense<0.000000e+00> : vector<256x128xf32>
    %55 = tpu.matmul %52, %54, %cst_76 {dimension_numbers = #tpu.dot_dimension_numbers<[1], [0], [0], [1], [0, 0, 1, 1], [], []>} : vector<256x8xbf16>, vector<8x128xbf16>, vector<256x128xf32> -> vector<256x128xf32>
    %56 = arith.addf %49, %55 : vector<256x128xf32>
    %c0_77 = arith.constant 0 : index
    %c0_78 = arith.constant 0 : index
    %c2_79 = arith.constant 2 : index
    %c2_80 = arith.constant 2 : index
    %c0_81 = arith.constant 0 : index
    %57 = vector.load %arg2[%c0_77, %c0_78, %c2_79, %c2_80, %c0_81] : memref<1x1x18x18x8xbf16, #tpu.memory_space<vmem>>, vector<1x1x16x16x8xbf16>
    %58 = vector.shape_cast %57 : vector<1x1x16x16x8xbf16> to vector<16x16x8xbf16>
    %59 = vector.shape_cast %58 : vector<16x16x8xbf16> to vector<256x8xbf16>
    %c2_82 = arith.constant 2 : index
    %c2_83 = arith.constant 2 : index
    %c0_84 = arith.constant 0 : index
    %c0_85 = arith.constant 0 : index
    %60 = vector.load %arg3[%c2_82, %c2_83, %c0_84, %c0_85] : memref<3x3x8x128xbf16, #tpu.memory_space<vmem>>, vector<1x1x8x128xbf16>
    %61 = vector.shape_cast %60 : vector<1x1x8x128xbf16> to vector<8x128xbf16>
    %cst_86 = arith.constant dense<0.000000e+00> : vector<256x128xf32>
    %62 = tpu.matmul %59, %61, %cst_86 {dimension_numbers = #tpu.dot_dimension_numbers<[1], [0], [0], [1], [0, 0, 1, 1], [], []>} : vector<256x8xbf16>, vector<8x128xbf16>, vector<256x128xf32> -> vector<256x128xf32>
    %63 = arith.addf %56, %62 : vector<256x128xf32>
    %c0_87 = arith.constant 0 : index
    %c0_88 = arith.constant 0 : index
    %64 = vector.load %arg4[%c0_87, %c0_88] : memref<1x128xf32, #tpu.memory_space<vmem>>, vector<1x128xf32>
    %65 = vector.broadcast %64 : vector<1x128xf32> to vector<256x128xf32>
    %66 = arith.addf %63, %65 : vector<256x128xf32>
    %67 = vector.shape_cast %66 : vector<256x128xf32> to vector<1x256x128xf32>
    %c0_89 = arith.constant 0 : index
    %c0_90 = arith.constant 0 : index
    %c0_91 = arith.constant 0 : index
    %68 = vector.load %arg5[%c0_89, %c0_90, %c0_91] : memref<1x256x128xf32, #tpu.memory_space<vmem>>, vector<1x256x128xf32>
    tpu.vector_store %arg5[%c0_89, %c0_90, %c0_91], %67 {strides = array<i32>} : memref<1x256x128xf32, #tpu.memory_space<vmem>>, vector<1x256x128xf32>,
    %cst_92 = arith.constant dense<0.000000e+00> : vector<128xf32>
    %69 = vector.multi_reduction <add>, %66, %cst_92 [0] : vector<256x128xf32> to vector<128xf32>
    %70 = vector.shape_cast %69 : vector<128xf32> to vector<1x128xf32>
    %71 = vector.shape_cast %70 : vector<1x128xf32> to vector<1x1x128xf32>
    %c0_93 = arith.constant 0 : index
    %c0_94 = arith.constant 0 : index
    %c0_95 = arith.constant 0 : index
    %72 = vector.load %arg6[%c0_93, %c0_94, %c0_95] : memref<1x1x128xf32, #tpu.memory_space<vmem>>, vector<1x1x128xf32>
    tpu.vector_store %arg6[%c0_93, %c0_94, %c0_95], %71 {strides = array<i32>} : memref<1x1x128xf32, #tpu.memory_space<vmem>>, vector<1x1x128xf32>,
    %73 = arith.mulf %66, %66 : vector<256x128xf32>
    %cst_96 = arith.constant dense<0.000000e+00> : vector<128xf32>
    %74 = vector.multi_reduction <add>, %73, %cst_96 [0] : vector<256x128xf32> to vector<128xf32>
    %75 = vector.shape_cast %74 : vector<128xf32> to vector<1x128xf32>
    %76 = vector.shape_cast %75 : vector<1x128xf32> to vector<1x1x128xf32>
    %c0_97 = arith.constant 0 : index
    %c0_98 = arith.constant 0 : index
    %c0_99 = arith.constant 0 : index
    %77 = vector.load %arg7[%c0_97, %c0_98, %c0_99] : memref<1x1x128xf32, #tpu.memory_space<vmem>>, vector<1x1x128xf32>
    tpu.vector_store %arg7[%c0_97, %c0_98, %c0_99], %76 {strides = array<i32>} : memref<1x1x128xf32, #tpu.memory_space<vmem>>, vector<1x1x128xf32>,
    return
  }
  func.func @transform_0(%arg0: i32, %arg1: i32) -> (i32, i32, i32, i32, i32) {
    %c0_i32 = arith.constant 0 : i32
    %c0_i32_0 = arith.constant 0 : i32
    %c0_i32_1 = arith.constant 0 : i32
    %c0_i32_2 = arith.constant 0 : i32
    %c0_i32_3 = arith.constant 0 : i32
    return %arg0, %c0_i32, %c0_i32_0, %c0_i32_1, %c0_i32_2 : i32, i32, i32, i32, i32
  }
  func.func @transform_1(%arg0: i32, %arg1: i32) -> (i32, i32, i32, i32) {
    %c0_i32 = arith.constant 0 : i32
    %c0_i32_0 = arith.constant 0 : i32
    %c0_i32_1 = arith.constant 0 : i32
    %c0_i32_2 = arith.constant 0 : i32
    return %c0_i32, %c0_i32_0, %c0_i32_1, %arg1 : i32, i32, i32, i32
  }
  func.func @transform_2(%arg0: i32, %arg1: i32) -> (i32, i32) {
    %c0_i32 = arith.constant 0 : i32
    %c0_i32_0 = arith.constant 0 : i32
    return %c0_i32, %arg1 : i32, i32
  }
  func.func @transform_3(%arg0: i32, %arg1: i32) -> (i32, i32, i32) {
    %c0_i32 = arith.constant 0 : i32
    %c0_i32_0 = arith.constant 0 : i32
    return %arg0, %c0_i32, %arg1 : i32, i32, i32
  }
  func.func @transform_4(%arg0: i32, %arg1: i32) -> (i32, i32, i32) {
    %c0_i32 = arith.constant 0 : i32
    %c0_i32_0 = arith.constant 0 : i32
    return %arg0, %c0_i32, %arg1 : i32, i32, i32
  }
  func.func @transform_5(%arg0: i32, %arg1: i32) -> (i32, i32, i32) {
    %c0_i32 = arith.constant 0 : i32
    %c0_i32_0 = arith.constant 0 : i32
    return %arg0, %c0_i32, %arg1 : i32, i32, i32
  }
}

module attributes {stable_mosaic.version = 11 : i64} {
  func.func @_affine_relu_kernel(%arg0: i32, %arg1: i32, %arg2: memref<1x256x128xf32, #tpu.memory_space<vmem>>, %arg3: memref<1x128xf32, #tpu.memory_space<vmem>>, %arg4: memref<1x128xf32, #tpu.memory_space<vmem>>, %arg5: memref<1x256x128xbf16, #tpu.memory_space<vmem>>) attributes {dimension_semantics = [#tpu.dimension_semantics<parallel>, #tpu.dimension_semantics<parallel>], iteration_bounds = array<i64: 2, 1>, scalar_prefetch = 0 : i64, scratch_operands = 0 : i64, tpu.core_type = #tpu.core_type<tc>, window_params = [{transform_indices = @transform_0, window_bounds = array<i64: 1, 256, 128>}, {pipeline_mode = #tpu.pipeline_mode<synchronous>, transform_indices = @transform_1, window_bounds = array<i64: 1, 128>}, {pipeline_mode = #tpu.pipeline_mode<synchronous>, transform_indices = @transform_2, window_bounds = array<i64: 1, 128>}, {transform_indices = @transform_3, window_bounds = array<i64: 1, 256, 128>}]} {
    %c0 = arith.constant 0 : index
    %c0_0 = arith.constant 0 : index
    %c0_1 = arith.constant 0 : index
    %0 = vector.load %arg2[%c0, %c0_0, %c0_1] : memref<1x256x128xf32, #tpu.memory_space<vmem>>, vector<1x256x128xf32>
    %c0_2 = arith.constant 0 : index
    %c0_3 = arith.constant 0 : index
    %1 = vector.load %arg3[%c0_2, %c0_3] : memref<1x128xf32, #tpu.memory_space<vmem>>, vector<1x128xf32>
    %2 = vector.shape_cast %1 : vector<1x128xf32> to vector<1x1x128xf32>
    %3 = vector.broadcast %2 : vector<1x1x128xf32> to vector<1x256x128xf32>
    %4 = arith.mulf %0, %3 : vector<1x256x128xf32>
    %c0_4 = arith.constant 0 : index
    %c0_5 = arith.constant 0 : index
    %5 = vector.load %arg4[%c0_4, %c0_5] : memref<1x128xf32, #tpu.memory_space<vmem>>, vector<1x128xf32>
    %6 = vector.shape_cast %5 : vector<1x128xf32> to vector<1x1x128xf32>
    %7 = vector.broadcast %6 : vector<1x1x128xf32> to vector<1x256x128xf32>
    %8 = arith.addf %4, %7 : vector<1x256x128xf32>
    %cst = arith.constant 0.000000e+00 : f32
    %9 = vector.broadcast %cst : f32 to vector<1x256x128xf32>
    %10 = arith.maximumf %8, %9 : vector<1x256x128xf32>
    %11 = arith.truncf %10 : vector<1x256x128xf32> to vector<1x256x128xbf16>
    %c0_6 = arith.constant 0 : index
    %c0_7 = arith.constant 0 : index
    %c0_8 = arith.constant 0 : index
    %12 = vector.load %arg5[%c0_6, %c0_7, %c0_8] : memref<1x256x128xbf16, #tpu.memory_space<vmem>>, vector<1x256x128xbf16>
    tpu.vector_store %arg5[%c0_6, %c0_7, %c0_8], %11 {strides = array<i32>} : memref<1x256x128xbf16, #tpu.memory_space<vmem>>, vector<1x256x128xbf16>,
    return
  }
  func.func @transform_0(%arg0: i32, %arg1: i32) -> (i32, i32, i32) {
    %c0_i32 = arith.constant 0 : i32
    %c0_i32_0 = arith.constant 0 : i32
    return %arg0, %arg1, %c0_i32 : i32, i32, i32
  }
  func.func @transform_1(%arg0: i32, %arg1: i32) -> (i32, i32) {
    %c0_i32 = arith.constant 0 : i32
    %c0_i32_0 = arith.constant 0 : i32
    %c0_i32_1 = arith.constant 0 : i32
    return %c0_i32, %c0_i32_0 : i32, i32
  }
  func.func @transform_2(%arg0: i32, %arg1: i32) -> (i32, i32) {
    %c0_i32 = arith.constant 0 : i32
    %c0_i32_0 = arith.constant 0 : i32
    %c0_i32_1 = arith.constant 0 : i32
    return %c0_i32, %c0_i32_0 : i32, i32
  }
  func.func @transform_3(%arg0: i32, %arg1: i32) -> (i32, i32, i32) {
    %c0_i32 = arith.constant 0 : i32
    %c0_i32_0 = arith.constant 0 : i32
    return %arg0, %arg1, %c0_i32 : i32, i32, i32
  }
}

module attributes {stable_mosaic.version = 11 : i64} {
  func.func @kernel(%arg0: i32, %arg1: i32, %arg2: memref<1x4x9x9x128xbf16, #tpu.memory_space<vmem>>, %arg3: memref<3x3x128x128xbf16, #tpu.memory_space<vmem>>, %arg4: memref<1x128xf32, #tpu.memory_space<vmem>>, %arg5: memref<1x64x128xf32, #tpu.memory_space<vmem>>, %arg6: memref<1x1x128xf32, #tpu.memory_space<vmem>>, %arg7: memref<1x1x128xf32, #tpu.memory_space<vmem>>) attributes {dimension_semantics = [#tpu.dimension_semantics<parallel>, #tpu.dimension_semantics<parallel>], iteration_bounds = array<i64: 2, 1>, scalar_prefetch = 0 : i64, scratch_operands = 0 : i64, tpu.core_type = #tpu.core_type<tc>, window_params = [{transform_indices = @transform_0, window_bounds = array<i64: 1, 4, 9, 9, 128>}, {transform_indices = @transform_1, window_bounds = array<i64: 3, 3, 128, 128>}, {transform_indices = @transform_2, window_bounds = array<i64: 1, 128>}, {transform_indices = @transform_3, window_bounds = array<i64: 1, 64, 128>}, {transform_indices = @transform_4, window_bounds = array<i64: 1, 1, 128>}, {transform_indices = @transform_5, window_bounds = array<i64: 1, 1, 128>}]} {
    %cst = arith.constant 0.000000e+00 : f32
    %0 = vector.broadcast %cst : f32 to vector<64x128xf32>
    %c0 = arith.constant 0 : index
    %c0_0 = arith.constant 0 : index
    %c0_1 = arith.constant 0 : index
    %c0_2 = arith.constant 0 : index
    %c0_3 = arith.constant 0 : index
    %1 = vector.load %arg2[%c0, %c0_0, %c0_1, %c0_2, %c0_3] : memref<1x4x9x9x128xbf16, #tpu.memory_space<vmem>>, vector<1x1x8x8x128xbf16>
    %2 = vector.shape_cast %1 : vector<1x1x8x8x128xbf16> to vector<8x8x128xbf16>
    %3 = vector.shape_cast %2 : vector<8x8x128xbf16> to vector<64x128xbf16>
    %c0_4 = arith.constant 0 : index
    %c0_5 = arith.constant 0 : index
    %c0_6 = arith.constant 0 : index
    %c0_7 = arith.constant 0 : index
    %4 = vector.load %arg3[%c0_4, %c0_5, %c0_6, %c0_7] : memref<3x3x128x128xbf16, #tpu.memory_space<vmem>>, vector<1x1x128x128xbf16>
    %5 = vector.shape_cast %4 : vector<1x1x128x128xbf16> to vector<128x128xbf16>
    %cst_8 = arith.constant dense<0.000000e+00> : vector<64x128xf32>
    %6 = tpu.matmul %3, %5, %cst_8 {dimension_numbers = #tpu.dot_dimension_numbers<[1], [0], [0], [1], [0, 0, 1, 1], [], []>} : vector<64x128xbf16>, vector<128x128xbf16>, vector<64x128xf32> -> vector<64x128xf32>
    %7 = arith.addf %0, %6 : vector<64x128xf32>
    %c0_9 = arith.constant 0 : index
    %c1 = arith.constant 1 : index
    %c0_10 = arith.constant 0 : index
    %c0_11 = arith.constant 0 : index
    %c0_12 = arith.constant 0 : index
    %8 = vector.load %arg2[%c0_9, %c1, %c0_10, %c0_11, %c0_12] : memref<1x4x9x9x128xbf16, #tpu.memory_space<vmem>>, vector<1x1x8x8x128xbf16>
    %9 = vector.shape_cast %8 : vector<1x1x8x8x128xbf16> to vector<8x8x128xbf16>
    %10 = vector.shape_cast %9 : vector<8x8x128xbf16> to vector<64x128xbf16>
    %c0_13 = arith.constant 0 : index
    %c1_14 = arith.constant 1 : index
    %c0_15 = arith.constant 0 : index
    %c0_16 = arith.constant 0 : index
    %11 = vector.load %arg3[%c0_13, %c1_14, %c0_15, %c0_16] : memref<3x3x128x128xbf16, #tpu.memory_space<vmem>>, vector<1x1x128x128xbf16>
    %12 = vector.shape_cast %11 : vector<1x1x128x128xbf16> to vector<128x128xbf16>
    %cst_17 = arith.constant dense<0.000000e+00> : vector<64x128xf32>
    %13 = tpu.matmul %10, %12, %cst_17 {dimension_numbers = #tpu.dot_dimension_numbers<[1], [0], [0], [1], [0, 0, 1, 1], [], []>} : vector<64x128xbf16>, vector<128x128xbf16>, vector<64x128xf32> -> vector<64x128xf32>
    %14 = arith.addf %7, %13 : vector<64x128xf32>
    %c0_18 = arith.constant 0 : index
    %c0_19 = arith.constant 0 : index
    %c0_20 = arith.constant 0 : index
    %c1_21 = arith.constant 1 : index
    %c0_22 = arith.constant 0 : index
    %15 = vector.load %arg2[%c0_18, %c0_19, %c0_20, %c1_21, %c0_22] : memref<1x4x9x9x128xbf16, #tpu.memory_space<vmem>>, vector<1x1x8x8x128xbf16>
    %16 = vector.shape_cast %15 : vector<1x1x8x8x128xbf16> to vector<8x8x128xbf16>
    %17 = vector.shape_cast %16 : vector<8x8x128xbf16> to vector<64x128xbf16>
    %c0_23 = arith.constant 0 : index
    %c2 = arith.constant 2 : index
    %c0_24 = arith.constant 0 : index
    %c0_25 = arith.constant 0 : index
    %18 = vector.load %arg3[%c0_23, %c2, %c0_24, %c0_25] : memref<3x3x128x128xbf16, #tpu.memory_space<vmem>>, vector<1x1x128x128xbf16>
    %19 = vector.shape_cast %18 : vector<1x1x128x128xbf16> to vector<128x128xbf16>
    %cst_26 = arith.constant dense<0.000000e+00> : vector<64x128xf32>
    %20 = tpu.matmul %17, %19, %cst_26 {dimension_numbers = #tpu.dot_dimension_numbers<[1], [0], [0], [1], [0, 0, 1, 1], [], []>} : vector<64x128xbf16>, vector<128x128xbf16>, vector<64x128xf32> -> vector<64x128xf32>
    %21 = arith.addf %14, %20 : vector<64x128xf32>
    %c0_27 = arith.constant 0 : index
    %c2_28 = arith.constant 2 : index
    %c0_29 = arith.constant 0 : index
    %c0_30 = arith.constant 0 : index
    %c0_31 = arith.constant 0 : index
    %22 = vector.load %arg2[%c0_27, %c2_28, %c0_29, %c0_30, %c0_31] : memref<1x4x9x9x128xbf16, #tpu.memory_space<vmem>>, vector<1x1x8x8x128xbf16>
    %23 = vector.shape_cast %22 : vector<1x1x8x8x128xbf16> to vector<8x8x128xbf16>
    %24 = vector.shape_cast %23 : vector<8x8x128xbf16> to vector<64x128xbf16>
    %c1_32 = arith.constant 1 : index
    %c0_33 = arith.constant 0 : index
    %c0_34 = arith.constant 0 : index
    %c0_35 = arith.constant 0 : index
    %25 = vector.load %arg3[%c1_32, %c0_33, %c0_34, %c0_35] : memref<3x3x128x128xbf16, #tpu.memory_space<vmem>>, vector<1x1x128x128xbf16>
    %26 = vector.shape_cast %25 : vector<1x1x128x128xbf16> to vector<128x128xbf16>
    %cst_36 = arith.constant dense<0.000000e+00> : vector<64x128xf32>
    %27 = tpu.matmul %24, %26, %cst_36 {dimension_numbers = #tpu.dot_dimension_numbers<[1], [0], [0], [1], [0, 0, 1, 1], [], []>} : vector<64x128xbf16>, vector<128x128xbf16>, vector<64x128xf32> -> vector<64x128xf32>
    %28 = arith.addf %21, %27 : vector<64x128xf32>
    %c0_37 = arith.constant 0 : index
    %c3 = arith.constant 3 : index
    %c0_38 = arith.constant 0 : index
    %c0_39 = arith.constant 0 : index
    %c0_40 = arith.constant 0 : index
    %29 = vector.load %arg2[%c0_37, %c3, %c0_38, %c0_39, %c0_40] : memref<1x4x9x9x128xbf16, #tpu.memory_space<vmem>>, vector<1x1x8x8x128xbf16>
    %30 = vector.shape_cast %29 : vector<1x1x8x8x128xbf16> to vector<8x8x128xbf16>
    %31 = vector.shape_cast %30 : vector<8x8x128xbf16> to vector<64x128xbf16>
    %c1_41 = arith.constant 1 : index
    %c1_42 = arith.constant 1 : index
    %c0_43 = arith.constant 0 : index
    %c0_44 = arith.constant 0 : index
    %32 = vector.load %arg3[%c1_41, %c1_42, %c0_43, %c0_44] : memref<3x3x128x128xbf16, #tpu.memory_space<vmem>>, vector<1x1x128x128xbf16>
    %33 = vector.shape_cast %32 : vector<1x1x128x128xbf16> to vector<128x128xbf16>
    %cst_45 = arith.constant dense<0.000000e+00> : vector<64x128xf32>
    %34 = tpu.matmul %31, %33, %cst_45 {dimension_numbers = #tpu.dot_dimension_numbers<[1], [0], [0], [1], [0, 0, 1, 1], [], []>} : vector<64x128xbf16>, vector<128x128xbf16>, vector<64x128xf32> -> vector<64x128xf32>
    %35 = arith.addf %28, %34 : vector<64x128xf32>
    %c0_46 = arith.constant 0 : index
    %c2_47 = arith.constant 2 : index
    %c0_48 = arith.constant 0 : index
    %c1_49 = arith.constant 1 : index
    %c0_50 = arith.constant 0 : index
    %36 = vector.load %arg2[%c0_46, %c2_47, %c0_48, %c1_49, %c0_50] : memref<1x4x9x9x128xbf16, #tpu.memory_space<vmem>>, vector<1x1x8x8x128xbf16>
    %37 = vector.shape_cast %36 : vector<1x1x8x8x128xbf16> to vector<8x8x128xbf16>
    %38 = vector.shape_cast %37 : vector<8x8x128xbf16> to vector<64x128xbf16>
    %c1_51 = arith.constant 1 : index
    %c2_52 = arith.constant 2 : index
    %c0_53 = arith.constant 0 : index
    %c0_54 = arith.constant 0 : index
    %39 = vector.load %arg3[%c1_51, %c2_52, %c0_53, %c0_54] : memref<3x3x128x128xbf16, #tpu.memory_space<vmem>>, vector<1x1x128x128xbf16>
    %40 = vector.shape_cast %39 : vector<1x1x128x128xbf16> to vector<128x128xbf16>
    %cst_55 = arith.constant dense<0.000000e+00> : vector<64x128xf32>
    %41 = tpu.matmul %38, %40, %cst_55 {dimension_numbers = #tpu.dot_dimension_numbers<[1], [0], [0], [1], [0, 0, 1, 1], [], []>} : vector<64x128xbf16>, vector<128x128xbf16>, vector<64x128xf32> -> vector<64x128xf32>
    %42 = arith.addf %35, %41 : vector<64x128xf32>
    %c0_56 = arith.constant 0 : index
    %c0_57 = arith.constant 0 : index
    %c1_58 = arith.constant 1 : index
    %c0_59 = arith.constant 0 : index
    %c0_60 = arith.constant 0 : index
    %43 = vector.load %arg2[%c0_56, %c0_57, %c1_58, %c0_59, %c0_60] : memref<1x4x9x9x128xbf16, #tpu.memory_space<vmem>>, vector<1x1x8x8x128xbf16>
    %44 = vector.shape_cast %43 : vector<1x1x8x8x128xbf16> to vector<8x8x128xbf16>
    %45 = vector.shape_cast %44 : vector<8x8x128xbf16> to vector<64x128xbf16>
    %c2_61 = arith.constant 2 : index
    %c0_62 = arith.constant 0 : index
    %c0_63 = arith.constant 0 : index
    %c0_64 = arith.constant 0 : index
    %46 = vector.load %arg3[%c2_61, %c0_62, %c0_63, %c0_64] : memref<3x3x128x128xbf16, #tpu.memory_space<vmem>>, vector<1x1x128x128xbf16>
    %47 = vector.shape_cast %46 : vector<1x1x128x128xbf16> to vector<128x128xbf16>
    %cst_65 = arith.constant dense<0.000000e+00> : vector<64x128xf32>
    %48 = tpu.matmul %45, %47, %cst_65 {dimension_numbers = #tpu.dot_dimension_numbers<[1], [0], [0], [1], [0, 0, 1, 1], [], []>} : vector<64x128xbf16>, vector<128x128xbf16>, vector<64x128xf32> -> vector<64x128xf32>
    %49 = arith.addf %42, %48 : vector<64x128xf32>
    %c0_66 = arith.constant 0 : index
    %c1_67 = arith.constant 1 : index
    %c1_68 = arith.constant 1 : index
    %c0_69 = arith.constant 0 : index
    %c0_70 = arith.constant 0 : index
    %50 = vector.load %arg2[%c0_66, %c1_67, %c1_68, %c0_69, %c0_70] : memref<1x4x9x9x128xbf16, #tpu.memory_space<vmem>>, vector<1x1x8x8x128xbf16>
    %51 = vector.shape_cast %50 : vector<1x1x8x8x128xbf16> to vector<8x8x128xbf16>
    %52 = vector.shape_cast %51 : vector<8x8x128xbf16> to vector<64x128xbf16>
    %c2_71 = arith.constant 2 : index
    %c1_72 = arith.constant 1 : index
    %c0_73 = arith.constant 0 : index
    %c0_74 = arith.constant 0 : index
    %53 = vector.load %arg3[%c2_71, %c1_72, %c0_73, %c0_74] : memref<3x3x128x128xbf16, #tpu.memory_space<vmem>>, vector<1x1x128x128xbf16>
    %54 = vector.shape_cast %53 : vector<1x1x128x128xbf16> to vector<128x128xbf16>
    %cst_75 = arith.constant dense<0.000000e+00> : vector<64x128xf32>
    %55 = tpu.matmul %52, %54, %cst_75 {dimension_numbers = #tpu.dot_dimension_numbers<[1], [0], [0], [1], [0, 0, 1, 1], [], []>} : vector<64x128xbf16>, vector<128x128xbf16>, vector<64x128xf32> -> vector<64x128xf32>
    %56 = arith.addf %49, %55 : vector<64x128xf32>
    %c0_76 = arith.constant 0 : index
    %c0_77 = arith.constant 0 : index
    %c1_78 = arith.constant 1 : index
    %c1_79 = arith.constant 1 : index
    %c0_80 = arith.constant 0 : index
    %57 = vector.load %arg2[%c0_76, %c0_77, %c1_78, %c1_79, %c0_80] : memref<1x4x9x9x128xbf16, #tpu.memory_space<vmem>>, vector<1x1x8x8x128xbf16>
    %58 = vector.shape_cast %57 : vector<1x1x8x8x128xbf16> to vector<8x8x128xbf16>
    %59 = vector.shape_cast %58 : vector<8x8x128xbf16> to vector<64x128xbf16>
    %c2_81 = arith.constant 2 : index
    %c2_82 = arith.constant 2 : index
    %c0_83 = arith.constant 0 : index
    %c0_84 = arith.constant 0 : index
    %60 = vector.load %arg3[%c2_81, %c2_82, %c0_83, %c0_84] : memref<3x3x128x128xbf16, #tpu.memory_space<vmem>>, vector<1x1x128x128xbf16>
    %61 = vector.shape_cast %60 : vector<1x1x128x128xbf16> to vector<128x128xbf16>
    %cst_85 = arith.constant dense<0.000000e+00> : vector<64x128xf32>
    %62 = tpu.matmul %59, %61, %cst_85 {dimension_numbers = #tpu.dot_dimension_numbers<[1], [0], [0], [1], [0, 0, 1, 1], [], []>} : vector<64x128xbf16>, vector<128x128xbf16>, vector<64x128xf32> -> vector<64x128xf32>
    %63 = arith.addf %56, %62 : vector<64x128xf32>
    %c0_86 = arith.constant 0 : index
    %c0_87 = arith.constant 0 : index
    %64 = vector.load %arg4[%c0_86, %c0_87] : memref<1x128xf32, #tpu.memory_space<vmem>>, vector<1x128xf32>
    %65 = vector.broadcast %64 : vector<1x128xf32> to vector<64x128xf32>
    %66 = arith.addf %63, %65 : vector<64x128xf32>
    %67 = vector.shape_cast %66 : vector<64x128xf32> to vector<1x64x128xf32>
    %c0_88 = arith.constant 0 : index
    %c0_89 = arith.constant 0 : index
    %c0_90 = arith.constant 0 : index
    %68 = vector.load %arg5[%c0_88, %c0_89, %c0_90] : memref<1x64x128xf32, #tpu.memory_space<vmem>>, vector<1x64x128xf32>
    tpu.vector_store %arg5[%c0_88, %c0_89, %c0_90], %67 {strides = array<i32>} : memref<1x64x128xf32, #tpu.memory_space<vmem>>, vector<1x64x128xf32>,
    %cst_91 = arith.constant dense<0.000000e+00> : vector<128xf32>
    %69 = vector.multi_reduction <add>, %66, %cst_91 [0] : vector<64x128xf32> to vector<128xf32>
    %70 = vector.shape_cast %69 : vector<128xf32> to vector<1x128xf32>
    %71 = vector.shape_cast %70 : vector<1x128xf32> to vector<1x1x128xf32>
    %c0_92 = arith.constant 0 : index
    %c0_93 = arith.constant 0 : index
    %c0_94 = arith.constant 0 : index
    %72 = vector.load %arg6[%c0_92, %c0_93, %c0_94] : memref<1x1x128xf32, #tpu.memory_space<vmem>>, vector<1x1x128xf32>
    tpu.vector_store %arg6[%c0_92, %c0_93, %c0_94], %71 {strides = array<i32>} : memref<1x1x128xf32, #tpu.memory_space<vmem>>, vector<1x1x128xf32>,
    %73 = arith.mulf %66, %66 : vector<64x128xf32>
    %cst_95 = arith.constant dense<0.000000e+00> : vector<128xf32>
    %74 = vector.multi_reduction <add>, %73, %cst_95 [0] : vector<64x128xf32> to vector<128xf32>
    %75 = vector.shape_cast %74 : vector<128xf32> to vector<1x128xf32>
    %76 = vector.shape_cast %75 : vector<1x128xf32> to vector<1x1x128xf32>
    %c0_96 = arith.constant 0 : index
    %c0_97 = arith.constant 0 : index
    %c0_98 = arith.constant 0 : index
    %77 = vector.load %arg7[%c0_96, %c0_97, %c0_98] : memref<1x1x128xf32, #tpu.memory_space<vmem>>, vector<1x1x128xf32>
    tpu.vector_store %arg7[%c0_96, %c0_97, %c0_98], %76 {strides = array<i32>} : memref<1x1x128xf32, #tpu.memory_space<vmem>>, vector<1x1x128xf32>,
    return
  }
  func.func @transform_0(%arg0: i32, %arg1: i32) -> (i32, i32, i32, i32, i32) {
    %c0_i32 = arith.constant 0 : i32
    %c0_i32_0 = arith.constant 0 : i32
    %c0_i32_1 = arith.constant 0 : i32
    %c0_i32_2 = arith.constant 0 : i32
    %c0_i32_3 = arith.constant 0 : i32
    return %arg0, %c0_i32, %c0_i32_0, %c0_i32_1, %c0_i32_2 : i32, i32, i32, i32, i32
  }
  func.func @transform_1(%arg0: i32, %arg1: i32) -> (i32, i32, i32, i32) {
    %c0_i32 = arith.constant 0 : i32
    %c0_i32_0 = arith.constant 0 : i32
    %c0_i32_1 = arith.constant 0 : i32
    %c0_i32_2 = arith.constant 0 : i32
    return %c0_i32, %c0_i32_0, %c0_i32_1, %arg1 : i32, i32, i32, i32
  }
  func.func @transform_2(%arg0: i32, %arg1: i32) -> (i32, i32) {
    %c0_i32 = arith.constant 0 : i32
    %c0_i32_0 = arith.constant 0 : i32
    return %c0_i32, %arg1 : i32, i32
  }
  func.func @transform_3(%arg0: i32, %arg1: i32) -> (i32, i32, i32) {
    %c0_i32 = arith.constant 0 : i32
    %c0_i32_0 = arith.constant 0 : i32
    return %arg0, %c0_i32, %arg1 : i32, i32, i32
  }
  func.func @transform_4(%arg0: i32, %arg1: i32) -> (i32, i32, i32) {
    %c0_i32 = arith.constant 0 : i32
    %c0_i32_0 = arith.constant 0 : i32
    return %arg0, %c0_i32, %arg1 : i32, i32, i32
  }
  func.func @transform_5(%arg0: i32, %arg1: i32) -> (i32, i32, i32) {
    %c0_i32 = arith.constant 0 : i32
    %c0_i32_0 = arith.constant 0 : i32
    return %arg0, %c0_i32, %arg1 : i32, i32, i32
  }
}

module attributes {stable_mosaic.version = 11 : i64} {
  func.func @_affine_relu_kernel(%arg0: i32, %arg1: i32, %arg2: memref<1x64x128xf32, #tpu.memory_space<vmem>>, %arg3: memref<1x128xf32, #tpu.memory_space<vmem>>, %arg4: memref<1x128xf32, #tpu.memory_space<vmem>>, %arg5: memref<1x64x128xbf16, #tpu.memory_space<vmem>>) attributes {dimension_semantics = [#tpu.dimension_semantics<parallel>, #tpu.dimension_semantics<parallel>], iteration_bounds = array<i64: 2, 1>, scalar_prefetch = 0 : i64, scratch_operands = 0 : i64, tpu.core_type = #tpu.core_type<tc>, window_params = [{transform_indices = @transform_0, window_bounds = array<i64: 1, 64, 128>}, {pipeline_mode = #tpu.pipeline_mode<synchronous>, transform_indices = @transform_1, window_bounds = array<i64: 1, 128>}, {pipeline_mode = #tpu.pipeline_mode<synchronous>, transform_indices = @transform_2, window_bounds = array<i64: 1, 128>}, {transform_indices = @transform_3, window_bounds = array<i64: 1, 64, 128>}]} {
    %c0 = arith.constant 0 : index
    %c0_0 = arith.constant 0 : index
    %c0_1 = arith.constant 0 : index
    %0 = vector.load %arg2[%c0, %c0_0, %c0_1] : memref<1x64x128xf32, #tpu.memory_space<vmem>>, vector<1x64x128xf32>
    %c0_2 = arith.constant 0 : index
    %c0_3 = arith.constant 0 : index
    %1 = vector.load %arg3[%c0_2, %c0_3] : memref<1x128xf32, #tpu.memory_space<vmem>>, vector<1x128xf32>
    %2 = vector.shape_cast %1 : vector<1x128xf32> to vector<1x1x128xf32>
    %3 = vector.broadcast %2 : vector<1x1x128xf32> to vector<1x64x128xf32>
    %4 = arith.mulf %0, %3 : vector<1x64x128xf32>
    %c0_4 = arith.constant 0 : index
    %c0_5 = arith.constant 0 : index
    %5 = vector.load %arg4[%c0_4, %c0_5] : memref<1x128xf32, #tpu.memory_space<vmem>>, vector<1x128xf32>
    %6 = vector.shape_cast %5 : vector<1x128xf32> to vector<1x1x128xf32>
    %7 = vector.broadcast %6 : vector<1x1x128xf32> to vector<1x64x128xf32>
    %8 = arith.addf %4, %7 : vector<1x64x128xf32>
    %cst = arith.constant 0.000000e+00 : f32
    %9 = vector.broadcast %cst : f32 to vector<1x64x128xf32>
    %10 = arith.maximumf %8, %9 : vector<1x64x128xf32>
    %11 = arith.truncf %10 : vector<1x64x128xf32> to vector<1x64x128xbf16>
    %c0_6 = arith.constant 0 : index
    %c0_7 = arith.constant 0 : index
    %c0_8 = arith.constant 0 : index
    %12 = vector.load %arg5[%c0_6, %c0_7, %c0_8] : memref<1x64x128xbf16, #tpu.memory_space<vmem>>, vector<1x64x128xbf16>
    tpu.vector_store %arg5[%c0_6, %c0_7, %c0_8], %11 {strides = array<i32>} : memref<1x64x128xbf16, #tpu.memory_space<vmem>>, vector<1x64x128xbf16>,
    return
  }
  func.func @transform_0(%arg0: i32, %arg1: i32) -> (i32, i32, i32) {
    %c0_i32 = arith.constant 0 : i32
    %c0_i32_0 = arith.constant 0 : i32
    return %arg0, %arg1, %c0_i32 : i32, i32, i32
  }
  func.func @transform_1(%arg0: i32, %arg1: i32) -> (i32, i32) {
    %c0_i32 = arith.constant 0 : i32
    %c0_i32_0 = arith.constant 0 : i32
    %c0_i32_1 = arith.constant 0 : i32
    return %c0_i32, %c0_i32_0 : i32, i32
  }
  func.func @transform_2(%arg0: i32, %arg1: i32) -> (i32, i32) {
    %c0_i32 = arith.constant 0 : i32
    %c0_i32_0 = arith.constant 0 : i32
    %c0_i32_1 = arith.constant 0 : i32
    return %c0_i32, %c0_i32_0 : i32, i32
  }
  func.func @transform_3(%arg0: i32, %arg1: i32) -> (i32, i32, i32) {
    %c0_i32 = arith.constant 0 : i32
    %c0_i32_0 = arith.constant 0 : i32
    return %arg0, %arg1, %c0_i32 : i32, i32, i32
  }
}

module attributes {stable_mosaic.version = 11 : i64} {
  func.func @kernel(%arg0: i32, %arg1: i32, %arg2: memref<1x1x8x8x128xbf16, #tpu.memory_space<vmem>>, %arg3: memref<1x1x128x128xbf16, #tpu.memory_space<vmem>>, %arg4: memref<1x128xf32, #tpu.memory_space<vmem>>, %arg5: memref<1x64x128xf32, #tpu.memory_space<vmem>>, %arg6: memref<1x1x128xf32, #tpu.memory_space<vmem>>, %arg7: memref<1x1x128xf32, #tpu.memory_space<vmem>>) attributes {dimension_semantics = [#tpu.dimension_semantics<parallel>, #tpu.dimension_semantics<parallel>], iteration_bounds = array<i64: 2, 1>, scalar_prefetch = 0 : i64, scratch_operands = 0 : i64, tpu.core_type = #tpu.core_type<tc>, window_params = [{transform_indices = @transform_0, window_bounds = array<i64: 1, 1, 8, 8, 128>}, {transform_indices = @transform_1, window_bounds = array<i64: 1, 1, 128, 128>}, {transform_indices = @transform_2, window_bounds = array<i64: 1, 128>}, {transform_indices = @transform_3, window_bounds = array<i64: 1, 64, 128>}, {transform_indices = @transform_4, window_bounds = array<i64: 1, 1, 128>}, {transform_indices = @transform_5, window_bounds = array<i64: 1, 1, 128>}]} {
    %cst = arith.constant 0.000000e+00 : f32
    %0 = vector.broadcast %cst : f32 to vector<64x128xf32>
    %c0 = arith.constant 0 : index
    %c0_0 = arith.constant 0 : index
    %c0_1 = arith.constant 0 : index
    %c0_2 = arith.constant 0 : index
    %c0_3 = arith.constant 0 : index
    %1 = vector.load %arg2[%c0, %c0_0, %c0_1, %c0_2, %c0_3] : memref<1x1x8x8x128xbf16, #tpu.memory_space<vmem>>, vector<1x1x8x8x128xbf16>
    %2 = vector.shape_cast %1 : vector<1x1x8x8x128xbf16> to vector<8x8x128xbf16>
    %3 = vector.shape_cast %2 : vector<8x8x128xbf16> to vector<64x128xbf16>
    %c0_4 = arith.constant 0 : index
    %c0_5 = arith.constant 0 : index
    %c0_6 = arith.constant 0 : index
    %c0_7 = arith.constant 0 : index
    %4 = vector.load %arg3[%c0_4, %c0_5, %c0_6, %c0_7] : memref<1x1x128x128xbf16, #tpu.memory_space<vmem>>, vector<1x1x128x128xbf16>
    %5 = vector.shape_cast %4 : vector<1x1x128x128xbf16> to vector<128x128xbf16>
    %cst_8 = arith.constant dense<0.000000e+00> : vector<64x128xf32>
    %6 = tpu.matmul %3, %5, %cst_8 {dimension_numbers = #tpu.dot_dimension_numbers<[1], [0], [0], [1], [0, 0, 1, 1], [], []>} : vector<64x128xbf16>, vector<128x128xbf16>, vector<64x128xf32> -> vector<64x128xf32>
    %7 = arith.addf %0, %6 : vector<64x128xf32>
    %c0_9 = arith.constant 0 : index
    %c0_10 = arith.constant 0 : index
    %8 = vector.load %arg4[%c0_9, %c0_10] : memref<1x128xf32, #tpu.memory_space<vmem>>, vector<1x128xf32>
    %9 = vector.broadcast %8 : vector<1x128xf32> to vector<64x128xf32>
    %10 = arith.addf %7, %9 : vector<64x128xf32>
    %11 = vector.shape_cast %10 : vector<64x128xf32> to vector<1x64x128xf32>
    %c0_11 = arith.constant 0 : index
    %c0_12 = arith.constant 0 : index
    %c0_13 = arith.constant 0 : index
    %12 = vector.load %arg5[%c0_11, %c0_12, %c0_13] : memref<1x64x128xf32, #tpu.memory_space<vmem>>, vector<1x64x128xf32>
    tpu.vector_store %arg5[%c0_11, %c0_12, %c0_13], %11 {strides = array<i32>} : memref<1x64x128xf32, #tpu.memory_space<vmem>>, vector<1x64x128xf32>,
    %cst_14 = arith.constant dense<0.000000e+00> : vector<128xf32>
    %13 = vector.multi_reduction <add>, %10, %cst_14 [0] : vector<64x128xf32> to vector<128xf32>
    %14 = vector.shape_cast %13 : vector<128xf32> to vector<1x128xf32>
    %15 = vector.shape_cast %14 : vector<1x128xf32> to vector<1x1x128xf32>
    %c0_15 = arith.constant 0 : index
    %c0_16 = arith.constant 0 : index
    %c0_17 = arith.constant 0 : index
    %16 = vector.load %arg6[%c0_15, %c0_16, %c0_17] : memref<1x1x128xf32, #tpu.memory_space<vmem>>, vector<1x1x128xf32>
    tpu.vector_store %arg6[%c0_15, %c0_16, %c0_17], %15 {strides = array<i32>} : memref<1x1x128xf32, #tpu.memory_space<vmem>>, vector<1x1x128xf32>,
    %17 = arith.mulf %10, %10 : vector<64x128xf32>
    %cst_18 = arith.constant dense<0.000000e+00> : vector<128xf32>
    %18 = vector.multi_reduction <add>, %17, %cst_18 [0] : vector<64x128xf32> to vector<128xf32>
    %19 = vector.shape_cast %18 : vector<128xf32> to vector<1x128xf32>
    %20 = vector.shape_cast %19 : vector<1x128xf32> to vector<1x1x128xf32>
    %c0_19 = arith.constant 0 : index
    %c0_20 = arith.constant 0 : index
    %c0_21 = arith.constant 0 : index
    %21 = vector.load %arg7[%c0_19, %c0_20, %c0_21] : memref<1x1x128xf32, #tpu.memory_space<vmem>>, vector<1x1x128xf32>
    tpu.vector_store %arg7[%c0_19, %c0_20, %c0_21], %20 {strides = array<i32>} : memref<1x1x128xf32, #tpu.memory_space<vmem>>, vector<1x1x128xf32>,
    return
  }
  func.func @transform_0(%arg0: i32, %arg1: i32) -> (i32, i32, i32, i32, i32) {
    %c0_i32 = arith.constant 0 : i32
    %c0_i32_0 = arith.constant 0 : i32
    %c0_i32_1 = arith.constant 0 : i32
    %c0_i32_2 = arith.constant 0 : i32
    %c0_i32_3 = arith.constant 0 : i32
    return %arg0, %c0_i32, %c0_i32_0, %c0_i32_1, %c0_i32_2 : i32, i32, i32, i32, i32
  }
  func.func @transform_1(%arg0: i32, %arg1: i32) -> (i32, i32, i32, i32) {
    %c0_i32 = arith.constant 0 : i32
    %c0_i32_0 = arith.constant 0 : i32
    %c0_i32_1 = arith.constant 0 : i32
    %c0_i32_2 = arith.constant 0 : i32
    return %c0_i32, %c0_i32_0, %c0_i32_1, %arg1 : i32, i32, i32, i32
  }
  func.func @transform_2(%arg0: i32, %arg1: i32) -> (i32, i32) {
    %c0_i32 = arith.constant 0 : i32
    %c0_i32_0 = arith.constant 0 : i32
    return %c0_i32, %arg1 : i32, i32
  }
  func.func @transform_3(%arg0: i32, %arg1: i32) -> (i32, i32, i32) {
    %c0_i32 = arith.constant 0 : i32
    %c0_i32_0 = arith.constant 0 : i32
    return %arg0, %c0_i32, %arg1 : i32, i32, i32
  }
  func.func @transform_4(%arg0: i32, %arg1: i32) -> (i32, i32, i32) {
    %c0_i32 = arith.constant 0 : i32
    %c0_i32_0 = arith.constant 0 : i32
    return %arg0, %c0_i32, %arg1 : i32, i32, i32
  }
  func.func @transform_5(%arg0: i32, %arg1: i32) -> (i32, i32, i32) {
    %c0_i32 = arith.constant 0 : i32
    %c0_i32_0 = arith.constant 0 : i32
    return %arg0, %c0_i32, %arg1 : i32, i32, i32
  }
}

</mosaic_0001>

<llo_original>
// kernel: a_call__.6
$region0: #{a_call__.6}
  #allocation0 [shape = 'u32[]', space=smem, size = 0x4, offset = 0x4, fixed_abs, tag = 'smem constant byte address 0x4 - core index']
  #allocation1 [shape = 'u32[144,128]{1,0:T(1,128)}', space=vmem, size = 0x12000, scoped, tag = 'internal scratch']
  %s0 = inlined_call_operand.vmem [shape: f32[2,256,128], index: 0, kind: input, shape index: {}]
  %s1 = inlined_call_operand.vmem [shape: f32[1,128], index: 1, kind: input, shape index: {}]
  %s2 = inlined_call_operand.vmem [shape: f32[1,128], index: 2, kind: input, shape index: {}]
  %s3 = inlined_call_operand.vmem [shape: bf16[2,256,128], index: 3, kind: output, shape index: {}]
  %s4 = sld [smem:[#allocation0]]
  $region45: #{a_call__.6} parent=0
    _
  %s6 = ssub.s32 1, %s4
  %s7 = scalar_select 0, %s6, %s4
  loop: start=0, step=1, limit=4
  $region2: #{a_call__.6} parent=0 // loop_pre_header
    _
  $region3: #{a_call__.6} parent=0 // loop_header
    %s9 = sphi 0, %s13
    %p10 = scmp.ge.s32.totalorder %s9, 4
    %s16 = sphi 0, %s28
    %s17 = sphi 0, %s24
    %s18 = sphi 0, %s16
    %s19 = sphi 0, %s17
    %s20 = sphi 0, %s18
    %s21 = sphi 0, %s19
    %s33 = sphi 0, %s35
    %s36 = sphi 0, %s33
    %s37 = sphi 0, %s36
    %s53 = sphi 0, %s37
    %s57 = sphi 0, %s57
    %s59 = sphi 0, %s57
    %s60 = sphi 0, %s59
    %s74 = sphi 0, %s60
    %s78 = sphi 0, %s78
    %s80 = sphi 0, %s78
    %s81 = sphi 0, %s80
    %s95 = sphi 0, %s81
    %s103 = sphi 0, %s105
    %s106 = sphi 0, %s103
    %s107 = sphi 0, %s106
    %s123 = sphi 0, %s107
  $region4: #{a_call__.6} parent=0 // loop_header_branch
    %12 = sbr.rel (%p10) target = $region8
  $region5: #{a_call__.6} parent=0 // loop_body
    %s14 = ssub.s32 %s9, 1
    %s15 = ssub.s32 %s9, 2
    %s22 = sadd.s32 1, %s17
    %p23 = scmp.ge.s32.totalorder %s22, 1
    %s24 = scalar_select %p23, 0, %s22
    %s25 = sadd.s32 1, %s16
    %s26 = scalar_select %p23, %s25, %s16
    %p27 = scmp.ge.s32.totalorder %s26, 2
    %s28 = scalar_select %p27, 0, %s26
    %s29 = ssub.s32 %s16, %s28
    %s30 = ssub.s32 %s17, %s24
    %s31 = sor.u32 %s29, %s30
    %p32 = scmp.eq.s32.totalorder %s31, 0
    %s34 = sadd.s32 %s33, 1
    %s35 = scalar_select %p32, %s33, %s34
    %p38 = pneg %p32
    %p39 = scmp.eq.s32.totalorder %s9, 1
    %p40 = por %p38, %p39
    %p41 = scmp.ne.s32.totalorder %s33, %s36
    %p42 = scmp.eq.s32.totalorder %s9, 0
    %p43 = por %p41, %p42
    %p44 = scmp.ne.s32.totalorder %s33, %s36
    %p45 = scmp.eq.s32.totalorder %s14, 1
    %p46 = por %p44, %p45
    %p47 = scmp.ne.s32.totalorder %s36, %s37
    %p48 = scmp.eq.s32.totalorder %s14, 0
    %p49 = por %p47, %p48
    %p50 = scmp.ne.s32.totalorder %s36, %s37
    %p51 = scmp.eq.s32.totalorder %s15, 1
    %p52 = por %p50, %p51
    %p54 = scmp.ne.s32.totalorder %s37, %s53
    %p55 = scmp.eq.s32.totalorder %s15, 0
    %p56 = por %p54, %p55
    %s58 = sadd.s32 %s57, 1
    %p61 = scmp.eq.s32.totalorder %s9, 1
    %p62 = scmp.ne.s32.totalorder %s57, %s59
    %p63 = scmp.eq.s32.totalorder %s9, 0
    %p64 = por %p62, %p63
    %p65 = scmp.ne.s32.totalorder %s57, %s59
    %p66 = scmp.eq.s32.totalorder %s14, 1
    %p67 = por %p65, %p66
    %p68 = scmp.ne.s32.totalorder %s59, %s60
    %p69 = scmp.eq.s32.totalorder %s14, 0
    %p70 = por %p68, %p69
    %p71 = scmp.ne.s32.totalorder %s59, %s60
    %p72 = scmp.eq.s32.totalorder %s15, 1
    %p73 = por %p71, %p72
    %p75 = scmp.ne.s32.totalorder %s60, %s74
    %p76 = scmp.eq.s32.totalorder %s15, 0
    %p77 = por %p75, %p76
    %s79 = sadd.s32 %s78, 1
    %p82 = scmp.eq.s32.totalorder %s9, 1
    %p83 = scmp.ne.s32.totalorder %s78, %s80
    %p84 = scmp.eq.s32.totalorder %s9, 0
    %p85 = por %p83, %p84
    %p86 = scmp.ne.s32.totalorder %s78, %s80
    %p87 = scmp.eq.s32.totalorder %s14, 1
    %p88 = por %p86, %p87
    %p89 = scmp.ne.s32.totalorder %s80, %s81
    %p90 = scmp.eq.s32.totalorder %s14, 0
    %p91 = por %p89, %p90
    %p92 = scmp.ne.s32.totalorder %s80, %s81
    %p93 = scmp.eq.s32.totalorder %s15, 1
    %p94 = por %p92, %p93
    %p96 = scmp.ne.s32.totalorder %s81, %s95
    %p97 = scmp.eq.s32.totalorder %s15, 0
    %p98 = por %p96, %p97
    %s99 = ssub.s32 %s16, %s28
    %s100 = ssub.s32 %s17, %s24
    %s101 = sor.u32 %s99, %s100
    %p102 = scmp.eq.s32.totalorder %s101, 0
    %s104 = sadd.s32 %s103, 1
    %s105 = scalar_select %p102, %s103, %s104
    %p108 = pneg %p102
    %p109 = scmp.eq.s32.totalorder %s9, 1
    %p110 = por %p108, %p109
    %p111 = scmp.ne.s32.totalorder %s103, %s106
    %p112 = scmp.eq.s32.totalorder %s9, 0
    %p113 = por %p111, %p112
    %p114 = scmp.ne.s32.totalorder %s103, %s106
    %p115 = scmp.eq.s32.totalorder %s14, 1
    %p116 = por %p114, %p115
    %p117 = scmp.ne.s32.totalorder %s106, %s107
    %p118 = scmp.eq.s32.totalorder %s14, 0
    %p119 = por %p117, %p118
    %p120 = scmp.ne.s32.totalorder %s106, %s107
    %p121 = scmp.eq.s32.totalorder %s15, 1
    %p122 = por %p120, %p121
    %p124 = scmp.ne.s32.totalorder %s107, %s123
    %p125 = scmp.eq.s32.totalorder %s15, 0
    %p126 = por %p124, %p125
    %p127 = scmp.le.s32.totalorder 1, %s9
    %p128 = scmp.lt.s32.totalorder %s9, 3
    %p129 = pnand %p127, %p128
    %p130 = pneg %p129
    // Predicated region
    $region9: #{a_call__.6} parent=5 // pred_check
      _
    $region10: #{a_call__.6} parent=5 // pred_check_branch
      %132 = sbr.rel (%p129) target = $region12
    $region11: #{a_call__.6} parent=5 // pred_region
      %s133 = ssub.s32 %s9, 1
      // Predicated region
      $region13: #{a_call__.6} parent=11 // pred_check
        %p134 = pneg %p70
      $region14: #{a_call__.6} parent=11 // pred_check_branch
        %136 = sbr.rel (%p134) target = $region16
      $region15: #{a_call__.6} parent=11 // pred_region
        _
      $region16: #{a_call__.6} parent=11 // pred_fallthru
        _
      // Predicated region
      $region17: #{a_call__.6} parent=11 // pred_check
        %p137 = pneg %p91
      $region18: #{a_call__.6} parent=11 // pred_check_branch
        %139 = sbr.rel (%p137) target = $region20
      $region19: #{a_call__.6} parent=11 // pred_region
        _
      $region20: #{a_call__.6} parent=11 // pred_fallthru
        _
    $region12: #{a_call__.6} parent=5 // pred_fallthru
      _
    %p140 = scmp.lt.s32.totalorder %s9, 2
    // Predicated region
    $region21: #{a_call__.6} parent=5 // pred_check
      %p141 = pneg %p140
    $region22: #{a_call__.6} parent=5 // pred_check_branch
      %143 = sbr.rel (%p141) target = $region24
    $region23: #{a_call__.6} parent=5 // pred_region
      // Predicated region
      $region25: #{a_call__.6} parent=23 // pred_check
        %p144 = pneg %p43
      $region26: #{a_call__.6} parent=23 // pred_check_branch
        %146 = sbr.rel (%p144) target = $region28
      $region27: #{a_call__.6} parent=23 // pred_region
        %s147 = smul.u32 32, %s17
        %p148 = scmp.lt.s32.totalorder %s16, 1
        %s149 = scalar_select %p148, %s16, 1
        %p150 = scmp.lt.s32.totalorder %s147, 31
        %s151 = scalar_select %p150, %s147, 31
        %s152 = smul.addr %s149, 32
        %s153 = sadd.s32 %s151, %s152
        %s154 = smul.addr %s153, 8
        %s155 = scalar_lea.vmem %s0, %s154
        %s156 = smul.u32 32, %s17
      $region28: #{a_call__.6} parent=23 // pred_fallthru
        _
    $region24: #{a_call__.6} parent=5 // pred_fallthru
      _
    %p157 = scmp.le.s32.totalorder 1, %s9
    %p158 = scmp.lt.s32.totalorder %s9, 3
    %p159 = pnand %p157, %p158
    %p160 = pneg %p159
    // Predicated region
    $region29: #{a_call__.6} parent=5 // pred_check
      _
    $region30: #{a_call__.6} parent=5 // pred_check_branch
      %162 = sbr.rel (%p159) target = $region32
    $region31: #{a_call__.6} parent=5 // pred_region
      %s163 = ssub.s32 %s9, 1
      %s164 = smul.u32 32, %s19
      %p165 = scmp.lt.s32.totalorder %s18, 1
      %s166 = scalar_select %p165, %s18, 1
      %p167 = scmp.lt.s32.totalorder %s164, 31
      %s168 = scalar_select %p167, %s164, 31
      %s169 = smul.addr %s166, 32
      %s170 = sadd.s32 %s168, %s169
      %s171 = smul.addr %s170, 8
      %s172 = scalar_lea.vmem %s0, %s171
      %p173 = pneg %p49
      %p174 = pneg %p46
      %p175 = pneg %p70
      %p176 = pneg %p67
      %p177 = pneg %p91
      %p178 = pneg %p88
      %p179 = pneg %p119
      %p180 = pneg %p116
      %s181 = smul.u32 32, %s19
      %p182 = scmp.lt.s32.totalorder %s18, 1
      %s183 = scalar_select %p182, %s18, 1
      %p184 = scmp.lt.s32.totalorder %s181, 31
      %s185 = scalar_select %p184, %s181, 31
      %s186 = smul.addr %s183, 32
      %s187 = sadd.s32 %s185, %s186
      %s188 = smul.addr %s187, 4
      %s189 = scalar_lea.vmem %s3, %s188
      %s190 = smul.u32 32, %s19
      %p191 = scmp.lt.s32.totalorder %s18, 1
      %s192 = scalar_select %p191, %s18, 1
      %p193 = scmp.lt.s32.totalorder %s190, 31
      %s194 = scalar_select %p193, %s190, 31
      %s195 = smul.addr %s192, 32
      %s196 = sadd.s32 %s194, %s195
      %s197 = smul.addr %s196, 8
      %s198 = scalar_lea.vmem %s0, %s197
      %s199 = smul.u32 32, %s19
      %s200 = smul.u32 32, %s19
      %p201 = scmp.lt.s32.totalorder %s18, 1
      %s202 = scalar_select %p201, %s18, 1
      %p203 = scmp.lt.s32.totalorder %s200, 31
      %s204 = scalar_select %p203, %s200, 31
      %s205 = smul.addr %s202, 32
      %s206 = sadd.s32 %s204, %s205
      %s207 = smul.addr %s206, 4
      %s208 = scalar_lea.vmem %s3, %s207
      %s209 = smul.u32 32, %s19
      %v210 = vld [vmem:[%s198] sm:$0xff]
      %v211 = vld [vmem:[%s198 + $0x8] sm:$0xff]
      %v212 = vld [vmem:[%s198 + $0x10] sm:$0xff]
      %v213 = vld [vmem:[%s198 + $0x18] sm:$0xff]
      %v214 = vld [vmem:[%s198 + $0x20] sm:$0xff]
      %v215 = vld [vmem:[%s198 + $0x28] sm:$0xff]
      %v216 = vld [vmem:[%s198 + $0x30] sm:$0xff]
      %v217 = vld [vmem:[%s198 + $0x38] sm:$0xff]
      %v218 = vld [vmem:[%s198 + $0x40] sm:$0xff]
      %v219 = vld [vmem:[%s198 + $0x48] sm:$0xff]
      %v220 = vld [vmem:[%s198 + $0x50] sm:$0xff]
      %v221 = vld [vmem:[%s198 + $0x58] sm:$0xff]
      %v222 = vld [vmem:[%s198 + $0x60] sm:$0xff]
      %v223 = vld [vmem:[%s198 + $0x68] sm:$0xff]
      %v224 = vld [vmem:[%s198 + $0x70] sm:$0xff]
      %v225 = vld [vmem:[%s198 + $0x78] sm:$0xff]
      %v226 = vld [vmem:[%s198 + $0x80] sm:$0xff]
      %v227 = vld [vmem:[%s198 + $0x88] sm:$0xff]
      %v228 = vld [vmem:[%s198 + $0x90] sm:$0xff]
      %v229 = vld [vmem:[%s198 + $0x98] sm:$0xff]
      %v230 = vld [vmem:[%s198 + $0xa0] sm:$0xff]
      %v231 = vld [vmem:[%s198 + $0xa8] sm:$0xff]
      %v232 = vld [vmem:[%s198 + $0xb0] sm:$0xff]
      %v233 = vld [vmem:[%s198 + $0xb8] sm:$0xff]
      %v234 = vld [vmem:[%s198 + $0xc0] sm:$0xff]
      %v235 = vld [vmem:[%s198 + $0xc8] sm:$0xff]
      %v236 = vld [vmem:[%s198 + $0xd0] sm:$0xff]
      %v237 = vld [vmem:[%s198 + $0xd8] sm:$0xff]
      %v238 = vld [vmem:[%s198 + $0xe0] sm:$0xff]
      %v239 = vld [vmem:[%s198 + $0xe8] sm:$0xff]
      %v240 = vld [vmem:[%s198 + $0xf0] sm:$0xff]
      %v241 = vld [vmem:[%s198 + $0xf8] sm:$0xff]
      %v242 = vld [vmem:[%s1] sm:$0x1]
      %v244 = vlaneseq
      %v245 = vshrl.u32 %v244, 7
      %v246 = vsub.s32 0, %v245
      %v247 = vrot.slane %v242, %v246
      %v249 = vmul.f32 %v210, %v247
      %v250 = vmul.f32 %v211, %v247
      %v251 = vmul.f32 %v212, %v247
      %v252 = vmul.f32 %v213, %v247
      %v253 = vmul.f32 %v214, %v247
      %v254 = vmul.f32 %v215, %v247
      %v255 = vmul.f32 %v216, %v247
      %v256 = vmul.f32 %v217, %v247
      %v257 = vmul.f32 %v218, %v247
      %v258 = vmul.f32 %v219, %v247
      %v259 = vmul.f32 %v220, %v247
      %v260 = vmul.f32 %v221, %v247
      %v261 = vmul.f32 %v222, %v247
      %v262 = vmul.f32 %v223, %v247
      %v263 = vmul.f32 %v224, %v247
      %v264 = vmul.f32 %v225, %v247
      %v265 = vmul.f32 %v226, %v247
      %v266 = vmul.f32 %v227, %v247
      %v267 = vmul.f32 %v228, %v247
      %v268 = vmul.f32 %v229, %v247
      %v269 = vmul.f32 %v230, %v247
      %v270 = vmul.f32 %v231, %v247
      %v271 = vmul.f32 %v232, %v247
      %v272 = vmul.f32 %v233, %v247
      %v273 = vmul.f32 %v234, %v247
      %v274 = vmul.f32 %v235, %v247
      %v275 = vmul.f32 %v236, %v247
      %v276 = vmul.f32 %v237, %v247
      %v277 = vmul.f32 %v238, %v247
      %v278 = vmul.f32 %v239, %v247
      %v279 = vmul.f32 %v240, %v247
      %v280 = vmul.f32 %v241, %v247
      %v281 = vld [vmem:[%s2] sm:$0x1]
      %v283 = vlaneseq
      %v284 = vshrl.u32 %v283, 7
      %v285 = vsub.s32 0, %v284
      %v286 = vrot.slane %v281, %v285
      %v288 = vadd.f32 %v249, %v286
      %v289 = vadd.f32 %v250, %v286
      %v290 = vadd.f32 %v251, %v286
      %v291 = vadd.f32 %v252, %v286
      %v292 = vadd.f32 %v253, %v286
      %v293 = vadd.f32 %v254, %v286
      %v294 = vadd.f32 %v255, %v286
      %v295 = vadd.f32 %v256, %v286
      %v296 = vadd.f32 %v257, %v286
      %v297 = vadd.f32 %v258, %v286
      %v298 = vadd.f32 %v259, %v286
      %v299 = vadd.f32 %v260, %v286
      %v300 = vadd.f32 %v261, %v286
      %v301 = vadd.f32 %v262, %v286
      %v302 = vadd.f32 %v263, %v286
      %v303 = vadd.f32 %v264, %v286
      %v304 = vadd.f32 %v265, %v286
      %v305 = vadd.f32 %v266, %v286
      %v306 = vadd.f32 %v267, %v286
      %v307 = vadd.f32 %v268, %v286
      %v308 = vadd.f32 %v269, %v286
      %v309 = vadd.f32 %v270, %v286
      %v310 = vadd.f32 %v271, %v286
      %v311 = vadd.f32 %v272, %v286
      %v312 = vadd.f32 %v273, %v286
      %v313 = vadd.f32 %v274, %v286
      %v314 = vadd.f32 %v275, %v286
      %v315 = vadd.f32 %v276, %v286
      %v316 = vadd.f32 %v277, %v286
      %v317 = vadd.f32 %v278, %v286
      %v318 = vadd.f32 %v279, %v286
      %v319 = vadd.f32 %v280, %v286
      %v320 = vmax.f32 %v288, 0.0
      %v321 = vmax.f32 %v289, 0.0
      %v322 = vmax.f32 %v290, 0.0
      %v323 = vmax.f32 %v291, 0.0
      %v324 = vmax.f32 %v292, 0.0
      %v325 = vmax.f32 %v293, 0.0
      %v326 = vmax.f32 %v294, 0.0
      %v327 = vmax.f32 %v295, 0.0
      %v328 = vmax.f32 %v296, 0.0
      %v329 = vmax.f32 %v297, 0.0
      %v330 = vmax.f32 %v298, 0.0
      %v331 = vmax.f32 %v299, 0.0
      %v332 = vmax.f32 %v300, 0.0
      %v333 = vmax.f32 %v301, 0.0
      %v334 = vmax.f32 %v302, 0.0
      %v335 = vmax.f32 %v303, 0.0
      %v336 = vmax.f32 %v304, 0.0
      %v337 = vmax.f32 %v305, 0.0
      %v338 = vmax.f32 %v306, 0.0
      %v339 = vmax.f32 %v307, 0.0
      %v340 = vmax.f32 %v308, 0.0
      %v341 = vmax.f32 %v309, 0.0
      %v342 = vmax.f32 %v310, 0.0
      %v343 = vmax.f32 %v311, 0.0
      %v344 = vmax.f32 %v312, 0.0
      %v345 = vmax.f32 %v313, 0.0
      %v346 = vmax.f32 %v314, 0.0
      %v347 = vmax.f32 %v315, 0.0
      %v348 = vmax.f32 %v316, 0.0
      %v349 = vmax.f32 %v317, 0.0
      %v350 = vmax.f32 %v318, 0.0
      %v351 = vmax.f32 %v319, 0.0
      %v352 = vpack.c.bf16 %v321, %v320
      %v353 = vpack.c.bf16 %v323, %v322
      %v354 = vpack.c.bf16 %v325, %v324
      %v355 = vpack.c.bf16 %v327, %v326
      %v356 = vpack.c.bf16 %v329, %v328
      %v357 = vpack.c.bf16 %v331, %v330
      %v358 = vpack.c.bf16 %v333, %v332
      %v359 = vpack.c.bf16 %v335, %v334
      %v360 = vpack.c.bf16 %v337, %v336
      %v361 = vpack.c.bf16 %v339, %v338
      %v362 = vpack.c.bf16 %v341, %v340
      %v363 = vpack.c.bf16 %v343, %v342
      %v364 = vpack.c.bf16 %v345, %v344
      %v365 = vpack.c.bf16 %v347, %v346
      %v366 = vpack.c.bf16 %v349, %v348
      %v367 = vpack.c.bf16 %v351, %v350
      %v384 = vunpack.c.l.b16 %v352
      %v385 = vunpack.c.h.b16 %v352
      %v386 = vunpack.c.l.b16 %v353
      %v387 = vunpack.c.h.b16 %v353
      %v388 = vunpack.c.l.b16 %v354
      %v389 = vunpack.c.h.b16 %v354
      %v390 = vunpack.c.l.b16 %v355
      %v391 = vunpack.c.h.b16 %v355
      %v392 = vunpack.c.l.b16 %v356
      %v393 = vunpack.c.h.b16 %v356
      %v394 = vunpack.c.l.b16 %v357
      %v395 = vunpack.c.h.b16 %v357
      %v396 = vunpack.c.l.b16 %v358
      %v397 = vunpack.c.h.b16 %v358
      %v398 = vunpack.c.l.b16 %v359
      %v399 = vunpack.c.h.b16 %v359
      %v400 = vunpack.c.l.b16 %v360
      %v401 = vunpack.c.h.b16 %v360
      %v402 = vunpack.c.l.b16 %v361
      %v403 = vunpack.c.h.b16 %v361
      %v404 = vunpack.c.l.b16 %v362
      %v405 = vunpack.c.h.b16 %v362
      %v406 = vunpack.c.l.b16 %v363
      %v407 = vunpack.c.h.b16 %v363
      %v408 = vunpack.c.l.b16 %v364
      %v409 = vunpack.c.h.b16 %v364
      %v410 = vunpack.c.l.b16 %v365
      %v411 = vunpack.c.h.b16 %v365
      %v412 = vunpack.c.l.b16 %v366
      %v413 = vunpack.c.h.b16 %v366
      %v414 = vunpack.c.l.b16 %v367
      %v415 = vunpack.c.h.b16 %v367
      %v416 = vpack.c.b16 %v384, %v384
      %v417 = vpack.c.b16 %v385, %v385
      %v418 = vpack.c.b16 %v386, %v386
      %v419 = vpack.c.b16 %v387, %v387
      %v420 = vpack.c.b16 %v388, %v388
      %v421 = vpack.c.b16 %v389, %v389
      %v422 = vpack.c.b16 %v390, %v390
      %v423 = vpack.c.b16 %v391, %v391
      %v424 = vpack.c.b16 %v392, %v392
      %v425 = vpack.c.b16 %v393, %v393
      %v426 = vpack.c.b16 %v394, %v394
      %v427 = vpack.c.b16 %v395, %v395
      %v428 = vpack.c.b16 %v396, %v396
      %v429 = vpack.c.b16 %v397, %v397
      %v430 = vpack.c.b16 %v398, %v398
      %v431 = vpack.c.b16 %v399, %v399
      %v432 = vpack.c.b16 %v400, %v400
      %v433 = vpack.c.b16 %v401, %v401
      %v434 = vpack.c.b16 %v402, %v402
      %v435 = vpack.c.b16 %v403, %v403
      %v436 = vpack.c.b16 %v404, %v404
      %v437 = vpack.c.b16 %v405, %v405
      %v438 = vpack.c.b16 %v406, %v406
      %v439 = vpack.c.b16 %v407, %v407
      %v440 = vpack.c.b16 %v408, %v408
      %v441 = vpack.c.b16 %v409, %v409
      %v442 = vpack.c.b16 %v410, %v410
      %v443 = vpack.c.b16 %v411, %v411
      %v444 = vpack.c.b16 %v412, %v412
      %v445 = vpack.c.b16 %v413, %v413
      %v446 = vpack.c.b16 %v414, %v414
      %v447 = vpack.c.b16 %v415, %v415
      %480 = vst [vmem:[%s208] sm:$0xf] %v416
      %481 = vst [vmem:[%s208 + $0x4] sm:$0xf] %v417
      %482 = vst [vmem:[%s208 + $0x8] sm:$0xf] %v418
      %483 = vst [vmem:[%s208 + $0xc] sm:$0xf] %v419
      %484 = vst [vmem:[%s208 + $0x10] sm:$0xf] %v420
      %485 = vst [vmem:[%s208 + $0x14] sm:$0xf] %v421
      %486 = vst [vmem:[%s208 + $0x18] sm:$0xf] %v422
      %487 = vst [vmem:[%s208 + $0x1c] sm:$0xf] %v423
      %488 = vst [vmem:[%s208 + $0x20] sm:$0xf] %v424
      %489 = vst [vmem:[%s208 + $0x24] sm:$0xf] %v425
      %490 = vst [vmem:[%s208 + $0x28] sm:$0xf] %v426
      %491 = vst [vmem:[%s208 + $0x2c] sm:$0xf] %v427
      %492 = vst [vmem:[%s208 + $0x30] sm:$0xf] %v428
      %493 = vst [vmem:[%s208 + $0x34] sm:$0xf] %v429
      %494 = vst [vmem:[%s208 + $0x38] sm:$0xf] %v430
      %495 = vst [vmem:[%s208 + $0x3c] sm:$0xf] %v431
      %496 = vst [vmem:[%s208 + $0x40] sm:$0xf] %v432
      %497 = vst [vmem:[%s208 + $0x44] sm:$0xf] %v433
      %498 = vst [vmem:[%s208 + $0x48] sm:$0xf] %v434
      %499 = vst [vmem:[%s208 + $0x4c] sm:$0xf] %v435
      %500 = vst [vmem:[%s208 + $0x50] sm:$0xf] %v436
      %501 = vst [vmem:[%s208 + $0x54] sm:$0xf] %v437
      %502 = vst [vmem:[%s208 + $0x58] sm:$0xf] %v438
      %503 = vst [vmem:[%s208 + $0x5c] sm:$0xf] %v439
      %504 = vst [vmem:[%s208 + $0x60] sm:$0xf] %v440
      %505 = vst [vmem:[%s208 + $0x64] sm:$0xf] %v441
      %506 = vst [vmem:[%s208 + $0x68] sm:$0xf] %v442
      %507 = vst [vmem:[%s208 + $0x6c] sm:$0xf] %v443
      %508 = vst [vmem:[%s208 + $0x70] sm:$0xf] %v444
      %509 = vst [vmem:[%s208 + $0x74] sm:$0xf] %v445
      %510 = vst [vmem:[%s208 + $0x78] sm:$0xf] %v446
      %511 = vst [vmem:[%s208 + $0x7c] sm:$0xf] %v447
      %s512 = smul.u32 32, %s19
      %p513 = scmp.lt.s32.totalorder %s18, 1
      %s514 = scalar_select %p513, %s18, 1
      %p515 = scmp.lt.s32.totalorder %s512, 31
      %s516 = scalar_select %p515, %s512, 31
      %s517 = smul.addr %s514, 32
      %s518 = sadd.s32 %s516, %s517
      %s519 = smul.addr %s518, 4
      %s520 = scalar_lea.vmem %s3, %s519
      // Predicated region
      $region33: #{a_call__.6} parent=31 // pred_check
        %p521 = pneg %p116
      $region34: #{a_call__.6} parent=31 // pred_check_branch
        %523 = sbr.rel (%p521) target = $region36
      $region35: #{a_call__.6} parent=31 // pred_region
        %s524 = smul.u32 32, %s19
      $region36: #{a_call__.6} parent=31 // pred_fallthru
        _
    $region32: #{a_call__.6} parent=5 // pred_fallthru
      _
    %p525 = scmp.le.s32.totalorder 2, %s9
    // Predicated region
    $region37: #{a_call__.6} parent=5 // pred_check
      %p526 = pneg %p525
    $region38: #{a_call__.6} parent=5 // pred_check_branch
      %528 = sbr.rel (%p526) target = $region40
    $region39: #{a_call__.6} parent=5 // pred_region
      %s529 = ssub.s32 %s9, 2
      // Predicated region
      $region41: #{a_call__.6} parent=39 // pred_check
        %p530 = pneg %p122
      $region42: #{a_call__.6} parent=39 // pred_check_branch
        %532 = sbr.rel (%p530) target = $region44
      $region43: #{a_call__.6} parent=39 // pred_region
        %s533 = smul.u32 32, %s21
        %p534 = scmp.lt.s32.totalorder %s20, 1
        %s535 = scalar_select %p534, %s20, 1
        %p536 = scmp.lt.s32.totalorder %s533, 31
        %s537 = scalar_select %p536, %s533, 31
        %s538 = smul.addr %s535, 32
        %s539 = sadd.s32 %s537, %s538
        %s540 = smul.addr %s539, 4
        %s541 = scalar_lea.vmem %s3, %s540
      $region44: #{a_call__.6} parent=39 // pred_fallthru
        _
    $region40: #{a_call__.6} parent=5 // pred_fallthru
      _
  $region6: #{a_call__.6} parent=0 // loop_footer
    %s13 = sadd.s32 1, %s9
  $region7: #{a_call__.6} parent=0 // loop_footer_branch
    %8 = sbr.rel target = $region3
  $region8: #{a_call__.6} parent=0 // loop_exit
    _

// kernel: a_call__.8
$region0: #{a_call__.8}
  #allocation0 [shape = 'u32[]', space=smem, size = 0x4, offset = 0x4, fixed_abs, tag = 'smem constant byte address 0x4 - core index']
  #allocation1 [shape = 'u32[144,128]{1,0:T(1,128)}', space=vmem, size = 0x12000, scoped, tag = 'internal scratch']
  %s0 = inlined_call_operand.vmem [shape: f32[2,64,128], index: 0, kind: input, shape index: {}]
  %s1 = inlined_call_operand.vmem [shape: f32[1,128], index: 1, kind: input, shape index: {}]
  %s2 = inlined_call_operand.vmem [shape: f32[1,128], index: 2, kind: input, shape index: {}]
  %s3 = inlined_call_operand.vmem [shape: bf16[2,64,128], index: 3, kind: output, shape index: {}]
  %s4 = sld [smem:[#allocation0]]
  $region45: #{a_call__.8} parent=0
    _
  %s6 = ssub.s32 1, %s4
  %s7 = scalar_select 0, %s6, %s4
  loop: start=0, step=1, limit=4
  $region2: #{a_call__.8} parent=0 // loop_pre_header
    _
  $region3: #{a_call__.8} parent=0 // loop_header
    %s9 = sphi 0, %s13
    %p10 = scmp.ge.s32.totalorder %s9, 4
    %s16 = sphi 0, %s28
    %s17 = sphi 0, %s24
    %s18 = sphi 0, %s16
    %s19 = sphi 0, %s17
    %s20 = sphi 0, %s18
    %s21 = sphi 0, %s19
    %s33 = sphi 0, %s35
    %s36 = sphi 0, %s33
    %s37 = sphi 0, %s36
    %s53 = sphi 0, %s37
    %s57 = sphi 0, %s57
    %s59 = sphi 0, %s57
    %s60 = sphi 0, %s59
    %s74 = sphi 0, %s60
    %s78 = sphi 0, %s78
    %s80 = sphi 0, %s78
    %s81 = sphi 0, %s80
    %s95 = sphi 0, %s81
    %s103 = sphi 0, %s105
    %s106 = sphi 0, %s103
    %s107 = sphi 0, %s106
    %s123 = sphi 0, %s107
  $region4: #{a_call__.8} parent=0 // loop_header_branch
    %12 = sbr.rel (%p10) target = $region8
  $region5: #{a_call__.8} parent=0 // loop_body
    %s14 = ssub.s32 %s9, 1
    %s15 = ssub.s32 %s9, 2
    %s22 = sadd.s32 1, %s17
    %p23 = scmp.ge.s32.totalorder %s22, 1
    %s24 = scalar_select %p23, 0, %s22
    %s25 = sadd.s32 1, %s16
    %s26 = scalar_select %p23, %s25, %s16
    %p27 = scmp.ge.s32.totalorder %s26, 2
    %s28 = scalar_select %p27, 0, %s26
    %s29 = ssub.s32 %s16, %s28
    %s30 = ssub.s32 %s17, %s24
    %s31 = sor.u32 %s29, %s30
    %p32 = scmp.eq.s32.totalorder %s31, 0
    %s34 = sadd.s32 %s33, 1
    %s35 = scalar_select %p32, %s33, %s34
    %p38 = pneg %p32
    %p39 = scmp.eq.s32.totalorder %s9, 1
    %p40 = por %p38, %p39
    %p41 = scmp.ne.s32.totalorder %s33, %s36
    %p42 = scmp.eq.s32.totalorder %s9, 0
    %p43 = por %p41, %p42
    %p44 = scmp.ne.s32.totalorder %s33, %s36
    %p45 = scmp.eq.s32.totalorder %s14, 1
    %p46 = por %p44, %p45
    %p47 = scmp.ne.s32.totalorder %s36, %s37
    %p48 = scmp.eq.s32.totalorder %s14, 0
    %p49 = por %p47, %p48
    %p50 = scmp.ne.s32.totalorder %s36, %s37
    %p51 = scmp.eq.s32.totalorder %s15, 1
    %p52 = por %p50, %p51
    %p54 = scmp.ne.s32.totalorder %s37, %s53
    %p55 = scmp.eq.s32.totalorder %s15, 0
    %p56 = por %p54, %p55
    %s58 = sadd.s32 %s57, 1
    %p61 = scmp.eq.s32.totalorder %s9, 1
    %p62 = scmp.ne.s32.totalorder %s57, %s59
    %p63 = scmp.eq.s32.totalorder %s9, 0
    %p64 = por %p62, %p63
    %p65 = scmp.ne.s32.totalorder %s57, %s59
    %p66 = scmp.eq.s32.totalorder %s14, 1
    %p67 = por %p65, %p66
    %p68 = scmp.ne.s32.totalorder %s59, %s60
    %p69 = scmp.eq.s32.totalorder %s14, 0
    %p70 = por %p68, %p69
    %p71 = scmp.ne.s32.totalorder %s59, %s60
    %p72 = scmp.eq.s32.totalorder %s15, 1
    %p73 = por %p71, %p72
    %p75 = scmp.ne.s32.totalorder %s60, %s74
    %p76 = scmp.eq.s32.totalorder %s15, 0
    %p77 = por %p75, %p76
    %s79 = sadd.s32 %s78, 1
    %p82 = scmp.eq.s32.totalorder %s9, 1
    %p83 = scmp.ne.s32.totalorder %s78, %s80
    %p84 = scmp.eq.s32.totalorder %s9, 0
    %p85 = por %p83, %p84
    %p86 = scmp.ne.s32.totalorder %s78, %s80
    %p87 = scmp.eq.s32.totalorder %s14, 1
    %p88 = por %p86, %p87
    %p89 = scmp.ne.s32.totalorder %s80, %s81
    %p90 = scmp.eq.s32.totalorder %s14, 0
    %p91 = por %p89, %p90
    %p92 = scmp.ne.s32.totalorder %s80, %s81
    %p93 = scmp.eq.s32.totalorder %s15, 1
    %p94 = por %p92, %p93
    %p96 = scmp.ne.s32.totalorder %s81, %s95
    %p97 = scmp.eq.s32.totalorder %s15, 0
    %p98 = por %p96, %p97
    %s99 = ssub.s32 %s16, %s28
    %s100 = ssub.s32 %s17, %s24
    %s101 = sor.u32 %s99, %s100
    %p102 = scmp.eq.s32.totalorder %s101, 0
    %s104 = sadd.s32 %s103, 1
    %s105 = scalar_select %p102, %s103, %s104
    %p108 = pneg %p102
    %p109 = scmp.eq.s32.totalorder %s9, 1
    %p110 = por %p108, %p109
    %p111 = scmp.ne.s32.totalorder %s103, %s106
    %p112 = scmp.eq.s32.totalorder %s9, 0
    %p113 = por %p111, %p112
    %p114 = scmp.ne.s32.totalorder %s103, %s106
    %p115 = scmp.eq.s32.totalorder %s14, 1
    %p116 = por %p114, %p115
    %p117 = scmp.ne.s32.totalorder %s106, %s107
    %p118 = scmp.eq.s32.totalorder %s14, 0
    %p119 = por %p117, %p118
    %p120 = scmp.ne.s32.totalorder %s106, %s107
    %p121 = scmp.eq.s32.totalorder %s15, 1
    %p122 = por %p120, %p121
    %p124 = scmp.ne.s32.totalorder %s107, %s123
    %p125 = scmp.eq.s32.totalorder %s15, 0
    %p126 = por %p124, %p125
    %p127 = scmp.le.s32.totalorder 1, %s9
    %p128 = scmp.lt.s32.totalorder %s9, 3
    %p129 = pnand %p127, %p128
    %p130 = pneg %p129
    // Predicated region
    $region9: #{a_call__.8} parent=5 // pred_check
      _
    $region10: #{a_call__.8} parent=5 // pred_check_branch
      %132 = sbr.rel (%p129) target = $region12
    $region11: #{a_call__.8} parent=5 // pred_region
      %s133 = ssub.s32 %s9, 1
      // Predicated region
      $region13: #{a_call__.8} parent=11 // pred_check
        %p134 = pneg %p70
      $region14: #{a_call__.8} parent=11 // pred_check_branch
        %136 = sbr.rel (%p134) target = $region16
      $region15: #{a_call__.8} parent=11 // pred_region
        _
      $region16: #{a_call__.8} parent=11 // pred_fallthru
        _
      // Predicated region
      $region17: #{a_call__.8} parent=11 // pred_check
        %p137 = pneg %p91
      $region18: #{a_call__.8} parent=11 // pred_check_branch
        %139 = sbr.rel (%p137) target = $region20
      $region19: #{a_call__.8} parent=11 // pred_region
        _
      $region20: #{a_call__.8} parent=11 // pred_fallthru
        _
    $region12: #{a_call__.8} parent=5 // pred_fallthru
      _
    %p140 = scmp.lt.s32.totalorder %s9, 2
    // Predicated region
    $region21: #{a_call__.8} parent=5 // pred_check
      %p141 = pneg %p140
    $region22: #{a_call__.8} parent=5 // pred_check_branch
      %143 = sbr.rel (%p141) target = $region24
    $region23: #{a_call__.8} parent=5 // pred_region
      // Predicated region
      $region25: #{a_call__.8} parent=23 // pred_check
        %p144 = pneg %p43
      $region26: #{a_call__.8} parent=23 // pred_check_branch
        %146 = sbr.rel (%p144) target = $region28
      $region27: #{a_call__.8} parent=23 // pred_region
        %s147 = smul.u32 8, %s17
        %p148 = scmp.lt.s32.totalorder %s16, 1
        %s149 = scalar_select %p148, %s16, 1
        %p150 = scmp.lt.s32.totalorder %s147, 7
        %s151 = scalar_select %p150, %s147, 7
        %s152 = smul.addr %s149, 8
        %s153 = sadd.s32 %s151, %s152
        %s154 = smul.addr %s153, 8
        %s155 = scalar_lea.vmem %s0, %s154
        %s156 = smul.u32 8, %s17
      $region28: #{a_call__.8} parent=23 // pred_fallthru
        _
    $region24: #{a_call__.8} parent=5 // pred_fallthru
      _
    %p157 = scmp.le.s32.totalorder 1, %s9
    %p158 = scmp.lt.s32.totalorder %s9, 3
    %p159 = pnand %p157, %p158
    %p160 = pneg %p159
    // Predicated region
    $region29: #{a_call__.8} parent=5 // pred_check
      _
    $region30: #{a_call__.8} parent=5 // pred_check_branch
      %162 = sbr.rel (%p159) target = $region32
    $region31: #{a_call__.8} parent=5 // pred_region
      %s163 = ssub.s32 %s9, 1
      %s164 = smul.u32 8, %s19
      %p165 = scmp.lt.s32.totalorder %s18, 1
      %s166 = scalar_select %p165, %s18, 1
      %p167 = scmp.lt.s32.totalorder %s164, 7
      %s168 = scalar_select %p167, %s164, 7
      %s169 = smul.addr %s166, 8
      %s170 = sadd.s32 %s168, %s169
      %s171 = smul.addr %s170, 8
      %s172 = scalar_lea.vmem %s0, %s171
      %p173 = pneg %p49
      %p174 = pneg %p46
      %p175 = pneg %p70
      %p176 = pneg %p67
      %p177 = pneg %p91
      %p178 = pneg %p88
      %p179 = pneg %p119
      %p180 = pneg %p116
      %s181 = smul.u32 8, %s19
      %p182 = scmp.lt.s32.totalorder %s18, 1
      %s183 = scalar_select %p182, %s18, 1
      %p184 = scmp.lt.s32.totalorder %s181, 7
      %s185 = scalar_select %p184, %s181, 7
      %s186 = smul.addr %s183, 8
      %s187 = sadd.s32 %s185, %s186
      %s188 = smul.addr %s187, 4
      %s189 = scalar_lea.vmem %s3, %s188
      %s190 = smul.u32 8, %s19
      %p191 = scmp.lt.s32.totalorder %s18, 1
      %s192 = scalar_select %p191, %s18, 1
      %p193 = scmp.lt.s32.totalorder %s190, 7
      %s194 = scalar_select %p193, %s190, 7
      %s195 = smul.addr %s192, 8
      %s196 = sadd.s32 %s194, %s195
      %s197 = smul.addr %s196, 8
      %s198 = scalar_lea.vmem %s0, %s197
      %s199 = smul.u32 8, %s19
      %s200 = smul.u32 8, %s19
      %p201 = scmp.lt.s32.totalorder %s18, 1
      %s202 = scalar_select %p201, %s18, 1
      %p203 = scmp.lt.s32.totalorder %s200, 7
      %s204 = scalar_select %p203, %s200, 7
      %s205 = smul.addr %s202, 8
      %s206 = sadd.s32 %s204, %s205
      %s207 = smul.addr %s206, 4
      %s208 = scalar_lea.vmem %s3, %s207
      %s209 = smul.u32 8, %s19
      %v210 = vld [vmem:[%s198] sm:$0xff]
      %v211 = vld [vmem:[%s198 + $0x8] sm:$0xff]
      %v212 = vld [vmem:[%s198 + $0x10] sm:$0xff]
      %v213 = vld [vmem:[%s198 + $0x18] sm:$0xff]
      %v214 = vld [vmem:[%s198 + $0x20] sm:$0xff]
      %v215 = vld [vmem:[%s198 + $0x28] sm:$0xff]
      %v216 = vld [vmem:[%s198 + $0x30] sm:$0xff]
      %v217 = vld [vmem:[%s198 + $0x38] sm:$0xff]
      %v218 = vld [vmem:[%s1] sm:$0x1]
      %v220 = vlaneseq
      %v221 = vshrl.u32 %v220, 7
      %v222 = vsub.s32 0, %v221
      %v223 = vrot.slane %v218, %v222
      %v225 = vmul.f32 %v210, %v223
      %v226 = vmul.f32 %v211, %v223
      %v227 = vmul.f32 %v212, %v223
      %v228 = vmul.f32 %v213, %v223
      %v229 = vmul.f32 %v214, %v223
      %v230 = vmul.f32 %v215, %v223
      %v231 = vmul.f32 %v216, %v223
      %v232 = vmul.f32 %v217, %v223
      %v233 = vld [vmem:[%s2] sm:$0x1]
      %v235 = vlaneseq
      %v236 = vshrl.u32 %v235, 7
      %v237 = vsub.s32 0, %v236
      %v238 = vrot.slane %v233, %v237
      %v240 = vadd.f32 %v225, %v238
      %v241 = vadd.f32 %v226, %v238
      %v242 = vadd.f32 %v227, %v238
      %v243 = vadd.f32 %v228, %v238
      %v244 = vadd.f32 %v229, %v238
      %v245 = vadd.f32 %v230, %v238
      %v246 = vadd.f32 %v231, %v238
      %v247 = vadd.f32 %v232, %v238
      %v248 = vmax.f32 %v240, 0.0
      %v249 = vmax.f32 %v241, 0.0
      %v250 = vmax.f32 %v242, 0.0
      %v251 = vmax.f32 %v243, 0.0
      %v252 = vmax.f32 %v244, 0.0
      %v253 = vmax.f32 %v245, 0.0
      %v254 = vmax.f32 %v246, 0.0
      %v255 = vmax.f32 %v247, 0.0
      %v256 = vpack.c.bf16 %v249, %v248
      %v257 = vpack.c.bf16 %v251, %v250
      %v258 = vpack.c.bf16 %v253, %v252
      %v259 = vpack.c.bf16 %v255, %v254
      %v264 = vunpack.c.l.b16 %v256
      %v265 = vunpack.c.h.b16 %v256
      %v266 = vunpack.c.l.b16 %v257
      %v267 = vunpack.c.h.b16 %v257
      %v268 = vunpack.c.l.b16 %v258
      %v269 = vunpack.c.h.b16 %v258
      %v270 = vunpack.c.l.b16 %v259
      %v271 = vunpack.c.h.b16 %v259
      %v272 = vpack.c.b16 %v264, %v264
      %v273 = vpack.c.b16 %v265, %v265
      %v274 = vpack.c.b16 %v266, %v266
      %v275 = vpack.c.b16 %v267, %v267
      %v276 = vpack.c.b16 %v268, %v268
      %v277 = vpack.c.b16 %v269, %v269
      %v278 = vpack.c.b16 %v270, %v270
      %v279 = vpack.c.b16 %v271, %v271
      %288 = vst [vmem:[%s208] sm:$0xf] %v272
      %289 = vst [vmem:[%s208 + $0x4] sm:$0xf] %v273
      %290 = vst [vmem:[%s208 + $0x8] sm:$0xf] %v274
      %291 = vst [vmem:[%s208 + $0xc] sm:$0xf] %v275
      %292 = vst [vmem:[%s208 + $0x10] sm:$0xf] %v276
      %293 = vst [vmem:[%s208 + $0x14] sm:$0xf] %v277
      %294 = vst [vmem:[%s208 + $0x18] sm:$0xf] %v278
      %295 = vst [vmem:[%s208 + $0x1c] sm:$0xf] %v279
      %s296 = smul.u32 8, %s19
      %p297 = scmp.lt.s32.totalorder %s18, 1
      %s298 = scalar_select %p297, %s18, 1
      %p299 = scmp.lt.s32.totalorder %s296, 7
      %s300 = scalar_select %p299, %s296, 7
      %s301 = smul.addr %s298, 8
      %s302 = sadd.s32 %s300, %s301
      %s303 = smul.addr %s302, 4
      %s304 = scalar_lea.vmem %s3, %s303
      // Predicated region
      $region33: #{a_call__.8} parent=31 // pred_check
        %p305 = pneg %p116
      $region34: #{a_call__.8} parent=31 // pred_check_branch
        %307 = sbr.rel (%p305) target = $region36
      $region35: #{a_call__.8} parent=31 // pred_region
        %s308 = smul.u32 8, %s19
      $region36: #{a_call__.8} parent=31 // pred_fallthru
        _
    $region32: #{a_call__.8} parent=5 // pred_fallthru
      _
    %p309 = scmp.le.s32.totalorder 2, %s9
    // Predicated region
    $region37: #{a_call__.8} parent=5 // pred_check
      %p310 = pneg %p309
    $region38: #{a_call__.8} parent=5 // pred_check_branch
      %312 = sbr.rel (%p310) target = $region40
    $region39: #{a_call__.8} parent=5 // pred_region
      %s313 = ssub.s32 %s9, 2
      // Predicated region
      $region41: #{a_call__.8} parent=39 // pred_check
        %p314 = pneg %p122
      $region42: #{a_call__.8} parent=39 // pred_check_branch
        %316 = sbr.rel (%p314) target = $region44
      $region43: #{a_call__.8} parent=39 // pred_region
        %s317 = smul.u32 8, %s21
        %p318 = scmp.lt.s32.totalorder %s20, 1
        %s319 = scalar_select %p318, %s20, 1
        %p320 = scmp.lt.s32.totalorder %s317, 7
        %s321 = scalar_select %p320, %s317, 7
        %s322 = smul.addr %s319, 8
        %s323 = sadd.s32 %s321, %s322
        %s324 = smul.addr %s323, 4
        %s325 = scalar_lea.vmem %s3, %s324
      $region44: #{a_call__.8} parent=39 // pred_fallthru
        _
    $region40: #{a_call__.8} parent=5 // pred_fallthru
      _
  $region6: #{a_call__.8} parent=0 // loop_footer
    %s13 = sadd.s32 1, %s9
  $region7: #{a_call__.8} parent=0 // loop_footer_branch
    %8 = sbr.rel target = $region3
  $region8: #{a_call__.8} parent=0 // loop_exit
    _

// kernel: a_call__.9
$region0: #{a_call__.9}
  #allocation0 [shape = 'u32[]', space=smem, size = 0x4, offset = 0x4, fixed_abs, tag = 'smem constant byte address 0x4 - core index']
  #allocation1 [shape = 'u32[144,128]{1,0:T(1,128)}', space=vmem, size = 0x12000, scoped, tag = 'internal scratch']
  %s0 = inlined_call_operand.vmem [shape: bf16[2,1,8,8,128], index: 0, kind: input, shape index: {}]
  %s1 = inlined_call_operand.vmem [shape: bf16[1,1,128,128], index: 1, kind: input, shape index: {}]
  %s2 = inlined_call_operand.vmem [shape: f32[1,128], index: 2, kind: input, shape index: {}]
  %s3 = inlined_call_operand.vmem [shape: f32[2,64,128], index: 3, kind: output, shape index: {0}]
  %s4 = inlined_call_operand.hbm [shape: f32[2,1,128], index: 4, kind: output, shape index: {1}]
  %s5 = inlined_call_operand.hbm [shape: f32[2,1,128], index: 5, kind: output, shape index: {2}]
  %6 = xla_tuple %s3, %s4, %s5
  %s7 = sld [smem:[#allocation0]]
  $region61: #{a_call__.9} parent=0
    _
  %s9 = ssub.s32 1, %s7
  %s10 = scalar_select 0, %s9, %s7
  $region1: #{a_call__.9} parent=0
    #allocation2 [shape = 'u8[1024]{0}', space=vmem, size = 0x400, scoped, tag = 'output window, operand 1']
    #allocation3 [shape = 's32[2]{0}', space=sflag, size = 0x8, scoped, tag = 'scoped memory for a_call__.9']
    #allocation4 [shape = 'u8[1024]{0}', space=vmem, size = 0x400, scoped, tag = 'output window, operand 2']
    #allocation5 [shape = 's32[2]{0}', space=sflag, size = 0x8, scoped, tag = 'scoped memory for a_call__.9']
    %11 = vsyncpa [#allocation3], 0
    %s12 = scalar_lea.sflag [#allocation3], 1
    %13 = vsyncpa %s12, 0
    %14 = vsyncpa [#allocation5], 0
    %s15 = scalar_lea.sflag [#allocation5], 1
    %16 = vsyncpa %s15, 0
    loop: start=0, step=1, limit=4
    $region2: #{a_call__.9} parent=1 // loop_pre_header
      _
    $region3: #{a_call__.9} parent=1 // loop_header
      %s18 = sphi 0, %s22
      %p19 = scmp.ge.s32.totalorder %s18, 4
      %s25 = sphi 0, %s37
      %s26 = sphi 0, %s33
      %s27 = sphi 0, %s25
      %s28 = sphi 0, %s26
      %s29 = sphi 0, %s27
      %s30 = sphi 0, %s28
      %s40 = sphi 0, %s42
      %s43 = sphi 0, %s40
      %s44 = sphi 0, %s43
      %s60 = sphi 0, %s44
      %s66 = sphi 0, %s68
      %s69 = sphi 0, %s66
      %s70 = sphi 0, %s69
      %s86 = sphi 0, %s70
      %s92 = sphi 0, %s94
      %s95 = sphi 0, %s92
      %s96 = sphi 0, %s95
      %s112 = sphi 0, %s96
      %s120 = sphi 0, %s122
      %s123 = sphi 0, %s120
      %s124 = sphi 0, %s123
      %s140 = sphi 0, %s124
      %s148 = sphi 0, %s150
      %s151 = sphi 0, %s148
      %s152 = sphi 0, %s151
      %s168 = sphi 0, %s152
      %s176 = sphi 0, %s178
      %s179 = sphi 0, %s176
      %s180 = sphi 0, %s179
      %s196 = sphi 0, %s180
    $region4: #{a_call__.9} parent=1 // loop_header_branch
      %21 = sbr.rel (%p19) target = $region8
    $region5: #{a_call__.9} parent=1 // loop_body
      %s23 = ssub.s32 %s18, 1
      %s24 = ssub.s32 %s18, 2
      %s31 = sadd.s32 1, %s26
      %p32 = scmp.ge.s32.totalorder %s31, 1
      %s33 = scalar_select %p32, 0, %s31
      %s34 = sadd.s32 1, %s25
      %s35 = scalar_select %p32, %s34, %s25
      %p36 = scmp.ge.s32.totalorder %s35, 2
      %s37 = scalar_select %p36, 0, %s35
      %s38 = ssub.s32 %s25, %s37
      %p39 = scmp.eq.s32.totalorder %s38, 0
      %s41 = sadd.s32 %s40, 1
      %s42 = scalar_select %p39, %s40, %s41
      %p45 = pneg %p39
      %p46 = scmp.eq.s32.totalorder %s18, 1
      %p47 = por %p45, %p46
      %p48 = scmp.ne.s32.totalorder %s40, %s43
      %p49 = scmp.eq.s32.totalorder %s18, 0
      %p50 = por %p48, %p49
      %p51 = scmp.ne.s32.totalorder %s40, %s43
      %p52 = scmp.eq.s32.totalorder %s23, 1
      %p53 = por %p51, %p52
      %p54 = scmp.ne.s32.totalorder %s43, %s44
      %p55 = scmp.eq.s32.totalorder %s23, 0
      %p56 = por %p54, %p55
      %p57 = scmp.ne.s32.totalorder %s43, %s44
      %p58 = scmp.eq.s32.totalorder %s24, 1
      %p59 = por %p57, %p58
      %p61 = scmp.ne.s32.totalorder %s44, %s60
      %p62 = scmp.eq.s32.totalorder %s24, 0
      %p63 = por %p61, %p62
      %s64 = ssub.s32 %s26, %s33
      %p65 = scmp.eq.s32.totalorder %s64, 0
      %s67 = sadd.s32 %s66, 1
      %s68 = scalar_select %p65, %s66, %s67
      %p71 = pneg %p65
      %p72 = scmp.eq.s32.totalorder %s18, 1
      %p73 = por %p71, %p72
      %p74 = scmp.ne.s32.totalorder %s66, %s69
      %p75 = scmp.eq.s32.totalorder %s18, 0
      %p76 = por %p74, %p75
      %p77 = scmp.ne.s32.totalorder %s66, %s69
      %p78 = scmp.eq.s32.totalorder %s23, 1
      %p79 = por %p77, %p78
      %p80 = scmp.ne.s32.totalorder %s69, %s70
      %p81 = scmp.eq.s32.totalorder %s23, 0
      %p82 = por %p80, %p81
      %p83 = scmp.ne.s32.totalorder %s69, %s70
      %p84 = scmp.eq.s32.totalorder %s24, 1
      %p85 = por %p83, %p84
      %p87 = scmp.ne.s32.totalorder %s70, %s86
      %p88 = scmp.eq.s32.totalorder %s24, 0
      %p89 = por %p87, %p88
      %s90 = ssub.s32 %s26, %s33
      %p91 = scmp.eq.s32.totalorder %s90, 0
      %s93 = sadd.s32 %s92, 1
      %s94 = scalar_select %p91, %s92, %s93
      %p97 = pneg %p91
      %p98 = scmp.eq.s32.totalorder %s18, 1
      %p99 = por %p97, %p98
      %p100 = scmp.ne.s32.totalorder %s92, %s95
      %p101 = scmp.eq.s32.totalorder %s18, 0
      %p102 = por %p100, %p101
      %p103 = scmp.ne.s32.totalorder %s92, %s95
      %p104 = scmp.eq.s32.totalorder %s23, 1
      %p105 = por %p103, %p104
      %p106 = scmp.ne.s32.totalorder %s95, %s96
      %p107 = scmp.eq.s32.totalorder %s23, 0
      %p108 = por %p106, %p107
      %p109 = scmp.ne.s32.totalorder %s95, %s96
      %p110 = scmp.eq.s32.totalorder %s24, 1
      %p111 = por %p109, %p110
      %p113 = scmp.ne.s32.totalorder %s96, %s112
      %p114 = scmp.eq.s32.totalorder %s24, 0
      %p115 = por %p113, %p114
      %s116 = ssub.s32 %s25, %s37
      %s117 = ssub.s32 %s26, %s33
      %s118 = sor.u32 %s116, %s117
      %p119 = scmp.eq.s32.totalorder %s118, 0
      %s121 = sadd.s32 %s120, 1
      %s122 = scalar_select %p119, %s120, %s121
      %p125 = pneg %p119
      %p126 = scmp.eq.s32.totalorder %s18, 1
      %p127 = por %p125, %p126
      %p128 = scmp.ne.s32.totalorder %s120, %s123
      %p129 = scmp.eq.s32.totalorder %s18, 0
      %p130 = por %p128, %p129
      %p131 = scmp.ne.s32.totalorder %s120, %s123
      %p132 = scmp.eq.s32.totalorder %s23, 1
      %p133 = por %p131, %p132
      %p134 = scmp.ne.s32.totalorder %s123, %s124
      %p135 = scmp.eq.s32.totalorder %s23, 0
      %p136 = por %p134, %p135
      %p137 = scmp.ne.s32.totalorder %s123, %s124
      %p138 = scmp.eq.s32.totalorder %s24, 1
      %p139 = por %p137, %p138
      %p141 = scmp.ne.s32.totalorder %s124, %s140
      %p142 = scmp.eq.s32.totalorder %s24, 0
      %p143 = por %p141, %p142
      %s144 = ssub.s32 %s25, %s37
      %s145 = ssub.s32 %s26, %s33
      %s146 = sor.u32 %s144, %s145
      %p147 = scmp.eq.s32.totalorder %s146, 0
      %s149 = sadd.s32 %s148, 1
      %s150 = scalar_select %p147, %s148, %s149
      %p153 = pneg %p147
      %p154 = scmp.eq.s32.totalorder %s18, 1
      %p155 = por %p153, %p154
      %p156 = scmp.ne.s32.totalorder %s148, %s151
      %p157 = scmp.eq.s32.totalorder %s18, 0
      %p158 = por %p156, %p157
      %p159 = scmp.ne.s32.totalorder %s148, %s151
      %p160 = scmp.eq.s32.totalorder %s23, 1
      %p161 = por %p159, %p160
      %p162 = scmp.ne.s32.totalorder %s151, %s152
      %p163 = scmp.eq.s32.totalorder %s23, 0
      %p164 = por %p162, %p163
      %p165 = scmp.ne.s32.totalorder %s151, %s152
      %p166 = scmp.eq.s32.totalorder %s24, 1
      %p167 = por %p165, %p166
      %p169 = scmp.ne.s32.totalorder %s152, %s168
      %p170 = scmp.eq.s32.totalorder %s24, 0
      %p171 = por %p169, %p170
      %s172 = ssub.s32 %s25, %s37
      %s173 = ssub.s32 %s26, %s33
      %s174 = sor.u32 %s172, %s173
      %p175 = scmp.eq.s32.totalorder %s174, 0
      %s177 = sadd.s32 %s176, 1
      %s178 = scalar_select %p175, %s176, %s177
      %p181 = pneg %p175
      %p182 = scmp.eq.s32.totalorder %s18, 1
      %p183 = por %p181, %p182
      %p184 = scmp.ne.s32.totalorder %s176, %s179
      %p185 = scmp.eq.s32.totalorder %s18, 0
      %p186 = por %p184, %p185
      %p187 = scmp.ne.s32.totalorder %s176, %s179
      %p188 = scmp.eq.s32.totalorder %s23, 1
      %p189 = por %p187, %p188
      %p190 = scmp.ne.s32.totalorder %s179, %s180
      %p191 = scmp.eq.s32.totalorder %s23, 0
      %p192 = por %p190, %p191
      %p193 = scmp.ne.s32.totalorder %s179, %s180
      %p194 = scmp.eq.s32.totalorder %s24, 1
      %p195 = por %p193, %p194
      %p197 = scmp.ne.s32.totalorder %s180, %s196
      %p198 = scmp.eq.s32.totalorder %s24, 0
      %p199 = por %p197, %p198
      %p200 = scmp.le.s32.totalorder 1, %s18
      %p201 = scmp.lt.s32.totalorder %s18, 3
      %p202 = pnand %p200, %p201
      %p203 = pneg %p202
      // Predicated region
      $region9: #{a_call__.9} parent=5 // pred_check
        _
      $region10: #{a_call__.9} parent=5 // pred_check_branch
        %205 = sbr.rel (%p202) target = $region12
      $region11: #{a_call__.9} parent=5 // pred_region
        %s206 = ssub.s32 %s18, 1
        // Predicated region
        $region13: #{a_call__.9} parent=11 // pred_check
          %p207 = pneg %p82
        $region14: #{a_call__.9} parent=11 // pred_check_branch
          %209 = sbr.rel (%p207) target = $region16
        $region15: #{a_call__.9} parent=11 // pred_region
          %p210 = scmp.lt.s32.totalorder %s28, 0
          %s211 = scalar_select %p210, %s28, 0
          %s212 = smul.addr %s211, 4
          %s213 = scalar_lea.vmem %s1, %s212
        $region16: #{a_call__.9} parent=11 // pred_fallthru
          _
        // Predicated region
        $region17: #{a_call__.9} parent=11 // pred_check
          %p214 = pneg %p108
        $region18: #{a_call__.9} parent=11 // pred_check_branch
          %216 = sbr.rel (%p214) target = $region20
        $region19: #{a_call__.9} parent=11 // pred_region
          %p217 = scmp.lt.s32.totalorder %s28, 0
          %s218 = scalar_select %p217, %s28, 0
          %s219 = scalar_lea.vmem %s2, %s218
        $region20: #{a_call__.9} parent=11 // pred_fallthru
          _
      $region12: #{a_call__.9} parent=5 // pred_fallthru
        _
      %p220 = scmp.lt.s32.totalorder %s18, 2
      // Predicated region
      $region21: #{a_call__.9} parent=5 // pred_check
        %p221 = pneg %p220
      $region22: #{a_call__.9} parent=5 // pred_check_branch
        %223 = sbr.rel (%p221) target = $region24
      $region23: #{a_call__.9} parent=5 // pred_region
        // Predicated region
        $region25: #{a_call__.9} parent=23 // pred_check
          %p224 = pneg %p50
        $region26: #{a_call__.9} parent=23 // pred_check_branch
          %226 = sbr.rel (%p224) target = $region28
        $region27: #{a_call__.9} parent=23 // pred_region
          %p227 = scmp.lt.s32.totalorder %s25, 1
          %s228 = scalar_select %p227, %s25, 1
          %s229 = smul.addr %s228, 8
          %s230 = smul.addr %s229, 4
          %s231 = scalar_lea.vmem %s0, %s230
        $region28: #{a_call__.9} parent=23 // pred_fallthru
          _
      $region24: #{a_call__.9} parent=5 // pred_fallthru
        _
      %p232 = scmp.le.s32.totalorder 1, %s18
      %p233 = scmp.lt.s32.totalorder %s18, 3
      %p234 = pnand %p232, %p233
      %p235 = pneg %p234
      // Predicated region
      $region29: #{a_call__.9} parent=5 // pred_check
        _
      $region30: #{a_call__.9} parent=5 // pred_check_branch
        %237 = sbr.rel (%p234) target = $region32
      $region31: #{a_call__.9} parent=5 // pred_region
        %s238 = ssub.s32 %s18, 1
        %p239 = scmp.lt.s32.totalorder %s27, 1
        %s240 = scalar_select %p239, %s27, 1
        %s241 = smul.addr %s240, 8
        %s242 = smul.addr %s241, 4
        %s243 = scalar_lea.vmem %s0, %s242
        %p244 = pneg %p56
        %p245 = pneg %p53
        %p246 = scmp.lt.s32.totalorder %s28, 0
        %s247 = scalar_select %p246, %s28, 0
        %s248 = smul.addr %s247, 4
        %s249 = scalar_lea.vmem %s1, %s248
        %p250 = pneg %p82
        %p251 = pneg %p79
        %p252 = scmp.lt.s32.totalorder %s28, 0
        %s253 = scalar_select %p252, %s28, 0
        %s254 = scalar_lea.vmem %s2, %s253
        %p255 = pneg %p108
        %p256 = pneg %p105
        %p257 = pneg %p136
        %p258 = pneg %p133
        %p259 = scmp.lt.s32.totalorder %s27, 1
        %s260 = scalar_select %p259, %s27, 1
        %p261 = scmp.lt.s32.totalorder %s28, 0
        %s262 = scalar_select %p261, %s28, 0
        %s263 = smul.addr %s260, 8
        %s264 = sadd.s32 %s262, %s263
        %s265 = smul.addr %s264, 8
        %s266 = scalar_lea.vmem %s3, %s265
        %p267 = pneg %p164
        %p268 = pneg %p161
        %s269 = sand.u32 %s151, 1
        %s270 = scalar_lea.sflag [#allocation3], %s269
        %s271 = sand.u32 %s151, 1
        %s272 = scalar_lea.vmem [#allocation2], %s271
        %p273 = pneg %p192
        %p274 = pneg %p189
        %s275 = sand.u32 %s179, 1
        %s276 = scalar_lea.sflag [#allocation5], %s275
        %s277 = sand.u32 %s179, 1
        %s278 = scalar_lea.vmem [#allocation4], %s277
        %p279 = scmp.lt.s32.totalorder %s27, 1
        %s280 = scalar_select %p279, %s27, 1
        %s281 = smul.addr %s280, 8
        %s282 = smul.addr %s281, 4
        %s283 = scalar_lea.vmem %s0, %s282
        %p284 = scmp.lt.s32.totalorder %s28, 0
        %s285 = scalar_select %p284, %s28, 0
        %s286 = smul.addr %s285, 4
        %s287 = scalar_lea.vmem %s1, %s286
        %p288 = scmp.lt.s32.totalorder %s28, 0
        %s289 = scalar_select %p288, %s28, 0
        %s290 = scalar_lea.vmem %s2, %s289
        %p291 = scmp.lt.s32.totalorder %s27, 1
        %s292 = scalar_select %p291, %s27, 1
        %p293 = scmp.lt.s32.totalorder %s28, 0
        %s294 = scalar_select %p293, %s28, 0
        %s295 = smul.addr %s292, 8
        %s296 = sadd.s32 %s294, %s295
        %s297 = smul.addr %s296, 8
        %s298 = scalar_lea.vmem %s3, %s297
        %v300 = vld [vmem:[%s283] sm:$0xf]
        %v301 = vld [vmem:[%s283 + $0x4] sm:$0xf]
        %v302 = vld [vmem:[%s283 + $0x8] sm:$0xf]
        %v303 = vld [vmem:[%s283 + $0xc] sm:$0xf]
        %v304 = vld [vmem:[%s283 + $0x10] sm:$0xf]
        %v305 = vld [vmem:[%s283 + $0x14] sm:$0xf]
        %v306 = vld [vmem:[%s283 + $0x18] sm:$0xf]
        %v307 = vld [vmem:[%s283 + $0x1c] sm:$0xf]
        %v308 = vld [vmem:[%s287] sm:$0xf]
        %v309 = vld [vmem:[%s287 + $0x4] sm:$0xf]
        %v310 = vld [vmem:[%s287 + $0x8] sm:$0xf]
        %v311 = vld [vmem:[%s287 + $0xc] sm:$0xf]
        %v312 = vld [vmem:[%s287 + $0x10] sm:$0xf]
        %v313 = vld [vmem:[%s287 + $0x14] sm:$0xf]
        %v314 = vld [vmem:[%s287 + $0x18] sm:$0xf]
        %v315 = vld [vmem:[%s287 + $0x1c] sm:$0xf]
        %v316 = vld [vmem:[%s287 + $0x20] sm:$0xf]
        %v317 = vld [vmem:[%s287 + $0x24] sm:$0xf]
        %v318 = vld [vmem:[%s287 + $0x28] sm:$0xf]
        %v319 = vld [vmem:[%s287 + $0x2c] sm:$0xf]
        %v320 = vld [vmem:[%s287 + $0x30] sm:$0xf]
        %v321 = vld [vmem:[%s287 + $0x34] sm:$0xf]
        %v322 = vld [vmem:[%s287 + $0x38] sm:$0xf]
        %v323 = vld [vmem:[%s287 + $0x3c] sm:$0xf]
        %v324 = vld [vmem:[%s290] sm:$0x1]
        %v326 = vlaneseq
        %v327 = vshrl.u32 %v326, 7
        %v328 = vsub.s32 0, %v327
        %v329 = vrot.slane %v324, %v328
        %v339 = vunpack.c.l.b16 %v300
        %v340 = vunpack.c.l.b16 %v301
        %v341 = vunpack.c.l.b16 %v302
        %v342 = vunpack.c.l.b16 %v303
        %v343 = vunpack.c.l.b16 %v304
        %v344 = vunpack.c.l.b16 %v305
        %v345 = vunpack.c.l.b16 %v306
        %v346 = vunpack.c.l.b16 %v307
        %v347 = vpack.c.b16 %v340, %v339
        %v348 = vpack.c.b16 %v342, %v341
        %v349 = vpack.c.b16 %v344, %v343
        %v350 = vpack.c.b16 %v346, %v345
        %v371 = vunpack.c.l.b16 %v308
        %v372 = vunpack.c.l.b16 %v309
        %v373 = vunpack.c.l.b16 %v310
        %v374 = vunpack.c.l.b16 %v311
        %v375 = vunpack.c.l.b16 %v312
        %v376 = vunpack.c.l.b16 %v313
        %v377 = vunpack.c.l.b16 %v314
        %v378 = vunpack.c.l.b16 %v315
        %v379 = vunpack.c.l.b16 %v316
        %v380 = vunpack.c.l.b16 %v317
        %v381 = vunpack.c.l.b16 %v318
        %v382 = vunpack.c.l.b16 %v319
        %v383 = vunpack.c.l.b16 %v320
        %v384 = vunpack.c.l.b16 %v321
        %v385 = vunpack.c.l.b16 %v322
        %v386 = vunpack.c.l.b16 %v323
        %v387 = vpack.c.b16 %v372, %v371
        %v388 = vpack.c.b16 %v374, %v373
        %v389 = vpack.c.b16 %v376, %v375
        %v390 = vpack.c.b16 %v378, %v377
        %v391 = vpack.c.b16 %v380, %v379
        %v392 = vpack.c.b16 %v382, %v381
        %v393 = vpack.c.b16 %v384, %v383
        %v394 = vpack.c.b16 %v386, %v385
        %403 = vmatprep.subr.bf16.mxu0 0
        %404 = vmatpush1.bf16.msra.mxu0 %v387
        %405 = vmatprep.subr.bf16.mxu0 0
        %406 = vmatpush1.bf16.msra.mxu0 %v388
        %407 = vmatprep.subr.bf16.mxu0 0
        %408 = vmatpush1.bf16.msra.mxu0 %v389
        %409 = vmatprep.subr.bf16.mxu0 0
        %410 = vmatpush1.bf16.msra.mxu0 %v390
        %411 = vmatprep.subr.bf16.mxu0 0
        %412 = vmatpush1.bf16.msra.mxu0 %v391
        %413 = vmatprep.subr.bf16.mxu0 0
        %414 = vmatpush1.bf16.msra.mxu0 %v392
        %415 = vmatprep.subr.bf16.mxu0 0
        %416 = vmatpush1.bf16.msra.mxu0 %v393
        %417 = vmatprep.subr.bf16.mxu0 0
        %418 = vmatpush1.bf16.msra.mxu0 %v394
        %419 = vmatprep.subr.bf16.mxu0 0
        %420 = vmatpush1.bf16.msra.mxu0 0
        %421 = vmatprep.subr.bf16.mxu0 0
        %422 = vmatpush1.bf16.msra.mxu0 0
        %423 = vmatprep.subr.bf16.mxu0 0
        %424 = vmatpush1.bf16.msra.mxu0 0
        %425 = vmatprep.subr.bf16.mxu0 0
        %426 = vmatpush1.bf16.msra.mxu0 0
        %427 = vmatprep.subr.bf16.mxu0 0
        %428 = vmatpush1.bf16.msra.mxu0 0
        %429 = vmatprep.subr.bf16.mxu0 0
        %430 = vmatpush1.bf16.msra.mxu0 0
        %431 = vmatprep.subr.bf16.mxu0 0
        %432 = vmatpush1.bf16.msra.mxu0 0
        %433 = vmatprep.subr.bf16.mxu0 0
        %434 = vmatpush1.bf16.msra.mxu0 0
        %435 = vmatprep.mubr.bf16.mxu0 0
        %436 = vmatmul.mubr.bf16.gmra.mrb[0].mxu0 %v347
        %v437 = vpop.f32.mrb[0].mxu0
        %v438 = vadd.f32 %v329, %v437
        %v439 = vpop.f32.mrb[0].mxu0
        %v440 = vpop.f32.mrb[0].mxu0
        %v441 = vadd.f32 %v329, %v440
        %v442 = vpop.f32.mrb[0].mxu0
        %443 = vmatprep.mubr.bf16.mxu0 0
        %444 = vmatmul.mubr.bf16.gmra.mrb[0].mxu0 %v348
        %v445 = vpop.f32.mrb[0].mxu0
        %v446 = vadd.f32 %v329, %v445
        %v447 = vpop.f32.mrb[0].mxu0
        %v448 = vpop.f32.mrb[0].mxu0
        %v449 = vadd.f32 %v329, %v448
        %v450 = vpop.f32.mrb[0].mxu0
        %451 = vmatprep.mubr.bf16.mxu0 0
        %452 = vmatmul.mubr.bf16.gmra.mrb[0].mxu0 %v349
        %v453 = vpop.f32.mrb[0].mxu0
        %v454 = vadd.f32 %v329, %v453
        %v455 = vpop.f32.mrb[0].mxu0
        %v456 = vpop.f32.mrb[0].mxu0
        %v457 = vadd.f32 %v329, %v456
        %v458 = vpop.f32.mrb[0].mxu0
        %459 = vmatprep.mubr.bf16.mxu0 0
        %460 = vmatmul.mubr.bf16.gmra.mrb[0].mxu0 %v350
        %v461 = vpop.f32.mrb[0].mxu0
        %v462 = vadd.f32 %v329, %v461
        %v463 = vpop.f32.mrb[0].mxu0
        %v464 = vpop.f32.mrb[0].mxu0
        %v465 = vadd.f32 %v329, %v464
        %v466 = vpop.f32.mrb[0].mxu0
        %467 = vdwg.mxu0
        %468 = vst [vmem:[%s298] sm:$0xff] %v438
        %469 = vst [vmem:[%s298 + $0x8] sm:$0xff] %v441
        %470 = vst [vmem:[%s298 + $0x10] sm:$0xff] %v446
        %471 = vst [vmem:[%s298 + $0x18] sm:$0xff] %v449
        %472 = vst [vmem:[%s298 + $0x20] sm:$0xff] %v454
        %473 = vst [vmem:[%s298 + $0x28] sm:$0xff] %v457
        %474 = vst [vmem:[%s298 + $0x30] sm:$0xff] %v462
        %475 = vst [vmem:[%s298 + $0x38] sm:$0xff] %v465
        %v476 = vadd.f32 %v438, %v441
        %v477 = vadd.f32 %v476, %v446
        %v478 = vadd.f32 %v477, %v449
        %v479 = vadd.f32 %v478, %v454
        %v480 = vadd.f32 %v479, %v457
        %v481 = vadd.f32 %v480, %v462
        %v482 = vadd.f32 %v481, %v465
        %v483 = vrot.slane %v482, 4
        %v484 = vadd.f32 %v482, %v483
        %v485 = vrot.slane %v484, 2
        %v486 = vadd.f32 %v484, %v485
        %v487 = vrot.slane %v486, 1
        %v488 = vadd.f32 %v486, %v487
        %489 = vst [vmem:[%s272] sm:$0x1] %v488
        %v490 = vmul.f32 %v438, %v438
        %v491 = vmul.f32 %v441, %v441
        %v492 = vmul.f32 %v446, %v446
        %v493 = vmul.f32 %v449, %v449
        %v494 = vmul.f32 %v454, %v454
        %v495 = vmul.f32 %v457, %v457
        %v496 = vmul.f32 %v462, %v462
        %v497 = vmul.f32 %v465, %v465
        %v498 = vadd.f32 %v490, %v491
        %v499 = vadd.f32 %v498, %v492
        %v500 = vadd.f32 %v499, %v493
        %v501 = vadd.f32 %v500, %v494
        %v502 = vadd.f32 %v501, %v495
        %v503 = vadd.f32 %v502, %v496
        %v504 = vadd.f32 %v503, %v497
        %v505 = vrot.slane %v504, 4
        %v506 = vadd.f32 %v504, %v505
        %v507 = vrot.slane %v506, 2
        %v508 = vadd.f32 %v506, %v507
        %v509 = vrot.slane %v508, 1
        %v510 = vadd.f32 %v508, %v509
        %511 = vst [vmem:[%s278] sm:$0x1] %v510
        %p512 = scmp.lt.s32.totalorder %s27, 1
        %s513 = scalar_select %p512, %s27, 1
        %p514 = scmp.lt.s32.totalorder %s28, 0
        %s515 = scalar_select %p514, %s28, 0
        %s516 = smul.addr %s513, 8
        %s517 = sadd.s32 %s515, %s516
        %s518 = smul.addr %s517, 8
        %s519 = scalar_lea.vmem %s3, %s518
        %s520 = sand.u32 %s151, 1
        %s521 = scalar_lea.sflag [#allocation3], %s520
        %s522 = sand.u32 %s151, 1
        %s523 = scalar_lea.vmem [#allocation2], %s522
        %s524 = sand.u32 %s179, 1
        %s525 = scalar_lea.sflag [#allocation5], %s524
        %s526 = sand.u32 %s179, 1
        %s527 = scalar_lea.vmem [#allocation4], %s526
        // Predicated region
        $region33: #{a_call__.9} parent=31 // pred_check
          %p528 = pneg %p133
        $region34: #{a_call__.9} parent=31 // pred_check_branch
          %530 = sbr.rel (%p528) target = $region36
        $region35: #{a_call__.9} parent=31 // pred_region
          _
        $region36: #{a_call__.9} parent=31 // pred_fallthru
          _
        // Predicated region
        $region37: #{a_call__.9} parent=31 // pred_check
          %p531 = pneg %p161
        $region38: #{a_call__.9} parent=31 // pred_check_branch
          %533 = sbr.rel (%p531) target = $region40
        $region39: #{a_call__.9} parent=31 // pred_region
          %s535 = ssub.s32 16, 16
          %536 = vsyncadd %s521, %s535
          %s537 = sadd.s32 %s28, %s27
          %s538 = smul.addr %s537, 16
          %s539 = scalar_lea.hbm %s4, %s538
          %s541 = sshll.u32 %s523, 4
          %s542 = int_to_ptr.vmem [resolvable:$true] %s541
          %544 = dma.vmem_to_hbm [thread:$0]  %s542, 16, %s539, %s521
        $region40: #{a_call__.9} parent=31 // pred_fallthru
          _
        // Predicated region
        $region41: #{a_call__.9} parent=31 // pred_check
          %p545 = pneg %p189
        $region42: #{a_call__.9} parent=31 // pred_check_branch
          %547 = sbr.rel (%p545) target = $region44
        $region43: #{a_call__.9} parent=31 // pred_region
          %s549 = ssub.s32 16, 16
          %550 = vsyncadd %s525, %s549
          %s551 = sadd.s32 %s28, %s27
          %s552 = smul.addr %s551, 16
          %s553 = scalar_lea.hbm %s5, %s552
          %s555 = sshll.u32 %s527, 4
          %s556 = int_to_ptr.vmem [resolvable:$true] %s555
          %558 = dma.vmem_to_hbm [thread:$0]  %s556, 16, %s553, %s525
        $region44: #{a_call__.9} parent=31 // pred_fallthru
          _
      $region32: #{a_call__.9} parent=5 // pred_fallthru
        _
      %p559 = scmp.le.s32.totalorder 2, %s18
      // Predicated region
      $region45: #{a_call__.9} parent=5 // pred_check
        %p560 = pneg %p559
      $region46: #{a_call__.9} parent=5 // pred_check_branch
        %562 = sbr.rel (%p560) target = $region48
      $region47: #{a_call__.9} parent=5 // pred_region
        %s563 = ssub.s32 %s18, 2
        // Predicated region
        $region49: #{a_call__.9} parent=47 // pred_check
          %p564 = pneg %p139
        $region50: #{a_call__.9} parent=47 // pred_check_branch
          %566 = sbr.rel (%p564) target = $region52
        $region51: #{a_call__.9} parent=47 // pred_region
          %p567 = scmp.lt.s32.totalorder %s29, 1
          %s568 = scalar_select %p567, %s29, 1
          %p569 = scmp.lt.s32.totalorder %s30, 0
          %s570 = scalar_select %p569, %s30, 0
          %s571 = smul.addr %s568, 8
          %s572 = sadd.s32 %s570, %s571
          %s573 = smul.addr %s572, 8
          %s574 = scalar_lea.vmem %s3, %s573
        $region52: #{a_call__.9} parent=47 // pred_fallthru
          _
        // Predicated region
        $region53: #{a_call__.9} parent=47 // pred_check
          %p575 = pneg %p167
        $region54: #{a_call__.9} parent=47 // pred_check_branch
          %577 = sbr.rel (%p575) target = $region56
        $region55: #{a_call__.9} parent=47 // pred_region
          %s578 = sand.u32 %s152, 1
          %s579 = scalar_lea.sflag [#allocation3], %s578
          %s580 = sand.u32 %s152, 1
          %s581 = scalar_lea.vmem [#allocation2], %s580
          %582 = dma.done %s579, 16
        $region56: #{a_call__.9} parent=47 // pred_fallthru
          _
        // Predicated region
        $region57: #{a_call__.9} parent=47 // pred_check
          %p583 = pneg %p195
        $region58: #{a_call__.9} parent=47 // pred_check_branch
          %585 = sbr.rel (%p583) target = $region60
        $region59: #{a_call__.9} parent=47 // pred_region
          %s586 = sand.u32 %s180, 1
          %s587 = scalar_lea.sflag [#allocation5], %s586
          %s588 = sand.u32 %s180, 1
          %s589 = scalar_lea.vmem [#allocation4], %s588
          %590 = dma.done %s587, 16
        $region60: #{a_call__.9} parent=47 // pred_fallthru
          _
      $region48: #{a_call__.9} parent=5 // pred_fallthru
        _
    $region6: #{a_call__.9} parent=1 // loop_footer
      %s22 = sadd.s32 1, %s18
    $region7: #{a_call__.9} parent=1 // loop_footer_branch
      %17 = sbr.rel target = $region3
    $region8: #{a_call__.9} parent=1 // loop_exit
      _
    %591 = vsyncpa [#allocation3], 1
    %s592 = scalar_lea.sflag [#allocation3], 1
    %593 = vsyncpa %s592, 1
    %594 = vsyncpa [#allocation5], 1
    %s595 = scalar_lea.sflag [#allocation5], 1
    %596 = vsyncpa %s595, 1

// kernel: a_call__.7
$region0: #{a_call__.7}
  #allocation0 [shape = 'u32[]', space=smem, size = 0x4, offset = 0x4, fixed_abs, tag = 'smem constant byte address 0x4 - core index']
  #allocation1 [shape = 'u32[144,128]{1,0:T(1,128)}', space=vmem, size = 0x12000, scoped, tag = 'internal scratch']
  %s0 = inlined_call_operand.vmem [shape: bf16[2,4,9,9,128], index: 0, kind: input, shape index: {}]
  %s1 = inlined_call_operand.vmem [shape: bf16[3,3,128,128], index: 1, kind: input, shape index: {}]
  %s2 = inlined_call_operand.vmem [shape: f32[1,128], index: 2, kind: input, shape index: {}]
  %s3 = inlined_call_operand.vmem [shape: f32[2,64,128], index: 3, kind: output, shape index: {0}]
  %s4 = inlined_call_operand.vmem [shape: f32[2,1,128], index: 4, kind: output, shape index: {1}]
  %s5 = inlined_call_operand.vmem [shape: f32[2,1,128], index: 5, kind: output, shape index: {2}]
  %6 = xla_tuple %s3, %s4, %s5
  %s7 = sld [smem:[#allocation0]]
  $region61: #{a_call__.7} parent=0
    _
  %s9 = ssub.s32 1, %s7
  %s10 = scalar_select 0, %s9, %s7
  loop: start=0, step=1, limit=4
  $region2: #{a_call__.7} parent=0 // loop_pre_header
    _
  $region3: #{a_call__.7} parent=0 // loop_header
    %s12 = sphi 0, %s16
    %p13 = scmp.ge.s32.totalorder %s12, 4
    %s19 = sphi 0, %s31
    %s20 = sphi 0, %s27
    %s21 = sphi 0, %s19
    %s22 = sphi 0, %s20
    %s23 = sphi 0, %s21
    %s24 = sphi 0, %s22
    %s34 = sphi 0, %s36
    %s37 = sphi 0, %s34
    %s38 = sphi 0, %s37
    %s54 = sphi 0, %s38
    %s60 = sphi 0, %s62
    %s63 = sphi 0, %s60
    %s64 = sphi 0, %s63
    %s80 = sphi 0, %s64
    %s86 = sphi 0, %s88
    %s89 = sphi 0, %s86
    %s90 = sphi 0, %s89
    %s106 = sphi 0, %s90
    %s114 = sphi 0, %s116
    %s117 = sphi 0, %s114
    %s118 = sphi 0, %s117
    %s134 = sphi 0, %s118
    %s142 = sphi 0, %s144
    %s145 = sphi 0, %s142
    %s146 = sphi 0, %s145
    %s162 = sphi 0, %s146
    %s170 = sphi 0, %s172
    %s173 = sphi 0, %s170
    %s174 = sphi 0, %s173
    %s190 = sphi 0, %s174
  $region4: #{a_call__.7} parent=0 // loop_header_branch
    %15 = sbr.rel (%p13) target = $region8
  $region5: #{a_call__.7} parent=0 // loop_body
    %s17 = ssub.s32 %s12, 1
    %s18 = ssub.s32 %s12, 2
    %s25 = sadd.s32 1, %s20
    %p26 = scmp.ge.s32.totalorder %s25, 1
    %s27 = scalar_select %p26, 0, %s25
    %s28 = sadd.s32 1, %s19
    %s29 = scalar_select %p26, %s28, %s19
    %p30 = scmp.ge.s32.totalorder %s29, 2
    %s31 = scalar_select %p30, 0, %s29
    %s32 = ssub.s32 %s19, %s31
    %p33 = scmp.eq.s32.totalorder %s32, 0
    %s35 = sadd.s32 %s34, 1
    %s36 = scalar_select %p33, %s34, %s35
    %p39 = pneg %p33
    %p40 = scmp.eq.s32.totalorder %s12, 1
    %p41 = por %p39, %p40
    %p42 = scmp.ne.s32.totalorder %s34, %s37
    %p43 = scmp.eq.s32.totalorder %s12, 0
    %p44 = por %p42, %p43
    %p45 = scmp.ne.s32.totalorder %s34, %s37
    %p46 = scmp.eq.s32.totalorder %s17, 1
    %p47 = por %p45, %p46
    %p48 = scmp.ne.s32.totalorder %s37, %s38
    %p49 = scmp.eq.s32.totalorder %s17, 0
    %p50 = por %p48, %p49
    %p51 = scmp.ne.s32.totalorder %s37, %s38
    %p52 = scmp.eq.s32.totalorder %s18, 1
    %p53 = por %p51, %p52
    %p55 = scmp.ne.s32.totalorder %s38, %s54
    %p56 = scmp.eq.s32.totalorder %s18, 0
    %p57 = por %p55, %p56
    %s58 = ssub.s32 %s20, %s27
    %p59 = scmp.eq.s32.totalorder %s58, 0
    %s61 = sadd.s32 %s60, 1
    %s62 = scalar_select %p59, %s60, %s61
    %p65 = pneg %p59
    %p66 = scmp.eq.s32.totalorder %s12, 1
    %p67 = por %p65, %p66
    %p68 = scmp.ne.s32.totalorder %s60, %s63
    %p69 = scmp.eq.s32.totalorder %s12, 0
    %p70 = por %p68, %p69
    %p71 = scmp.ne.s32.totalorder %s60, %s63
    %p72 = scmp.eq.s32.totalorder %s17, 1
    %p73 = por %p71, %p72
    %p74 = scmp.ne.s32.totalorder %s63, %s64
    %p75 = scmp.eq.s32.totalorder %s17, 0
    %p76 = por %p74, %p75
    %p77 = scmp.ne.s32.totalorder %s63, %s64
    %p78 = scmp.eq.s32.totalorder %s18, 1
    %p79 = por %p77, %p78
    %p81 = scmp.ne.s32.totalorder %s64, %s80
    %p82 = scmp.eq.s32.totalorder %s18, 0
    %p83 = por %p81, %p82
    %s84 = ssub.s32 %s20, %s27
    %p85 = scmp.eq.s32.totalorder %s84, 0
    %s87 = sadd.s32 %s86, 1
    %s88 = scalar_select %p85, %s86, %s87
    %p91 = pneg %p85
    %p92 = scmp.eq.s32.totalorder %s12, 1
    %p93 = por %p91, %p92
    %p94 = scmp.ne.s32.totalorder %s86, %s89
    %p95 = scmp.eq.s32.totalorder %s12, 0
    %p96 = por %p94, %p95
    %p97 = scmp.ne.s32.totalorder %s86, %s89
    %p98 = scmp.eq.s32.totalorder %s17, 1
    %p99 = por %p97, %p98
    %p100 = scmp.ne.s32.totalorder %s89, %s90
    %p101 = scmp.eq.s32.totalorder %s17, 0
    %p102 = por %p100, %p101
    %p103 = scmp.ne.s32.totalorder %s89, %s90
    %p104 = scmp.eq.s32.totalorder %s18, 1
    %p105 = por %p103, %p104
    %p107 = scmp.ne.s32.totalorder %s90, %s106
    %p108 = scmp.eq.s32.totalorder %s18, 0
    %p109 = por %p107, %p108
    %s110 = ssub.s32 %s19, %s31
    %s111 = ssub.s32 %s20, %s27
    %s112 = sor.u32 %s110, %s111
    %p113 = scmp.eq.s32.totalorder %s112, 0
    %s115 = sadd.s32 %s114, 1
    %s116 = scalar_select %p113, %s114, %s115
    %p119 = pneg %p113
    %p120 = scmp.eq.s32.totalorder %s12, 1
    %p121 = por %p119, %p120
    %p122 = scmp.ne.s32.totalorder %s114, %s117
    %p123 = scmp.eq.s32.totalorder %s12, 0
    %p124 = por %p122, %p123
    %p125 = scmp.ne.s32.totalorder %s114, %s117
    %p126 = scmp.eq.s32.totalorder %s17, 1
    %p127 = por %p125, %p126
    %p128 = scmp.ne.s32.totalorder %s117, %s118
    %p129 = scmp.eq.s32.totalorder %s17, 0
    %p130 = por %p128, %p129
    %p131 = scmp.ne.s32.totalorder %s117, %s118
    %p132 = scmp.eq.s32.totalorder %s18, 1
    %p133 = por %p131, %p132
    %p135 = scmp.ne.s32.totalorder %s118, %s134
    %p136 = scmp.eq.s32.totalorder %s18, 0
    %p137 = por %p135, %p136
    %s138 = ssub.s32 %s19, %s31
    %s139 = ssub.s32 %s20, %s27
    %s140 = sor.u32 %s138, %s139
    %p141 = scmp.eq.s32.totalorder %s140, 0
    %s143 = sadd.s32 %s142, 1
    %s144 = scalar_select %p141, %s142, %s143
    %p147 = pneg %p141
    %p148 = scmp.eq.s32.totalorder %s12, 1
    %p149 = por %p147, %p148
    %p150 = scmp.ne.s32.totalorder %s142, %s145
    %p151 = scmp.eq.s32.totalorder %s12, 0
    %p152 = por %p150, %p151
    %p153 = scmp.ne.s32.totalorder %s142, %s145
    %p154 = scmp.eq.s32.totalorder %s17, 1
    %p155 = por %p153, %p154
    %p156 = scmp.ne.s32.totalorder %s145, %s146
    %p157 = scmp.eq.s32.totalorder %s17, 0
    %p158 = por %p156, %p157
    %p159 = scmp.ne.s32.totalorder %s145, %s146
    %p160 = scmp.eq.s32.totalorder %s18, 1
    %p161 = por %p159, %p160
    %p163 = scmp.ne.s32.totalorder %s146, %s162
    %p164 = scmp.eq.s32.totalorder %s18, 0
    %p165 = por %p163, %p164
    %s166 = ssub.s32 %s19, %s31
    %s167 = ssub.s32 %s20, %s27
    %s168 = sor.u32 %s166, %s167
    %p169 = scmp.eq.s32.totalorder %s168, 0
    %s171 = sadd.s32 %s170, 1
    %s172 = scalar_select %p169, %s170, %s171
    %p175 = pneg %p169
    %p176 = scmp.eq.s32.totalorder %s12, 1
    %p177 = por %p175, %p176
    %p178 = scmp.ne.s32.totalorder %s170, %s173
    %p179 = scmp.eq.s32.totalorder %s12, 0
    %p180 = por %p178, %p179
    %p181 = scmp.ne.s32.totalorder %s170, %s173
    %p182 = scmp.eq.s32.totalorder %s17, 1
    %p183 = por %p181, %p182
    %p184 = scmp.ne.s32.totalorder %s173, %s174
    %p185 = scmp.eq.s32.totalorder %s17, 0
    %p186 = por %p184, %p185
    %p187 = scmp.ne.s32.totalorder %s173, %s174
    %p188 = scmp.eq.s32.totalorder %s18, 1
    %p189 = por %p187, %p188
    %p191 = scmp.ne.s32.totalorder %s174, %s190
    %p192 = scmp.eq.s32.totalorder %s18, 0
    %p193 = por %p191, %p192
    %p194 = scmp.le.s32.totalorder 1, %s12
    %p195 = scmp.lt.s32.totalorder %s12, 3
    %p196 = pnand %p194, %p195
    %p197 = pneg %p196
    // Predicated region
    $region9: #{a_call__.7} parent=5 // pred_check
      _
    $region10: #{a_call__.7} parent=5 // pred_check_branch
      %199 = sbr.rel (%p196) target = $region12
    $region11: #{a_call__.7} parent=5 // pred_region
      %s200 = ssub.s32 %s12, 1
      // Predicated region
      $region13: #{a_call__.7} parent=11 // pred_check
        %p201 = pneg %p76
      $region14: #{a_call__.7} parent=11 // pred_check_branch
        %203 = sbr.rel (%p201) target = $region16
      $region15: #{a_call__.7} parent=11 // pred_region
        %p204 = scmp.lt.s32.totalorder %s22, 0
        %s205 = scalar_select %p204, %s22, 0
        %s206 = smul.addr %s205, 4
        %s207 = scalar_lea.vmem %s1, %s206
      $region16: #{a_call__.7} parent=11 // pred_fallthru
        _
      // Predicated region
      $region17: #{a_call__.7} parent=11 // pred_check
        %p208 = pneg %p102
      $region18: #{a_call__.7} parent=11 // pred_check_branch
        %210 = sbr.rel (%p208) target = $region20
      $region19: #{a_call__.7} parent=11 // pred_region
        %p211 = scmp.lt.s32.totalorder %s22, 0
        %s212 = scalar_select %p211, %s22, 0
        %s213 = scalar_lea.vmem %s2, %s212
      $region20: #{a_call__.7} parent=11 // pred_fallthru
        _
    $region12: #{a_call__.7} parent=5 // pred_fallthru
      _
    %p214 = scmp.lt.s32.totalorder %s12, 2
    // Predicated region
    $region21: #{a_call__.7} parent=5 // pred_check
      %p215 = pneg %p214
    $region22: #{a_call__.7} parent=5 // pred_check_branch
      %217 = sbr.rel (%p215) target = $region24
    $region23: #{a_call__.7} parent=5 // pred_region
      // Predicated region
      $region25: #{a_call__.7} parent=23 // pred_check
        %p218 = pneg %p44
      $region26: #{a_call__.7} parent=23 // pred_check_branch
        %220 = sbr.rel (%p218) target = $region28
      $region27: #{a_call__.7} parent=23 // pred_region
        %p221 = scmp.lt.s32.totalorder %s19, 1
        %s222 = scalar_select %p221, %s19, 1
        %s223 = smul.addr %s222, 72
        %s224 = smul.addr %s223, 4
        %s225 = scalar_lea.vmem %s0, %s224
      $region28: #{a_call__.7} parent=23 // pred_fallthru
        _
    $region24: #{a_call__.7} parent=5 // pred_fallthru
      _
    %p226 = scmp.le.s32.totalorder 1, %s12
    %p227 = scmp.lt.s32.totalorder %s12, 3
    %p228 = pnand %p226, %p227
    %p229 = pneg %p228
    // Predicated region
    $region29: #{a_call__.7} parent=5 // pred_check
      _
    $region30: #{a_call__.7} parent=5 // pred_check_branch
      %231 = sbr.rel (%p228) target = $region32
    $region31: #{a_call__.7} parent=5 // pred_region
      %s232 = ssub.s32 %s12, 1
      %p233 = scmp.lt.s32.totalorder %s21, 1
      %s234 = scalar_select %p233, %s21, 1
      %s235 = smul.addr %s234, 72
      %s236 = smul.addr %s235, 4
      %s237 = scalar_lea.vmem %s0, %s236
      %p238 = pneg %p50
      %p239 = pneg %p47
      %p240 = scmp.lt.s32.totalorder %s22, 0
      %s241 = scalar_select %p240, %s22, 0
      %s242 = smul.addr %s241, 4
      %s243 = scalar_lea.vmem %s1, %s242
      %p244 = pneg %p76
      %p245 = pneg %p73
      %p246 = scmp.lt.s32.totalorder %s22, 0
      %s247 = scalar_select %p246, %s22, 0
      %s248 = scalar_lea.vmem %s2, %s247
      %p249 = pneg %p102
      %p250 = pneg %p99
      %p251 = pneg %p130
      %p252 = pneg %p127
      %p253 = scmp.lt.s32.totalorder %s21, 1
      %s254 = scalar_select %p253, %s21, 1
      %p255 = scmp.lt.s32.totalorder %s22, 0
      %s256 = scalar_select %p255, %s22, 0
      %s257 = smul.addr %s254, 8
      %s258 = sadd.s32 %s256, %s257
      %s259 = smul.addr %s258, 8
      %s260 = scalar_lea.vmem %s3, %s259
      %p261 = pneg %p158
      %p262 = pneg %p155
      %p263 = scmp.lt.s32.totalorder %s21, 1
      %s264 = scalar_select %p263, %s21, 1
      %p265 = scmp.lt.s32.totalorder %s22, 0
      %s266 = scalar_select %p265, %s22, 0
      %s267 = sadd.s32 %s266, %s264
      %s268 = scalar_lea.vmem %s4, %s267
      %p269 = pneg %p186
      %p270 = pneg %p183
      %p271 = scmp.lt.s32.totalorder %s21, 1
      %s272 = scalar_select %p271, %s21, 1
      %p273 = scmp.lt.s32.totalorder %s22, 0
      %s274 = scalar_select %p273, %s22, 0
      %s275 = sadd.s32 %s274, %s272
      %s276 = scalar_lea.vmem %s5, %s275
      %p277 = scmp.lt.s32.totalorder %s21, 1
      %s278 = scalar_select %p277, %s21, 1
      %s279 = smul.addr %s278, 72
      %s280 = smul.addr %s279, 4
      %s281 = scalar_lea.vmem %s0, %s280
      %p282 = scmp.lt.s32.totalorder %s22, 0
      %s283 = scalar_select %p282, %s22, 0
      %s284 = smul.addr %s283, 4
      %s285 = scalar_lea.vmem %s1, %s284
      %p286 = scmp.lt.s32.totalorder %s22, 0
      %s287 = scalar_select %p286, %s22, 0
      %s288 = scalar_lea.vmem %s2, %s287
      %p289 = scmp.lt.s32.totalorder %s21, 1
      %s290 = scalar_select %p289, %s21, 1
      %p291 = scmp.lt.s32.totalorder %s22, 0
      %s292 = scalar_select %p291, %s22, 0
      %s293 = smul.addr %s290, 8
      %s294 = sadd.s32 %s292, %s293
      %s295 = smul.addr %s294, 8
      %s296 = scalar_lea.vmem %s3, %s295
      %p297 = scmp.lt.s32.totalorder %s21, 1
      %s298 = scalar_select %p297, %s21, 1
      %p299 = scmp.lt.s32.totalorder %s22, 0
      %s300 = scalar_select %p299, %s22, 0
      %s301 = sadd.s32 %s300, %s298
      %s302 = scalar_lea.vmem %s4, %s301
      %p303 = scmp.lt.s32.totalorder %s21, 1
      %s304 = scalar_select %p303, %s21, 1
      %p305 = scmp.lt.s32.totalorder %s22, 0
      %s306 = scalar_select %p305, %s22, 0
      %s307 = sadd.s32 %s306, %s304
      %s308 = scalar_lea.vmem %s5, %s307
      %v310 = vld [vmem:[%s281] sm:$0xf]
      %v311 = vld [vmem:[%s281 + $0x8] sm:$0xf]
      %v312 = vld [vmem:[%s281 + $0x10] sm:$0xf]
      %v313 = vld [vmem:[%s281 + $0x18] sm:$0xf]
      %v314 = vld [vmem:[%s281 + $0x20] sm:$0xf]
      %v315 = vld [vmem:[%s281 + $0x28] sm:$0xf]
      %v316 = vld [vmem:[%s281 + $0x30] sm:$0xf]
      %v317 = vld [vmem:[%s281 + $0x38] sm:$0xf]
      %v318 = vld [vmem:[%s285] sm:$0xf]
      %v319 = vld [vmem:[%s285 + $0x4] sm:$0xf]
      %v320 = vld [vmem:[%s285 + $0x8] sm:$0xf]
      %v321 = vld [vmem:[%s285 + $0xc] sm:$0xf]
      %v322 = vld [vmem:[%s285 + $0x10] sm:$0xf]
      %v323 = vld [vmem:[%s285 + $0x14] sm:$0xf]
      %v324 = vld [vmem:[%s285 + $0x18] sm:$0xf]
      %v325 = vld [vmem:[%s285 + $0x1c] sm:$0xf]
      %v326 = vld [vmem:[%s285 + $0x20] sm:$0xf]
      %v327 = vld [vmem:[%s285 + $0x24] sm:$0xf]
      %v328 = vld [vmem:[%s285 + $0x28] sm:$0xf]
      %v329 = vld [vmem:[%s285 + $0x2c] sm:$0xf]
      %v330 = vld [vmem:[%s285 + $0x30] sm:$0xf]
      %v331 = vld [vmem:[%s285 + $0x34] sm:$0xf]
      %v332 = vld [vmem:[%s285 + $0x38] sm:$0xf]
      %v333 = vld [vmem:[%s285 + $0x3c] sm:$0xf]
      %s334 = scalar_lea.vmem %s281, 72
      %v335 = vld [vmem:[%s334] sm:$0xf]
      %v336 = vld [vmem:[%s334 + $0x8] sm:$0xf]
      %v337 = vld [vmem:[%s334 + $0x10] sm:$0xf]
      %v338 = vld [vmem:[%s334 + $0x18] sm:$0xf]
      %v339 = vld [vmem:[%s334 + $0x20] sm:$0xf]
      %v340 = vld [vmem:[%s334 + $0x28] sm:$0xf]
      %v341 = vld [vmem:[%s334 + $0x30] sm:$0xf]
      %v342 = vld [vmem:[%s334 + $0x38] sm:$0xf]
      %s343 = scalar_lea.vmem %s285, 64
      %v344 = vld [vmem:[%s343] sm:$0xf]
      %v345 = vld [vmem:[%s343 + $0x4] sm:$0xf]
      %v346 = vld [vmem:[%s343 + $0x8] sm:$0xf]
      %v347 = vld [vmem:[%s343 + $0xc] sm:$0xf]
      %v348 = vld [vmem:[%s343 + $0x10] sm:$0xf]
      %v349 = vld [vmem:[%s343 + $0x14] sm:$0xf]
      %v350 = vld [vmem:[%s343 + $0x18] sm:$0xf]
      %v351 = vld [vmem:[%s343 + $0x1c] sm:$0xf]
      %v352 = vld [vmem:[%s343 + $0x20] sm:$0xf]
      %v353 = vld [vmem:[%s343 + $0x24] sm:$0xf]
      %v354 = vld [vmem:[%s343 + $0x28] sm:$0xf]
      %v355 = vld [vmem:[%s343 + $0x2c] sm:$0xf]
      %v356 = vld [vmem:[%s343 + $0x30] sm:$0xf]
      %v357 = vld [vmem:[%s343 + $0x34] sm:$0xf]
      %v358 = vld [vmem:[%s343 + $0x38] sm:$0xf]
      %v359 = vld [vmem:[%s343 + $0x3c] sm:$0xf]
      %v368 = vunpack.c.l.b16 %v335
      %v369 = vunpack.c.l.b16 %v336
      %v370 = vunpack.c.l.b16 %v337
      %v371 = vunpack.c.l.b16 %v338
      %v372 = vunpack.c.l.b16 %v339
      %v373 = vunpack.c.l.b16 %v340
      %v374 = vunpack.c.l.b16 %v341
      %v375 = vunpack.c.l.b16 %v342
      %v376 = vpack.c.b16 %v369, %v368
      %v377 = vpack.c.b16 %v371, %v370
      %v378 = vpack.c.b16 %v373, %v372
      %v379 = vpack.c.b16 %v375, %v374
      %v400 = vunpack.c.l.b16 %v344
      %v401 = vunpack.c.l.b16 %v345
      %v402 = vunpack.c.l.b16 %v346
      %v403 = vunpack.c.l.b16 %v347
      %v404 = vunpack.c.l.b16 %v348
      %v405 = vunpack.c.l.b16 %v349
      %v406 = vunpack.c.l.b16 %v350
      %v407 = vunpack.c.l.b16 %v351
      %v408 = vunpack.c.l.b16 %v352
      %v409 = vunpack.c.l.b16 %v353
      %v410 = vunpack.c.l.b16 %v354
      %v411 = vunpack.c.l.b16 %v355
      %v412 = vunpack.c.l.b16 %v356
      %v413 = vunpack.c.l.b16 %v357
      %v414 = vunpack.c.l.b16 %v358
      %v415 = vunpack.c.l.b16 %v359
      %v416 = vpack.c.b16 %v401, %v400
      %v417 = vpack.c.b16 %v403, %v402
      %v418 = vpack.c.b16 %v405, %v404
      %v419 = vpack.c.b16 %v407, %v406
      %v420 = vpack.c.b16 %v409, %v408
      %v421 = vpack.c.b16 %v411, %v410
      %v422 = vpack.c.b16 %v413, %v412
      %v423 = vpack.c.b16 %v415, %v414
      %432 = vmatprep.subr.bf16.mxu0 0
      %433 = vmatpush1.bf16.msra.mxu0 %v416
      %434 = vmatprep.subr.bf16.mxu0 0
      %435 = vmatpush1.bf16.msra.mxu0 %v417
      %436 = vmatprep.subr.bf16.mxu0 0
      %437 = vmatpush1.bf16.msra.mxu0 %v418
      %438 = vmatprep.subr.bf16.mxu0 0
      %439 = vmatpush1.bf16.msra.mxu0 %v419
      %440 = vmatprep.subr.bf16.mxu0 0
      %441 = vmatpush1.bf16.msra.mxu0 %v420
      %442 = vmatprep.subr.bf16.mxu0 0
      %443 = vmatpush1.bf16.msra.mxu0 %v421
      %444 = vmatprep.subr.bf16.mxu0 0
      %445 = vmatpush1.bf16.msra.mxu0 %v422
      %446 = vmatprep.subr.bf16.mxu0 0
      %447 = vmatpush1.bf16.msra.mxu0 %v423
      %448 = vmatprep.subr.bf16.mxu0 0
      %449 = vmatpush1.bf16.msra.mxu0 0
      %450 = vmatprep.subr.bf16.mxu0 0
      %451 = vmatpush1.bf16.msra.mxu0 0
      %452 = vmatprep.subr.bf16.mxu0 0
      %453 = vmatpush1.bf16.msra.mxu0 0
      %454 = vmatprep.subr.bf16.mxu0 0
      %455 = vmatpush1.bf16.msra.mxu0 0
      %456 = vmatprep.subr.bf16.mxu0 0
      %457 = vmatpush1.bf16.msra.mxu0 0
      %458 = vmatprep.subr.bf16.mxu0 0
      %459 = vmatpush1.bf16.msra.mxu0 0
      %460 = vmatprep.subr.bf16.mxu0 0
      %461 = vmatpush1.bf16.msra.mxu0 0
      %462 = vmatprep.subr.bf16.mxu0 0
      %463 = vmatpush1.bf16.msra.mxu0 0
      %464 = vmatprep.mubr.bf16.mxu0 0
      %465 = vmatmul.mubr.bf16.gmra.mrb[0].mxu0 %v376
      %v466 = vpop.f32.mrb[0].mxu0
      %v467 = vadd.f32 0.0, %v466
      %v468 = vpop.f32.mrb[0].mxu0
      %v469 = vpop.f32.mrb[0].mxu0
      %v470 = vadd.f32 0.0, %v469
      %v471 = vpop.f32.mrb[0].mxu0
      %472 = vmatprep.mubr.bf16.mxu0 0
      %473 = vmatmul.mubr.bf16.gmra.mrb[0].mxu0 %v377
      %v474 = vpop.f32.mrb[0].mxu0
      %v475 = vadd.f32 0.0, %v474
      %v476 = vpop.f32.mrb[0].mxu0
      %v477 = vpop.f32.mrb[0].mxu0
      %v478 = vadd.f32 0.0, %v477
      %v479 = vpop.f32.mrb[0].mxu0
      %480 = vmatprep.mubr.bf16.mxu0 0
      %481 = vmatmul.mubr.bf16.gmra.mrb[0].mxu0 %v378
      %v482 = vpop.f32.mrb[0].mxu0
      %v483 = vadd.f32 0.0, %v482
      %v484 = vpop.f32.mrb[0].mxu0
      %v485 = vpop.f32.mrb[0].mxu0
      %v486 = vadd.f32 0.0, %v485
      %v487 = vpop.f32.mrb[0].mxu0
      %488 = vmatprep.mubr.bf16.mxu0 0
      %489 = vmatmul.mubr.bf16.gmra.mrb[0].mxu0 %v379
      %v490 = vpop.f32.mrb[0].mxu0
      %v491 = vadd.f32 0.0, %v490
      %v492 = vpop.f32.mrb[0].mxu0
      %v493 = vpop.f32.mrb[0].mxu0
      %v494 = vadd.f32 0.0, %v493
      %v495 = vpop.f32.mrb[0].mxu0
      %496 = vdwg.mxu0
      %v505 = vunpack.c.l.b16 %v310
      %v506 = vunpack.c.l.b16 %v311
      %v507 = vunpack.c.l.b16 %v312
      %v508 = vunpack.c.l.b16 %v313
      %v509 = vunpack.c.l.b16 %v314
      %v510 = vunpack.c.l.b16 %v315
      %v511 = vunpack.c.l.b16 %v316
      %v512 = vunpack.c.l.b16 %v317
      %v513 = vpack.c.b16 %v506, %v505
      %v514 = vpack.c.b16 %v508, %v507
      %v515 = vpack.c.b16 %v510, %v509
      %v516 = vpack.c.b16 %v512, %v511
      %v537 = vunpack.c.l.b16 %v318
      %v538 = vunpack.c.l.b16 %v319
      %v539 = vunpack.c.l.b16 %v320
      %v540 = vunpack.c.l.b16 %v321
      %v541 = vunpack.c.l.b16 %v322
      %v542 = vunpack.c.l.b16 %v323
      %v543 = vunpack.c.l.b16 %v324
      %v544 = vunpack.c.l.b16 %v325
      %v545 = vunpack.c.l.b16 %v326
      %v546 = vunpack.c.l.b16 %v327
      %v547 = vunpack.c.l.b16 %v328
      %v548 = vunpack.c.l.b16 %v329
      %v549 = vunpack.c.l.b16 %v330
      %v550 = vunpack.c.l.b16 %v331
      %v551 = vunpack.c.l.b16 %v332
      %v552 = vunpack.c.l.b16 %v333
      %v553 = vpack.c.b16 %v538, %v537
      %v554 = vpack.c.b16 %v540, %v539
      %v555 = vpack.c.b16 %v542, %v541
      %v556 = vpack.c.b16 %v544, %v543
      %v557 = vpack.c.b16 %v546, %v545
      %v558 = vpack.c.b16 %v548, %v547
      %v559 = vpack.c.b16 %v550, %v549
      %v560 = vpack.c.b16 %v552, %v551
      %569 = vmatprep.subr.bf16.mxu0 0
      %570 = vmatpush1.bf16.msra.mxu0 %v553
      %571 = vmatprep.subr.bf16.mxu0 0
      %572 = vmatpush1.bf16.msra.mxu0 %v554
      %573 = vmatprep.subr.bf16.mxu0 0
      %574 = vmatpush1.bf16.msra.mxu0 %v555
      %575 = vmatprep.subr.bf16.mxu0 0
      %576 = vmatpush1.bf16.msra.mxu0 %v556
      %577 = vmatprep.subr.bf16.mxu0 0
      %578 = vmatpush1.bf16.msra.mxu0 %v557
      %579 = vmatprep.subr.bf16.mxu0 0
      %580 = vmatpush1.bf16.msra.mxu0 %v558
      %581 = vmatprep.subr.bf16.mxu0 0
      %582 = vmatpush1.bf16.msra.mxu0 %v559
      %583 = vmatprep.subr.bf16.mxu0 0
      %584 = vmatpush1.bf16.msra.mxu0 %v560
      %585 = vmatprep.subr.bf16.mxu0 0
      %586 = vmatpush1.bf16.msra.mxu0 0
      %587 = vmatprep.subr.bf16.mxu0 0
      %588 = vmatpush1.bf16.msra.mxu0 0
      %589 = vmatprep.subr.bf16.mxu0 0
      %590 = vmatpush1.bf16.msra.mxu0 0
      %591 = vmatprep.subr.bf16.mxu0 0
      %592 = vmatpush1.bf16.msra.mxu0 0
      %593 = vmatprep.subr.bf16.mxu0 0
      %594 = vmatpush1.bf16.msra.mxu0 0
      %595 = vmatprep.subr.bf16.mxu0 0
      %596 = vmatpush1.bf16.msra.mxu0 0
      %597 = vmatprep.subr.bf16.mxu0 0
      %598 = vmatpush1.bf16.msra.mxu0 0
      %599 = vmatprep.subr.bf16.mxu0 0
      %600 = vmatpush1.bf16.msra.mxu0 0
      %601 = vmatprep.mubr.bf16.mxu0 0
      %602 = vmatmul.mubr.bf16.gmra.mrb[0].mxu0 %v513
      %v603 = vpop.f32.mrb[0].mxu0
      %v604 = vadd.f32 %v467, %v603
      %v605 = vpop.f32.mrb[0].mxu0
      %v606 = vpop.f32.mrb[0].mxu0
      %v607 = vadd.f32 %v470, %v606
      %v608 = vpop.f32.mrb[0].mxu0
      %609 = vmatprep.mubr.bf16.mxu0 0
      %610 = vmatmul.mubr.bf16.gmra.mrb[0].mxu0 %v514
      %v611 = vpop.f32.mrb[0].mxu0
      %v612 = vadd.f32 %v475, %v611
      %v613 = vpop.f32.mrb[0].mxu0
      %v614 = vpop.f32.mrb[0].mxu0
      %v615 = vadd.f32 %v478, %v614
      %v616 = vpop.f32.mrb[0].mxu0
      %617 = vmatprep.mubr.bf16.mxu0 0
      %618 = vmatmul.mubr.bf16.gmra.mrb[0].mxu0 %v515
      %v619 = vpop.f32.mrb[0].mxu0
      %v620 = vadd.f32 %v483, %v619
      %v621 = vpop.f32.mrb[0].mxu0
      %v622 = vpop.f32.mrb[0].mxu0
      %v623 = vadd.f32 %v486, %v622
      %v624 = vpop.f32.mrb[0].mxu0
      %625 = vmatprep.mubr.bf16.mxu0 0
      %626 = vmatmul.mubr.bf16.gmra.mrb[0].mxu0 %v516
      %v627 = vpop.f32.mrb[0].mxu0
      %v628 = vadd.f32 %v491, %v627
      %v629 = vpop.f32.mrb[0].mxu0
      %v630 = vpop.f32.mrb[0].mxu0
      %v631 = vadd.f32 %v494, %v630
      %v632 = vpop.f32.mrb[0].mxu0
      %633 = vdwg.mxu0
      %v634 = vld [vmem:[%s281] sm:$0xf]
      %v635 = vld [vmem:[%s281 + $0x4] sm:$0x1]
      %v636 = vld [vmem:[%s281 + $0x8] sm:$0xf]
      %v637 = vld [vmem:[%s281 + $0xc] sm:$0x1]
      %v638 = vld [vmem:[%s281 + $0x10] sm:$0xf]
      %v639 = vld [vmem:[%s281 + $0x14] sm:$0x1]
      %v640 = vld [vmem:[%s281 + $0x18] sm:$0xf]
      %v641 = vld [vmem:[%s281 + $0x1c] sm:$0x1]
      %v642 = vld [vmem:[%s281 + $0x20] sm:$0xf]
      %v643 = vld [vmem:[%s281 + $0x24] sm:$0x1]
      %v644 = vld [vmem:[%s281 + $0x28] sm:$0xf]
      %v645 = vld [vmem:[%s281 + $0x2c] sm:$0x1]
      %v646 = vld [vmem:[%s281 + $0x30] sm:$0xf]
      %v647 = vld [vmem:[%s281 + $0x34] sm:$0x1]
      %v648 = vld [vmem:[%s281 + $0x38] sm:$0xf]
      %v649 = vld [vmem:[%s281 + $0x3c] sm:$0x1]
      %vm650 = vsmask.f32 3328
      %vm651 = vsmask.f32 7440
      %vm652 = vmor %vm650, %vm651
      %v654 = vshrl.u32 %v634, 16
      %v656 = vrot.slane %v654, 4
      %v657 = vshll.u32 %v634, 16
      %v659 = vrot.slane %v657, 5
      %v660 = vor.u32 %v656, %v659
      %v661 = vrot.slane %v660, 4
      %v663 = vshll.u32 %v635, 16
      %v665 = vrot.slane %v663, 5
      %v666 = vsel %vm652, %v661, %v665
      %v668 = vshrl.u32 %v636, 16
      %v670 = vrot.slane %v668, 4
      %v671 = vshll.u32 %v636, 16
      %v673 = vrot.slane %v671, 5
      %v674 = vor.u32 %v670, %v673
      %v675 = vrot.slane %v674, 4
      %v677 = vshll.u32 %v637, 16
      %v679 = vrot.slane %v677, 5
      %v680 = vsel %vm652, %v675, %v679
      %v682 = vshrl.u32 %v638, 16
      %v684 = vrot.slane %v682, 4
      %v685 = vshll.u32 %v638, 16
      %v687 = vrot.slane %v685, 5
      %v688 = vor.u32 %v684, %v687
      %v689 = vrot.slane %v688, 4
      %v691 = vshll.u32 %v639, 16
      %v693 = vrot.slane %v691, 5
      %v694 = vsel %vm652, %v689, %v693
      %v696 = vshrl.u32 %v640, 16
      %v698 = vrot.slane %v696, 4
      %v699 = vshll.u32 %v640, 16
      %v701 = vrot.slane %v699, 5
      %v702 = vor.u32 %v698, %v701
      %v703 = vrot.slane %v702, 4
      %v705 = vshll.u32 %v641, 16
      %v707 = vrot.slane %v705, 5
      %v708 = vsel %vm652, %v703, %v707
      %v710 = vshrl.u32 %v642, 16
      %v712 = vrot.slane %v710, 4
      %v713 = vshll.u32 %v642, 16
      %v715 = vrot.slane %v713, 5
      %v716 = vor.u32 %v712, %v715
      %v717 = vrot.slane %v716, 4
      %v719 = vshll.u32 %v643, 16
      %v721 = vrot.slane %v719, 5
      %v722 = vsel %vm652, %v717, %v721
      %v724 = vshrl.u32 %v644, 16
      %v726 = vrot.slane %v724, 4
      %v727 = vshll.u32 %v644, 16
      %v729 = vrot.slane %v727, 5
      %v730 = vor.u32 %v726, %v729
      %v731 = vrot.slane %v730, 4
      %v733 = vshll.u32 %v645, 16
      %v735 = vrot.slane %v733, 5
      %v736 = vsel %vm652, %v731, %v735
      %v738 = vshrl.u32 %v646, 16
      %v740 = vrot.slane %v738, 4
      %v741 = vshll.u32 %v646, 16
      %v743 = vrot.slane %v741, 5
      %v744 = vor.u32 %v740, %v743
      %v745 = vrot.slane %v744, 4
      %v747 = vshll.u32 %v647, 16
      %v749 = vrot.slane %v747, 5
      %v750 = vsel %vm652, %v745, %v749
      %v752 = vshrl.u32 %v648, 16
      %v754 = vrot.slane %v752, 4
      %v755 = vshll.u32 %v648, 16
      %v757 = vrot.slane %v755, 5
      %v758 = vor.u32 %v754, %v757
      %v759 = vrot.slane %v758, 4
      %v761 = vshll.u32 %v649, 16
      %v763 = vrot.slane %v761, 5
      %v764 = vsel %vm652, %v759, %v763
      %s765 = scalar_lea.vmem %s285, 128
      %v766 = vld [vmem:[%s765] sm:$0xf]
      %v767 = vld [vmem:[%s765 + $0x4] sm:$0xf]
      %v768 = vld [vmem:[%s765 + $0x8] sm:$0xf]
      %v769 = vld [vmem:[%s765 + $0xc] sm:$0xf]
      %v770 = vld [vmem:[%s765 + $0x10] sm:$0xf]
      %v771 = vld [vmem:[%s765 + $0x14] sm:$0xf]
      %v772 = vld [vmem:[%s765 + $0x18] sm:$0xf]
      %v773 = vld [vmem:[%s765 + $0x1c] sm:$0xf]
      %v774 = vld [vmem:[%s765 + $0x20] sm:$0xf]
      %v775 = vld [vmem:[%s765 + $0x24] sm:$0xf]
      %v776 = vld [vmem:[%s765 + $0x28] sm:$0xf]
      %v777 = vld [vmem:[%s765 + $0x2c] sm:$0xf]
      %v778 = vld [vmem:[%s765 + $0x30] sm:$0xf]
      %v779 = vld [vmem:[%s765 + $0x34] sm:$0xf]
      %v780 = vld [vmem:[%s765 + $0x38] sm:$0xf]
      %v781 = vld [vmem:[%s765 + $0x3c] sm:$0xf]
      %v782 = vunpack.c.l.b16 %v666
      %v783 = vunpack.c.l.b16 %v680
      %v784 = vunpack.c.l.b16 %v694
      %v785 = vunpack.c.l.b16 %v708
      %v786 = vunpack.c.l.b16 %v722
      %v787 = vunpack.c.l.b16 %v736
      %v788 = vunpack.c.l.b16 %v750
      %v789 = vunpack.c.l.b16 %v764
      %v790 = vpack.c.b16 %v783, %v782
      %v791 = vpack.c.b16 %v785, %v784
      %v792 = vpack.c.b16 %v787, %v786
      %v793 = vpack.c.b16 %v789, %v788
      %v814 = vunpack.c.l.b16 %v766
      %v815 = vunpack.c.l.b16 %v767
      %v816 = vunpack.c.l.b16 %v768
      %v817 = vunpack.c.l.b16 %v769
      %v818 = vunpack.c.l.b16 %v770
      %v819 = vunpack.c.l.b16 %v771
      %v820 = vunpack.c.l.b16 %v772
      %v821 = vunpack.c.l.b16 %v773
      %v822 = vunpack.c.l.b16 %v774
      %v823 = vunpack.c.l.b16 %v775
      %v824 = vunpack.c.l.b16 %v776
      %v825 = vunpack.c.l.b16 %v777
      %v826 = vunpack.c.l.b16 %v778
      %v827 = vunpack.c.l.b16 %v779
      %v828 = vunpack.c.l.b16 %v780
      %v829 = vunpack.c.l.b16 %v781
      %v830 = vpack.c.b16 %v815, %v814
      %v831 = vpack.c.b16 %v817, %v816
      %v832 = vpack.c.b16 %v819, %v818
      %v833 = vpack.c.b16 %v821, %v820
      %v834 = vpack.c.b16 %v823, %v822
      %v835 = vpack.c.b16 %v825, %v824
      %v836 = vpack.c.b16 %v827, %v826
      %v837 = vpack.c.b16 %v829, %v828
      %846 = vmatprep.subr.bf16.mxu0 0
      %847 = vmatpush1.bf16.msra.mxu0 %v830
      %848 = vmatprep.subr.bf16.mxu0 0
      %849 = vmatpush1.bf16.msra.mxu0 %v831
      %850 = vmatprep.subr.bf16.mxu0 0
      %851 = vmatpush1.bf16.msra.mxu0 %v832
      %852 = vmatprep.subr.bf16.mxu0 0
      %853 = vmatpush1.bf16.msra.mxu0 %v833
      %854 = vmatprep.subr.bf16.mxu0 0
      %855 = vmatpush1.bf16.msra.mxu0 %v834
      %856 = vmatprep.subr.bf16.mxu0 0
      %857 = vmatpush1.bf16.msra.mxu0 %v835
      %858 = vmatprep.subr.bf16.mxu0 0
      %859 = vmatpush1.bf16.msra.mxu0 %v836
      %860 = vmatprep.subr.bf16.mxu0 0
      %861 = vmatpush1.bf16.msra.mxu0 %v837
      %862 = vmatprep.subr.bf16.mxu0 0
      %863 = vmatpush1.bf16.msra.mxu0 0
      %864 = vmatprep.subr.bf16.mxu0 0
      %865 = vmatpush1.bf16.msra.mxu0 0
      %866 = vmatprep.subr.bf16.mxu0 0
      %867 = vmatpush1.bf16.msra.mxu0 0
      %868 = vmatprep.subr.bf16.mxu0 0
      %869 = vmatpush1.bf16.msra.mxu0 0
      %870 = vmatprep.subr.bf16.mxu0 0
      %871 = vmatpush1.bf16.msra.mxu0 0
      %872 = vmatprep.subr.bf16.mxu0 0
      %873 = vmatpush1.bf16.msra.mxu0 0
      %874 = vmatprep.subr.bf16.mxu0 0
      %875 = vmatpush1.bf16.msra.mxu0 0
      %876 = vmatprep.subr.bf16.mxu0 0
      %877 = vmatpush1.bf16.msra.mxu0 0
      %878 = vmatprep.mubr.bf16.mxu0 0
      %879 = vmatmul.mubr.bf16.gmra.mrb[0].mxu0 %v790
      %v880 = vpop.f32.mrb[0].mxu0
      %v881 = vadd.f32 0.0, %v880
      %v882 = vpop.f32.mrb[0].mxu0
      %v883 = vpop.f32.mrb[0].mxu0
      %v884 = vadd.f32 0.0, %v883
      %v885 = vpop.f32.mrb[0].mxu0
      %886 = vmatprep.mubr.bf16.mxu0 0
      %887 = vmatmul.mubr.bf16.gmra.mrb[0].mxu0 %v791
      %v888 = vpop.f32.mrb[0].mxu0
      %v889 = vadd.f32 0.0, %v888
      %v890 = vpop.f32.mrb[0].mxu0
      %v891 = vpop.f32.mrb[0].mxu0
      %v892 = vadd.f32 0.0, %v891
      %v893 = vpop.f32.mrb[0].mxu0
      %894 = vmatprep.mubr.bf16.mxu0 0
      %895 = vmatmul.mubr.bf16.gmra.mrb[0].mxu0 %v792
      %v896 = vpop.f32.mrb[0].mxu0
      %v897 = vadd.f32 0.0, %v896
      %v898 = vpop.f32.mrb[0].mxu0
      %v899 = vpop.f32.mrb[0].mxu0
      %v900 = vadd.f32 0.0, %v899
      %v901 = vpop.f32.mrb[0].mxu0
      %902 = vmatprep.mubr.bf16.mxu0 0
      %903 = vmatmul.mubr.bf16.gmra.mrb[0].mxu0 %v793
      %v904 = vpop.f32.mrb[0].mxu0
      %v905 = vadd.f32 0.0, %v904
      %v906 = vpop.f32.mrb[0].mxu0
      %v907 = vpop.f32.mrb[0].mxu0
      %v908 = vadd.f32 0.0, %v907
      %v909 = vpop.f32.mrb[0].mxu0
      %910 = vdwg.mxu0
      %v911 = vadd.f32 %v604, %v881
      %v912 = vadd.f32 %v607, %v884
      %v913 = vadd.f32 %v612, %v889
      %v914 = vadd.f32 %v615, %v892
      %v915 = vadd.f32 %v620, %v897
      %v916 = vadd.f32 %v623, %v900
      %v917 = vadd.f32 %v628, %v905
      %v918 = vadd.f32 %v631, %v908
      %s919 = scalar_lea.vmem %s281, 144
      %v920 = vld [vmem:[%s919] sm:$0xf]
      %v921 = vld [vmem:[%s919 + $0x8] sm:$0xf]
      %v922 = vld [vmem:[%s919 + $0x10] sm:$0xf]
      %v923 = vld [vmem:[%s919 + $0x18] sm:$0xf]
      %v924 = vld [vmem:[%s919 + $0x20] sm:$0xf]
      %v925 = vld [vmem:[%s919 + $0x28] sm:$0xf]
      %v926 = vld [vmem:[%s919 + $0x30] sm:$0xf]
      %v927 = vld [vmem:[%s919 + $0x38] sm:$0xf]
      %s928 = scalar_lea.vmem %s285, 192
      %v929 = vld [vmem:[%s928] sm:$0xf]
      %v930 = vld [vmem:[%s928 + $0x4] sm:$0xf]
      %v931 = vld [vmem:[%s928 + $0x8] sm:$0xf]
      %v932 = vld [vmem:[%s928 + $0xc] sm:$0xf]
      %v933 = vld [vmem:[%s928 + $0x10] sm:$0xf]
      %v934 = vld [vmem:[%s928 + $0x14] sm:$0xf]
      %v935 = vld [vmem:[%s928 + $0x18] sm:$0xf]
      %v936 = vld [vmem:[%s928 + $0x1c] sm:$0xf]
      %v937 = vld [vmem:[%s928 + $0x20] sm:$0xf]
      %v938 = vld [vmem:[%s928 + $0x24] sm:$0xf]
      %v939 = vld [vmem:[%s928 + $0x28] sm:$0xf]
      %v940 = vld [vmem:[%s928 + $0x2c] sm:$0xf]
      %v941 = vld [vmem:[%s928 + $0x30] sm:$0xf]
      %v942 = vld [vmem:[%s928 + $0x34] sm:$0xf]
      %v943 = vld [vmem:[%s928 + $0x38] sm:$0xf]
      %v944 = vld [vmem:[%s928 + $0x3c] sm:$0xf]
      %v953 = vunpack.c.l.b16 %v920
      %v954 = vunpack.c.l.b16 %v921
      %v955 = vunpack.c.l.b16 %v922
      %v956 = vunpack.c.l.b16 %v923
      %v957 = vunpack.c.l.b16 %v924
      %v958 = vunpack.c.l.b16 %v925
      %v959 = vunpack.c.l.b16 %v926
      %v960 = vunpack.c.l.b16 %v927
      %v961 = vpack.c.b16 %v954, %v953
      %v962 = vpack.c.b16 %v956, %v955
      %v963 = vpack.c.b16 %v958, %v957
      %v964 = vpack.c.b16 %v960, %v959
      %v985 = vunpack.c.l.b16 %v929
      %v986 = vunpack.c.l.b16 %v930
      %v987 = vunpack.c.l.b16 %v931
      %v988 = vunpack.c.l.b16 %v932
      %v989 = vunpack.c.l.b16 %v933
      %v990 = vunpack.c.l.b16 %v934
      %v991 = vunpack.c.l.b16 %v935
      %v992 = vunpack.c.l.b16 %v936
      %v993 = vunpack.c.l.b16 %v937
      %v994 = vunpack.c.l.b16 %v938
      %v995 = vunpack.c.l.b16 %v939
      %v996 = vunpack.c.l.b16 %v940
      %v997 = vunpack.c.l.b16 %v941
      %v998 = vunpack.c.l.b16 %v942
      %v999 = vunpack.c.l.b16 %v943
      %v1000 = vunpack.c.l.b16 %v944
      %v1001 = vpack.c.b16 %v986, %v985
      %v1002 = vpack.c.b16 %v988, %v987
      %v1003 = vpack.c.b16 %v990, %v989
      %v1004 = vpack.c.b16 %v992, %v991
      %v1005 = vpack.c.b16 %v994, %v993
      %v1006 = vpack.c.b16 %v996, %v995
      %v1007 = vpack.c.b16 %v998, %v997
      %v1008 = vpack.c.b16 %v1000, %v999
      %1017 = vmatprep.subr.bf16.mxu0 0
      %1018 = vmatpush1.bf16.msra.mxu0 %v1001
      %1019 = vmatprep.subr.bf16.mxu0 0
      %1020 = vmatpush1.bf16.msra.mxu0 %v1002
      %1021 = vmatprep.subr.bf16.mxu0 0
      %1022 = vmatpush1.bf16.msra.mxu0 %v1003
      %1023 = vmatprep.subr.bf16.mxu0 0
      %1024 = vmatpush1.bf16.msra.mxu0 %v1004
      %1025 = vmatprep.subr.bf16.mxu0 0
      %1026 = vmatpush1.bf16.msra.mxu0 %v1005
      %1027 = vmatprep.subr.bf16.mxu0 0
      %1028 = vmatpush1.bf16.msra.mxu0 %v1006
      %1029 = vmatprep.subr.bf16.mxu0 0
      %1030 = vmatpush1.bf16.msra.mxu0 %v1007
      %1031 = vmatprep.subr.bf16.mxu0 0
      %1032 = vmatpush1.bf16.msra.mxu0 %v1008
      %1033 = vmatprep.subr.bf16.mxu0 0
      %1034 = vmatpush1.bf16.msra.mxu0 0
      %1035 = vmatprep.subr.bf16.mxu0 0
      %1036 = vmatpush1.bf16.msra.mxu0 0
      %1037 = vmatprep.subr.bf16.mxu0 0
      %1038 = vmatpush1.bf16.msra.mxu0 0
      %1039 = vmatprep.subr.bf16.mxu0 0
      %1040 = vmatpush1.bf16.msra.mxu0 0
      %1041 = vmatprep.subr.bf16.mxu0 0
      %1042 = vmatpush1.bf16.msra.mxu0 0
      %1043 = vmatprep.subr.bf16.mxu0 0
      %1044 = vmatpush1.bf16.msra.mxu0 0
      %1045 = vmatprep.subr.bf16.mxu0 0
      %1046 = vmatpush1.bf16.msra.mxu0 0
      %1047 = vmatprep.subr.bf16.mxu0 0
      %1048 = vmatpush1.bf16.msra.mxu0 0
      %1049 = vmatprep.mubr.bf16.mxu0 0
      %1050 = vmatmul.mubr.bf16.gmra.mrb[0].mxu0 %v961
      %v1051 = vpop.f32.mrb[0].mxu0
      %v1052 = vadd.f32 0.0, %v1051
      %v1053 = vpop.f32.mrb[0].mxu0
      %v1054 = vpop.f32.mrb[0].mxu0
      %v1055 = vadd.f32 0.0, %v1054
      %v1056 = vpop.f32.mrb[0].mxu0
      %1057 = vmatprep.mubr.bf16.mxu0 0
      %1058 = vmatmul.mubr.bf16.gmra.mrb[0].mxu0 %v962
      %v1059 = vpop.f32.mrb[0].mxu0
      %v1060 = vadd.f32 0.0, %v1059
      %v1061 = vpop.f32.mrb[0].mxu0
      %v1062 = vpop.f32.mrb[0].mxu0
      %v1063 = vadd.f32 0.0, %v1062
      %v1064 = vpop.f32.mrb[0].mxu0
      %1065 = vmatprep.mubr.bf16.mxu0 0
      %1066 = vmatmul.mubr.bf16.gmra.mrb[0].mxu0 %v963
      %v1067 = vpop.f32.mrb[0].mxu0
      %v1068 = vadd.f32 0.0, %v1067
      %v1069 = vpop.f32.mrb[0].mxu0
      %v1070 = vpop.f32.mrb[0].mxu0
      %v1071 = vadd.f32 0.0, %v1070
      %v1072 = vpop.f32.mrb[0].mxu0
      %1073 = vmatprep.mubr.bf16.mxu0 0
      %1074 = vmatmul.mubr.bf16.gmra.mrb[0].mxu0 %v964
      %v1075 = vpop.f32.mrb[0].mxu0
      %v1076 = vadd.f32 0.0, %v1075
      %v1077 = vpop.f32.mrb[0].mxu0
      %v1078 = vpop.f32.mrb[0].mxu0
      %v1079 = vadd.f32 0.0, %v1078
      %v1080 = vpop.f32.mrb[0].mxu0
      %1081 = vdwg.mxu0
      %v1082 = vadd.f32 %v911, %v1052
      %v1083 = vadd.f32 %v912, %v1055
      %v1084 = vadd.f32 %v913, %v1060
      %v1085 = vadd.f32 %v914, %v1063
      %v1086 = vadd.f32 %v915, %v1068
      %v1087 = vadd.f32 %v916, %v1071
      %v1088 = vadd.f32 %v917, %v1076
      %v1089 = vadd.f32 %v918, %v1079
      %s1090 = scalar_lea.vmem %s281, 216
      %v1091 = vld [vmem:[%s1090] sm:$0xf]
      %v1092 = vld [vmem:[%s1090 + $0x8] sm:$0xf]
      %v1093 = vld [vmem:[%s1090 + $0x10] sm:$0xf]
      %v1094 = vld [vmem:[%s1090 + $0x18] sm:$0xf]
      %v1095 = vld [vmem:[%s1090 + $0x20] sm:$0xf]
      %v1096 = vld [vmem:[%s1090 + $0x28] sm:$0xf]
      %v1097 = vld [vmem:[%s1090 + $0x30] sm:$0xf]
      %v1098 = vld [vmem:[%s1090 + $0x38] sm:$0xf]
      %s1099 = scalar_lea.vmem %s285, 256
      %v1100 = vld [vmem:[%s1099] sm:$0xf]
      %v1101 = vld [vmem:[%s1099 + $0x4] sm:$0xf]
      %v1102 = vld [vmem:[%s1099 + $0x8] sm:$0xf]
      %v1103 = vld [vmem:[%s1099 + $0xc] sm:$0xf]
      %v1104 = vld [vmem:[%s1099 + $0x10] sm:$0xf]
      %v1105 = vld [vmem:[%s1099 + $0x14] sm:$0xf]
      %v1106 = vld [vmem:[%s1099 + $0x18] sm:$0xf]
      %v1107 = vld [vmem:[%s1099 + $0x1c] sm:$0xf]
      %v1108 = vld [vmem:[%s1099 + $0x20] sm:$0xf]
      %v1109 = vld [vmem:[%s1099 + $0x24] sm:$0xf]
      %v1110 = vld [vmem:[%s1099 + $0x28] sm:$0xf]
      %v1111 = vld [vmem:[%s1099 + $0x2c] sm:$0xf]
      %v1112 = vld [vmem:[%s1099 + $0x30] sm:$0xf]
      %v1113 = vld [vmem:[%s1099 + $0x34] sm:$0xf]
      %v1114 = vld [vmem:[%s1099 + $0x38] sm:$0xf]
      %v1115 = vld [vmem:[%s1099 + $0x3c] sm:$0xf]
      %v1124 = vunpack.c.l.b16 %v1091
      %v1125 = vunpack.c.l.b16 %v1092
      %v1126 = vunpack.c.l.b16 %v1093
      %v1127 = vunpack.c.l.b16 %v1094
      %v1128 = vunpack.c.l.b16 %v1095
      %v1129 = vunpack.c.l.b16 %v1096
      %v1130 = vunpack.c.l.b16 %v1097
      %v1131 = vunpack.c.l.b16 %v1098
      %v1132 = vpack.c.b16 %v1125, %v1124
      %v1133 = vpack.c.b16 %v1127, %v1126
      %v1134 = vpack.c.b16 %v1129, %v1128
      %v1135 = vpack.c.b16 %v1131, %v1130
      %v1156 = vunpack.c.l.b16 %v1100
      %v1157 = vunpack.c.l.b16 %v1101
      %v1158 = vunpack.c.l.b16 %v1102
      %v1159 = vunpack.c.l.b16 %v1103
      %v1160 = vunpack.c.l.b16 %v1104
      %v1161 = vunpack.c.l.b16 %v1105
      %v1162 = vunpack.c.l.b16 %v1106
      %v1163 = vunpack.c.l.b16 %v1107
      %v1164 = vunpack.c.l.b16 %v1108
      %v1165 = vunpack.c.l.b16 %v1109
      %v1166 = vunpack.c.l.b16 %v1110
      %v1167 = vunpack.c.l.b16 %v1111
      %v1168 = vunpack.c.l.b16 %v1112
      %v1169 = vunpack.c.l.b16 %v1113
      %v1170 = vunpack.c.l.b16 %v1114
      %v1171 = vunpack.c.l.b16 %v1115
      %v1172 = vpack.c.b16 %v1157, %v1156
      %v1173 = vpack.c.b16 %v1159, %v1158
      %v1174 = vpack.c.b16 %v1161, %v1160
      %v1175 = vpack.c.b16 %v1163, %v1162
      %v1176 = vpack.c.b16 %v1165, %v1164
      %v1177 = vpack.c.b16 %v1167, %v1166
      %v1178 = vpack.c.b16 %v1169, %v1168
      %v1179 = vpack.c.b16 %v1171, %v1170
      %1188 = vmatprep.subr.bf16.mxu0 0
      %1189 = vmatpush1.bf16.msra.mxu0 %v1172
      %1190 = vmatprep.subr.bf16.mxu0 0
      %1191 = vmatpush1.bf16.msra.mxu0 %v1173
      %1192 = vmatprep.subr.bf16.mxu0 0
      %1193 = vmatpush1.bf16.msra.mxu0 %v1174
      %1194 = vmatprep.subr.bf16.mxu0 0
      %1195 = vmatpush1.bf16.msra.mxu0 %v1175
      %1196 = vmatprep.subr.bf16.mxu0 0
      %1197 = vmatpush1.bf16.msra.mxu0 %v1176
      %1198 = vmatprep.subr.bf16.mxu0 0
      %1199 = vmatpush1.bf16.msra.mxu0 %v1177
      %1200 = vmatprep.subr.bf16.mxu0 0
      %1201 = vmatpush1.bf16.msra.mxu0 %v1178
      %1202 = vmatprep.subr.bf16.mxu0 0
      %1203 = vmatpush1.bf16.msra.mxu0 %v1179
      %1204 = vmatprep.subr.bf16.mxu0 0
      %1205 = vmatpush1.bf16.msra.mxu0 0
      %1206 = vmatprep.subr.bf16.mxu0 0
      %1207 = vmatpush1.bf16.msra.mxu0 0
      %1208 = vmatprep.subr.bf16.mxu0 0
      %1209 = vmatpush1.bf16.msra.mxu0 0
      %1210 = vmatprep.subr.bf16.mxu0 0
      %1211 = vmatpush1.bf16.msra.mxu0 0
      %1212 = vmatprep.subr.bf16.mxu0 0
      %1213 = vmatpush1.bf16.msra.mxu0 0
      %1214 = vmatprep.subr.bf16.mxu0 0
      %1215 = vmatpush1.bf16.msra.mxu0 0
      %1216 = vmatprep.subr.bf16.mxu0 0
      %1217 = vmatpush1.bf16.msra.mxu0 0
      %1218 = vmatprep.subr.bf16.mxu0 0
      %1219 = vmatpush1.bf16.msra.mxu0 0
      %1220 = vmatprep.mubr.bf16.mxu0 0
      %1221 = vmatmul.mubr.bf16.gmra.mrb[0].mxu0 %v1132
      %v1222 = vpop.f32.mrb[0].mxu0
      %v1223 = vadd.f32 0.0, %v1222
      %v1224 = vpop.f32.mrb[0].mxu0
      %v1225 = vpop.f32.mrb[0].mxu0
      %v1226 = vadd.f32 0.0, %v1225
      %v1227 = vpop.f32.mrb[0].mxu0
      %1228 = vmatprep.mubr.bf16.mxu0 0
      %1229 = vmatmul.mubr.bf16.gmra.mrb[0].mxu0 %v1133
      %v1230 = vpop.f32.mrb[0].mxu0
      %v1231 = vadd.f32 0.0, %v1230
      %v1232 = vpop.f32.mrb[0].mxu0
      %v1233 = vpop.f32.mrb[0].mxu0
      %v1234 = vadd.f32 0.0, %v1233
      %v1235 = vpop.f32.mrb[0].mxu0
      %1236 = vmatprep.mubr.bf16.mxu0 0
      %1237 = vmatmul.mubr.bf16.gmra.mrb[0].mxu0 %v1134
      %v1238 = vpop.f32.mrb[0].mxu0
      %v1239 = vadd.f32 0.0, %v1238
      %v1240 = vpop.f32.mrb[0].mxu0
      %v1241 = vpop.f32.mrb[0].mxu0
      %v1242 = vadd.f32 0.0, %v1241
      %v1243 = vpop.f32.mrb[0].mxu0
      %1244 = vmatprep.mubr.bf16.mxu0 0
      %1245 = vmatmul.mubr.bf16.gmra.mrb[0].mxu0 %v1135
      %v1246 = vpop.f32.mrb[0].mxu0
      %v1247 = vadd.f32 0.0, %v1246
      %v1248 = vpop.f32.mrb[0].mxu0
      %v1249 = vpop.f32.mrb[0].mxu0
      %v1250 = vadd.f32 0.0, %v1249
      %v1251 = vpop.f32.mrb[0].mxu0
      %1252 = vdwg.mxu0
      %v1253 = vadd.f32 %v1082, %v1223
      %v1254 = vadd.f32 %v1083, %v1226
      %v1255 = vadd.f32 %v1084, %v1231
      %v1256 = vadd.f32 %v1085, %v1234
      %v1257 = vadd.f32 %v1086, %v1239
      %v1258 = vadd.f32 %v1087, %v1242
      %v1259 = vadd.f32 %v1088, %v1247
      %v1260 = vadd.f32 %v1089, %v1250
      %v1261 = vld [vmem:[%s919] sm:$0xf]
      %v1262 = vld [vmem:[%s919 + $0x4] sm:$0x1]
      %v1263 = vld [vmem:[%s919 + $0x8] sm:$0xf]
      %v1264 = vld [vmem:[%s919 + $0xc] sm:$0x1]
      %v1265 = vld [vmem:[%s919 + $0x10] sm:$0xf]
      %v1266 = vld [vmem:[%s919 + $0x14] sm:$0x1]
      %v1267 = vld [vmem:[%s919 + $0x18] sm:$0xf]
      %v1268 = vld [vmem:[%s919 + $0x1c] sm:$0x1]
      %v1269 = vld [vmem:[%s919 + $0x20] sm:$0xf]
      %v1270 = vld [vmem:[%s919 + $0x24] sm:$0x1]
      %v1271 = vld [vmem:[%s919 + $0x28] sm:$0xf]
      %v1272 = vld [vmem:[%s919 + $0x2c] sm:$0x1]
      %v1273 = vld [vmem:[%s919 + $0x30] sm:$0xf]
      %v1274 = vld [vmem:[%s919 + $0x34] sm:$0x1]
      %v1275 = vld [vmem:[%s919 + $0x38] sm:$0xf]
      %v1276 = vld [vmem:[%s919 + $0x3c] sm:$0x1]
      %v1278 = vshrl.u32 %v1261, 16
      %v1280 = vrot.slane %v1278, 4
      %v1281 = vshll.u32 %v1261, 16
      %v1283 = vrot.slane %v1281, 5
      %v1284 = vor.u32 %v1280, %v1283
      %v1285 = vrot.slane %v1284, 4
      %v1287 = vshll.u32 %v1262, 16
      %v1289 = vrot.slane %v1287, 5
      %v1290 = vsel %vm652, %v1285, %v1289
      %v1292 = vshrl.u32 %v1263, 16
      %v1294 = vrot.slane %v1292, 4
      %v1295 = vshll.u32 %v1263, 16
      %v1297 = vrot.slane %v1295, 5
      %v1298 = vor.u32 %v1294, %v1297
      %v1299 = vrot.slane %v1298, 4
      %v1301 = vshll.u32 %v1264, 16
      %v1303 = vrot.slane %v1301, 5
      %v1304 = vsel %vm652, %v1299, %v1303
      %v1306 = vshrl.u32 %v1265, 16
      %v1308 = vrot.slane %v1306, 4
      %v1309 = vshll.u32 %v1265, 16
      %v1311 = vrot.slane %v1309, 5
      %v1312 = vor.u32 %v1308, %v1311
      %v1313 = vrot.slane %v1312, 4
      %v1315 = vshll.u32 %v1266, 16
      %v1317 = vrot.slane %v1315, 5
      %v1318 = vsel %vm652, %v1313, %v1317
      %v1320 = vshrl.u32 %v1267, 16
      %v1322 = vrot.slane %v1320, 4
      %v1323 = vshll.u32 %v1267, 16
      %v1325 = vrot.slane %v1323, 5
      %v1326 = vor.u32 %v1322, %v1325
      %v1327 = vrot.slane %v1326, 4
      %v1329 = vshll.u32 %v1268, 16
      %v1331 = vrot.slane %v1329, 5
      %v1332 = vsel %vm652, %v1327, %v1331
      %v1334 = vshrl.u32 %v1269, 16
      %v1336 = vrot.slane %v1334, 4
      %v1337 = vshll.u32 %v1269, 16
      %v1339 = vrot.slane %v1337, 5
      %v1340 = vor.u32 %v1336, %v1339
      %v1341 = vrot.slane %v1340, 4
      %v1343 = vshll.u32 %v1270, 16
      %v1345 = vrot.slane %v1343, 5
      %v1346 = vsel %vm652, %v1341, %v1345
      %v1348 = vshrl.u32 %v1271, 16
      %v1350 = vrot.slane %v1348, 4
      %v1351 = vshll.u32 %v1271, 16
      %v1353 = vrot.slane %v1351, 5
      %v1354 = vor.u32 %v1350, %v1353
      %v1355 = vrot.slane %v1354, 4
      %v1357 = vshll.u32 %v1272, 16
      %v1359 = vrot.slane %v1357, 5
      %v1360 = vsel %vm652, %v1355, %v1359
      %v1362 = vshrl.u32 %v1273, 16
      %v1364 = vrot.slane %v1362, 4
      %v1365 = vshll.u32 %v1273, 16
      %v1367 = vrot.slane %v1365, 5
      %v1368 = vor.u32 %v1364, %v1367
      %v1369 = vrot.slane %v1368, 4
      %v1371 = vshll.u32 %v1274, 16
      %v1373 = vrot.slane %v1371, 5
      %v1374 = vsel %vm652, %v1369, %v1373
      %v1376 = vshrl.u32 %v1275, 16
      %v1378 = vrot.slane %v1376, 4
      %v1379 = vshll.u32 %v1275, 16
      %v1381 = vrot.slane %v1379, 5
      %v1382 = vor.u32 %v1378, %v1381
      %v1383 = vrot.slane %v1382, 4
      %v1385 = vshll.u32 %v1276, 16
      %v1387 = vrot.slane %v1385, 5
      %v1388 = vsel %vm652, %v1383, %v1387
      %s1389 = scalar_lea.vmem %s285, 320
      %v1390 = vld [vmem:[%s1389] sm:$0xf]
      %v1391 = vld [vmem:[%s1389 + $0x4] sm:$0xf]
      %v1392 = vld [vmem:[%s1389 + $0x8] sm:$0xf]
      %v1393 = vld [vmem:[%s1389 + $0xc] sm:$0xf]
      %v1394 = vld [vmem:[%s1389 + $0x10] sm:$0xf]
      %v1395 = vld [vmem:[%s1389 + $0x14] sm:$0xf]
      %v1396 = vld [vmem:[%s1389 + $0x18] sm:$0xf]
      %v1397 = vld [vmem:[%s1389 + $0x1c] sm:$0xf]
      %v1398 = vld [vmem:[%s1389 + $0x20] sm:$0xf]
      %v1399 = vld [vmem:[%s1389 + $0x24] sm:$0xf]
      %v1400 = vld [vmem:[%s1389 + $0x28] sm:$0xf]
      %v1401 = vld [vmem:[%s1389 + $0x2c] sm:$0xf]
      %v1402 = vld [vmem:[%s1389 + $0x30] sm:$0xf]
      %v1403 = vld [vmem:[%s1389 + $0x34] sm:$0xf]
      %v1404 = vld [vmem:[%s1389 + $0x38] sm:$0xf]
      %v1405 = vld [vmem:[%s1389 + $0x3c] sm:$0xf]
      %v1406 = vunpack.c.l.b16 %v1290
      %v1407 = vunpack.c.l.b16 %v1304
      %v1408 = vunpack.c.l.b16 %v1318
      %v1409 = vunpack.c.l.b16 %v1332
      %v1410 = vunpack.c.l.b16 %v1346
      %v1411 = vunpack.c.l.b16 %v1360
      %v1412 = vunpack.c.l.b16 %v1374
      %v1413 = vunpack.c.l.b16 %v1388
      %v1414 = vpack.c.b16 %v1407, %v1406
      %v1415 = vpack.c.b16 %v1409, %v1408
      %v1416 = vpack.c.b16 %v1411, %v1410
      %v1417 = vpack.c.b16 %v1413, %v1412
      %v1438 = vunpack.c.l.b16 %v1390
      %v1439 = vunpack.c.l.b16 %v1391
      %v1440 = vunpack.c.l.b16 %v1392
      %v1441 = vunpack.c.l.b16 %v1393
      %v1442 = vunpack.c.l.b16 %v1394
      %v1443 = vunpack.c.l.b16 %v1395
      %v1444 = vunpack.c.l.b16 %v1396
      %v1445 = vunpack.c.l.b16 %v1397
      %v1446 = vunpack.c.l.b16 %v1398
      %v1447 = vunpack.c.l.b16 %v1399
      %v1448 = vunpack.c.l.b16 %v1400
      %v1449 = vunpack.c.l.b16 %v1401
      %v1450 = vunpack.c.l.b16 %v1402
      %v1451 = vunpack.c.l.b16 %v1403
      %v1452 = vunpack.c.l.b16 %v1404
      %v1453 = vunpack.c.l.b16 %v1405
      %v1454 = vpack.c.b16 %v1439, %v1438
      %v1455 = vpack.c.b16 %v1441, %v1440
      %v1456 = vpack.c.b16 %v1443, %v1442
      %v1457 = vpack.c.b16 %v1445, %v1444
      %v1458 = vpack.c.b16 %v1447, %v1446
      %v1459 = vpack.c.b16 %v1449, %v1448
      %v1460 = vpack.c.b16 %v1451, %v1450
      %v1461 = vpack.c.b16 %v1453, %v1452
      %1470 = vmatprep.subr.bf16.mxu0 0
      %1471 = vmatpush1.bf16.msra.mxu0 %v1454
      %1472 = vmatprep.subr.bf16.mxu0 0
      %1473 = vmatpush1.bf16.msra.mxu0 %v1455
      %1474 = vmatprep.subr.bf16.mxu0 0
      %1475 = vmatpush1.bf16.msra.mxu0 %v1456
      %1476 = vmatprep.subr.bf16.mxu0 0
      %1477 = vmatpush1.bf16.msra.mxu0 %v1457
      %1478 = vmatprep.subr.bf16.mxu0 0
      %1479 = vmatpush1.bf16.msra.mxu0 %v1458
      %1480 = vmatprep.subr.bf16.mxu0 0
      %1481 = vmatpush1.bf16.msra.mxu0 %v1459
      %1482 = vmatprep.subr.bf16.mxu0 0
      %1483 = vmatpush1.bf16.msra.mxu0 %v1460
      %1484 = vmatprep.subr.bf16.mxu0 0
      %1485 = vmatpush1.bf16.msra.mxu0 %v1461
      %1486 = vmatprep.subr.bf16.mxu0 0
      %1487 = vmatpush1.bf16.msra.mxu0 0
      %1488 = vmatprep.subr.bf16.mxu0 0
      %1489 = vmatpush1.bf16.msra.mxu0 0
      %1490 = vmatprep.subr.bf16.mxu0 0
      %1491 = vmatpush1.bf16.msra.mxu0 0
      %1492 = vmatprep.subr.bf16.mxu0 0
      %1493 = vmatpush1.bf16.msra.mxu0 0
      %1494 = vmatprep.subr.bf16.mxu0 0
      %1495 = vmatpush1.bf16.msra.mxu0 0
      %1496 = vmatprep.subr.bf16.mxu0 0
      %1497 = vmatpush1.bf16.msra.mxu0 0
      %1498 = vmatprep.subr.bf16.mxu0 0
      %1499 = vmatpush1.bf16.msra.mxu0 0
      %1500 = vmatprep.subr.bf16.mxu0 0
      %1501 = vmatpush1.bf16.msra.mxu0 0
      %1502 = vmatprep.mubr.bf16.mxu0 0
      %1503 = vmatmul.mubr.bf16.gmra.mrb[0].mxu0 %v1414
      %v1504 = vpop.f32.mrb[0].mxu0
      %v1505 = vadd.f32 0.0, %v1504
      %v1506 = vpop.f32.mrb[0].mxu0
      %v1507 = vpop.f32.mrb[0].mxu0
      %v1508 = vadd.f32 0.0, %v1507
      %v1509 = vpop.f32.mrb[0].mxu0
      %1510 = vmatprep.mubr.bf16.mxu0 0
      %1511 = vmatmul.mubr.bf16.gmra.mrb[0].mxu0 %v1415
      %v1512 = vpop.f32.mrb[0].mxu0
      %v1513 = vadd.f32 0.0, %v1512
      %v1514 = vpop.f32.mrb[0].mxu0
      %v1515 = vpop.f32.mrb[0].mxu0
      %v1516 = vadd.f32 0.0, %v1515
      %v1517 = vpop.f32.mrb[0].mxu0
      %1518 = vmatprep.mubr.bf16.mxu0 0
      %1519 = vmatmul.mubr.bf16.gmra.mrb[0].mxu0 %v1416
      %v1520 = vpop.f32.mrb[0].mxu0
      %v1521 = vadd.f32 0.0, %v1520
      %v1522 = vpop.f32.mrb[0].mxu0
      %v1523 = vpop.f32.mrb[0].mxu0
      %v1524 = vadd.f32 0.0, %v1523
      %v1525 = vpop.f32.mrb[0].mxu0
      %1526 = vmatprep.mubr.bf16.mxu0 0
      %1527 = vmatmul.mubr.bf16.gmra.mrb[0].mxu0 %v1417
      %v1528 = vpop.f32.mrb[0].mxu0
      %v1529 = vadd.f32 0.0, %v1528
      %v1530 = vpop.f32.mrb[0].mxu0
      %v1531 = vpop.f32.mrb[0].mxu0
      %v1532 = vadd.f32 0.0, %v1531
      %v1533 = vpop.f32.mrb[0].mxu0
      %1534 = vdwg.mxu0
      %v1535 = vadd.f32 %v1253, %v1505
      %v1536 = vadd.f32 %v1254, %v1508
      %v1537 = vadd.f32 %v1255, %v1513
      %v1538 = vadd.f32 %v1256, %v1516
      %v1539 = vadd.f32 %v1257, %v1521
      %v1540 = vadd.f32 %v1258, %v1524
      %v1541 = vadd.f32 %v1259, %v1529
      %v1542 = vadd.f32 %v1260, %v1532
      %s1543 = scalar_lea.vmem %s281, 8
      %v1544 = vld [vmem:[%s1543] sm:$0xf]
      %v1545 = vld [vmem:[%s1543 + $0x8] sm:$0xf]
      %v1546 = vld [vmem:[%s1543 + $0x10] sm:$0xf]
      %v1547 = vld [vmem:[%s1543 + $0x18] sm:$0xf]
      %v1548 = vld [vmem:[%s1543 + $0x20] sm:$0xf]
      %v1549 = vld [vmem:[%s1543 + $0x28] sm:$0xf]
      %v1550 = vld [vmem:[%s1543 + $0x30] sm:$0xf]
      %v1551 = vld [vmem:[%s1543 + $0x38] sm:$0xf]
      %s1552 = scalar_lea.vmem %s285, 384
      %v1553 = vld [vmem:[%s1552] sm:$0xf]
      %v1554 = vld [vmem:[%s1552 + $0x4] sm:$0xf]
      %v1555 = vld [vmem:[%s1552 + $0x8] sm:$0xf]
      %v1556 = vld [vmem:[%s1552 + $0xc] sm:$0xf]
      %v1557 = vld [vmem:[%s1552 + $0x10] sm:$0xf]
      %v1558 = vld [vmem:[%s1552 + $0x14] sm:$0xf]
      %v1559 = vld [vmem:[%s1552 + $0x18] sm:$0xf]
      %v1560 = vld [vmem:[%s1552 + $0x1c] sm:$0xf]
      %v1561 = vld [vmem:[%s1552 + $0x20] sm:$0xf]
      %v1562 = vld [vmem:[%s1552 + $0x24] sm:$0xf]
      %v1563 = vld [vmem:[%s1552 + $0x28] sm:$0xf]
      %v1564 = vld [vmem:[%s1552 + $0x2c] sm:$0xf]
      %v1565 = vld [vmem:[%s1552 + $0x30] sm:$0xf]
      %v1566 = vld [vmem:[%s1552 + $0x34] sm:$0xf]
      %v1567 = vld [vmem:[%s1552 + $0x38] sm:$0xf]
      %v1568 = vld [vmem:[%s1552 + $0x3c] sm:$0xf]
      %v1577 = vunpack.c.l.b16 %v1544
      %v1578 = vunpack.c.l.b16 %v1545
      %v1579 = vunpack.c.l.b16 %v1546
      %v1580 = vunpack.c.l.b16 %v1547
      %v1581 = vunpack.c.l.b16 %v1548
      %v1582 = vunpack.c.l.b16 %v1549
      %v1583 = vunpack.c.l.b16 %v1550
      %v1584 = vunpack.c.l.b16 %v1551
      %v1585 = vpack.c.b16 %v1578, %v1577
      %v1586 = vpack.c.b16 %v1580, %v1579
      %v1587 = vpack.c.b16 %v1582, %v1581
      %v1588 = vpack.c.b16 %v1584, %v1583
      %v1609 = vunpack.c.l.b16 %v1553
      %v1610 = vunpack.c.l.b16 %v1554
      %v1611 = vunpack.c.l.b16 %v1555
      %v1612 = vunpack.c.l.b16 %v1556
      %v1613 = vunpack.c.l.b16 %v1557
      %v1614 = vunpack.c.l.b16 %v1558
      %v1615 = vunpack.c.l.b16 %v1559
      %v1616 = vunpack.c.l.b16 %v1560
      %v1617 = vunpack.c.l.b16 %v1561
      %v1618 = vunpack.c.l.b16 %v1562
      %v1619 = vunpack.c.l.b16 %v1563
      %v1620 = vunpack.c.l.b16 %v1564
      %v1621 = vunpack.c.l.b16 %v1565
      %v1622 = vunpack.c.l.b16 %v1566
      %v1623 = vunpack.c.l.b16 %v1567
      %v1624 = vunpack.c.l.b16 %v1568
      %v1625 = vpack.c.b16 %v1610, %v1609
      %v1626 = vpack.c.b16 %v1612, %v1611
      %v1627 = vpack.c.b16 %v1614, %v1613
      %v1628 = vpack.c.b16 %v1616, %v1615
      %v1629 = vpack.c.b16 %v1618, %v1617
      %v1630 = vpack.c.b16 %v1620, %v1619
      %v1631 = vpack.c.b16 %v1622, %v1621
      %v1632 = vpack.c.b16 %v1624, %v1623
      %1641 = vmatprep.subr.bf16.mxu0 0
      %1642 = vmatpush1.bf16.msra.mxu0 %v1625
      %1643 = vmatprep.subr.bf16.mxu0 0
      %1644 = vmatpush1.bf16.msra.mxu0 %v1626
      %1645 = vmatprep.subr.bf16.mxu0 0
      %1646 = vmatpush1.bf16.msra.mxu0 %v1627
      %1647 = vmatprep.subr.bf16.mxu0 0
      %1648 = vmatpush1.bf16.msra.mxu0 %v1628
      %1649 = vmatprep.subr.bf16.mxu0 0
      %1650 = vmatpush1.bf16.msra.mxu0 %v1629
      %1651 = vmatprep.subr.bf16.mxu0 0
      %1652 = vmatpush1.bf16.msra.mxu0 %v1630
      %1653 = vmatprep.subr.bf16.mxu0 0
      %1654 = vmatpush1.bf16.msra.mxu0 %v1631
      %1655 = vmatprep.subr.bf16.mxu0 0
      %1656 = vmatpush1.bf16.msra.mxu0 %v1632
      %1657 = vmatprep.subr.bf16.mxu0 0
      %1658 = vmatpush1.bf16.msra.mxu0 0
      %1659 = vmatprep.subr.bf16.mxu0 0
      %1660 = vmatpush1.bf16.msra.mxu0 0
      %1661 = vmatprep.subr.bf16.mxu0 0
      %1662 = vmatpush1.bf16.msra.mxu0 0
      %1663 = vmatprep.subr.bf16.mxu0 0
      %1664 = vmatpush1.bf16.msra.mxu0 0
      %1665 = vmatprep.subr.bf16.mxu0 0
      %1666 = vmatpush1.bf16.msra.mxu0 0
      %1667 = vmatprep.subr.bf16.mxu0 0
      %1668 = vmatpush1.bf16.msra.mxu0 0
      %1669 = vmatprep.subr.bf16.mxu0 0
      %1670 = vmatpush1.bf16.msra.mxu0 0
      %1671 = vmatprep.subr.bf16.mxu0 0
      %1672 = vmatpush1.bf16.msra.mxu0 0
      %1673 = vmatprep.mubr.bf16.mxu0 0
      %1674 = vmatmul.mubr.bf16.gmra.mrb[0].mxu0 %v1585
      %v1675 = vpop.f32.mrb[0].mxu0
      %v1676 = vadd.f32 0.0, %v1675
      %v1677 = vpop.f32.mrb[0].mxu0
      %v1678 = vpop.f32.mrb[0].mxu0
      %v1679 = vadd.f32 0.0, %v1678
      %v1680 = vpop.f32.mrb[0].mxu0
      %1681 = vmatprep.mubr.bf16.mxu0 0
      %1682 = vmatmul.mubr.bf16.gmra.mrb[0].mxu0 %v1586
      %v1683 = vpop.f32.mrb[0].mxu0
      %v1684 = vadd.f32 0.0, %v1683
      %v1685 = vpop.f32.mrb[0].mxu0
      %v1686 = vpop.f32.mrb[0].mxu0
      %v1687 = vadd.f32 0.0, %v1686
      %v1688 = vpop.f32.mrb[0].mxu0
      %1689 = vmatprep.mubr.bf16.mxu0 0
      %1690 = vmatmul.mubr.bf16.gmra.mrb[0].mxu0 %v1587
      %v1691 = vpop.f32.mrb[0].mxu0
      %v1692 = vadd.f32 0.0, %v1691
      %v1693 = vpop.f32.mrb[0].mxu0
      %v1694 = vpop.f32.mrb[0].mxu0
      %v1695 = vadd.f32 0.0, %v1694
      %v1696 = vpop.f32.mrb[0].mxu0
      %1697 = vmatprep.mubr.bf16.mxu0 0
      %1698 = vmatmul.mubr.bf16.gmra.mrb[0].mxu0 %v1588
      %v1699 = vpop.f32.mrb[0].mxu0
      %v1700 = vadd.f32 0.0, %v1699
      %v1701 = vpop.f32.mrb[0].mxu0
      %v1702 = vpop.f32.mrb[0].mxu0
      %v1703 = vadd.f32 0.0, %v1702
      %v1704 = vpop.f32.mrb[0].mxu0
      %1705 = vdwg.mxu0
      %v1706 = vadd.f32 %v1535, %v1676
      %v1707 = vadd.f32 %v1536, %v1679
      %v1708 = vadd.f32 %v1537, %v1684
      %v1709 = vadd.f32 %v1538, %v1687
      %v1710 = vadd.f32 %v1539, %v1692
      %v1711 = vadd.f32 %v1540, %v1695
      %v1712 = vadd.f32 %v1541, %v1700
      %v1713 = vadd.f32 %v1542, %v1703
      %s1714 = scalar_lea.vmem %s281, 80
      %v1715 = vld [vmem:[%s1714] sm:$0xf]
      %v1716 = vld [vmem:[%s1714 + $0x8] sm:$0xf]
      %v1717 = vld [vmem:[%s1714 + $0x10] sm:$0xf]
      %v1718 = vld [vmem:[%s1714 + $0x18] sm:$0xf]
      %v1719 = vld [vmem:[%s1714 + $0x20] sm:$0xf]
      %v1720 = vld [vmem:[%s1714 + $0x28] sm:$0xf]
      %v1721 = vld [vmem:[%s1714 + $0x30] sm:$0xf]
      %v1722 = vld [vmem:[%s1714 + $0x38] sm:$0xf]
      %s1723 = scalar_lea.vmem %s285, 448
      %v1724 = vld [vmem:[%s1723] sm:$0xf]
      %v1725 = vld [vmem:[%s1723 + $0x4] sm:$0xf]
      %v1726 = vld [vmem:[%s1723 + $0x8] sm:$0xf]
      %v1727 = vld [vmem:[%s1723 + $0xc] sm:$0xf]
      %v1728 = vld [vmem:[%s1723 + $0x10] sm:$0xf]
      %v1729 = vld [vmem:[%s1723 + $0x14] sm:$0xf]
      %v1730 = vld [vmem:[%s1723 + $0x18] sm:$0xf]
      %v1731 = vld [vmem:[%s1723 + $0x1c] sm:$0xf]
      %v1732 = vld [vmem:[%s1723 + $0x20] sm:$0xf]
      %v1733 = vld [vmem:[%s1723 + $0x24] sm:$0xf]
      %v1734 = vld [vmem:[%s1723 + $0x28] sm:$0xf]
      %v1735 = vld [vmem:[%s1723 + $0x2c] sm:$0xf]
      %v1736 = vld [vmem:[%s1723 + $0x30] sm:$0xf]
      %v1737 = vld [vmem:[%s1723 + $0x34] sm:$0xf]
      %v1738 = vld [vmem:[%s1723 + $0x38] sm:$0xf]
      %v1739 = vld [vmem:[%s1723 + $0x3c] sm:$0xf]
      %v1748 = vunpack.c.l.b16 %v1715
      %v1749 = vunpack.c.l.b16 %v1716
      %v1750 = vunpack.c.l.b16 %v1717
      %v1751 = vunpack.c.l.b16 %v1718
      %v1752 = vunpack.c.l.b16 %v1719
      %v1753 = vunpack.c.l.b16 %v1720
      %v1754 = vunpack.c.l.b16 %v1721
      %v1755 = vunpack.c.l.b16 %v1722
      %v1756 = vpack.c.b16 %v1749, %v1748
      %v1757 = vpack.c.b16 %v1751, %v1750
      %v1758 = vpack.c.b16 %v1753, %v1752
      %v1759 = vpack.c.b16 %v1755, %v1754
      %v1780 = vunpack.c.l.b16 %v1724
      %v1781 = vunpack.c.l.b16 %v1725
      %v1782 = vunpack.c.l.b16 %v1726
      %v1783 = vunpack.c.l.b16 %v1727
      %v1784 = vunpack.c.l.b16 %v1728
      %v1785 = vunpack.c.l.b16 %v1729
      %v1786 = vunpack.c.l.b16 %v1730
      %v1787 = vunpack.c.l.b16 %v1731
      %v1788 = vunpack.c.l.b16 %v1732
      %v1789 = vunpack.c.l.b16 %v1733
      %v1790 = vunpack.c.l.b16 %v1734
      %v1791 = vunpack.c.l.b16 %v1735
      %v1792 = vunpack.c.l.b16 %v1736
      %v1793 = vunpack.c.l.b16 %v1737
      %v1794 = vunpack.c.l.b16 %v1738
      %v1795 = vunpack.c.l.b16 %v1739
      %v1796 = vpack.c.b16 %v1781, %v1780
      %v1797 = vpack.c.b16 %v1783, %v1782
      %v1798 = vpack.c.b16 %v1785, %v1784
      %v1799 = vpack.c.b16 %v1787, %v1786
      %v1800 = vpack.c.b16 %v1789, %v1788
      %v1801 = vpack.c.b16 %v1791, %v1790
      %v1802 = vpack.c.b16 %v1793, %v1792
      %v1803 = vpack.c.b16 %v1795, %v1794
      %1812 = vmatprep.subr.bf16.mxu0 0
      %1813 = vmatpush1.bf16.msra.mxu0 %v1796
      %1814 = vmatprep.subr.bf16.mxu0 0
      %1815 = vmatpush1.bf16.msra.mxu0 %v1797
      %1816 = vmatprep.subr.bf16.mxu0 0
      %1817 = vmatpush1.bf16.msra.mxu0 %v1798
      %1818 = vmatprep.subr.bf16.mxu0 0
      %1819 = vmatpush1.bf16.msra.mxu0 %v1799
      %1820 = vmatprep.subr.bf16.mxu0 0
      %1821 = vmatpush1.bf16.msra.mxu0 %v1800
      %1822 = vmatprep.subr.bf16.mxu0 0
      %1823 = vmatpush1.bf16.msra.mxu0 %v1801
      %1824 = vmatprep.subr.bf16.mxu0 0
      %1825 = vmatpush1.bf16.msra.mxu0 %v1802
      %1826 = vmatprep.subr.bf16.mxu0 0
      %1827 = vmatpush1.bf16.msra.mxu0 %v1803
      %1828 = vmatprep.subr.bf16.mxu0 0
      %1829 = vmatpush1.bf16.msra.mxu0 0
      %1830 = vmatprep.subr.bf16.mxu0 0
      %1831 = vmatpush1.bf16.msra.mxu0 0
      %1832 = vmatprep.subr.bf16.mxu0 0
      %1833 = vmatpush1.bf16.msra.mxu0 0
      %1834 = vmatprep.subr.bf16.mxu0 0
      %1835 = vmatpush1.bf16.msra.mxu0 0
      %1836 = vmatprep.subr.bf16.mxu0 0
      %1837 = vmatpush1.bf16.msra.mxu0 0
      %1838 = vmatprep.subr.bf16.mxu0 0
      %1839 = vmatpush1.bf16.msra.mxu0 0
      %1840 = vmatprep.subr.bf16.mxu0 0
      %1841 = vmatpush1.bf16.msra.mxu0 0
      %1842 = vmatprep.subr.bf16.mxu0 0
      %1843 = vmatpush1.bf16.msra.mxu0 0
      %1844 = vmatprep.mubr.bf16.mxu0 0
      %1845 = vmatmul.mubr.bf16.gmra.mrb[0].mxu0 %v1756
      %v1846 = vpop.f32.mrb[0].mxu0
      %v1847 = vadd.f32 0.0, %v1846
      %v1848 = vpop.f32.mrb[0].mxu0
      %v1849 = vpop.f32.mrb[0].mxu0
      %v1850 = vadd.f32 0.0, %v1849
      %v1851 = vpop.f32.mrb[0].mxu0
      %1852 = vmatprep.mubr.bf16.mxu0 0
      %1853 = vmatmul.mubr.bf16.gmra.mrb[0].mxu0 %v1757
      %v1854 = vpop.f32.mrb[0].mxu0
      %v1855 = vadd.f32 0.0, %v1854
      %v1856 = vpop.f32.mrb[0].mxu0
      %v1857 = vpop.f32.mrb[0].mxu0
      %v1858 = vadd.f32 0.0, %v1857
      %v1859 = vpop.f32.mrb[0].mxu0
      %1860 = vmatprep.mubr.bf16.mxu0 0
      %1861 = vmatmul.mubr.bf16.gmra.mrb[0].mxu0 %v1758
      %v1862 = vpop.f32.mrb[0].mxu0
      %v1863 = vadd.f32 0.0, %v1862
      %v1864 = vpop.f32.mrb[0].mxu0
      %v1865 = vpop.f32.mrb[0].mxu0
      %v1866 = vadd.f32 0.0, %v1865
      %v1867 = vpop.f32.mrb[0].mxu0
      %1868 = vmatprep.mubr.bf16.mxu0 0
      %1869 = vmatmul.mubr.bf16.gmra.mrb[0].mxu0 %v1759
      %v1870 = vpop.f32.mrb[0].mxu0
      %v1871 = vadd.f32 0.0, %v1870
      %v1872 = vpop.f32.mrb[0].mxu0
      %v1873 = vpop.f32.mrb[0].mxu0
      %v1874 = vadd.f32 0.0, %v1873
      %v1875 = vpop.f32.mrb[0].mxu0
      %1876 = vdwg.mxu0
      %v1877 = vadd.f32 %v1706, %v1847
      %v1878 = vadd.f32 %v1707, %v1850
      %v1879 = vadd.f32 %v1708, %v1855
      %v1880 = vadd.f32 %v1709, %v1858
      %v1881 = vadd.f32 %v1710, %v1863
      %v1882 = vadd.f32 %v1711, %v1866
      %v1883 = vadd.f32 %v1712, %v1871
      %v1884 = vadd.f32 %v1713, %v1874
      %v1885 = vld [vmem:[%s1543] sm:$0xf]
      %v1886 = vld [vmem:[%s1543 + $0x4] sm:$0x1]
      %v1887 = vld [vmem:[%s1543 + $0x8] sm:$0xf]
      %v1888 = vld [vmem:[%s1543 + $0xc] sm:$0x1]
      %v1889 = vld [vmem:[%s1543 + $0x10] sm:$0xf]
      %v1890 = vld [vmem:[%s1543 + $0x14] sm:$0x1]
      %v1891 = vld [vmem:[%s1543 + $0x18] sm:$0xf]
      %v1892 = vld [vmem:[%s1543 + $0x1c] sm:$0x1]
      %v1893 = vld [vmem:[%s1543 + $0x20] sm:$0xf]
      %v1894 = vld [vmem:[%s1543 + $0x24] sm:$0x1]
      %v1895 = vld [vmem:[%s1543 + $0x28] sm:$0xf]
      %v1896 = vld [vmem:[%s1543 + $0x2c] sm:$0x1]
      %v1897 = vld [vmem:[%s1543 + $0x30] sm:$0xf]
      %v1898 = vld [vmem:[%s1543 + $0x34] sm:$0x1]
      %v1899 = vld [vmem:[%s1543 + $0x38] sm:$0xf]
      %v1900 = vld [vmem:[%s1543 + $0x3c] sm:$0x1]
      %v1902 = vshrl.u32 %v1885, 16
      %v1904 = vrot.slane %v1902, 4
      %v1905 = vshll.u32 %v1885, 16
      %v1907 = vrot.slane %v1905, 5
      %v1908 = vor.u32 %v1904, %v1907
      %v1909 = vrot.slane %v1908, 4
      %v1911 = vshll.u32 %v1886, 16
      %v1913 = vrot.slane %v1911, 5
      %v1914 = vsel %vm652, %v1909, %v1913
      %v1916 = vshrl.u32 %v1887, 16
      %v1918 = vrot.slane %v1916, 4
      %v1919 = vshll.u32 %v1887, 16
      %v1921 = vrot.slane %v1919, 5
      %v1922 = vor.u32 %v1918, %v1921
      %v1923 = vrot.slane %v1922, 4
      %v1925 = vshll.u32 %v1888, 16
      %v1927 = vrot.slane %v1925, 5
      %v1928 = vsel %vm652, %v1923, %v1927
      %v1930 = vshrl.u32 %v1889, 16
      %v1932 = vrot.slane %v1930, 4
      %v1933 = vshll.u32 %v1889, 16
      %v1935 = vrot.slane %v1933, 5
      %v1936 = vor.u32 %v1932, %v1935
      %v1937 = vrot.slane %v1936, 4
      %v1939 = vshll.u32 %v1890, 16
      %v1941 = vrot.slane %v1939, 5
      %v1942 = vsel %vm652, %v1937, %v1941
      %v1944 = vshrl.u32 %v1891, 16
      %v1946 = vrot.slane %v1944, 4
      %v1947 = vshll.u32 %v1891, 16
      %v1949 = vrot.slane %v1947, 5
      %v1950 = vor.u32 %v1946, %v1949
      %v1951 = vrot.slane %v1950, 4
      %v1953 = vshll.u32 %v1892, 16
      %v1955 = vrot.slane %v1953, 5
      %v1956 = vsel %vm652, %v1951, %v1955
      %v1958 = vshrl.u32 %v1893, 16
      %v1960 = vrot.slane %v1958, 4
      %v1961 = vshll.u32 %v1893, 16
      %v1963 = vrot.slane %v1961, 5
      %v1964 = vor.u32 %v1960, %v1963
      %v1965 = vrot.slane %v1964, 4
      %v1967 = vshll.u32 %v1894, 16
      %v1969 = vrot.slane %v1967, 5
      %v1970 = vsel %vm652, %v1965, %v1969
      %v1972 = vshrl.u32 %v1895, 16
      %v1974 = vrot.slane %v1972, 4
      %v1975 = vshll.u32 %v1895, 16
      %v1977 = vrot.slane %v1975, 5
      %v1978 = vor.u32 %v1974, %v1977
      %v1979 = vrot.slane %v1978, 4
      %v1981 = vshll.u32 %v1896, 16
      %v1983 = vrot.slane %v1981, 5
      %v1984 = vsel %vm652, %v1979, %v1983
      %v1986 = vshrl.u32 %v1897, 16
      %v1988 = vrot.slane %v1986, 4
      %v1989 = vshll.u32 %v1897, 16
      %v1991 = vrot.slane %v1989, 5
      %v1992 = vor.u32 %v1988, %v1991
      %v1993 = vrot.slane %v1992, 4
      %v1995 = vshll.u32 %v1898, 16
      %v1997 = vrot.slane %v1995, 5
      %v1998 = vsel %vm652, %v1993, %v1997
      %v2000 = vshrl.u32 %v1899, 16
      %v2002 = vrot.slane %v2000, 4
      %v2003 = vshll.u32 %v1899, 16
      %v2005 = vrot.slane %v2003, 5
      %v2006 = vor.u32 %v2002, %v2005
      %v2007 = vrot.slane %v2006, 4
      %v2009 = vshll.u32 %v1900, 16
      %v2011 = vrot.slane %v2009, 5
      %v2012 = vsel %vm652, %v2007, %v2011
      %s2013 = scalar_lea.vmem %s285, 512
      %v2014 = vld [vmem:[%s2013] sm:$0xf]
      %v2015 = vld [vmem:[%s2013 + $0x4] sm:$0xf]
      %v2016 = vld [vmem:[%s2013 + $0x8] sm:$0xf]
      %v2017 = vld [vmem:[%s2013 + $0xc] sm:$0xf]
      %v2018 = vld [vmem:[%s2013 + $0x10] sm:$0xf]
      %v2019 = vld [vmem:[%s2013 + $0x14] sm:$0xf]
      %v2020 = vld [vmem:[%s2013 + $0x18] sm:$0xf]
      %v2021 = vld [vmem:[%s2013 + $0x1c] sm:$0xf]
      %v2022 = vld [vmem:[%s2013 + $0x20] sm:$0xf]
      %v2023 = vld [vmem:[%s2013 + $0x24] sm:$0xf]
      %v2024 = vld [vmem:[%s2013 + $0x28] sm:$0xf]
      %v2025 = vld [vmem:[%s2013 + $0x2c] sm:$0xf]
      %v2026 = vld [vmem:[%s2013 + $0x30] sm:$0xf]
      %v2027 = vld [vmem:[%s2013 + $0x34] sm:$0xf]
      %v2028 = vld [vmem:[%s2013 + $0x38] sm:$0xf]
      %v2029 = vld [vmem:[%s2013 + $0x3c] sm:$0xf]
      %v2030 = vunpack.c.l.b16 %v1914
      %v2031 = vunpack.c.l.b16 %v1928
      %v2032 = vunpack.c.l.b16 %v1942
      %v2033 = vunpack.c.l.b16 %v1956
      %v2034 = vunpack.c.l.b16 %v1970
      %v2035 = vunpack.c.l.b16 %v1984
      %v2036 = vunpack.c.l.b16 %v1998
      %v2037 = vunpack.c.l.b16 %v2012
      %v2038 = vpack.c.b16 %v2031, %v2030
      %v2039 = vpack.c.b16 %v2033, %v2032
      %v2040 = vpack.c.b16 %v2035, %v2034
      %v2041 = vpack.c.b16 %v2037, %v2036
      %v2062 = vunpack.c.l.b16 %v2014
      %v2063 = vunpack.c.l.b16 %v2015
      %v2064 = vunpack.c.l.b16 %v2016
      %v2065 = vunpack.c.l.b16 %v2017
      %v2066 = vunpack.c.l.b16 %v2018
      %v2067 = vunpack.c.l.b16 %v2019
      %v2068 = vunpack.c.l.b16 %v2020
      %v2069 = vunpack.c.l.b16 %v2021
      %v2070 = vunpack.c.l.b16 %v2022
      %v2071 = vunpack.c.l.b16 %v2023
      %v2072 = vunpack.c.l.b16 %v2024
      %v2073 = vunpack.c.l.b16 %v2025
      %v2074 = vunpack.c.l.b16 %v2026
      %v2075 = vunpack.c.l.b16 %v2027
      %v2076 = vunpack.c.l.b16 %v2028
      %v2077 = vunpack.c.l.b16 %v2029
      %v2078 = vpack.c.b16 %v2063, %v2062
      %v2079 = vpack.c.b16 %v2065, %v2064
      %v2080 = vpack.c.b16 %v2067, %v2066
      %v2081 = vpack.c.b16 %v2069, %v2068
      %v2082 = vpack.c.b16 %v2071, %v2070
      %v2083 = vpack.c.b16 %v2073, %v2072
      %v2084 = vpack.c.b16 %v2075, %v2074
      %v2085 = vpack.c.b16 %v2077, %v2076
      %2094 = vmatprep.subr.bf16.mxu0 0
      %2095 = vmatpush1.bf16.msra.mxu0 %v2078
      %2096 = vmatprep.subr.bf16.mxu0 0
      %2097 = vmatpush1.bf16.msra.mxu0 %v2079
      %2098 = vmatprep.subr.bf16.mxu0 0
      %2099 = vmatpush1.bf16.msra.mxu0 %v2080
      %2100 = vmatprep.subr.bf16.mxu0 0
      %2101 = vmatpush1.bf16.msra.mxu0 %v2081
      %2102 = vmatprep.subr.bf16.mxu0 0
      %2103 = vmatpush1.bf16.msra.mxu0 %v2082
      %2104 = vmatprep.subr.bf16.mxu0 0
      %2105 = vmatpush1.bf16.msra.mxu0 %v2083
      %2106 = vmatprep.subr.bf16.mxu0 0
      %2107 = vmatpush1.bf16.msra.mxu0 %v2084
      %2108 = vmatprep.subr.bf16.mxu0 0
      %2109 = vmatpush1.bf16.msra.mxu0 %v2085
      %2110 = vmatprep.subr.bf16.mxu0 0
      %2111 = vmatpush1.bf16.msra.mxu0 0
      %2112 = vmatprep.subr.bf16.mxu0 0
      %2113 = vmatpush1.bf16.msra.mxu0 0
      %2114 = vmatprep.subr.bf16.mxu0 0
      %2115 = vmatpush1.bf16.msra.mxu0 0
      %2116 = vmatprep.subr.bf16.mxu0 0
      %2117 = vmatpush1.bf16.msra.mxu0 0
      %2118 = vmatprep.subr.bf16.mxu0 0
      %2119 = vmatpush1.bf16.msra.mxu0 0
      %2120 = vmatprep.subr.bf16.mxu0 0
      %2121 = vmatpush1.bf16.msra.mxu0 0
      %2122 = vmatprep.subr.bf16.mxu0 0
      %2123 = vmatpush1.bf16.msra.mxu0 0
      %2124 = vmatprep.subr.bf16.mxu0 0
      %2125 = vmatpush1.bf16.msra.mxu0 0
      %2126 = vmatprep.mubr.bf16.mxu0 0
      %2127 = vmatmul.mubr.bf16.gmra.mrb[0].mxu0 %v2038
      %v2128 = vpop.f32.mrb[0].mxu0
      %v2129 = vadd.f32 0.0, %v2128
      %v2130 = vpop.f32.mrb[0].mxu0
      %v2131 = vpop.f32.mrb[0].mxu0
      %v2132 = vadd.f32 0.0, %v2131
      %v2133 = vpop.f32.mrb[0].mxu0
      %2134 = vmatprep.mubr.bf16.mxu0 0
      %2135 = vmatmul.mubr.bf16.gmra.mrb[0].mxu0 %v2039
      %v2136 = vpop.f32.mrb[0].mxu0
      %v2137 = vadd.f32 0.0, %v2136
      %v2138 = vpop.f32.mrb[0].mxu0
      %v2139 = vpop.f32.mrb[0].mxu0
      %v2140 = vadd.f32 0.0, %v2139
      %v2141 = vpop.f32.mrb[0].mxu0
      %2142 = vmatprep.mubr.bf16.mxu0 0
      %2143 = vmatmul.mubr.bf16.gmra.mrb[0].mxu0 %v2040
      %v2144 = vpop.f32.mrb[0].mxu0
      %v2145 = vadd.f32 0.0, %v2144
      %v2146 = vpop.f32.mrb[0].mxu0
      %v2147 = vpop.f32.mrb[0].mxu0
      %v2148 = vadd.f32 0.0, %v2147
      %v2149 = vpop.f32.mrb[0].mxu0
      %2150 = vmatprep.mubr.bf16.mxu0 0
      %2151 = vmatmul.mubr.bf16.gmra.mrb[0].mxu0 %v2041
      %v2152 = vpop.f32.mrb[0].mxu0
      %v2153 = vadd.f32 0.0, %v2152
      %v2154 = vpop.f32.mrb[0].mxu0
      %v2155 = vpop.f32.mrb[0].mxu0
      %v2156 = vadd.f32 0.0, %v2155
      %v2157 = vpop.f32.mrb[0].mxu0
      %2158 = vdwg.mxu0
      %v2159 = vadd.f32 %v1877, %v2129
      %v2160 = vadd.f32 %v1878, %v2132
      %v2161 = vadd.f32 %v1879, %v2137
      %v2162 = vadd.f32 %v1880, %v2140
      %v2163 = vadd.f32 %v1881, %v2145
      %v2164 = vadd.f32 %v1882, %v2148
      %v2165 = vadd.f32 %v1883, %v2153
      %v2166 = vadd.f32 %v1884, %v2156
      %v2167 = vld [vmem:[%s288] sm:$0x1]
      %v2169 = vlaneseq
      %v2170 = vshrl.u32 %v2169, 7
      %v2171 = vsub.s32 0, %v2170
      %v2172 = vrot.slane %v2167, %v2171
      %v2174 = vadd.f32 %v2159, %v2172
      %v2175 = vadd.f32 %v2160, %v2172
      %v2176 = vadd.f32 %v2161, %v2172
      %v2177 = vadd.f32 %v2162, %v2172
      %v2178 = vadd.f32 %v2163, %v2172
      %v2179 = vadd.f32 %v2164, %v2172
      %v2180 = vadd.f32 %v2165, %v2172
      %v2181 = vadd.f32 %v2166, %v2172
      %2182 = vst [vmem:[%s296] sm:$0xff] %v2174
      %2183 = vst [vmem:[%s296 + $0x8] sm:$0xff] %v2175
      %2184 = vst [vmem:[%s296 + $0x10] sm:$0xff] %v2176
      %2185 = vst [vmem:[%s296 + $0x18] sm:$0xff] %v2177
      %2186 = vst [vmem:[%s296 + $0x20] sm:$0xff] %v2178
      %2187 = vst [vmem:[%s296 + $0x28] sm:$0xff] %v2179
      %2188 = vst [vmem:[%s296 + $0x30] sm:$0xff] %v2180
      %2189 = vst [vmem:[%s296 + $0x38] sm:$0xff] %v2181
      %v2190 = vadd.f32 %v2174, %v2175
      %v2191 = vadd.f32 %v2190, %v2176
      %v2192 = vadd.f32 %v2191, %v2177
      %v2193 = vadd.f32 %v2192, %v2178
      %v2194 = vadd.f32 %v2193, %v2179
      %v2195 = vadd.f32 %v2194, %v2180
      %v2196 = vadd.f32 %v2195, %v2181
      %v2197 = vrot.slane %v2196, 4
      %v2198 = vadd.f32 %v2196, %v2197
      %v2199 = vrot.slane %v2198, 2
      %v2200 = vadd.f32 %v2198, %v2199
      %v2201 = vrot.slane %v2200, 1
      %v2202 = vadd.f32 %v2200, %v2201
      %2203 = vst [vmem:[%s302] sm:$0x1] %v2202
      %v2204 = vmul.f32 %v2174, %v2174
      %v2205 = vmul.f32 %v2175, %v2175
      %v2206 = vmul.f32 %v2176, %v2176
      %v2207 = vmul.f32 %v2177, %v2177
      %v2208 = vmul.f32 %v2178, %v2178
      %v2209 = vmul.f32 %v2179, %v2179
      %v2210 = vmul.f32 %v2180, %v2180
      %v2211 = vmul.f32 %v2181, %v2181
      %v2212 = vadd.f32 %v2204, %v2205
      %v2213 = vadd.f32 %v2212, %v2206
      %v2214 = vadd.f32 %v2213, %v2207
      %v2215 = vadd.f32 %v2214, %v2208
      %v2216 = vadd.f32 %v2215, %v2209
      %v2217 = vadd.f32 %v2216, %v2210
      %v2218 = vadd.f32 %v2217, %v2211
      %v2219 = vrot.slane %v2218, 4
      %v2220 = vadd.f32 %v2218, %v2219
      %v2221 = vrot.slane %v2220, 2
      %v2222 = vadd.f32 %v2220, %v2221
      %v2223 = vrot.slane %v2222, 1
      %v2224 = vadd.f32 %v2222, %v2223
      %2225 = vst [vmem:[%s308] sm:$0x1] %v2224
      %p2226 = scmp.lt.s32.totalorder %s21, 1
      %s2227 = scalar_select %p2226, %s21, 1
      %p2228 = scmp.lt.s32.totalorder %s22, 0
      %s2229 = scalar_select %p2228, %s22, 0
      %s2230 = smul.addr %s2227, 8
      %s2231 = sadd.s32 %s2229, %s2230
      %s2232 = smul.addr %s2231, 8
      %s2233 = scalar_lea.vmem %s3, %s2232
      %p2234 = scmp.lt.s32.totalorder %s21, 1
      %s2235 = scalar_select %p2234, %s21, 1
      %p2236 = scmp.lt.s32.totalorder %s22, 0
      %s2237 = scalar_select %p2236, %s22, 0
      %s2238 = sadd.s32 %s2237, %s2235
      %s2239 = scalar_lea.vmem %s4, %s2238
      %p2240 = scmp.lt.s32.totalorder %s21, 1
      %s2241 = scalar_select %p2240, %s21, 1
      %p2242 = scmp.lt.s32.totalorder %s22, 0
      %s2243 = scalar_select %p2242, %s22, 0
      %s2244 = sadd.s32 %s2243, %s2241
      %s2245 = scalar_lea.vmem %s5, %s2244
      // Predicated region
      $region33: #{a_call__.7} parent=31 // pred_check
        %p2246 = pneg %p127
      $region34: #{a_call__.7} parent=31 // pred_check_branch
        %2248 = sbr.rel (%p2246) target = $region36
      $region35: #{a_call__.7} parent=31 // pred_region
        _
      $region36: #{a_call__.7} parent=31 // pred_fallthru
        _
      // Predicated region
      $region37: #{a_call__.7} parent=31 // pred_check
        %p2249 = pneg %p155
      $region38: #{a_call__.7} parent=31 // pred_check_branch
        %2251 = sbr.rel (%p2249) target = $region40
      $region39: #{a_call__.7} parent=31 // pred_region
        _
      $region40: #{a_call__.7} parent=31 // pred_fallthru
        _
      // Predicated region
      $region41: #{a_call__.7} parent=31 // pred_check
        %p2252 = pneg %p183
      $region42: #{a_call__.7} parent=31 // pred_check_branch
        %2254 = sbr.rel (%p2252) target = $region44
      $region43: #{a_call__.7} parent=31 // pred_region
        _
      $region44: #{a_call__.7} parent=31 // pred_fallthru
        _
    $region32: #{a_call__.7} parent=5 // pred_fallthru
      _
    %p2255 = scmp.le.s32.totalorder 2, %s12
    // Predicated region
    $region45: #{a_call__.7} parent=5 // pred_check
      %p2256 = pneg %p2255
    $region46: #{a_call__.7} parent=5 // pred_check_branch
      %2258 = sbr.rel (%p2256) target = $region48
    $region47: #{a_call__.7} parent=5 // pred_region
      %s2259 = ssub.s32 %s12, 2
      // Predicated region
      $region49: #{a_call__.7} parent=47 // pred_check
        %p2260 = pneg %p133
      $region50: #{a_call__.7} parent=47 // pred_check_branch
        %2262 = sbr.rel (%p2260) target = $region52
      $region51: #{a_call__.7} parent=47 // pred_region
        %p2263 = scmp.lt.s32.totalorder %s23, 1
        %s2264 = scalar_select %p2263, %s23, 1
        %p2265 = scmp.lt.s32.totalorder %s24, 0
        %s2266 = scalar_select %p2265, %s24, 0
        %s2267 = smul.addr %s2264, 8
        %s2268 = sadd.s32 %s2266, %s2267
        %s2269 = smul.addr %s2268, 8
        %s2270 = scalar_lea.vmem %s3, %s2269
      $region52: #{a_call__.7} parent=47 // pred_fallthru
        _
      // Predicated region
      $region53: #{a_call__.7} parent=47 // pred_check
        %p2271 = pneg %p161
      $region54: #{a_call__.7} parent=47 // pred_check_branch
        %2273 = sbr.rel (%p2271) target = $region56
      $region55: #{a_call__.7} parent=47 // pred_region
        %p2274 = scmp.lt.s32.totalorder %s23, 1
        %s2275 = scalar_select %p2274, %s23, 1
        %p2276 = scmp.lt.s32.totalorder %s24, 0
        %s2277 = scalar_select %p2276, %s24, 0
        %s2278 = sadd.s32 %s2277, %s2275
        %s2279 = scalar_lea.vmem %s4, %s2278
      $region56: #{a_call__.7} parent=47 // pred_fallthru
        _
      // Predicated region
      $region57: #{a_call__.7} parent=47 // pred_check
        %p2280 = pneg %p189
      $region58: #{a_call__.7} parent=47 // pred_check_branch
        %2282 = sbr.rel (%p2280) target = $region60
      $region59: #{a_call__.7} parent=47 // pred_region
        %p2283 = scmp.lt.s32.totalorder %s23, 1
        %s2284 = scalar_select %p2283, %s23, 1
        %p2285 = scmp.lt.s32.totalorder %s24, 0
        %s2286 = scalar_select %p2285, %s24, 0
        %s2287 = sadd.s32 %s2286, %s2284
        %s2288 = scalar_lea.vmem %s5, %s2287
      $region60: #{a_call__.7} parent=47 // pred_fallthru
        _
    $region48: #{a_call__.7} parent=5 // pred_fallthru
      _
  $region6: #{a_call__.7} parent=0 // loop_footer
    %s16 = sadd.s32 1, %s12
  $region7: #{a_call__.7} parent=0 // loop_footer_branch
    %11 = sbr.rel target = $region3
  $region8: #{a_call__.7} parent=0 // loop_exit
    _

// kernel: a_call__.5
$region0: #{a_call__.5}
  #allocation0 [shape = 'u32[]', space=smem, size = 0x4, offset = 0x4, fixed_abs, tag = 'smem constant byte address 0x4 - core index']
  #allocation1 [shape = 'u32[144,128]{1,0:T(1,128)}', space=vmem, size = 0x12000, scoped, tag = 'internal scratch']
  %s0 = inlined_call_operand.vmem [shape: bf16[2,1,18,18,8], index: 0, kind: input, shape index: {}]
  %s1 = inlined_call_operand.vmem [shape: bf16[3,3,8,128], index: 1, kind: input, shape index: {}]
  %s2 = inlined_call_operand.vmem [shape: f32[1,128], index: 2, kind: input, shape index: {}]
  %s3 = inlined_call_operand.vmem [shape: f32[2,256,128], index: 3, kind: output, shape index: {0}]
  %s4 = inlined_call_operand.vmem [shape: f32[2,1,128], index: 4, kind: output, shape index: {1}]
  %s5 = inlined_call_operand.vmem [shape: f32[2,1,128], index: 5, kind: output, shape index: {2}]
  %6 = xla_tuple %s3, %s4, %s5
  %s7 = sld [smem:[#allocation0]]
  $region61: #{a_call__.5} parent=0
    _
  %s9 = ssub.s32 1, %s7
  %s10 = scalar_select 0, %s9, %s7
  loop: start=0, step=1, limit=4
  $region2: #{a_call__.5} parent=0 // loop_pre_header
    _
  $region3: #{a_call__.5} parent=0 // loop_header
    %s12 = sphi 0, %s16
    %p13 = scmp.ge.s32.totalorder %s12, 4
    %s19 = sphi 0, %s31
    %s20 = sphi 0, %s27
    %s21 = sphi 0, %s19
    %s22 = sphi 0, %s20
    %s23 = sphi 0, %s21
    %s24 = sphi 0, %s22
    %s34 = sphi 0, %s36
    %s37 = sphi 0, %s34
    %s38 = sphi 0, %s37
    %s54 = sphi 0, %s38
    %s60 = sphi 0, %s62
    %s63 = sphi 0, %s60
    %s64 = sphi 0, %s63
    %s80 = sphi 0, %s64
    %s86 = sphi 0, %s88
    %s89 = sphi 0, %s86
    %s90 = sphi 0, %s89
    %s106 = sphi 0, %s90
    %s114 = sphi 0, %s116
    %s117 = sphi 0, %s114
    %s118 = sphi 0, %s117
    %s134 = sphi 0, %s118
    %s142 = sphi 0, %s144
    %s145 = sphi 0, %s142
    %s146 = sphi 0, %s145
    %s162 = sphi 0, %s146
    %s170 = sphi 0, %s172
    %s173 = sphi 0, %s170
    %s174 = sphi 0, %s173
    %s190 = sphi 0, %s174
  $region4: #{a_call__.5} parent=0 // loop_header_branch
    %15 = sbr.rel (%p13) target = $region8
  $region5: #{a_call__.5} parent=0 // loop_body
    %s17 = ssub.s32 %s12, 1
    %s18 = ssub.s32 %s12, 2
    %s25 = sadd.s32 1, %s20
    %p26 = scmp.ge.s32.totalorder %s25, 1
    %s27 = scalar_select %p26, 0, %s25
    %s28 = sadd.s32 1, %s19
    %s29 = scalar_select %p26, %s28, %s19
    %p30 = scmp.ge.s32.totalorder %s29, 2
    %s31 = scalar_select %p30, 0, %s29
    %s32 = ssub.s32 %s19, %s31
    %p33 = scmp.eq.s32.totalorder %s32, 0
    %s35 = sadd.s32 %s34, 1
    %s36 = scalar_select %p33, %s34, %s35
    %p39 = pneg %p33
    %p40 = scmp.eq.s32.totalorder %s12, 1
    %p41 = por %p39, %p40
    %p42 = scmp.ne.s32.totalorder %s34, %s37
    %p43 = scmp.eq.s32.totalorder %s12, 0
    %p44 = por %p42, %p43
    %p45 = scmp.ne.s32.totalorder %s34, %s37
    %p46 = scmp.eq.s32.totalorder %s17, 1
    %p47 = por %p45, %p46
    %p48 = scmp.ne.s32.totalorder %s37, %s38
    %p49 = scmp.eq.s32.totalorder %s17, 0
    %p50 = por %p48, %p49
    %p51 = scmp.ne.s32.totalorder %s37, %s38
    %p52 = scmp.eq.s32.totalorder %s18, 1
    %p53 = por %p51, %p52
    %p55 = scmp.ne.s32.totalorder %s38, %s54
    %p56 = scmp.eq.s32.totalorder %s18, 0
    %p57 = por %p55, %p56
    %s58 = ssub.s32 %s20, %s27
    %p59 = scmp.eq.s32.totalorder %s58, 0
    %s61 = sadd.s32 %s60, 1
    %s62 = scalar_select %p59, %s60, %s61
    %p65 = pneg %p59
    %p66 = scmp.eq.s32.totalorder %s12, 1
    %p67 = por %p65, %p66
    %p68 = scmp.ne.s32.totalorder %s60, %s63
    %p69 = scmp.eq.s32.totalorder %s12, 0
    %p70 = por %p68, %p69
    %p71 = scmp.ne.s32.totalorder %s60, %s63
    %p72 = scmp.eq.s32.totalorder %s17, 1
    %p73 = por %p71, %p72
    %p74 = scmp.ne.s32.totalorder %s63, %s64
    %p75 = scmp.eq.s32.totalorder %s17, 0
    %p76 = por %p74, %p75
    %p77 = scmp.ne.s32.totalorder %s63, %s64
    %p78 = scmp.eq.s32.totalorder %s18, 1
    %p79 = por %p77, %p78
    %p81 = scmp.ne.s32.totalorder %s64, %s80
    %p82 = scmp.eq.s32.totalorder %s18, 0
    %p83 = por %p81, %p82
    %s84 = ssub.s32 %s20, %s27
    %p85 = scmp.eq.s32.totalorder %s84, 0
    %s87 = sadd.s32 %s86, 1
    %s88 = scalar_select %p85, %s86, %s87
    %p91 = pneg %p85
    %p92 = scmp.eq.s32.totalorder %s12, 1
    %p93 = por %p91, %p92
    %p94 = scmp.ne.s32.totalorder %s86, %s89
    %p95 = scmp.eq.s32.totalorder %s12, 0
    %p96 = por %p94, %p95
    %p97 = scmp.ne.s32.totalorder %s86, %s89
    %p98 = scmp.eq.s32.totalorder %s17, 1
    %p99 = por %p97, %p98
    %p100 = scmp.ne.s32.totalorder %s89, %s90
    %p101 = scmp.eq.s32.totalorder %s17, 0
    %p102 = por %p100, %p101
    %p103 = scmp.ne.s32.totalorder %s89, %s90
    %p104 = scmp.eq.s32.totalorder %s18, 1
    %p105 = por %p103, %p104
    %p107 = scmp.ne.s32.totalorder %s90, %s106
    %p108 = scmp.eq.s32.totalorder %s18, 0
    %p109 = por %p107, %p108
    %s110 = ssub.s32 %s19, %s31
    %s111 = ssub.s32 %s20, %s27
    %s112 = sor.u32 %s110, %s111
    %p113 = scmp.eq.s32.totalorder %s112, 0
    %s115 = sadd.s32 %s114, 1
    %s116 = scalar_select %p113, %s114, %s115
    %p119 = pneg %p113
    %p120 = scmp.eq.s32.totalorder %s12, 1
    %p121 = por %p119, %p120
    %p122 = scmp.ne.s32.totalorder %s114, %s117
    %p123 = scmp.eq.s32.totalorder %s12, 0
    %p124 = por %p122, %p123
    %p125 = scmp.ne.s32.totalorder %s114, %s117
    %p126 = scmp.eq.s32.totalorder %s17, 1
    %p127 = por %p125, %p126
    %p128 = scmp.ne.s32.totalorder %s117, %s118
    %p129 = scmp.eq.s32.totalorder %s17, 0
    %p130 = por %p128, %p129
    %p131 = scmp.ne.s32.totalorder %s117, %s118
    %p132 = scmp.eq.s32.totalorder %s18, 1
    %p133 = por %p131, %p132
    %p135 = scmp.ne.s32.totalorder %s118, %s134
    %p136 = scmp.eq.s32.totalorder %s18, 0
    %p137 = por %p135, %p136
    %s138 = ssub.s32 %s19, %s31
    %s139 = ssub.s32 %s20, %s27
    %s140 = sor.u32 %s138, %s139
    %p141 = scmp.eq.s32.totalorder %s140, 0
    %s143 = sadd.s32 %s142, 1
    %s144 = scalar_select %p141, %s142, %s143
    %p147 = pneg %p141
    %p148 = scmp.eq.s32.totalorder %s12, 1
    %p149 = por %p147, %p148
    %p150 = scmp.ne.s32.totalorder %s142, %s145
    %p151 = scmp.eq.s32.totalorder %s12, 0
    %p152 = por %p150, %p151
    %p153 = scmp.ne.s32.totalorder %s142, %s145
    %p154 = scmp.eq.s32.totalorder %s17, 1
    %p155 = por %p153, %p154
    %p156 = scmp.ne.s32.totalorder %s145, %s146
    %p157 = scmp.eq.s32.totalorder %s17, 0
    %p158 = por %p156, %p157
    %p159 = scmp.ne.s32.totalorder %s145, %s146
    %p160 = scmp.eq.s32.totalorder %s18, 1
    %p161 = por %p159, %p160
    %p163 = scmp.ne.s32.totalorder %s146, %s162
    %p164 = scmp.eq.s32.totalorder %s18, 0
    %p165 = por %p163, %p164
    %s166 = ssub.s32 %s19, %s31
    %s167 = ssub.s32 %s20, %s27
    %s168 = sor.u32 %s166, %s167
    %p169 = scmp.eq.s32.totalorder %s168, 0
    %s171 = sadd.s32 %s170, 1
    %s172 = scalar_select %p169, %s170, %s171
    %p175 = pneg %p169
    %p176 = scmp.eq.s32.totalorder %s12, 1
    %p177 = por %p175, %p176
    %p178 = scmp.ne.s32.totalorder %s170, %s173
    %p179 = scmp.eq.s32.totalorder %s12, 0
    %p180 = por %p178, %p179
    %p181 = scmp.ne.s32.totalorder %s170, %s173
    %p182 = scmp.eq.s32.totalorder %s17, 1
    %p183 = por %p181, %p182
    %p184 = scmp.ne.s32.totalorder %s173, %s174
    %p185 = scmp.eq.s32.totalorder %s17, 0
    %p186 = por %p184, %p185
    %p187 = scmp.ne.s32.totalorder %s173, %s174
    %p188 = scmp.eq.s32.totalorder %s18, 1
    %p189 = por %p187, %p188
    %p191 = scmp.ne.s32.totalorder %s174, %s190
    %p192 = scmp.eq.s32.totalorder %s18, 0
    %p193 = por %p191, %p192
    %p194 = scmp.le.s32.totalorder 1, %s12
    %p195 = scmp.lt.s32.totalorder %s12, 3
    %p196 = pnand %p194, %p195
    %p197 = pneg %p196
    // Predicated region
    $region9: #{a_call__.5} parent=5 // pred_check
      _
    $region10: #{a_call__.5} parent=5 // pred_check_branch
      %199 = sbr.rel (%p196) target = $region12
    $region11: #{a_call__.5} parent=5 // pred_region
      %s200 = ssub.s32 %s12, 1
      // Predicated region
      $region13: #{a_call__.5} parent=11 // pred_check
        %p201 = pneg %p76
      $region14: #{a_call__.5} parent=11 // pred_check_branch
        %203 = sbr.rel (%p201) target = $region16
      $region15: #{a_call__.5} parent=11 // pred_region
        %p204 = scmp.lt.s32.totalorder %s22, 0
        %s205 = scalar_select %p204, %s22, 0
        %s206 = smul.addr %s205, 4
        %s207 = scalar_lea.vmem %s1, %s206
      $region16: #{a_call__.5} parent=11 // pred_fallthru
        _
      // Predicated region
      $region17: #{a_call__.5} parent=11 // pred_check
        %p208 = pneg %p102
      $region18: #{a_call__.5} parent=11 // pred_check_branch
        %210 = sbr.rel (%p208) target = $region20
      $region19: #{a_call__.5} parent=11 // pred_region
        %p211 = scmp.lt.s32.totalorder %s22, 0
        %s212 = scalar_select %p211, %s22, 0
        %s213 = scalar_lea.vmem %s2, %s212
      $region20: #{a_call__.5} parent=11 // pred_fallthru
        _
    $region12: #{a_call__.5} parent=5 // pred_fallthru
      _
    %p214 = scmp.lt.s32.totalorder %s12, 2
    // Predicated region
    $region21: #{a_call__.5} parent=5 // pred_check
      %p215 = pneg %p214
    $region22: #{a_call__.5} parent=5 // pred_check_branch
      %217 = sbr.rel (%p215) target = $region24
    $region23: #{a_call__.5} parent=5 // pred_region
      // Predicated region
      $region25: #{a_call__.5} parent=23 // pred_check
        %p218 = pneg %p44
      $region26: #{a_call__.5} parent=23 // pred_check_branch
        %220 = sbr.rel (%p218) target = $region28
      $region27: #{a_call__.5} parent=23 // pred_region
        %p221 = scmp.lt.s32.totalorder %s19, 1
        %s222 = scalar_select %p221, %s19, 1
        %s223 = smul.addr %s222, 54
        %s224 = smul.addr %s223, 4
        %s225 = scalar_lea.vmem %s0, %s224
      $region28: #{a_call__.5} parent=23 // pred_fallthru
        _
    $region24: #{a_call__.5} parent=5 // pred_fallthru
      _
    %p226 = scmp.le.s32.totalorder 1, %s12
    %p227 = scmp.lt.s32.totalorder %s12, 3
    %p228 = pnand %p226, %p227
    %p229 = pneg %p228
    // Predicated region
    $region29: #{a_call__.5} parent=5 // pred_check
      _
    $region30: #{a_call__.5} parent=5 // pred_check_branch
      %231 = sbr.rel (%p228) target = $region32
    $region31: #{a_call__.5} parent=5 // pred_region
      %s232 = ssub.s32 %s12, 1
      %p233 = scmp.lt.s32.totalorder %s21, 1
      %s234 = scalar_select %p233, %s21, 1
      %s235 = smul.addr %s234, 54
      %s236 = smul.addr %s235, 4
      %s237 = scalar_lea.vmem %s0, %s236
      %p238 = pneg %p50
      %p239 = pneg %p47
      %p240 = scmp.lt.s32.totalorder %s22, 0
      %s241 = scalar_select %p240, %s22, 0
      %s242 = smul.addr %s241, 4
      %s243 = scalar_lea.vmem %s1, %s242
      %p244 = pneg %p76
      %p245 = pneg %p73
      %p246 = scmp.lt.s32.totalorder %s22, 0
      %s247 = scalar_select %p246, %s22, 0
      %s248 = scalar_lea.vmem %s2, %s247
      %p249 = pneg %p102
      %p250 = pneg %p99
      %p251 = pneg %p130
      %p252 = pneg %p127
      %p253 = scmp.lt.s32.totalorder %s21, 1
      %s254 = scalar_select %p253, %s21, 1
      %p255 = scmp.lt.s32.totalorder %s22, 0
      %s256 = scalar_select %p255, %s22, 0
      %s257 = smul.addr %s254, 32
      %s258 = sadd.s32 %s256, %s257
      %s259 = smul.addr %s258, 8
      %s260 = scalar_lea.vmem %s3, %s259
      %p261 = pneg %p158
      %p262 = pneg %p155
      %p263 = scmp.lt.s32.totalorder %s21, 1
      %s264 = scalar_select %p263, %s21, 1
      %p265 = scmp.lt.s32.totalorder %s22, 0
      %s266 = scalar_select %p265, %s22, 0
      %s267 = sadd.s32 %s266, %s264
      %s268 = scalar_lea.vmem %s4, %s267
      %p269 = pneg %p186
      %p270 = pneg %p183
      %p271 = scmp.lt.s32.totalorder %s21, 1
      %s272 = scalar_select %p271, %s21, 1
      %p273 = scmp.lt.s32.totalorder %s22, 0
      %s274 = scalar_select %p273, %s22, 0
      %s275 = sadd.s32 %s274, %s272
      %s276 = scalar_lea.vmem %s5, %s275
      %p277 = scmp.lt.s32.totalorder %s21, 1
      %s278 = scalar_select %p277, %s21, 1
      %s279 = smul.addr %s278, 54
      %s280 = smul.addr %s279, 4
      %s281 = scalar_lea.vmem %s0, %s280
      %p282 = scmp.lt.s32.totalorder %s22, 0
      %s283 = scalar_select %p282, %s22, 0
      %s284 = smul.addr %s283, 4
      %s285 = scalar_lea.vmem %s1, %s284
      %p286 = scmp.lt.s32.totalorder %s22, 0
      %s287 = scalar_select %p286, %s22, 0
      %s288 = scalar_lea.vmem %s2, %s287
      %p289 = scmp.lt.s32.totalorder %s21, 1
      %s290 = scalar_select %p289, %s21, 1
      %p291 = scmp.lt.s32.totalorder %s22, 0
      %s292 = scalar_select %p291, %s22, 0
      %s293 = smul.addr %s290, 32
      %s294 = sadd.s32 %s292, %s293
      %s295 = smul.addr %s294, 8
      %s296 = scalar_lea.vmem %s3, %s295
      %p297 = scmp.lt.s32.totalorder %s21, 1
      %s298 = scalar_select %p297, %s21, 1
      %p299 = scmp.lt.s32.totalorder %s22, 0
      %s300 = scalar_select %p299, %s22, 0
      %s301 = sadd.s32 %s300, %s298
      %s302 = scalar_lea.vmem %s4, %s301
      %p303 = scmp.lt.s32.totalorder %s21, 1
      %s304 = scalar_select %p303, %s21, 1
      %p305 = scmp.lt.s32.totalorder %s22, 0
      %s306 = scalar_select %p305, %s22, 0
      %s307 = sadd.s32 %s306, %s304
      %s308 = scalar_lea.vmem %s5, %s307
      %v310 = vld [vmem:[%s281] sm:$0xf]
      %v311 = vld [vmem:[%s281 + $0x4] sm:$0xf]
      %v312 = vld [vmem:[%s281 + $0xc] sm:$0xf]
      %v313 = vld [vmem:[%s281 + $0x10] sm:$0xf]
      %v314 = vld [vmem:[%s281 + $0x18] sm:$0xf]
      %v315 = vld [vmem:[%s281 + $0x1c] sm:$0xf]
      %v316 = vld [vmem:[%s281 + $0x24] sm:$0xf]
      %v317 = vld [vmem:[%s281 + $0x28] sm:$0xf]
      %v318 = vld [vmem:[%s281 + $0x30] sm:$0xf]
      %v319 = vld [vmem:[%s281 + $0x34] sm:$0xf]
      %v320 = vld [vmem:[%s281 + $0x3c] sm:$0xf]
      %v321 = vld [vmem:[%s281 + $0x40] sm:$0xf]
      %v322 = vld [vmem:[%s281 + $0x48] sm:$0xf]
      %v323 = vld [vmem:[%s281 + $0x4c] sm:$0xf]
      %v324 = vld [vmem:[%s281 + $0x54] sm:$0xf]
      %v325 = vld [vmem:[%s281 + $0x58] sm:$0xf]
      %v326 = vld [vmem:[%s281 + $0x60] sm:$0xf]
      %v327 = vld [vmem:[%s281 + $0x64] sm:$0xf]
      %v328 = vld [vmem:[%s281 + $0x6c] sm:$0xf]
      %v329 = vld [vmem:[%s281 + $0x70] sm:$0xf]
      %v330 = vld [vmem:[%s281 + $0x78] sm:$0xf]
      %v331 = vld [vmem:[%s281 + $0x7c] sm:$0xf]
      %v332 = vld [vmem:[%s281 + $0x84] sm:$0xf]
      %v333 = vld [vmem:[%s281 + $0x88] sm:$0xf]
      %v334 = vld [vmem:[%s281 + $0x90] sm:$0xf]
      %v335 = vld [vmem:[%s281 + $0x94] sm:$0xf]
      %v336 = vld [vmem:[%s281 + $0x9c] sm:$0xf]
      %v337 = vld [vmem:[%s281 + $0xa0] sm:$0xf]
      %v338 = vld [vmem:[%s281 + $0xa8] sm:$0xf]
      %v339 = vld [vmem:[%s281 + $0xac] sm:$0xf]
      %v340 = vld [vmem:[%s281 + $0xb4] sm:$0xf]
      %v341 = vld [vmem:[%s281 + $0xb8] sm:$0xf]
      %v342 = vld [vmem:[%s285] sm:$0xf]
      %v343 = vld [vmem:[%s281 + $0x8] sm:$0x1]
      %v344 = vld [vmem:[%s281 + $0x14] sm:$0x1]
      %v345 = vld [vmem:[%s281 + $0x20] sm:$0x1]
      %v346 = vld [vmem:[%s281 + $0x2c] sm:$0x1]
      %v347 = vld [vmem:[%s281 + $0x38] sm:$0x1]
      %v348 = vld [vmem:[%s281 + $0x44] sm:$0x1]
      %v349 = vld [vmem:[%s281 + $0x50] sm:$0x1]
      %v350 = vld [vmem:[%s281 + $0x5c] sm:$0x1]
      %v351 = vld [vmem:[%s281 + $0x68] sm:$0x1]
      %v352 = vld [vmem:[%s281 + $0x74] sm:$0x1]
      %v353 = vld [vmem:[%s281 + $0x80] sm:$0x1]
      %v354 = vld [vmem:[%s281 + $0x8c] sm:$0x1]
      %v355 = vld [vmem:[%s281 + $0x98] sm:$0x1]
      %v356 = vld [vmem:[%s281 + $0xa4] sm:$0x1]
      %v357 = vld [vmem:[%s281 + $0xb0] sm:$0x1]
      %v358 = vld [vmem:[%s281 + $0xbc] sm:$0x1]
      %vm359 = vsmask.f32 3328
      %vm360 = vsmask.f32 7440
      %vm361 = vmor %vm359, %vm360
      %v363 = vshrl.u32 %v310, 16
      %v365 = vrot.slane %v363, 4
      %v366 = vshll.u32 %v310, 16
      %v368 = vrot.slane %v366, 5
      %v369 = vor.u32 %v365, %v368
      %v370 = vrot.slane %v369, 4
      %v372 = vshll.u32 %v311, 16
      %v374 = vrot.slane %v372, 5
      %v375 = vsel %vm361, %v370, %v374
      %v376 = vshrl.u32 %v311, 16
      %v378 = vrot.slane %v376, 4
      %v379 = vor.u32 %v378, %v374
      %v380 = vrot.slane %v379, 4
      %v382 = vshll.u32 %v343, 16
      %v384 = vrot.slane %v382, 5
      %v385 = vsel %vm361, %v380, %v384
      %v387 = vshrl.u32 %v312, 16
      %v389 = vrot.slane %v387, 4
      %v390 = vshll.u32 %v312, 16
      %v392 = vrot.slane %v390, 5
      %v393 = vor.u32 %v389, %v392
      %v394 = vrot.slane %v393, 4
      %v396 = vshll.u32 %v313, 16
      %v398 = vrot.slane %v396, 5
      %v399 = vsel %vm361, %v394, %v398
      %v400 = vshrl.u32 %v313, 16
      %v402 = vrot.slane %v400, 4
      %v403 = vor.u32 %v402, %v398
      %v404 = vrot.slane %v403, 4
      %v406 = vshll.u32 %v344, 16
      %v408 = vrot.slane %v406, 5
      %v409 = vsel %vm361, %v404, %v408
      %v411 = vshrl.u32 %v314, 16
      %v413 = vrot.slane %v411, 4
      %v414 = vshll.u32 %v314, 16
      %v416 = vrot.slane %v414, 5
      %v417 = vor.u32 %v413, %v416
      %v418 = vrot.slane %v417, 4
      %v420 = vshll.u32 %v315, 16
      %v422 = vrot.slane %v420, 5
      %v423 = vsel %vm361, %v418, %v422
      %v424 = vshrl.u32 %v315, 16
      %v426 = vrot.slane %v424, 4
      %v427 = vor.u32 %v426, %v422
      %v428 = vrot.slane %v427, 4
      %v430 = vshll.u32 %v345, 16
      %v432 = vrot.slane %v430, 5
      %v433 = vsel %vm361, %v428, %v432
      %v435 = vshrl.u32 %v316, 16
      %v437 = vrot.slane %v435, 4
      %v438 = vshll.u32 %v316, 16
      %v440 = vrot.slane %v438, 5
      %v441 = vor.u32 %v437, %v440
      %v442 = vrot.slane %v441, 4
      %v444 = vshll.u32 %v317, 16
      %v446 = vrot.slane %v444, 5
      %v447 = vsel %vm361, %v442, %v446
      %v448 = vshrl.u32 %v317, 16
      %v450 = vrot.slane %v448, 4
      %v451 = vor.u32 %v450, %v446
      %v452 = vrot.slane %v451, 4
      %v454 = vshll.u32 %v346, 16
      %v456 = vrot.slane %v454, 5
      %v457 = vsel %vm361, %v452, %v456
      %v459 = vshrl.u32 %v318, 16
      %v461 = vrot.slane %v459, 4
      %v462 = vshll.u32 %v318, 16
      %v464 = vrot.slane %v462, 5
      %v465 = vor.u32 %v461, %v464
      %v466 = vrot.slane %v465, 4
      %v468 = vshll.u32 %v319, 16
      %v470 = vrot.slane %v468, 5
      %v471 = vsel %vm361, %v466, %v470
      %v472 = vshrl.u32 %v319, 16
      %v474 = vrot.slane %v472, 4
      %v475 = vor.u32 %v474, %v470
      %v476 = vrot.slane %v475, 4
      %v478 = vshll.u32 %v347, 16
      %v480 = vrot.slane %v478, 5
      %v481 = vsel %vm361, %v476, %v480
      %v483 = vshrl.u32 %v320, 16
      %v485 = vrot.slane %v483, 4
      %v486 = vshll.u32 %v320, 16
      %v488 = vrot.slane %v486, 5
      %v489 = vor.u32 %v485, %v488
      %v490 = vrot.slane %v489, 4
      %v492 = vshll.u32 %v321, 16
      %v494 = vrot.slane %v492, 5
      %v495 = vsel %vm361, %v490, %v494
      %v496 = vshrl.u32 %v321, 16
      %v498 = vrot.slane %v496, 4
      %v499 = vor.u32 %v498, %v494
      %v500 = vrot.slane %v499, 4
      %v502 = vshll.u32 %v348, 16
      %v504 = vrot.slane %v502, 5
      %v505 = vsel %vm361, %v500, %v504
      %v507 = vshrl.u32 %v322, 16
      %v509 = vrot.slane %v507, 4
      %v510 = vshll.u32 %v322, 16
      %v512 = vrot.slane %v510, 5
      %v513 = vor.u32 %v509, %v512
      %v514 = vrot.slane %v513, 4
      %v516 = vshll.u32 %v323, 16
      %v518 = vrot.slane %v516, 5
      %v519 = vsel %vm361, %v514, %v518
      %v520 = vshrl.u32 %v323, 16
      %v522 = vrot.slane %v520, 4
      %v523 = vor.u32 %v522, %v518
      %v524 = vrot.slane %v523, 4
      %v526 = vshll.u32 %v349, 16
      %v528 = vrot.slane %v526, 5
      %v529 = vsel %vm361, %v524, %v528
      %v531 = vshrl.u32 %v324, 16
      %v533 = vrot.slane %v531, 4
      %v534 = vshll.u32 %v324, 16
      %v536 = vrot.slane %v534, 5
      %v537 = vor.u32 %v533, %v536
      %v538 = vrot.slane %v537, 4
      %v540 = vshll.u32 %v325, 16
      %v542 = vrot.slane %v540, 5
      %v543 = vsel %vm361, %v538, %v542
      %v544 = vshrl.u32 %v325, 16
      %v546 = vrot.slane %v544, 4
      %v547 = vor.u32 %v546, %v542
      %v548 = vrot.slane %v547, 4
      %v550 = vshll.u32 %v350, 16
      %v552 = vrot.slane %v550, 5
      %v553 = vsel %vm361, %v548, %v552
      %v555 = vshrl.u32 %v326, 16
      %v557 = vrot.slane %v555, 4
      %v558 = vshll.u32 %v326, 16
      %v560 = vrot.slane %v558, 5
      %v561 = vor.u32 %v557, %v560
      %v562 = vrot.slane %v561, 4
      %v564 = vshll.u32 %v327, 16
      %v566 = vrot.slane %v564, 5
      %v567 = vsel %vm361, %v562, %v566
      %v568 = vshrl.u32 %v327, 16
      %v570 = vrot.slane %v568, 4
      %v571 = vor.u32 %v570, %v566
      %v572 = vrot.slane %v571, 4
      %v574 = vshll.u32 %v351, 16
      %v576 = vrot.slane %v574, 5
      %v577 = vsel %vm361, %v572, %v576
      %v579 = vshrl.u32 %v328, 16
      %v581 = vrot.slane %v579, 4
      %v582 = vshll.u32 %v328, 16
      %v584 = vrot.slane %v582, 5
      %v585 = vor.u32 %v581, %v584
      %v586 = vrot.slane %v585, 4
      %v588 = vshll.u32 %v329, 16
      %v590 = vrot.slane %v588, 5
      %v591 = vsel %vm361, %v586, %v590
      %v592 = vshrl.u32 %v329, 16
      %v594 = vrot.slane %v592, 4
      %v595 = vor.u32 %v594, %v590
      %v596 = vrot.slane %v595, 4
      %v598 = vshll.u32 %v352, 16
      %v600 = vrot.slane %v598, 5
      %v601 = vsel %vm361, %v596, %v600
      %v603 = vshrl.u32 %v330, 16
      %v605 = vrot.slane %v603, 4
      %v606 = vshll.u32 %v330, 16
      %v608 = vrot.slane %v606, 5
      %v609 = vor.u32 %v605, %v608
      %v610 = vrot.slane %v609, 4
      %v612 = vshll.u32 %v331, 16
      %v614 = vrot.slane %v612, 5
      %v615 = vsel %vm361, %v610, %v614
      %v616 = vshrl.u32 %v331, 16
      %v618 = vrot.slane %v616, 4
      %v619 = vor.u32 %v618, %v614
      %v620 = vrot.slane %v619, 4
      %v622 = vshll.u32 %v353, 16
      %v624 = vrot.slane %v622, 5
      %v625 = vsel %vm361, %v620, %v624
      %v627 = vshrl.u32 %v332, 16
      %v629 = vrot.slane %v627, 4
      %v630 = vshll.u32 %v332, 16
      %v632 = vrot.slane %v630, 5
      %v633 = vor.u32 %v629, %v632
      %v634 = vrot.slane %v633, 4
      %v636 = vshll.u32 %v333, 16
      %v638 = vrot.slane %v636, 5
      %v639 = vsel %vm361, %v634, %v638
      %v640 = vshrl.u32 %v333, 16
      %v642 = vrot.slane %v640, 4
      %v643 = vor.u32 %v642, %v638
      %v644 = vrot.slane %v643, 4
      %v646 = vshll.u32 %v354, 16
      %v648 = vrot.slane %v646, 5
      %v649 = vsel %vm361, %v644, %v648
      %v651 = vshrl.u32 %v334, 16
      %v653 = vrot.slane %v651, 4
      %v654 = vshll.u32 %v334, 16
      %v656 = vrot.slane %v654, 5
      %v657 = vor.u32 %v653, %v656
      %v658 = vrot.slane %v657, 4
      %v660 = vshll.u32 %v335, 16
      %v662 = vrot.slane %v660, 5
      %v663 = vsel %vm361, %v658, %v662
      %v664 = vshrl.u32 %v335, 16
      %v666 = vrot.slane %v664, 4
      %v667 = vor.u32 %v666, %v662
      %v668 = vrot.slane %v667, 4
      %v670 = vshll.u32 %v355, 16
      %v672 = vrot.slane %v670, 5
      %v673 = vsel %vm361, %v668, %v672
      %v675 = vshrl.u32 %v336, 16
      %v677 = vrot.slane %v675, 4
      %v678 = vshll.u32 %v336, 16
      %v680 = vrot.slane %v678, 5
      %v681 = vor.u32 %v677, %v680
      %v682 = vrot.slane %v681, 4
      %v684 = vshll.u32 %v337, 16
      %v686 = vrot.slane %v684, 5
      %v687 = vsel %vm361, %v682, %v686
      %v688 = vshrl.u32 %v337, 16
      %v690 = vrot.slane %v688, 4
      %v691 = vor.u32 %v690, %v686
      %v692 = vrot.slane %v691, 4
      %v694 = vshll.u32 %v356, 16
      %v696 = vrot.slane %v694, 5
      %v697 = vsel %vm361, %v692, %v696
      %v699 = vshrl.u32 %v338, 16
      %v701 = vrot.slane %v699, 4
      %v702 = vshll.u32 %v338, 16
      %v704 = vrot.slane %v702, 5
      %v705 = vor.u32 %v701, %v704
      %v706 = vrot.slane %v705, 4
      %v708 = vshll.u32 %v339, 16
      %v710 = vrot.slane %v708, 5
      %v711 = vsel %vm361, %v706, %v710
      %v712 = vshrl.u32 %v339, 16
      %v714 = vrot.slane %v712, 4
      %v715 = vor.u32 %v714, %v710
      %v716 = vrot.slane %v715, 4
      %v718 = vshll.u32 %v357, 16
      %v720 = vrot.slane %v718, 5
      %v721 = vsel %vm361, %v716, %v720
      %v723 = vshrl.u32 %v340, 16
      %v725 = vrot.slane %v723, 4
      %v726 = vshll.u32 %v340, 16
      %v728 = vrot.slane %v726, 5
      %v729 = vor.u32 %v725, %v728
      %v730 = vrot.slane %v729, 4
      %v732 = vshll.u32 %v341, 16
      %v734 = vrot.slane %v732, 5
      %v735 = vsel %vm361, %v730, %v734
      %v736 = vshrl.u32 %v341, 16
      %v738 = vrot.slane %v736, 4
      %v739 = vor.u32 %v738, %v734
      %v740 = vrot.slane %v739, 4
      %v742 = vshll.u32 %v358, 16
      %v744 = vrot.slane %v742, 5
      %v745 = vsel %vm361, %v740, %v744
      %s746 = scalar_lea.vmem %s285, 4
      %v747 = vld [vmem:[%s746] sm:$0xf]
      %v748 = vunpack.c.l.b16 %v375
      %v749 = vunpack.c.l.b16 %v385
      %v750 = vunpack.c.l.b16 %v399
      %v751 = vunpack.c.l.b16 %v409
      %v752 = vunpack.c.l.b16 %v423
      %v753 = vunpack.c.l.b16 %v433
      %v754 = vunpack.c.l.b16 %v447
      %v755 = vunpack.c.l.b16 %v457
      %v756 = vunpack.c.l.b16 %v471
      %v757 = vunpack.c.l.b16 %v481
      %v758 = vunpack.c.l.b16 %v495
      %v759 = vunpack.c.l.b16 %v505
      %v760 = vunpack.c.l.b16 %v519
      %v761 = vunpack.c.l.b16 %v529
      %v762 = vunpack.c.l.b16 %v543
      %v763 = vunpack.c.l.b16 %v553
      %v764 = vunpack.c.l.b16 %v567
      %v765 = vunpack.c.l.b16 %v577
      %v766 = vunpack.c.l.b16 %v591
      %v767 = vunpack.c.l.b16 %v601
      %v768 = vunpack.c.l.b16 %v615
      %v769 = vunpack.c.l.b16 %v625
      %v770 = vunpack.c.l.b16 %v639
      %v771 = vunpack.c.l.b16 %v649
      %v772 = vunpack.c.l.b16 %v663
      %v773 = vunpack.c.l.b16 %v673
      %v774 = vunpack.c.l.b16 %v687
      %v775 = vunpack.c.l.b16 %v697
      %v776 = vunpack.c.l.b16 %v711
      %v777 = vunpack.c.l.b16 %v721
      %v778 = vunpack.c.l.b16 %v735
      %v779 = vunpack.c.l.b16 %v745
      %v780 = vpack.c.b16 %v749, %v748
      %v781 = vpack.c.b16 %v751, %v750
      %v782 = vpack.c.b16 %v753, %v752
      %v783 = vpack.c.b16 %v755, %v754
      %v784 = vpack.c.b16 %v757, %v756
      %v785 = vpack.c.b16 %v759, %v758
      %v786 = vpack.c.b16 %v761, %v760
      %v787 = vpack.c.b16 %v763, %v762
      %v788 = vpack.c.b16 %v765, %v764
      %v789 = vpack.c.b16 %v767, %v766
      %v790 = vpack.c.b16 %v769, %v768
      %v791 = vpack.c.b16 %v771, %v770
      %v792 = vpack.c.b16 %v773, %v772
      %v793 = vpack.c.b16 %v775, %v774
      %v794 = vpack.c.b16 %v777, %v776
      %v795 = vpack.c.b16 %v779, %v778
      %vm796 = vcmask 64512
      %v798 = vsel %vm796, %v780, 0
      %v801 = vsel %vm796, %v781, 0
      %v804 = vsel %vm796, %v782, 0
      %v807 = vsel %vm796, %v783, 0
      %v810 = vsel %vm796, %v784, 0
      %v813 = vsel %vm796, %v785, 0
      %v816 = vsel %vm796, %v786, 0
      %v819 = vsel %vm796, %v787, 0
      %v822 = vsel %vm796, %v788, 0
      %v825 = vsel %vm796, %v789, 0
      %v828 = vsel %vm796, %v790, 0
      %v831 = vsel %vm796, %v791, 0
      %v834 = vsel %vm796, %v792, 0
      %v837 = vsel %vm796, %v793, 0
      %v840 = vsel %vm796, %v794, 0
      %v843 = vsel %vm796, %v795, 0
      %vm845 = vcmask 1043456
      %v847 = vsel %vm845, %v747, 0
      %849 = vmatprep.subr.bf16.mxu0 0
      %850 = vmatpush1.bf16.msra.mxu0 %v847
      %851 = vmatprep.subr.bf16.mxu0 0
      %852 = vmatpush1.bf16.msra.mxu0 0
      %853 = vmatprep.subr.bf16.mxu0 0
      %854 = vmatpush1.bf16.msra.mxu0 0
      %855 = vmatprep.subr.bf16.mxu0 0
      %856 = vmatpush1.bf16.msra.mxu0 0
      %857 = vmatprep.subr.bf16.mxu0 0
      %858 = vmatpush1.bf16.msra.mxu0 0
      %859 = vmatprep.subr.bf16.mxu0 0
      %860 = vmatpush1.bf16.msra.mxu0 0
      %861 = vmatprep.subr.bf16.mxu0 0
      %862 = vmatpush1.bf16.msra.mxu0 0
      %863 = vmatprep.subr.bf16.mxu0 0
      %864 = vmatpush1.bf16.msra.mxu0 0
      %865 = vmatprep.subr.bf16.mxu0 0
      %866 = vmatpush1.bf16.msra.mxu0 0
      %867 = vmatprep.subr.bf16.mxu0 0
      %868 = vmatpush1.bf16.msra.mxu0 0
      %869 = vmatprep.subr.bf16.mxu0 0
      %870 = vmatpush1.bf16.msra.mxu0 0
      %871 = vmatprep.subr.bf16.mxu0 0
      %872 = vmatpush1.bf16.msra.mxu0 0
      %873 = vmatprep.subr.bf16.mxu0 0
      %874 = vmatpush1.bf16.msra.mxu0 0
      %875 = vmatprep.subr.bf16.mxu0 0
      %876 = vmatpush1.bf16.msra.mxu0 0
      %877 = vmatprep.subr.bf16.mxu0 0
      %878 = vmatpush1.bf16.msra.mxu0 0
      %879 = vmatprep.subr.bf16.mxu0 0
      %880 = vmatpush1.bf16.msra.mxu0 0
      %881 = vmatprep.mubr.bf16.mxu0 0
      %882 = vmatmul.mubr.bf16.gmra.mrb[0].mxu0 %v798
      %v883 = vpop.f32.mrb[0].mxu0
      %v884 = vadd.f32 0.0, %v883
      %v885 = vpop.f32.mrb[0].mxu0
      %v886 = vpop.f32.mrb[0].mxu0
      %v887 = vadd.f32 0.0, %v886
      %v888 = vpop.f32.mrb[0].mxu0
      %889 = vmatprep.mubr.bf16.mxu0 0
      %890 = vmatmul.mubr.bf16.gmra.mrb[0].mxu0 %v801
      %v891 = vpop.f32.mrb[0].mxu0
      %v892 = vadd.f32 0.0, %v891
      %v893 = vpop.f32.mrb[0].mxu0
      %v894 = vpop.f32.mrb[0].mxu0
      %v895 = vadd.f32 0.0, %v894
      %v896 = vpop.f32.mrb[0].mxu0
      %897 = vmatprep.mubr.bf16.mxu0 0
      %898 = vmatmul.mubr.bf16.gmra.mrb[0].mxu0 %v804
      %v899 = vpop.f32.mrb[0].mxu0
      %v900 = vadd.f32 0.0, %v899
      %v901 = vpop.f32.mrb[0].mxu0
      %v902 = vpop.f32.mrb[0].mxu0
      %v903 = vadd.f32 0.0, %v902
      %v904 = vpop.f32.mrb[0].mxu0
      %905 = vmatprep.mubr.bf16.mxu0 0
      %906 = vmatmul.mubr.bf16.gmra.mrb[0].mxu0 %v807
      %v907 = vpop.f32.mrb[0].mxu0
      %v908 = vadd.f32 0.0, %v907
      %v909 = vpop.f32.mrb[0].mxu0
      %v910 = vpop.f32.mrb[0].mxu0
      %v911 = vadd.f32 0.0, %v910
      %v912 = vpop.f32.mrb[0].mxu0
      %913 = vmatprep.mubr.bf16.mxu0 0
      %914 = vmatmul.mubr.bf16.gmra.mrb[0].mxu0 %v810
      %v915 = vpop.f32.mrb[0].mxu0
      %v916 = vadd.f32 0.0, %v915
      %v917 = vpop.f32.mrb[0].mxu0
      %v918 = vpop.f32.mrb[0].mxu0
      %v919 = vadd.f32 0.0, %v918
      %v920 = vpop.f32.mrb[0].mxu0
      %921 = vmatprep.mubr.bf16.mxu0 0
      %922 = vmatmul.mubr.bf16.gmra.mrb[0].mxu0 %v813
      %v923 = vpop.f32.mrb[0].mxu0
      %v924 = vadd.f32 0.0, %v923
      %v925 = vpop.f32.mrb[0].mxu0
      %v926 = vpop.f32.mrb[0].mxu0
      %v927 = vadd.f32 0.0, %v926
      %v928 = vpop.f32.mrb[0].mxu0
      %929 = vmatprep.mubr.bf16.mxu0 0
      %930 = vmatmul.mubr.bf16.gmra.mrb[0].mxu0 %v816
      %v931 = vpop.f32.mrb[0].mxu0
      %v932 = vadd.f32 0.0, %v931
      %v933 = vpop.f32.mrb[0].mxu0
      %v934 = vpop.f32.mrb[0].mxu0
      %v935 = vadd.f32 0.0, %v934
      %v936 = vpop.f32.mrb[0].mxu0
      %937 = vmatprep.mubr.bf16.mxu0 0
      %938 = vmatmul.mubr.bf16.gmra.mrb[0].mxu0 %v819
      %v939 = vpop.f32.mrb[0].mxu0
      %v940 = vadd.f32 0.0, %v939
      %v941 = vpop.f32.mrb[0].mxu0
      %v942 = vpop.f32.mrb[0].mxu0
      %v943 = vadd.f32 0.0, %v942
      %v944 = vpop.f32.mrb[0].mxu0
      %945 = vmatprep.mubr.bf16.mxu0 0
      %946 = vmatmul.mubr.bf16.gmra.mrb[0].mxu0 %v822
      %v947 = vpop.f32.mrb[0].mxu0
      %v948 = vadd.f32 0.0, %v947
      %v949 = vpop.f32.mrb[0].mxu0
      %v950 = vpop.f32.mrb[0].mxu0
      %v951 = vadd.f32 0.0, %v950
      %v952 = vpop.f32.mrb[0].mxu0
      %953 = vmatprep.mubr.bf16.mxu0 0
      %954 = vmatmul.mubr.bf16.gmra.mrb[0].mxu0 %v825
      %v955 = vpop.f32.mrb[0].mxu0
      %v956 = vadd.f32 0.0, %v955
      %v957 = vpop.f32.mrb[0].mxu0
      %v958 = vpop.f32.mrb[0].mxu0
      %v959 = vadd.f32 0.0, %v958
      %v960 = vpop.f32.mrb[0].mxu0
      %961 = vmatprep.mubr.bf16.mxu0 0
      %962 = vmatmul.mubr.bf16.gmra.mrb[0].mxu0 %v828
      %v963 = vpop.f32.mrb[0].mxu0
      %v964 = vadd.f32 0.0, %v963
      %v965 = vpop.f32.mrb[0].mxu0
      %v966 = vpop.f32.mrb[0].mxu0
      %v967 = vadd.f32 0.0, %v966
      %v968 = vpop.f32.mrb[0].mxu0
      %969 = vmatprep.mubr.bf16.mxu0 0
      %970 = vmatmul.mubr.bf16.gmra.mrb[0].mxu0 %v831
      %v971 = vpop.f32.mrb[0].mxu0
      %v972 = vadd.f32 0.0, %v971
      %v973 = vpop.f32.mrb[0].mxu0
      %v974 = vpop.f32.mrb[0].mxu0
      %v975 = vadd.f32 0.0, %v974
      %v976 = vpop.f32.mrb[0].mxu0
      %977 = vmatprep.mubr.bf16.mxu0 0
      %978 = vmatmul.mubr.bf16.gmra.mrb[0].mxu0 %v834
      %v979 = vpop.f32.mrb[0].mxu0
      %v980 = vadd.f32 0.0, %v979
      %v981 = vpop.f32.mrb[0].mxu0
      %v982 = vpop.f32.mrb[0].mxu0
      %v983 = vadd.f32 0.0, %v982
      %v984 = vpop.f32.mrb[0].mxu0
      %985 = vmatprep.mubr.bf16.mxu0 0
      %986 = vmatmul.mubr.bf16.gmra.mrb[0].mxu0 %v837
      %v987 = vpop.f32.mrb[0].mxu0
      %v988 = vadd.f32 0.0, %v987
      %v989 = vpop.f32.mrb[0].mxu0
      %v990 = vpop.f32.mrb[0].mxu0
      %v991 = vadd.f32 0.0, %v990
      %v992 = vpop.f32.mrb[0].mxu0
      %993 = vmatprep.mubr.bf16.mxu0 0
      %994 = vmatmul.mubr.bf16.gmra.mrb[0].mxu0 %v840
      %v995 = vpop.f32.mrb[0].mxu0
      %v996 = vadd.f32 0.0, %v995
      %v997 = vpop.f32.mrb[0].mxu0
      %v998 = vpop.f32.mrb[0].mxu0
      %v999 = vadd.f32 0.0, %v998
      %v1000 = vpop.f32.mrb[0].mxu0
      %1001 = vmatprep.mubr.bf16.mxu0 0
      %1002 = vmatmul.mubr.bf16.gmra.mrb[0].mxu0 %v843
      %v1003 = vpop.f32.mrb[0].mxu0
      %v1004 = vadd.f32 0.0, %v1003
      %v1005 = vpop.f32.mrb[0].mxu0
      %v1006 = vpop.f32.mrb[0].mxu0
      %v1007 = vadd.f32 0.0, %v1006
      %v1008 = vpop.f32.mrb[0].mxu0
      %1009 = vdwg.mxu0
      %v1042 = vunpack.c.l.b16 %v310
      %v1043 = vunpack.c.l.b16 %v311
      %v1044 = vunpack.c.l.b16 %v312
      %v1045 = vunpack.c.l.b16 %v313
      %v1046 = vunpack.c.l.b16 %v314
      %v1047 = vunpack.c.l.b16 %v315
      %v1048 = vunpack.c.l.b16 %v316
      %v1049 = vunpack.c.l.b16 %v317
      %v1050 = vunpack.c.l.b16 %v318
      %v1051 = vunpack.c.l.b16 %v319
      %v1052 = vunpack.c.l.b16 %v320
      %v1053 = vunpack.c.l.b16 %v321
      %v1054 = vunpack.c.l.b16 %v322
      %v1055 = vunpack.c.l.b16 %v323
      %v1056 = vunpack.c.l.b16 %v324
      %v1057 = vunpack.c.l.b16 %v325
      %v1058 = vunpack.c.l.b16 %v326
      %v1059 = vunpack.c.l.b16 %v327
      %v1060 = vunpack.c.l.b16 %v328
      %v1061 = vunpack.c.l.b16 %v329
      %v1062 = vunpack.c.l.b16 %v330
      %v1063 = vunpack.c.l.b16 %v331
      %v1064 = vunpack.c.l.b16 %v332
      %v1065 = vunpack.c.l.b16 %v333
      %v1066 = vunpack.c.l.b16 %v334
      %v1067 = vunpack.c.l.b16 %v335
      %v1068 = vunpack.c.l.b16 %v336
      %v1069 = vunpack.c.l.b16 %v337
      %v1070 = vunpack.c.l.b16 %v338
      %v1071 = vunpack.c.l.b16 %v339
      %v1072 = vunpack.c.l.b16 %v340
      %v1073 = vunpack.c.l.b16 %v341
      %v1074 = vpack.c.b16 %v1043, %v1042
      %v1075 = vpack.c.b16 %v1045, %v1044
      %v1076 = vpack.c.b16 %v1047, %v1046
      %v1077 = vpack.c.b16 %v1049, %v1048
      %v1078 = vpack.c.b16 %v1051, %v1050
      %v1079 = vpack.c.b16 %v1053, %v1052
      %v1080 = vpack.c.b16 %v1055, %v1054
      %v1081 = vpack.c.b16 %v1057, %v1056
      %v1082 = vpack.c.b16 %v1059, %v1058
      %v1083 = vpack.c.b16 %v1061, %v1060
      %v1084 = vpack.c.b16 %v1063, %v1062
      %v1085 = vpack.c.b16 %v1065, %v1064
      %v1086 = vpack.c.b16 %v1067, %v1066
      %v1087 = vpack.c.b16 %v1069, %v1068
      %v1088 = vpack.c.b16 %v1071, %v1070
      %v1089 = vpack.c.b16 %v1073, %v1072
      %v1091 = vsel %vm796, %v1074, 0
      %v1094 = vsel %vm796, %v1075, 0
      %v1097 = vsel %vm796, %v1076, 0
      %v1100 = vsel %vm796, %v1077, 0
      %v1103 = vsel %vm796, %v1078, 0
      %v1106 = vsel %vm796, %v1079, 0
      %v1109 = vsel %vm796, %v1080, 0
      %v1112 = vsel %vm796, %v1081, 0
      %v1115 = vsel %vm796, %v1082, 0
      %v1118 = vsel %vm796, %v1083, 0
      %v1121 = vsel %vm796, %v1084, 0
      %v1124 = vsel %vm796, %v1085, 0
      %v1127 = vsel %vm796, %v1086, 0
      %v1130 = vsel %vm796, %v1087, 0
      %v1133 = vsel %vm796, %v1088, 0
      %v1136 = vsel %vm796, %v1089, 0
      %v1139 = vsel %vm845, %v342, 0
      %1141 = vmatprep.subr.bf16.mxu0 0
      %1142 = vmatpush1.bf16.msra.mxu0 %v1139
      %1143 = vmatprep.subr.bf16.mxu0 0
      %1144 = vmatpush1.bf16.msra.mxu0 0
      %1145 = vmatprep.subr.bf16.mxu0 0
      %1146 = vmatpush1.bf16.msra.mxu0 0
      %1147 = vmatprep.subr.bf16.mxu0 0
      %1148 = vmatpush1.bf16.msra.mxu0 0
      %1149 = vmatprep.subr.bf16.mxu0 0
      %1150 = vmatpush1.bf16.msra.mxu0 0
      %1151 = vmatprep.subr.bf16.mxu0 0
      %1152 = vmatpush1.bf16.msra.mxu0 0
      %1153 = vmatprep.subr.bf16.mxu0 0
      %1154 = vmatpush1.bf16.msra.mxu0 0
      %1155 = vmatprep.subr.bf16.mxu0 0
      %1156 = vmatpush1.bf16.msra.mxu0 0
      %1157 = vmatprep.subr.bf16.mxu0 0
      %1158 = vmatpush1.bf16.msra.mxu0 0
      %1159 = vmatprep.subr.bf16.mxu0 0
      %1160 = vmatpush1.bf16.msra.mxu0 0
      %1161 = vmatprep.subr.bf16.mxu0 0
      %1162 = vmatpush1.bf16.msra.mxu0 0
      %1163 = vmatprep.subr.bf16.mxu0 0
      %1164 = vmatpush1.bf16.msra.mxu0 0
      %1165 = vmatprep.subr.bf16.mxu0 0
      %1166 = vmatpush1.bf16.msra.mxu0 0
      %1167 = vmatprep.subr.bf16.mxu0 0
      %1168 = vmatpush1.bf16.msra.mxu0 0
      %1169 = vmatprep.subr.bf16.mxu0 0
      %1170 = vmatpush1.bf16.msra.mxu0 0
      %1171 = vmatprep.subr.bf16.mxu0 0
      %1172 = vmatpush1.bf16.msra.mxu0 0
      %1173 = vmatprep.mubr.bf16.mxu0 0
      %1174 = vmatmul.mubr.bf16.gmra.mrb[0].mxu0 %v1091
      %v1175 = vpop.f32.mrb[0].mxu0
      %v1176 = vadd.f32 %v884, %v1175
      %v1177 = vpop.f32.mrb[0].mxu0
      %v1178 = vpop.f32.mrb[0].mxu0
      %v1179 = vadd.f32 %v887, %v1178
      %v1180 = vpop.f32.mrb[0].mxu0
      %1181 = vmatprep.mubr.bf16.mxu0 0
      %1182 = vmatmul.mubr.bf16.gmra.mrb[0].mxu0 %v1094
      %v1183 = vpop.f32.mrb[0].mxu0
      %v1184 = vadd.f32 %v892, %v1183
      %v1185 = vpop.f32.mrb[0].mxu0
      %v1186 = vpop.f32.mrb[0].mxu0
      %v1187 = vadd.f32 %v895, %v1186
      %v1188 = vpop.f32.mrb[0].mxu0
      %1189 = vmatprep.mubr.bf16.mxu0 0
      %1190 = vmatmul.mubr.bf16.gmra.mrb[0].mxu0 %v1097
      %v1191 = vpop.f32.mrb[0].mxu0
      %v1192 = vadd.f32 %v900, %v1191
      %v1193 = vpop.f32.mrb[0].mxu0
      %v1194 = vpop.f32.mrb[0].mxu0
      %v1195 = vadd.f32 %v903, %v1194
      %v1196 = vpop.f32.mrb[0].mxu0
      %1197 = vmatprep.mubr.bf16.mxu0 0
      %1198 = vmatmul.mubr.bf16.gmra.mrb[0].mxu0 %v1100
      %v1199 = vpop.f32.mrb[0].mxu0
      %v1200 = vadd.f32 %v908, %v1199
      %v1201 = vpop.f32.mrb[0].mxu0
      %v1202 = vpop.f32.mrb[0].mxu0
      %v1203 = vadd.f32 %v911, %v1202
      %v1204 = vpop.f32.mrb[0].mxu0
      %1205 = vmatprep.mubr.bf16.mxu0 0
      %1206 = vmatmul.mubr.bf16.gmra.mrb[0].mxu0 %v1103
      %v1207 = vpop.f32.mrb[0].mxu0
      %v1208 = vadd.f32 %v916, %v1207
      %v1209 = vpop.f32.mrb[0].mxu0
      %v1210 = vpop.f32.mrb[0].mxu0
      %v1211 = vadd.f32 %v919, %v1210
      %v1212 = vpop.f32.mrb[0].mxu0
      %1213 = vmatprep.mubr.bf16.mxu0 0
      %1214 = vmatmul.mubr.bf16.gmra.mrb[0].mxu0 %v1106
      %v1215 = vpop.f32.mrb[0].mxu0
      %v1216 = vadd.f32 %v924, %v1215
      %v1217 = vpop.f32.mrb[0].mxu0
      %v1218 = vpop.f32.mrb[0].mxu0
      %v1219 = vadd.f32 %v927, %v1218
      %v1220 = vpop.f32.mrb[0].mxu0
      %1221 = vmatprep.mubr.bf16.mxu0 0
      %1222 = vmatmul.mubr.bf16.gmra.mrb[0].mxu0 %v1109
      %v1223 = vpop.f32.mrb[0].mxu0
      %v1224 = vadd.f32 %v932, %v1223
      %v1225 = vpop.f32.mrb[0].mxu0
      %v1226 = vpop.f32.mrb[0].mxu0
      %v1227 = vadd.f32 %v935, %v1226
      %v1228 = vpop.f32.mrb[0].mxu0
      %1229 = vmatprep.mubr.bf16.mxu0 0
      %1230 = vmatmul.mubr.bf16.gmra.mrb[0].mxu0 %v1112
      %v1231 = vpop.f32.mrb[0].mxu0
      %v1232 = vadd.f32 %v940, %v1231
      %v1233 = vpop.f32.mrb[0].mxu0
      %v1234 = vpop.f32.mrb[0].mxu0
      %v1235 = vadd.f32 %v943, %v1234
      %v1236 = vpop.f32.mrb[0].mxu0
      %1237 = vmatprep.mubr.bf16.mxu0 0
      %1238 = vmatmul.mubr.bf16.gmra.mrb[0].mxu0 %v1115
      %v1239 = vpop.f32.mrb[0].mxu0
      %v1240 = vadd.f32 %v948, %v1239
      %v1241 = vpop.f32.mrb[0].mxu0
      %v1242 = vpop.f32.mrb[0].mxu0
      %v1243 = vadd.f32 %v951, %v1242
      %v1244 = vpop.f32.mrb[0].mxu0
      %1245 = vmatprep.mubr.bf16.mxu0 0
      %1246 = vmatmul.mubr.bf16.gmra.mrb[0].mxu0 %v1118
      %v1247 = vpop.f32.mrb[0].mxu0
      %v1248 = vadd.f32 %v956, %v1247
      %v1249 = vpop.f32.mrb[0].mxu0
      %v1250 = vpop.f32.mrb[0].mxu0
      %v1251 = vadd.f32 %v959, %v1250
      %v1252 = vpop.f32.mrb[0].mxu0
      %1253 = vmatprep.mubr.bf16.mxu0 0
      %1254 = vmatmul.mubr.bf16.gmra.mrb[0].mxu0 %v1121
      %v1255 = vpop.f32.mrb[0].mxu0
      %v1256 = vadd.f32 %v964, %v1255
      %v1257 = vpop.f32.mrb[0].mxu0
      %v1258 = vpop.f32.mrb[0].mxu0
      %v1259 = vadd.f32 %v967, %v1258
      %v1260 = vpop.f32.mrb[0].mxu0
      %1261 = vmatprep.mubr.bf16.mxu0 0
      %1262 = vmatmul.mubr.bf16.gmra.mrb[0].mxu0 %v1124
      %v1263 = vpop.f32.mrb[0].mxu0
      %v1264 = vadd.f32 %v972, %v1263
      %v1265 = vpop.f32.mrb[0].mxu0
      %v1266 = vpop.f32.mrb[0].mxu0
      %v1267 = vadd.f32 %v975, %v1266
      %v1268 = vpop.f32.mrb[0].mxu0
      %1269 = vmatprep.mubr.bf16.mxu0 0
      %1270 = vmatmul.mubr.bf16.gmra.mrb[0].mxu0 %v1127
      %v1271 = vpop.f32.mrb[0].mxu0
      %v1272 = vadd.f32 %v980, %v1271
      %v1273 = vpop.f32.mrb[0].mxu0
      %v1274 = vpop.f32.mrb[0].mxu0
      %v1275 = vadd.f32 %v983, %v1274
      %v1276 = vpop.f32.mrb[0].mxu0
      %1277 = vmatprep.mubr.bf16.mxu0 0
      %1278 = vmatmul.mubr.bf16.gmra.mrb[0].mxu0 %v1130
      %v1279 = vpop.f32.mrb[0].mxu0
      %v1280 = vadd.f32 %v988, %v1279
      %v1281 = vpop.f32.mrb[0].mxu0
      %v1282 = vpop.f32.mrb[0].mxu0
      %v1283 = vadd.f32 %v991, %v1282
      %v1284 = vpop.f32.mrb[0].mxu0
      %1285 = vmatprep.mubr.bf16.mxu0 0
      %1286 = vmatmul.mubr.bf16.gmra.mrb[0].mxu0 %v1133
      %v1287 = vpop.f32.mrb[0].mxu0
      %v1288 = vadd.f32 %v996, %v1287
      %v1289 = vpop.f32.mrb[0].mxu0
      %v1290 = vpop.f32.mrb[0].mxu0
      %v1291 = vadd.f32 %v999, %v1290
      %v1292 = vpop.f32.mrb[0].mxu0
      %1293 = vmatprep.mubr.bf16.mxu0 0
      %1294 = vmatmul.mubr.bf16.gmra.mrb[0].mxu0 %v1136
      %v1295 = vpop.f32.mrb[0].mxu0
      %v1296 = vadd.f32 %v1004, %v1295
      %v1297 = vpop.f32.mrb[0].mxu0
      %v1298 = vpop.f32.mrb[0].mxu0
      %v1299 = vadd.f32 %v1007, %v1298
      %v1300 = vpop.f32.mrb[0].mxu0
      %1301 = vdwg.mxu0
      %v1302 = vld [vmem:[%s281] sm:$0xe]
      %v1303 = vld [vmem:[%s281 + $0xc] sm:$0xe]
      %v1304 = vld [vmem:[%s281 + $0x18] sm:$0xe]
      %v1305 = vld [vmem:[%s281 + $0x24] sm:$0xe]
      %v1306 = vld [vmem:[%s281 + $0x30] sm:$0xe]
      %v1307 = vld [vmem:[%s281 + $0x3c] sm:$0xe]
      %v1308 = vld [vmem:[%s281 + $0x48] sm:$0xe]
      %v1309 = vld [vmem:[%s281 + $0x54] sm:$0xe]
      %v1310 = vld [vmem:[%s281 + $0x60] sm:$0xe]
      %v1311 = vld [vmem:[%s281 + $0x6c] sm:$0xe]
      %v1312 = vld [vmem:[%s281 + $0x78] sm:$0xe]
      %v1313 = vld [vmem:[%s281 + $0x84] sm:$0xe]
      %v1314 = vld [vmem:[%s281 + $0x90] sm:$0xe]
      %v1315 = vld [vmem:[%s281 + $0x9c] sm:$0xe]
      %v1316 = vld [vmem:[%s281 + $0xa8] sm:$0xe]
      %v1317 = vld [vmem:[%s281 + $0xb4] sm:$0xe]
      %vm1350 = vcmask 1042432
      %vm1351 = vcmask 1046532
      %vm1352 = vmor %vm1350, %vm1351
      %v1353 = vrot.slane %v1302, 5
      %v1354 = vrot.slane %v1353, 4
      %v1355 = vrot.slane %v311, 5
      %v1356 = vsel %vm1352, %v1354, %v1355
      %v1357 = vrot.slane %v1355, 4
      %v1358 = vrot.slane %v343, 5
      %v1359 = vsel %vm1352, %v1357, %v1358
      %v1360 = vrot.slane %v1303, 5
      %v1361 = vrot.slane %v1360, 4
      %v1362 = vrot.slane %v313, 5
      %v1363 = vsel %vm1352, %v1361, %v1362
      %v1364 = vrot.slane %v1362, 4
      %v1365 = vrot.slane %v344, 5
      %v1366 = vsel %vm1352, %v1364, %v1365
      %v1367 = vrot.slane %v1304, 5
      %v1368 = vrot.slane %v1367, 4
      %v1369 = vrot.slane %v315, 5
      %v1370 = vsel %vm1352, %v1368, %v1369
      %v1371 = vrot.slane %v1369, 4
      %v1372 = vrot.slane %v345, 5
      %v1373 = vsel %vm1352, %v1371, %v1372
      %v1374 = vrot.slane %v1305, 5
      %v1375 = vrot.slane %v1374, 4
      %v1376 = vrot.slane %v317, 5
      %v1377 = vsel %vm1352, %v1375, %v1376
      %v1378 = vrot.slane %v1376, 4
      %v1379 = vrot.slane %v346, 5
      %v1380 = vsel %vm1352, %v1378, %v1379
      %v1381 = vrot.slane %v1306, 5
      %v1382 = vrot.slane %v1381, 4
      %v1383 = vrot.slane %v319, 5
      %v1384 = vsel %vm1352, %v1382, %v1383
      %v1385 = vrot.slane %v1383, 4
      %v1386 = vrot.slane %v347, 5
      %v1387 = vsel %vm1352, %v1385, %v1386
      %v1388 = vrot.slane %v1307, 5
      %v1389 = vrot.slane %v1388, 4
      %v1390 = vrot.slane %v321, 5
      %v1391 = vsel %vm1352, %v1389, %v1390
      %v1392 = vrot.slane %v1390, 4
      %v1393 = vrot.slane %v348, 5
      %v1394 = vsel %vm1352, %v1392, %v1393
      %v1395 = vrot.slane %v1308, 5
      %v1396 = vrot.slane %v1395, 4
      %v1397 = vrot.slane %v323, 5
      %v1398 = vsel %vm1352, %v1396, %v1397
      %v1399 = vrot.slane %v1397, 4
      %v1400 = vrot.slane %v349, 5
      %v1401 = vsel %vm1352, %v1399, %v1400
      %v1402 = vrot.slane %v1309, 5
      %v1403 = vrot.slane %v1402, 4
      %v1404 = vrot.slane %v325, 5
      %v1405 = vsel %vm1352, %v1403, %v1404
      %v1406 = vrot.slane %v1404, 4
      %v1407 = vrot.slane %v350, 5
      %v1408 = vsel %vm1352, %v1406, %v1407
      %v1409 = vrot.slane %v1310, 5
      %v1410 = vrot.slane %v1409, 4
      %v1411 = vrot.slane %v327, 5
      %v1412 = vsel %vm1352, %v1410, %v1411
      %v1413 = vrot.slane %v1411, 4
      %v1414 = vrot.slane %v351, 5
      %v1415 = vsel %vm1352, %v1413, %v1414
      %v1416 = vrot.slane %v1311, 5
      %v1417 = vrot.slane %v1416, 4
      %v1418 = vrot.slane %v329, 5
      %v1419 = vsel %vm1352, %v1417, %v1418
      %v1420 = vrot.slane %v1418, 4
      %v1421 = vrot.slane %v352, 5
      %v1422 = vsel %vm1352, %v1420, %v1421
      %v1423 = vrot.slane %v1312, 5
      %v1424 = vrot.slane %v1423, 4
      %v1425 = vrot.slane %v331, 5
      %v1426 = vsel %vm1352, %v1424, %v1425
      %v1427 = vrot.slane %v1425, 4
      %v1428 = vrot.slane %v353, 5
      %v1429 = vsel %vm1352, %v1427, %v1428
      %v1430 = vrot.slane %v1313, 5
      %v1431 = vrot.slane %v1430, 4
      %v1432 = vrot.slane %v333, 5
      %v1433 = vsel %vm1352, %v1431, %v1432
      %v1434 = vrot.slane %v1432, 4
      %v1435 = vrot.slane %v354, 5
      %v1436 = vsel %vm1352, %v1434, %v1435
      %v1437 = vrot.slane %v1314, 5
      %v1438 = vrot.slane %v1437, 4
      %v1439 = vrot.slane %v335, 5
      %v1440 = vsel %vm1352, %v1438, %v1439
      %v1441 = vrot.slane %v1439, 4
      %v1442 = vrot.slane %v355, 5
      %v1443 = vsel %vm1352, %v1441, %v1442
      %v1444 = vrot.slane %v1315, 5
      %v1445 = vrot.slane %v1444, 4
      %v1446 = vrot.slane %v337, 5
      %v1447 = vsel %vm1352, %v1445, %v1446
      %v1448 = vrot.slane %v1446, 4
      %v1449 = vrot.slane %v356, 5
      %v1450 = vsel %vm1352, %v1448, %v1449
      %v1451 = vrot.slane %v1316, 5
      %v1452 = vrot.slane %v1451, 4
      %v1453 = vrot.slane %v339, 5
      %v1454 = vsel %vm1352, %v1452, %v1453
      %v1455 = vrot.slane %v1453, 4
      %v1456 = vrot.slane %v357, 5
      %v1457 = vsel %vm1352, %v1455, %v1456
      %v1458 = vrot.slane %v1317, 5
      %v1459 = vrot.slane %v1458, 4
      %v1460 = vrot.slane %v341, 5
      %v1461 = vsel %vm1352, %v1459, %v1460
      %v1462 = vrot.slane %v1460, 4
      %v1463 = vrot.slane %v358, 5
      %v1464 = vsel %vm1352, %v1462, %v1463
      %s1465 = scalar_lea.vmem %s285, 8
      %v1466 = vld [vmem:[%s1465] sm:$0xf]
      %v1467 = vunpack.c.l.b16 %v1356
      %v1468 = vunpack.c.l.b16 %v1359
      %v1469 = vunpack.c.l.b16 %v1363
      %v1470 = vunpack.c.l.b16 %v1366
      %v1471 = vunpack.c.l.b16 %v1370
      %v1472 = vunpack.c.l.b16 %v1373
      %v1473 = vunpack.c.l.b16 %v1377
      %v1474 = vunpack.c.l.b16 %v1380
      %v1475 = vunpack.c.l.b16 %v1384
      %v1476 = vunpack.c.l.b16 %v1387
      %v1477 = vunpack.c.l.b16 %v1391
      %v1478 = vunpack.c.l.b16 %v1394
      %v1479 = vunpack.c.l.b16 %v1398
      %v1480 = vunpack.c.l.b16 %v1401
      %v1481 = vunpack.c.l.b16 %v1405
      %v1482 = vunpack.c.l.b16 %v1408
      %v1483 = vunpack.c.l.b16 %v1412
      %v1484 = vunpack.c.l.b16 %v1415
      %v1485 = vunpack.c.l.b16 %v1419
      %v1486 = vunpack.c.l.b16 %v1422
      %v1487 = vunpack.c.l.b16 %v1426
      %v1488 = vunpack.c.l.b16 %v1429
      %v1489 = vunpack.c.l.b16 %v1433
      %v1490 = vunpack.c.l.b16 %v1436
      %v1491 = vunpack.c.l.b16 %v1440
      %v1492 = vunpack.c.l.b16 %v1443
      %v1493 = vunpack.c.l.b16 %v1447
      %v1494 = vunpack.c.l.b16 %v1450
      %v1495 = vunpack.c.l.b16 %v1454
      %v1496 = vunpack.c.l.b16 %v1457
      %v1497 = vunpack.c.l.b16 %v1461
      %v1498 = vunpack.c.l.b16 %v1464
      %v1499 = vpack.c.b16 %v1468, %v1467
      %v1500 = vpack.c.b16 %v1470, %v1469
      %v1501 = vpack.c.b16 %v1472, %v1471
      %v1502 = vpack.c.b16 %v1474, %v1473
      %v1503 = vpack.c.b16 %v1476, %v1475
      %v1504 = vpack.c.b16 %v1478, %v1477
      %v1505 = vpack.c.b16 %v1480, %v1479
      %v1506 = vpack.c.b16 %v1482, %v1481
      %v1507 = vpack.c.b16 %v1484, %v1483
      %v1508 = vpack.c.b16 %v1486, %v1485
      %v1509 = vpack.c.b16 %v1488, %v1487
      %v1510 = vpack.c.b16 %v1490, %v1489
      %v1511 = vpack.c.b16 %v1492, %v1491
      %v1512 = vpack.c.b16 %v1494, %v1493
      %v1513 = vpack.c.b16 %v1496, %v1495
      %v1514 = vpack.c.b16 %v1498, %v1497
      %v1516 = vsel %vm796, %v1499, 0
      %v1519 = vsel %vm796, %v1500, 0
      %v1522 = vsel %vm796, %v1501, 0
      %v1525 = vsel %vm796, %v1502, 0
      %v1528 = vsel %vm796, %v1503, 0
      %v1531 = vsel %vm796, %v1504, 0
      %v1534 = vsel %vm796, %v1505, 0
      %v1537 = vsel %vm796, %v1506, 0
      %v1540 = vsel %vm796, %v1507, 0
      %v1543 = vsel %vm796, %v1508, 0
      %v1546 = vsel %vm796, %v1509, 0
      %v1549 = vsel %vm796, %v1510, 0
      %v1552 = vsel %vm796, %v1511, 0
      %v1555 = vsel %vm796, %v1512, 0
      %v1558 = vsel %vm796, %v1513, 0
      %v1561 = vsel %vm796, %v1514, 0
      %v1564 = vsel %vm845, %v1466, 0
      %1566 = vmatprep.subr.bf16.mxu0 0
      %1567 = vmatpush1.bf16.msra.mxu0 %v1564
      %1568 = vmatprep.subr.bf16.mxu0 0
      %1569 = vmatpush1.bf16.msra.mxu0 0
      %1570 = vmatprep.subr.bf16.mxu0 0
      %1571 = vmatpush1.bf16.msra.mxu0 0
      %1572 = vmatprep.subr.bf16.mxu0 0
      %1573 = vmatpush1.bf16.msra.mxu0 0
      %1574 = vmatprep.subr.bf16.mxu0 0
      %1575 = vmatpush1.bf16.msra.mxu0 0
      %1576 = vmatprep.subr.bf16.mxu0 0
      %1577 = vmatpush1.bf16.msra.mxu0 0
      %1578 = vmatprep.subr.bf16.mxu0 0
      %1579 = vmatpush1.bf16.msra.mxu0 0
      %1580 = vmatprep.subr.bf16.mxu0 0
      %1581 = vmatpush1.bf16.msra.mxu0 0
      %1582 = vmatprep.subr.bf16.mxu0 0
      %1583 = vmatpush1.bf16.msra.mxu0 0
      %1584 = vmatprep.subr.bf16.mxu0 0
      %1585 = vmatpush1.bf16.msra.mxu0 0
      %1586 = vmatprep.subr.bf16.mxu0 0
      %1587 = vmatpush1.bf16.msra.mxu0 0
      %1588 = vmatprep.subr.bf16.mxu0 0
      %1589 = vmatpush1.bf16.msra.mxu0 0
      %1590 = vmatprep.subr.bf16.mxu0 0
      %1591 = vmatpush1.bf16.msra.mxu0 0
      %1592 = vmatprep.subr.bf16.mxu0 0
      %1593 = vmatpush1.bf16.msra.mxu0 0
      %1594 = vmatprep.subr.bf16.mxu0 0
      %1595 = vmatpush1.bf16.msra.mxu0 0
      %1596 = vmatprep.subr.bf16.mxu0 0
      %1597 = vmatpush1.bf16.msra.mxu0 0
      %1598 = vmatprep.mubr.bf16.mxu0 0
      %1599 = vmatmul.mubr.bf16.gmra.mrb[0].mxu0 %v1516
      %v1600 = vpop.f32.mrb[0].mxu0
      %v1601 = vadd.f32 0.0, %v1600
      %v1602 = vpop.f32.mrb[0].mxu0
      %v1603 = vpop.f32.mrb[0].mxu0
      %v1604 = vadd.f32 0.0, %v1603
      %v1605 = vpop.f32.mrb[0].mxu0
      %1606 = vmatprep.mubr.bf16.mxu0 0
      %1607 = vmatmul.mubr.bf16.gmra.mrb[0].mxu0 %v1519
      %v1608 = vpop.f32.mrb[0].mxu0
      %v1609 = vadd.f32 0.0, %v1608
      %v1610 = vpop.f32.mrb[0].mxu0
      %v1611 = vpop.f32.mrb[0].mxu0
      %v1612 = vadd.f32 0.0, %v1611
      %v1613 = vpop.f32.mrb[0].mxu0
      %1614 = vmatprep.mubr.bf16.mxu0 0
      %1615 = vmatmul.mubr.bf16.gmra.mrb[0].mxu0 %v1522
      %v1616 = vpop.f32.mrb[0].mxu0
      %v1617 = vadd.f32 0.0, %v1616
      %v1618 = vpop.f32.mrb[0].mxu0
      %v1619 = vpop.f32.mrb[0].mxu0
      %v1620 = vadd.f32 0.0, %v1619
      %v1621 = vpop.f32.mrb[0].mxu0
      %1622 = vmatprep.mubr.bf16.mxu0 0
      %1623 = vmatmul.mubr.bf16.gmra.mrb[0].mxu0 %v1525
      %v1624 = vpop.f32.mrb[0].mxu0
      %v1625 = vadd.f32 0.0, %v1624
      %v1626 = vpop.f32.mrb[0].mxu0
      %v1627 = vpop.f32.mrb[0].mxu0
      %v1628 = vadd.f32 0.0, %v1627
      %v1629 = vpop.f32.mrb[0].mxu0
      %1630 = vmatprep.mubr.bf16.mxu0 0
      %1631 = vmatmul.mubr.bf16.gmra.mrb[0].mxu0 %v1528
      %v1632 = vpop.f32.mrb[0].mxu0
      %v1633 = vadd.f32 0.0, %v1632
      %v1634 = vpop.f32.mrb[0].mxu0
      %v1635 = vpop.f32.mrb[0].mxu0
      %v1636 = vadd.f32 0.0, %v1635
      %v1637 = vpop.f32.mrb[0].mxu0
      %1638 = vmatprep.mubr.bf16.mxu0 0
      %1639 = vmatmul.mubr.bf16.gmra.mrb[0].mxu0 %v1531
      %v1640 = vpop.f32.mrb[0].mxu0
      %v1641 = vadd.f32 0.0, %v1640
      %v1642 = vpop.f32.mrb[0].mxu0
      %v1643 = vpop.f32.mrb[0].mxu0
      %v1644 = vadd.f32 0.0, %v1643
      %v1645 = vpop.f32.mrb[0].mxu0
      %1646 = vmatprep.mubr.bf16.mxu0 0
      %1647 = vmatmul.mubr.bf16.gmra.mrb[0].mxu0 %v1534
      %v1648 = vpop.f32.mrb[0].mxu0
      %v1649 = vadd.f32 0.0, %v1648
      %v1650 = vpop.f32.mrb[0].mxu0
      %v1651 = vpop.f32.mrb[0].mxu0
      %v1652 = vadd.f32 0.0, %v1651
      %v1653 = vpop.f32.mrb[0].mxu0
      %1654 = vmatprep.mubr.bf16.mxu0 0
      %1655 = vmatmul.mubr.bf16.gmra.mrb[0].mxu0 %v1537
      %v1656 = vpop.f32.mrb[0].mxu0
      %v1657 = vadd.f32 0.0, %v1656
      %v1658 = vpop.f32.mrb[0].mxu0
      %v1659 = vpop.f32.mrb[0].mxu0
      %v1660 = vadd.f32 0.0, %v1659
      %v1661 = vpop.f32.mrb[0].mxu0
      %1662 = vmatprep.mubr.bf16.mxu0 0
      %1663 = vmatmul.mubr.bf16.gmra.mrb[0].mxu0 %v1540
      %v1664 = vpop.f32.mrb[0].mxu0
      %v1665 = vadd.f32 0.0, %v1664
      %v1666 = vpop.f32.mrb[0].mxu0
      %v1667 = vpop.f32.mrb[0].mxu0
      %v1668 = vadd.f32 0.0, %v1667
      %v1669 = vpop.f32.mrb[0].mxu0
      %1670 = vmatprep.mubr.bf16.mxu0 0
      %1671 = vmatmul.mubr.bf16.gmra.mrb[0].mxu0 %v1543
      %v1672 = vpop.f32.mrb[0].mxu0
      %v1673 = vadd.f32 0.0, %v1672
      %v1674 = vpop.f32.mrb[0].mxu0
      %v1675 = vpop.f32.mrb[0].mxu0
      %v1676 = vadd.f32 0.0, %v1675
      %v1677 = vpop.f32.mrb[0].mxu0
      %1678 = vmatprep.mubr.bf16.mxu0 0
      %1679 = vmatmul.mubr.bf16.gmra.mrb[0].mxu0 %v1546
      %v1680 = vpop.f32.mrb[0].mxu0
      %v1681 = vadd.f32 0.0, %v1680
      %v1682 = vpop.f32.mrb[0].mxu0
      %v1683 = vpop.f32.mrb[0].mxu0
      %v1684 = vadd.f32 0.0, %v1683
      %v1685 = vpop.f32.mrb[0].mxu0
      %1686 = vmatprep.mubr.bf16.mxu0 0
      %1687 = vmatmul.mubr.bf16.gmra.mrb[0].mxu0 %v1549
      %v1688 = vpop.f32.mrb[0].mxu0
      %v1689 = vadd.f32 0.0, %v1688
      %v1690 = vpop.f32.mrb[0].mxu0
      %v1691 = vpop.f32.mrb[0].mxu0
      %v1692 = vadd.f32 0.0, %v1691
      %v1693 = vpop.f32.mrb[0].mxu0
      %1694 = vmatprep.mubr.bf16.mxu0 0
      %1695 = vmatmul.mubr.bf16.gmra.mrb[0].mxu0 %v1552
      %v1696 = vpop.f32.mrb[0].mxu0
      %v1697 = vadd.f32 0.0, %v1696
      %v1698 = vpop.f32.mrb[0].mxu0
      %v1699 = vpop.f32.mrb[0].mxu0
      %v1700 = vadd.f32 0.0, %v1699
      %v1701 = vpop.f32.mrb[0].mxu0
      %1702 = vmatprep.mubr.bf16.mxu0 0
      %1703 = vmatmul.mubr.bf16.gmra.mrb[0].mxu0 %v1555
      %v1704 = vpop.f32.mrb[0].mxu0
      %v1705 = vadd.f32 0.0, %v1704
      %v1706 = vpop.f32.mrb[0].mxu0
      %v1707 = vpop.f32.mrb[0].mxu0
      %v1708 = vadd.f32 0.0, %v1707
      %v1709 = vpop.f32.mrb[0].mxu0
      %1710 = vmatprep.mubr.bf16.mxu0 0
      %1711 = vmatmul.mubr.bf16.gmra.mrb[0].mxu0 %v1558
      %v1712 = vpop.f32.mrb[0].mxu0
      %v1713 = vadd.f32 0.0, %v1712
      %v1714 = vpop.f32.mrb[0].mxu0
      %v1715 = vpop.f32.mrb[0].mxu0
      %v1716 = vadd.f32 0.0, %v1715
      %v1717 = vpop.f32.mrb[0].mxu0
      %1718 = vmatprep.mubr.bf16.mxu0 0
      %1719 = vmatmul.mubr.bf16.gmra.mrb[0].mxu0 %v1561
      %v1720 = vpop.f32.mrb[0].mxu0
      %v1721 = vadd.f32 0.0, %v1720
      %v1722 = vpop.f32.mrb[0].mxu0
      %v1723 = vpop.f32.mrb[0].mxu0
      %v1724 = vadd.f32 0.0, %v1723
      %v1725 = vpop.f32.mrb[0].mxu0
      %1726 = vdwg.mxu0
      %v1727 = vadd.f32 %v1176, %v1601
      %v1728 = vadd.f32 %v1179, %v1604
      %v1729 = vadd.f32 %v1184, %v1609
      %v1730 = vadd.f32 %v1187, %v1612
      %v1731 = vadd.f32 %v1192, %v1617
      %v1732 = vadd.f32 %v1195, %v1620
      %v1733 = vadd.f32 %v1200, %v1625
      %v1734 = vadd.f32 %v1203, %v1628
      %v1735 = vadd.f32 %v1208, %v1633
      %v1736 = vadd.f32 %v1211, %v1636
      %v1737 = vadd.f32 %v1216, %v1641
      %v1738 = vadd.f32 %v1219, %v1644
      %v1739 = vadd.f32 %v1224, %v1649
      %v1740 = vadd.f32 %v1227, %v1652
      %v1741 = vadd.f32 %v1232, %v1657
      %v1742 = vadd.f32 %v1235, %v1660
      %v1743 = vadd.f32 %v1240, %v1665
      %v1744 = vadd.f32 %v1243, %v1668
      %v1745 = vadd.f32 %v1248, %v1673
      %v1746 = vadd.f32 %v1251, %v1676
      %v1747 = vadd.f32 %v1256, %v1681
      %v1748 = vadd.f32 %v1259, %v1684
      %v1749 = vadd.f32 %v1264, %v1689
      %v1750 = vadd.f32 %v1267, %v1692
      %v1751 = vadd.f32 %v1272, %v1697
      %v1752 = vadd.f32 %v1275, %v1700
      %v1753 = vadd.f32 %v1280, %v1705
      %v1754 = vadd.f32 %v1283, %v1708
      %v1755 = vadd.f32 %v1288, %v1713
      %v1756 = vadd.f32 %v1291, %v1716
      %v1757 = vadd.f32 %v1296, %v1721
      %v1758 = vadd.f32 %v1299, %v1724
      %s1759 = scalar_lea.vmem %s281, 12
      %v1760 = vld [vmem:[%s1759] sm:$0xf]
      %v1761 = vld [vmem:[%s1759 + $0x4] sm:$0xf]
      %v1762 = vld [vmem:[%s1759 + $0xc] sm:$0xf]
      %v1763 = vld [vmem:[%s1759 + $0x10] sm:$0xf]
      %v1764 = vld [vmem:[%s1759 + $0x18] sm:$0xf]
      %v1765 = vld [vmem:[%s1759 + $0x1c] sm:$0xf]
      %v1766 = vld [vmem:[%s1759 + $0x24] sm:$0xf]
      %v1767 = vld [vmem:[%s1759 + $0x28] sm:$0xf]
      %v1768 = vld [vmem:[%s1759 + $0x30] sm:$0xf]
      %v1769 = vld [vmem:[%s1759 + $0x34] sm:$0xf]
      %v1770 = vld [vmem:[%s1759 + $0x3c] sm:$0xf]
      %v1771 = vld [vmem:[%s1759 + $0x40] sm:$0xf]
      %v1772 = vld [vmem:[%s1759 + $0x48] sm:$0xf]
      %v1773 = vld [vmem:[%s1759 + $0x4c] sm:$0xf]
      %v1774 = vld [vmem:[%s1759 + $0x54] sm:$0xf]
      %v1775 = vld [vmem:[%s1759 + $0x58] sm:$0xf]
      %v1776 = vld [vmem:[%s1759 + $0x60] sm:$0xf]
      %v1777 = vld [vmem:[%s1759 + $0x64] sm:$0xf]
      %v1778 = vld [vmem:[%s1759 + $0x6c] sm:$0xf]
      %v1779 = vld [vmem:[%s1759 + $0x70] sm:$0xf]
      %v1780 = vld [vmem:[%s1759 + $0x78] sm:$0xf]
      %v1781 = vld [vmem:[%s1759 + $0x7c] sm:$0xf]
      %v1782 = vld [vmem:[%s1759 + $0x84] sm:$0xf]
      %v1783 = vld [vmem:[%s1759 + $0x88] sm:$0xf]
      %v1784 = vld [vmem:[%s1759 + $0x90] sm:$0xf]
      %v1785 = vld [vmem:[%s1759 + $0x94] sm:$0xf]
      %v1786 = vld [vmem:[%s1759 + $0x9c] sm:$0xf]
      %v1787 = vld [vmem:[%s1759 + $0xa0] sm:$0xf]
      %v1788 = vld [vmem:[%s1759 + $0xa8] sm:$0xf]
      %v1789 = vld [vmem:[%s1759 + $0xac] sm:$0xf]
      %v1790 = vld [vmem:[%s1759 + $0xb4] sm:$0xf]
      %v1791 = vld [vmem:[%s1759 + $0xb8] sm:$0xf]
      %s1792 = scalar_lea.vmem %s285, 12
      %v1793 = vld [vmem:[%s1792] sm:$0xf]
      %v1826 = vunpack.c.l.b16 %v1760
      %v1827 = vunpack.c.l.b16 %v1761
      %v1828 = vunpack.c.l.b16 %v1762
      %v1829 = vunpack.c.l.b16 %v1763
      %v1830 = vunpack.c.l.b16 %v1764
      %v1831 = vunpack.c.l.b16 %v1765
      %v1832 = vunpack.c.l.b16 %v1766
      %v1833 = vunpack.c.l.b16 %v1767
      %v1834 = vunpack.c.l.b16 %v1768
      %v1835 = vunpack.c.l.b16 %v1769
      %v1836 = vunpack.c.l.b16 %v1770
      %v1837 = vunpack.c.l.b16 %v1771
      %v1838 = vunpack.c.l.b16 %v1772
      %v1839 = vunpack.c.l.b16 %v1773
      %v1840 = vunpack.c.l.b16 %v1774
      %v1841 = vunpack.c.l.b16 %v1775
      %v1842 = vunpack.c.l.b16 %v1776
      %v1843 = vunpack.c.l.b16 %v1777
      %v1844 = vunpack.c.l.b16 %v1778
      %v1845 = vunpack.c.l.b16 %v1779
      %v1846 = vunpack.c.l.b16 %v1780
      %v1847 = vunpack.c.l.b16 %v1781
      %v1848 = vunpack.c.l.b16 %v1782
      %v1849 = vunpack.c.l.b16 %v1783
      %v1850 = vunpack.c.l.b16 %v1784
      %v1851 = vunpack.c.l.b16 %v1785
      %v1852 = vunpack.c.l.b16 %v1786
      %v1853 = vunpack.c.l.b16 %v1787
      %v1854 = vunpack.c.l.b16 %v1788
      %v1855 = vunpack.c.l.b16 %v1789
      %v1856 = vunpack.c.l.b16 %v1790
      %v1857 = vunpack.c.l.b16 %v1791
      %v1858 = vpack.c.b16 %v1827, %v1826
      %v1859 = vpack.c.b16 %v1829, %v1828
      %v1860 = vpack.c.b16 %v1831, %v1830
      %v1861 = vpack.c.b16 %v1833, %v1832
      %v1862 = vpack.c.b16 %v1835, %v1834
      %v1863 = vpack.c.b16 %v1837, %v1836
      %v1864 = vpack.c.b16 %v1839, %v1838
      %v1865 = vpack.c.b16 %v1841, %v1840
      %v1866 = vpack.c.b16 %v1843, %v1842
      %v1867 = vpack.c.b16 %v1845, %v1844
      %v1868 = vpack.c.b16 %v1847, %v1846
      %v1869 = vpack.c.b16 %v1849, %v1848
      %v1870 = vpack.c.b16 %v1851, %v1850
      %v1871 = vpack.c.b16 %v1853, %v1852
      %v1872 = vpack.c.b16 %v1855, %v1854
      %v1873 = vpack.c.b16 %v1857, %v1856
      %v1875 = vsel %vm796, %v1858, 0
      %v1878 = vsel %vm796, %v1859, 0
      %v1881 = vsel %vm796, %v1860, 0
      %v1884 = vsel %vm796, %v1861, 0
      %v1887 = vsel %vm796, %v1862, 0
      %v1890 = vsel %vm796, %v1863, 0
      %v1893 = vsel %vm796, %v1864, 0
      %v1896 = vsel %vm796, %v1865, 0
      %v1899 = vsel %vm796, %v1866, 0
      %v1902 = vsel %vm796, %v1867, 0
      %v1905 = vsel %vm796, %v1868, 0
      %v1908 = vsel %vm796, %v1869, 0
      %v1911 = vsel %vm796, %v1870, 0
      %v1914 = vsel %vm796, %v1871, 0
      %v1917 = vsel %vm796, %v1872, 0
      %v1920 = vsel %vm796, %v1873, 0
      %v1923 = vsel %vm845, %v1793, 0
      %1925 = vmatprep.subr.bf16.mxu0 0
      %1926 = vmatpush1.bf16.msra.mxu0 %v1923
      %1927 = vmatprep.subr.bf16.mxu0 0
      %1928 = vmatpush1.bf16.msra.mxu0 0
      %1929 = vmatprep.subr.bf16.mxu0 0
      %1930 = vmatpush1.bf16.msra.mxu0 0
      %1931 = vmatprep.subr.bf16.mxu0 0
      %1932 = vmatpush1.bf16.msra.mxu0 0
      %1933 = vmatprep.subr.bf16.mxu0 0
      %1934 = vmatpush1.bf16.msra.mxu0 0
      %1935 = vmatprep.subr.bf16.mxu0 0
      %1936 = vmatpush1.bf16.msra.mxu0 0
      %1937 = vmatprep.subr.bf16.mxu0 0
      %1938 = vmatpush1.bf16.msra.mxu0 0
      %1939 = vmatprep.subr.bf16.mxu0 0
      %1940 = vmatpush1.bf16.msra.mxu0 0
      %1941 = vmatprep.subr.bf16.mxu0 0
      %1942 = vmatpush1.bf16.msra.mxu0 0
      %1943 = vmatprep.subr.bf16.mxu0 0
      %1944 = vmatpush1.bf16.msra.mxu0 0
      %1945 = vmatprep.subr.bf16.mxu0 0
      %1946 = vmatpush1.bf16.msra.mxu0 0
      %1947 = vmatprep.subr.bf16.mxu0 0
      %1948 = vmatpush1.bf16.msra.mxu0 0
      %1949 = vmatprep.subr.bf16.mxu0 0
      %1950 = vmatpush1.bf16.msra.mxu0 0
      %1951 = vmatprep.subr.bf16.mxu0 0
      %1952 = vmatpush1.bf16.msra.mxu0 0
      %1953 = vmatprep.subr.bf16.mxu0 0
      %1954 = vmatpush1.bf16.msra.mxu0 0
      %1955 = vmatprep.subr.bf16.mxu0 0
      %1956 = vmatpush1.bf16.msra.mxu0 0
      %1957 = vmatprep.mubr.bf16.mxu0 0
      %1958 = vmatmul.mubr.bf16.gmra.mrb[0].mxu0 %v1875
      %v1959 = vpop.f32.mrb[0].mxu0
      %v1960 = vadd.f32 0.0, %v1959
      %v1961 = vpop.f32.mrb[0].mxu0
      %v1962 = vpop.f32.mrb[0].mxu0
      %v1963 = vadd.f32 0.0, %v1962
      %v1964 = vpop.f32.mrb[0].mxu0
      %1965 = vmatprep.mubr.bf16.mxu0 0
      %1966 = vmatmul.mubr.bf16.gmra.mrb[0].mxu0 %v1878
      %v1967 = vpop.f32.mrb[0].mxu0
      %v1968 = vadd.f32 0.0, %v1967
      %v1969 = vpop.f32.mrb[0].mxu0
      %v1970 = vpop.f32.mrb[0].mxu0
      %v1971 = vadd.f32 0.0, %v1970
      %v1972 = vpop.f32.mrb[0].mxu0
      %1973 = vmatprep.mubr.bf16.mxu0 0
      %1974 = vmatmul.mubr.bf16.gmra.mrb[0].mxu0 %v1881
      %v1975 = vpop.f32.mrb[0].mxu0
      %v1976 = vadd.f32 0.0, %v1975
      %v1977 = vpop.f32.mrb[0].mxu0
      %v1978 = vpop.f32.mrb[0].mxu0
      %v1979 = vadd.f32 0.0, %v1978
      %v1980 = vpop.f32.mrb[0].mxu0
      %1981 = vmatprep.mubr.bf16.mxu0 0
      %1982 = vmatmul.mubr.bf16.gmra.mrb[0].mxu0 %v1884
      %v1983 = vpop.f32.mrb[0].mxu0
      %v1984 = vadd.f32 0.0, %v1983
      %v1985 = vpop.f32.mrb[0].mxu0
      %v1986 = vpop.f32.mrb[0].mxu0
      %v1987 = vadd.f32 0.0, %v1986
      %v1988 = vpop.f32.mrb[0].mxu0
      %1989 = vmatprep.mubr.bf16.mxu0 0
      %1990 = vmatmul.mubr.bf16.gmra.mrb[0].mxu0 %v1887
      %v1991 = vpop.f32.mrb[0].mxu0
      %v1992 = vadd.f32 0.0, %v1991
      %v1993 = vpop.f32.mrb[0].mxu0
      %v1994 = vpop.f32.mrb[0].mxu0
      %v1995 = vadd.f32 0.0, %v1994
      %v1996 = vpop.f32.mrb[0].mxu0
      %1997 = vmatprep.mubr.bf16.mxu0 0
      %1998 = vmatmul.mubr.bf16.gmra.mrb[0].mxu0 %v1890
      %v1999 = vpop.f32.mrb[0].mxu0
      %v2000 = vadd.f32 0.0, %v1999
      %v2001 = vpop.f32.mrb[0].mxu0
      %v2002 = vpop.f32.mrb[0].mxu0
      %v2003 = vadd.f32 0.0, %v2002
      %v2004 = vpop.f32.mrb[0].mxu0
      %2005 = vmatprep.mubr.bf16.mxu0 0
      %2006 = vmatmul.mubr.bf16.gmra.mrb[0].mxu0 %v1893
      %v2007 = vpop.f32.mrb[0].mxu0
      %v2008 = vadd.f32 0.0, %v2007
      %v2009 = vpop.f32.mrb[0].mxu0
      %v2010 = vpop.f32.mrb[0].mxu0
      %v2011 = vadd.f32 0.0, %v2010
      %v2012 = vpop.f32.mrb[0].mxu0
      %2013 = vmatprep.mubr.bf16.mxu0 0
      %2014 = vmatmul.mubr.bf16.gmra.mrb[0].mxu0 %v1896
      %v2015 = vpop.f32.mrb[0].mxu0
      %v2016 = vadd.f32 0.0, %v2015
      %v2017 = vpop.f32.mrb[0].mxu0
      %v2018 = vpop.f32.mrb[0].mxu0
      %v2019 = vadd.f32 0.0, %v2018
      %v2020 = vpop.f32.mrb[0].mxu0
      %2021 = vmatprep.mubr.bf16.mxu0 0
      %2022 = vmatmul.mubr.bf16.gmra.mrb[0].mxu0 %v1899
      %v2023 = vpop.f32.mrb[0].mxu0
      %v2024 = vadd.f32 0.0, %v2023
      %v2025 = vpop.f32.mrb[0].mxu0
      %v2026 = vpop.f32.mrb[0].mxu0
      %v2027 = vadd.f32 0.0, %v2026
      %v2028 = vpop.f32.mrb[0].mxu0
      %2029 = vmatprep.mubr.bf16.mxu0 0
      %2030 = vmatmul.mubr.bf16.gmra.mrb[0].mxu0 %v1902
      %v2031 = vpop.f32.mrb[0].mxu0
      %v2032 = vadd.f32 0.0, %v2031
      %v2033 = vpop.f32.mrb[0].mxu0
      %v2034 = vpop.f32.mrb[0].mxu0
      %v2035 = vadd.f32 0.0, %v2034
      %v2036 = vpop.f32.mrb[0].mxu0
      %2037 = vmatprep.mubr.bf16.mxu0 0
      %2038 = vmatmul.mubr.bf16.gmra.mrb[0].mxu0 %v1905
      %v2039 = vpop.f32.mrb[0].mxu0
      %v2040 = vadd.f32 0.0, %v2039
      %v2041 = vpop.f32.mrb[0].mxu0
      %v2042 = vpop.f32.mrb[0].mxu0
      %v2043 = vadd.f32 0.0, %v2042
      %v2044 = vpop.f32.mrb[0].mxu0
      %2045 = vmatprep.mubr.bf16.mxu0 0
      %2046 = vmatmul.mubr.bf16.gmra.mrb[0].mxu0 %v1908
      %v2047 = vpop.f32.mrb[0].mxu0
      %v2048 = vadd.f32 0.0, %v2047
      %v2049 = vpop.f32.mrb[0].mxu0
      %v2050 = vpop.f32.mrb[0].mxu0
      %v2051 = vadd.f32 0.0, %v2050
      %v2052 = vpop.f32.mrb[0].mxu0
      %2053 = vmatprep.mubr.bf16.mxu0 0
      %2054 = vmatmul.mubr.bf16.gmra.mrb[0].mxu0 %v1911
      %v2055 = vpop.f32.mrb[0].mxu0
      %v2056 = vadd.f32 0.0, %v2055
      %v2057 = vpop.f32.mrb[0].mxu0
      %v2058 = vpop.f32.mrb[0].mxu0
      %v2059 = vadd.f32 0.0, %v2058
      %v2060 = vpop.f32.mrb[0].mxu0
      %2061 = vmatprep.mubr.bf16.mxu0 0
      %2062 = vmatmul.mubr.bf16.gmra.mrb[0].mxu0 %v1914
      %v2063 = vpop.f32.mrb[0].mxu0
      %v2064 = vadd.f32 0.0, %v2063
      %v2065 = vpop.f32.mrb[0].mxu0
      %v2066 = vpop.f32.mrb[0].mxu0
      %v2067 = vadd.f32 0.0, %v2066
      %v2068 = vpop.f32.mrb[0].mxu0
      %2069 = vmatprep.mubr.bf16.mxu0 0
      %2070 = vmatmul.mubr.bf16.gmra.mrb[0].mxu0 %v1917
      %v2071 = vpop.f32.mrb[0].mxu0
      %v2072 = vadd.f32 0.0, %v2071
      %v2073 = vpop.f32.mrb[0].mxu0
      %v2074 = vpop.f32.mrb[0].mxu0
      %v2075 = vadd.f32 0.0, %v2074
      %v2076 = vpop.f32.mrb[0].mxu0
      %2077 = vmatprep.mubr.bf16.mxu0 0
      %2078 = vmatmul.mubr.bf16.gmra.mrb[0].mxu0 %v1920
      %v2079 = vpop.f32.mrb[0].mxu0
      %v2080 = vadd.f32 0.0, %v2079
      %v2081 = vpop.f32.mrb[0].mxu0
      %v2082 = vpop.f32.mrb[0].mxu0
      %v2083 = vadd.f32 0.0, %v2082
      %v2084 = vpop.f32.mrb[0].mxu0
      %2085 = vdwg.mxu0
      %v2086 = vadd.f32 %v1727, %v1960
      %v2087 = vadd.f32 %v1728, %v1963
      %v2088 = vadd.f32 %v1729, %v1968
      %v2089 = vadd.f32 %v1730, %v1971
      %v2090 = vadd.f32 %v1731, %v1976
      %v2091 = vadd.f32 %v1732, %v1979
      %v2092 = vadd.f32 %v1733, %v1984
      %v2093 = vadd.f32 %v1734, %v1987
      %v2094 = vadd.f32 %v1735, %v1992
      %v2095 = vadd.f32 %v1736, %v1995
      %v2096 = vadd.f32 %v1737, %v2000
      %v2097 = vadd.f32 %v1738, %v2003
      %v2098 = vadd.f32 %v1739, %v2008
      %v2099 = vadd.f32 %v1740, %v2011
      %v2100 = vadd.f32 %v1741, %v2016
      %v2101 = vadd.f32 %v1742, %v2019
      %v2102 = vadd.f32 %v1743, %v2024
      %v2103 = vadd.f32 %v1744, %v2027
      %v2104 = vadd.f32 %v1745, %v2032
      %v2105 = vadd.f32 %v1746, %v2035
      %v2106 = vadd.f32 %v1747, %v2040
      %v2107 = vadd.f32 %v1748, %v2043
      %v2108 = vadd.f32 %v1749, %v2048
      %v2109 = vadd.f32 %v1750, %v2051
      %v2110 = vadd.f32 %v1751, %v2056
      %v2111 = vadd.f32 %v1752, %v2059
      %v2112 = vadd.f32 %v1753, %v2064
      %v2113 = vadd.f32 %v1754, %v2067
      %v2114 = vadd.f32 %v1755, %v2072
      %v2115 = vadd.f32 %v1756, %v2075
      %v2116 = vadd.f32 %v1757, %v2080
      %v2117 = vadd.f32 %v1758, %v2083
      %v2118 = vld [vmem:[%s1759] sm:$0xf]
      %v2119 = vld [vmem:[%s1759 + $0x4] sm:$0xf]
      %v2120 = vld [vmem:[%s1759 + $0x8] sm:$0x1]
      %v2121 = vld [vmem:[%s1759 + $0xc] sm:$0xf]
      %v2122 = vld [vmem:[%s1759 + $0x10] sm:$0xf]
      %v2123 = vld [vmem:[%s1759 + $0x14] sm:$0x1]
      %v2124 = vld [vmem:[%s1759 + $0x18] sm:$0xf]
      %v2125 = vld [vmem:[%s1759 + $0x1c] sm:$0xf]
      %v2126 = vld [vmem:[%s1759 + $0x20] sm:$0x1]
      %v2127 = vld [vmem:[%s1759 + $0x24] sm:$0xf]
      %v2128 = vld [vmem:[%s1759 + $0x28] sm:$0xf]
      %v2129 = vld [vmem:[%s1759 + $0x2c] sm:$0x1]
      %v2130 = vld [vmem:[%s1759 + $0x30] sm:$0xf]
      %v2131 = vld [vmem:[%s1759 + $0x34] sm:$0xf]
      %v2132 = vld [vmem:[%s1759 + $0x38] sm:$0x1]
      %v2133 = vld [vmem:[%s1759 + $0x3c] sm:$0xf]
      %v2134 = vld [vmem:[%s1759 + $0x40] sm:$0xf]
      %v2135 = vld [vmem:[%s1759 + $0x44] sm:$0x1]
      %v2136 = vld [vmem:[%s1759 + $0x48] sm:$0xf]
      %v2137 = vld [vmem:[%s1759 + $0x4c] sm:$0xf]
      %v2138 = vld [vmem:[%s1759 + $0x50] sm:$0x1]
      %v2139 = vld [vmem:[%s1759 + $0x54] sm:$0xf]
      %v2140 = vld [vmem:[%s1759 + $0x58] sm:$0xf]
      %v2141 = vld [vmem:[%s1759 + $0x5c] sm:$0x1]
      %v2142 = vld [vmem:[%s1759 + $0x60] sm:$0xf]
      %v2143 = vld [vmem:[%s1759 + $0x64] sm:$0xf]
      %v2144 = vld [vmem:[%s1759 + $0x68] sm:$0x1]
      %v2145 = vld [vmem:[%s1759 + $0x6c] sm:$0xf]
      %v2146 = vld [vmem:[%s1759 + $0x70] sm:$0xf]
      %v2147 = vld [vmem:[%s1759 + $0x74] sm:$0x1]
      %v2148 = vld [vmem:[%s1759 + $0x78] sm:$0xf]
      %v2149 = vld [vmem:[%s1759 + $0x7c] sm:$0xf]
      %v2150 = vld [vmem:[%s1759 + $0x80] sm:$0x1]
      %v2151 = vld [vmem:[%s1759 + $0x84] sm:$0xf]
      %v2152 = vld [vmem:[%s1759 + $0x88] sm:$0xf]
      %v2153 = vld [vmem:[%s1759 + $0x8c] sm:$0x1]
      %v2154 = vld [vmem:[%s1759 + $0x90] sm:$0xf]
      %v2155 = vld [vmem:[%s1759 + $0x94] sm:$0xf]
      %v2156 = vld [vmem:[%s1759 + $0x98] sm:$0x1]
      %v2157 = vld [vmem:[%s1759 + $0x9c] sm:$0xf]
      %v2158 = vld [vmem:[%s1759 + $0xa0] sm:$0xf]
      %v2159 = vld [vmem:[%s1759 + $0xa4] sm:$0x1]
      %v2160 = vld [vmem:[%s1759 + $0xa8] sm:$0xf]
      %v2161 = vld [vmem:[%s1759 + $0xac] sm:$0xf]
      %v2162 = vld [vmem:[%s1759 + $0xb0] sm:$0x1]
      %v2163 = vld [vmem:[%s1759 + $0xb4] sm:$0xf]
      %v2164 = vld [vmem:[%s1759 + $0xb8] sm:$0xf]
      %v2165 = vld [vmem:[%s1759 + $0xbc] sm:$0x1]
      %v2167 = vshrl.u32 %v2118, 16
      %v2169 = vrot.slane %v2167, 4
      %v2170 = vshll.u32 %v2118, 16
      %v2172 = vrot.slane %v2170, 5
      %v2173 = vor.u32 %v2169, %v2172
      %v2174 = vrot.slane %v2173, 4
      %v2176 = vshll.u32 %v2119, 16
      %v2178 = vrot.slane %v2176, 5
      %v2179 = vsel %vm361, %v2174, %v2178
      %v2180 = vshrl.u32 %v2119, 16
      %v2182 = vrot.slane %v2180, 4
      %v2183 = vor.u32 %v2182, %v2178
      %v2184 = vrot.slane %v2183, 4
      %v2186 = vshll.u32 %v2120, 16
      %v2188 = vrot.slane %v2186, 5
      %v2189 = vsel %vm361, %v2184, %v2188
      %v2191 = vshrl.u32 %v2121, 16
      %v2193 = vrot.slane %v2191, 4
      %v2194 = vshll.u32 %v2121, 16
      %v2196 = vrot.slane %v2194, 5
      %v2197 = vor.u32 %v2193, %v2196
      %v2198 = vrot.slane %v2197, 4
      %v2200 = vshll.u32 %v2122, 16
      %v2202 = vrot.slane %v2200, 5
      %v2203 = vsel %vm361, %v2198, %v2202
      %v2204 = vshrl.u32 %v2122, 16
      %v2206 = vrot.slane %v2204, 4
      %v2207 = vor.u32 %v2206, %v2202
      %v2208 = vrot.slane %v2207, 4
      %v2210 = vshll.u32 %v2123, 16
      %v2212 = vrot.slane %v2210, 5
      %v2213 = vsel %vm361, %v2208, %v2212
      %v2215 = vshrl.u32 %v2124, 16
      %v2217 = vrot.slane %v2215, 4
      %v2218 = vshll.u32 %v2124, 16
      %v2220 = vrot.slane %v2218, 5
      %v2221 = vor.u32 %v2217, %v2220
      %v2222 = vrot.slane %v2221, 4
      %v2224 = vshll.u32 %v2125, 16
      %v2226 = vrot.slane %v2224, 5
      %v2227 = vsel %vm361, %v2222, %v2226
      %v2228 = vshrl.u32 %v2125, 16
      %v2230 = vrot.slane %v2228, 4
      %v2231 = vor.u32 %v2230, %v2226
      %v2232 = vrot.slane %v2231, 4
      %v2234 = vshll.u32 %v2126, 16
      %v2236 = vrot.slane %v2234, 5
      %v2237 = vsel %vm361, %v2232, %v2236
      %v2239 = vshrl.u32 %v2127, 16
      %v2241 = vrot.slane %v2239, 4
      %v2242 = vshll.u32 %v2127, 16
      %v2244 = vrot.slane %v2242, 5
      %v2245 = vor.u32 %v2241, %v2244
      %v2246 = vrot.slane %v2245, 4
      %v2248 = vshll.u32 %v2128, 16
      %v2250 = vrot.slane %v2248, 5
      %v2251 = vsel %vm361, %v2246, %v2250
      %v2252 = vshrl.u32 %v2128, 16
      %v2254 = vrot.slane %v2252, 4
      %v2255 = vor.u32 %v2254, %v2250
      %v2256 = vrot.slane %v2255, 4
      %v2258 = vshll.u32 %v2129, 16
      %v2260 = vrot.slane %v2258, 5
      %v2261 = vsel %vm361, %v2256, %v2260
      %v2263 = vshrl.u32 %v2130, 16
      %v2265 = vrot.slane %v2263, 4
      %v2266 = vshll.u32 %v2130, 16
      %v2268 = vrot.slane %v2266, 5
      %v2269 = vor.u32 %v2265, %v2268
      %v2270 = vrot.slane %v2269, 4
      %v2272 = vshll.u32 %v2131, 16
      %v2274 = vrot.slane %v2272, 5
      %v2275 = vsel %vm361, %v2270, %v2274
      %v2276 = vshrl.u32 %v2131, 16
      %v2278 = vrot.slane %v2276, 4
      %v2279 = vor.u32 %v2278, %v2274
      %v2280 = vrot.slane %v2279, 4
      %v2282 = vshll.u32 %v2132, 16
      %v2284 = vrot.slane %v2282, 5
      %v2285 = vsel %vm361, %v2280, %v2284
      %v2287 = vshrl.u32 %v2133, 16
      %v2289 = vrot.slane %v2287, 4
      %v2290 = vshll.u32 %v2133, 16
      %v2292 = vrot.slane %v2290, 5
      %v2293 = vor.u32 %v2289, %v2292
      %v2294 = vrot.slane %v2293, 4
      %v2296 = vshll.u32 %v2134, 16
      %v2298 = vrot.slane %v2296, 5
      %v2299 = vsel %vm361, %v2294, %v2298
      %v2300 = vshrl.u32 %v2134, 16
      %v2302 = vrot.slane %v2300, 4
      %v2303 = vor.u32 %v2302, %v2298
      %v2304 = vrot.slane %v2303, 4
      %v2306 = vshll.u32 %v2135, 16
      %v2308 = vrot.slane %v2306, 5
      %v2309 = vsel %vm361, %v2304, %v2308
      %v2311 = vshrl.u32 %v2136, 16
      %v2313 = vrot.slane %v2311, 4
      %v2314 = vshll.u32 %v2136, 16
      %v2316 = vrot.slane %v2314, 5
      %v2317 = vor.u32 %v2313, %v2316
      %v2318 = vrot.slane %v2317, 4
      %v2320 = vshll.u32 %v2137, 16
      %v2322 = vrot.slane %v2320, 5
      %v2323 = vsel %vm361, %v2318, %v2322
      %v2324 = vshrl.u32 %v2137, 16
      %v2326 = vrot.slane %v2324, 4
      %v2327 = vor.u32 %v2326, %v2322
      %v2328 = vrot.slane %v2327, 4
      %v2330 = vshll.u32 %v2138, 16
      %v2332 = vrot.slane %v2330, 5
      %v2333 = vsel %vm361, %v2328, %v2332
      %v2335 = vshrl.u32 %v2139, 16
      %v2337 = vrot.slane %v2335, 4
      %v2338 = vshll.u32 %v2139, 16
      %v2340 = vrot.slane %v2338, 5
      %v2341 = vor.u32 %v2337, %v2340
      %v2342 = vrot.slane %v2341, 4
      %v2344 = vshll.u32 %v2140, 16
      %v2346 = vrot.slane %v2344, 5
      %v2347 = vsel %vm361, %v2342, %v2346
      %v2348 = vshrl.u32 %v2140, 16
      %v2350 = vrot.slane %v2348, 4
      %v2351 = vor.u32 %v2350, %v2346
      %v2352 = vrot.slane %v2351, 4
      %v2354 = vshll.u32 %v2141, 16
      %v2356 = vrot.slane %v2354, 5
      %v2357 = vsel %vm361, %v2352, %v2356
      %v2359 = vshrl.u32 %v2142, 16
      %v2361 = vrot.slane %v2359, 4
      %v2362 = vshll.u32 %v2142, 16
      %v2364 = vrot.slane %v2362, 5
      %v2365 = vor.u32 %v2361, %v2364
      %v2366 = vrot.slane %v2365, 4
      %v2368 = vshll.u32 %v2143, 16
      %v2370 = vrot.slane %v2368, 5
      %v2371 = vsel %vm361, %v2366, %v2370
      %v2372 = vshrl.u32 %v2143, 16
      %v2374 = vrot.slane %v2372, 4
      %v2375 = vor.u32 %v2374, %v2370
      %v2376 = vrot.slane %v2375, 4
      %v2378 = vshll.u32 %v2144, 16
      %v2380 = vrot.slane %v2378, 5
      %v2381 = vsel %vm361, %v2376, %v2380
      %v2383 = vshrl.u32 %v2145, 16
      %v2385 = vrot.slane %v2383, 4
      %v2386 = vshll.u32 %v2145, 16
      %v2388 = vrot.slane %v2386, 5
      %v2389 = vor.u32 %v2385, %v2388
      %v2390 = vrot.slane %v2389, 4
      %v2392 = vshll.u32 %v2146, 16
      %v2394 = vrot.slane %v2392, 5
      %v2395 = vsel %vm361, %v2390, %v2394
      %v2396 = vshrl.u32 %v2146, 16
      %v2398 = vrot.slane %v2396, 4
      %v2399 = vor.u32 %v2398, %v2394
      %v2400 = vrot.slane %v2399, 4
      %v2402 = vshll.u32 %v2147, 16
      %v2404 = vrot.slane %v2402, 5
      %v2405 = vsel %vm361, %v2400, %v2404
      %v2407 = vshrl.u32 %v2148, 16
      %v2409 = vrot.slane %v2407, 4
      %v2410 = vshll.u32 %v2148, 16
      %v2412 = vrot.slane %v2410, 5
      %v2413 = vor.u32 %v2409, %v2412
      %v2414 = vrot.slane %v2413, 4
      %v2416 = vshll.u32 %v2149, 16
      %v2418 = vrot.slane %v2416, 5
      %v2419 = vsel %vm361, %v2414, %v2418
      %v2420 = vshrl.u32 %v2149, 16
      %v2422 = vrot.slane %v2420, 4
      %v2423 = vor.u32 %v2422, %v2418
      %v2424 = vrot.slane %v2423, 4
      %v2426 = vshll.u32 %v2150, 16
      %v2428 = vrot.slane %v2426, 5
      %v2429 = vsel %vm361, %v2424, %v2428
      %v2431 = vshrl.u32 %v2151, 16
      %v2433 = vrot.slane %v2431, 4
      %v2434 = vshll.u32 %v2151, 16
      %v2436 = vrot.slane %v2434, 5
      %v2437 = vor.u32 %v2433, %v2436
      %v2438 = vrot.slane %v2437, 4
      %v2440 = vshll.u32 %v2152, 16
      %v2442 = vrot.slane %v2440, 5
      %v2443 = vsel %vm361, %v2438, %v2442
      %v2444 = vshrl.u32 %v2152, 16
      %v2446 = vrot.slane %v2444, 4
      %v2447 = vor.u32 %v2446, %v2442
      %v2448 = vrot.slane %v2447, 4
      %v2450 = vshll.u32 %v2153, 16
      %v2452 = vrot.slane %v2450, 5
      %v2453 = vsel %vm361, %v2448, %v2452
      %v2455 = vshrl.u32 %v2154, 16
      %v2457 = vrot.slane %v2455, 4
      %v2458 = vshll.u32 %v2154, 16
      %v2460 = vrot.slane %v2458, 5
      %v2461 = vor.u32 %v2457, %v2460
      %v2462 = vrot.slane %v2461, 4
      %v2464 = vshll.u32 %v2155, 16
      %v2466 = vrot.slane %v2464, 5
      %v2467 = vsel %vm361, %v2462, %v2466
      %v2468 = vshrl.u32 %v2155, 16
      %v2470 = vrot.slane %v2468, 4
      %v2471 = vor.u32 %v2470, %v2466
      %v2472 = vrot.slane %v2471, 4
      %v2474 = vshll.u32 %v2156, 16
      %v2476 = vrot.slane %v2474, 5
      %v2477 = vsel %vm361, %v2472, %v2476
      %v2479 = vshrl.u32 %v2157, 16
      %v2481 = vrot.slane %v2479, 4
      %v2482 = vshll.u32 %v2157, 16
      %v2484 = vrot.slane %v2482, 5
      %v2485 = vor.u32 %v2481, %v2484
      %v2486 = vrot.slane %v2485, 4
      %v2488 = vshll.u32 %v2158, 16
      %v2490 = vrot.slane %v2488, 5
      %v2491 = vsel %vm361, %v2486, %v2490
      %v2492 = vshrl.u32 %v2158, 16
      %v2494 = vrot.slane %v2492, 4
      %v2495 = vor.u32 %v2494, %v2490
      %v2496 = vrot.slane %v2495, 4
      %v2498 = vshll.u32 %v2159, 16
      %v2500 = vrot.slane %v2498, 5
      %v2501 = vsel %vm361, %v2496, %v2500
      %v2503 = vshrl.u32 %v2160, 16
      %v2505 = vrot.slane %v2503, 4
      %v2506 = vshll.u32 %v2160, 16
      %v2508 = vrot.slane %v2506, 5
      %v2509 = vor.u32 %v2505, %v2508
      %v2510 = vrot.slane %v2509, 4
      %v2512 = vshll.u32 %v2161, 16
      %v2514 = vrot.slane %v2512, 5
      %v2515 = vsel %vm361, %v2510, %v2514
      %v2516 = vshrl.u32 %v2161, 16
      %v2518 = vrot.slane %v2516, 4
      %v2519 = vor.u32 %v2518, %v2514
      %v2520 = vrot.slane %v2519, 4
      %v2522 = vshll.u32 %v2162, 16
      %v2524 = vrot.slane %v2522, 5
      %v2525 = vsel %vm361, %v2520, %v2524
      %v2527 = vshrl.u32 %v2163, 16
      %v2529 = vrot.slane %v2527, 4
      %v2530 = vshll.u32 %v2163, 16
      %v2532 = vrot.slane %v2530, 5
      %v2533 = vor.u32 %v2529, %v2532
      %v2534 = vrot.slane %v2533, 4
      %v2536 = vshll.u32 %v2164, 16
      %v2538 = vrot.slane %v2536, 5
      %v2539 = vsel %vm361, %v2534, %v2538
      %v2540 = vshrl.u32 %v2164, 16
      %v2542 = vrot.slane %v2540, 4
      %v2543 = vor.u32 %v2542, %v2538
      %v2544 = vrot.slane %v2543, 4
      %v2546 = vshll.u32 %v2165, 16
      %v2548 = vrot.slane %v2546, 5
      %v2549 = vsel %vm361, %v2544, %v2548
      %s2550 = scalar_lea.vmem %s285, 16
      %v2551 = vld [vmem:[%s2550] sm:$0xf]
      %v2552 = vunpack.c.l.b16 %v2179
      %v2553 = vunpack.c.l.b16 %v2189
      %v2554 = vunpack.c.l.b16 %v2203
      %v2555 = vunpack.c.l.b16 %v2213
      %v2556 = vunpack.c.l.b16 %v2227
      %v2557 = vunpack.c.l.b16 %v2237
      %v2558 = vunpack.c.l.b16 %v2251
      %v2559 = vunpack.c.l.b16 %v2261
      %v2560 = vunpack.c.l.b16 %v2275
      %v2561 = vunpack.c.l.b16 %v2285
      %v2562 = vunpack.c.l.b16 %v2299
      %v2563 = vunpack.c.l.b16 %v2309
      %v2564 = vunpack.c.l.b16 %v2323
      %v2565 = vunpack.c.l.b16 %v2333
      %v2566 = vunpack.c.l.b16 %v2347
      %v2567 = vunpack.c.l.b16 %v2357
      %v2568 = vunpack.c.l.b16 %v2371
      %v2569 = vunpack.c.l.b16 %v2381
      %v2570 = vunpack.c.l.b16 %v2395
      %v2571 = vunpack.c.l.b16 %v2405
      %v2572 = vunpack.c.l.b16 %v2419
      %v2573 = vunpack.c.l.b16 %v2429
      %v2574 = vunpack.c.l.b16 %v2443
      %v2575 = vunpack.c.l.b16 %v2453
      %v2576 = vunpack.c.l.b16 %v2467
      %v2577 = vunpack.c.l.b16 %v2477
      %v2578 = vunpack.c.l.b16 %v2491
      %v2579 = vunpack.c.l.b16 %v2501
      %v2580 = vunpack.c.l.b16 %v2515
      %v2581 = vunpack.c.l.b16 %v2525
      %v2582 = vunpack.c.l.b16 %v2539
      %v2583 = vunpack.c.l.b16 %v2549
      %v2584 = vpack.c.b16 %v2553, %v2552
      %v2585 = vpack.c.b16 %v2555, %v2554
      %v2586 = vpack.c.b16 %v2557, %v2556
      %v2587 = vpack.c.b16 %v2559, %v2558
      %v2588 = vpack.c.b16 %v2561, %v2560
      %v2589 = vpack.c.b16 %v2563, %v2562
      %v2590 = vpack.c.b16 %v2565, %v2564
      %v2591 = vpack.c.b16 %v2567, %v2566
      %v2592 = vpack.c.b16 %v2569, %v2568
      %v2593 = vpack.c.b16 %v2571, %v2570
      %v2594 = vpack.c.b16 %v2573, %v2572
      %v2595 = vpack.c.b16 %v2575, %v2574
      %v2596 = vpack.c.b16 %v2577, %v2576
      %v2597 = vpack.c.b16 %v2579, %v2578
      %v2598 = vpack.c.b16 %v2581, %v2580
      %v2599 = vpack.c.b16 %v2583, %v2582
      %v2601 = vsel %vm796, %v2584, 0
      %v2604 = vsel %vm796, %v2585, 0
      %v2607 = vsel %vm796, %v2586, 0
      %v2610 = vsel %vm796, %v2587, 0
      %v2613 = vsel %vm796, %v2588, 0
      %v2616 = vsel %vm796, %v2589, 0
      %v2619 = vsel %vm796, %v2590, 0
      %v2622 = vsel %vm796, %v2591, 0
      %v2625 = vsel %vm796, %v2592, 0
      %v2628 = vsel %vm796, %v2593, 0
      %v2631 = vsel %vm796, %v2594, 0
      %v2634 = vsel %vm796, %v2595, 0
      %v2637 = vsel %vm796, %v2596, 0
      %v2640 = vsel %vm796, %v2597, 0
      %v2643 = vsel %vm796, %v2598, 0
      %v2646 = vsel %vm796, %v2599, 0
      %v2649 = vsel %vm845, %v2551, 0
      %2651 = vmatprep.subr.bf16.mxu0 0
      %2652 = vmatpush1.bf16.msra.mxu0 %v2649
      %2653 = vmatprep.subr.bf16.mxu0 0
      %2654 = vmatpush1.bf16.msra.mxu0 0
      %2655 = vmatprep.subr.bf16.mxu0 0
      %2656 = vmatpush1.bf16.msra.mxu0 0
      %2657 = vmatprep.subr.bf16.mxu0 0
      %2658 = vmatpush1.bf16.msra.mxu0 0
      %2659 = vmatprep.subr.bf16.mxu0 0
      %2660 = vmatpush1.bf16.msra.mxu0 0
      %2661 = vmatprep.subr.bf16.mxu0 0
      %2662 = vmatpush1.bf16.msra.mxu0 0
      %2663 = vmatprep.subr.bf16.mxu0 0
      %2664 = vmatpush1.bf16.msra.mxu0 0
      %2665 = vmatprep.subr.bf16.mxu0 0
      %2666 = vmatpush1.bf16.msra.mxu0 0
      %2667 = vmatprep.subr.bf16.mxu0 0
      %2668 = vmatpush1.bf16.msra.mxu0 0
      %2669 = vmatprep.subr.bf16.mxu0 0
      %2670 = vmatpush1.bf16.msra.mxu0 0
      %2671 = vmatprep.subr.bf16.mxu0 0
      %2672 = vmatpush1.bf16.msra.mxu0 0
      %2673 = vmatprep.subr.bf16.mxu0 0
      %2674 = vmatpush1.bf16.msra.mxu0 0
      %2675 = vmatprep.subr.bf16.mxu0 0
      %2676 = vmatpush1.bf16.msra.mxu0 0
      %2677 = vmatprep.subr.bf16.mxu0 0
      %2678 = vmatpush1.bf16.msra.mxu0 0
      %2679 = vmatprep.subr.bf16.mxu0 0
      %2680 = vmatpush1.bf16.msra.mxu0 0
      %2681 = vmatprep.subr.bf16.mxu0 0
      %2682 = vmatpush1.bf16.msra.mxu0 0
      %2683 = vmatprep.mubr.bf16.mxu0 0
      %2684 = vmatmul.mubr.bf16.gmra.mrb[0].mxu0 %v2601
      %v2685 = vpop.f32.mrb[0].mxu0
      %v2686 = vadd.f32 0.0, %v2685
      %v2687 = vpop.f32.mrb[0].mxu0
      %v2688 = vpop.f32.mrb[0].mxu0
      %v2689 = vadd.f32 0.0, %v2688
      %v2690 = vpop.f32.mrb[0].mxu0
      %2691 = vmatprep.mubr.bf16.mxu0 0
      %2692 = vmatmul.mubr.bf16.gmra.mrb[0].mxu0 %v2604
      %v2693 = vpop.f32.mrb[0].mxu0
      %v2694 = vadd.f32 0.0, %v2693
      %v2695 = vpop.f32.mrb[0].mxu0
      %v2696 = vpop.f32.mrb[0].mxu0
      %v2697 = vadd.f32 0.0, %v2696
      %v2698 = vpop.f32.mrb[0].mxu0
      %2699 = vmatprep.mubr.bf16.mxu0 0
      %2700 = vmatmul.mubr.bf16.gmra.mrb[0].mxu0 %v2607
      %v2701 = vpop.f32.mrb[0].mxu0
      %v2702 = vadd.f32 0.0, %v2701
      %v2703 = vpop.f32.mrb[0].mxu0
      %v2704 = vpop.f32.mrb[0].mxu0
      %v2705 = vadd.f32 0.0, %v2704
      %v2706 = vpop.f32.mrb[0].mxu0
      %2707 = vmatprep.mubr.bf16.mxu0 0
      %2708 = vmatmul.mubr.bf16.gmra.mrb[0].mxu0 %v2610
      %v2709 = vpop.f32.mrb[0].mxu0
      %v2710 = vadd.f32 0.0, %v2709
      %v2711 = vpop.f32.mrb[0].mxu0
      %v2712 = vpop.f32.mrb[0].mxu0
      %v2713 = vadd.f32 0.0, %v2712
      %v2714 = vpop.f32.mrb[0].mxu0
      %2715 = vmatprep.mubr.bf16.mxu0 0
      %2716 = vmatmul.mubr.bf16.gmra.mrb[0].mxu0 %v2613
      %v2717 = vpop.f32.mrb[0].mxu0
      %v2718 = vadd.f32 0.0, %v2717
      %v2719 = vpop.f32.mrb[0].mxu0
      %v2720 = vpop.f32.mrb[0].mxu0
      %v2721 = vadd.f32 0.0, %v2720
      %v2722 = vpop.f32.mrb[0].mxu0
      %2723 = vmatprep.mubr.bf16.mxu0 0
      %2724 = vmatmul.mubr.bf16.gmra.mrb[0].mxu0 %v2616
      %v2725 = vpop.f32.mrb[0].mxu0
      %v2726 = vadd.f32 0.0, %v2725
      %v2727 = vpop.f32.mrb[0].mxu0
      %v2728 = vpop.f32.mrb[0].mxu0
      %v2729 = vadd.f32 0.0, %v2728
      %v2730 = vpop.f32.mrb[0].mxu0
      %2731 = vmatprep.mubr.bf16.mxu0 0
      %2732 = vmatmul.mubr.bf16.gmra.mrb[0].mxu0 %v2619
      %v2733 = vpop.f32.mrb[0].mxu0
      %v2734 = vadd.f32 0.0, %v2733
      %v2735 = vpop.f32.mrb[0].mxu0
      %v2736 = vpop.f32.mrb[0].mxu0
      %v2737 = vadd.f32 0.0, %v2736
      %v2738 = vpop.f32.mrb[0].mxu0
      %2739 = vmatprep.mubr.bf16.mxu0 0
      %2740 = vmatmul.mubr.bf16.gmra.mrb[0].mxu0 %v2622
      %v2741 = vpop.f32.mrb[0].mxu0
      %v2742 = vadd.f32 0.0, %v2741
      %v2743 = vpop.f32.mrb[0].mxu0
      %v2744 = vpop.f32.mrb[0].mxu0
      %v2745 = vadd.f32 0.0, %v2744
      %v2746 = vpop.f32.mrb[0].mxu0
      %2747 = vmatprep.mubr.bf16.mxu0 0
      %2748 = vmatmul.mubr.bf16.gmra.mrb[0].mxu0 %v2625
      %v2749 = vpop.f32.mrb[0].mxu0
      %v2750 = vadd.f32 0.0, %v2749
      %v2751 = vpop.f32.mrb[0].mxu0
      %v2752 = vpop.f32.mrb[0].mxu0
      %v2753 = vadd.f32 0.0, %v2752
      %v2754 = vpop.f32.mrb[0].mxu0
      %2755 = vmatprep.mubr.bf16.mxu0 0
      %2756 = vmatmul.mubr.bf16.gmra.mrb[0].mxu0 %v2628
      %v2757 = vpop.f32.mrb[0].mxu0
      %v2758 = vadd.f32 0.0, %v2757
      %v2759 = vpop.f32.mrb[0].mxu0
      %v2760 = vpop.f32.mrb[0].mxu0
      %v2761 = vadd.f32 0.0, %v2760
      %v2762 = vpop.f32.mrb[0].mxu0
      %2763 = vmatprep.mubr.bf16.mxu0 0
      %2764 = vmatmul.mubr.bf16.gmra.mrb[0].mxu0 %v2631
      %v2765 = vpop.f32.mrb[0].mxu0
      %v2766 = vadd.f32 0.0, %v2765
      %v2767 = vpop.f32.mrb[0].mxu0
      %v2768 = vpop.f32.mrb[0].mxu0
      %v2769 = vadd.f32 0.0, %v2768
      %v2770 = vpop.f32.mrb[0].mxu0
      %2771 = vmatprep.mubr.bf16.mxu0 0
      %2772 = vmatmul.mubr.bf16.gmra.mrb[0].mxu0 %v2634
      %v2773 = vpop.f32.mrb[0].mxu0
      %v2774 = vadd.f32 0.0, %v2773
      %v2775 = vpop.f32.mrb[0].mxu0
      %v2776 = vpop.f32.mrb[0].mxu0
      %v2777 = vadd.f32 0.0, %v2776
      %v2778 = vpop.f32.mrb[0].mxu0
      %2779 = vmatprep.mubr.bf16.mxu0 0
      %2780 = vmatmul.mubr.bf16.gmra.mrb[0].mxu0 %v2637
      %v2781 = vpop.f32.mrb[0].mxu0
      %v2782 = vadd.f32 0.0, %v2781
      %v2783 = vpop.f32.mrb[0].mxu0
      %v2784 = vpop.f32.mrb[0].mxu0
      %v2785 = vadd.f32 0.0, %v2784
      %v2786 = vpop.f32.mrb[0].mxu0
      %2787 = vmatprep.mubr.bf16.mxu0 0
      %2788 = vmatmul.mubr.bf16.gmra.mrb[0].mxu0 %v2640
      %v2789 = vpop.f32.mrb[0].mxu0
      %v2790 = vadd.f32 0.0, %v2789
      %v2791 = vpop.f32.mrb[0].mxu0
      %v2792 = vpop.f32.mrb[0].mxu0
      %v2793 = vadd.f32 0.0, %v2792
      %v2794 = vpop.f32.mrb[0].mxu0
      %2795 = vmatprep.mubr.bf16.mxu0 0
      %2796 = vmatmul.mubr.bf16.gmra.mrb[0].mxu0 %v2643
      %v2797 = vpop.f32.mrb[0].mxu0
      %v2798 = vadd.f32 0.0, %v2797
      %v2799 = vpop.f32.mrb[0].mxu0
      %v2800 = vpop.f32.mrb[0].mxu0
      %v2801 = vadd.f32 0.0, %v2800
      %v2802 = vpop.f32.mrb[0].mxu0
      %2803 = vmatprep.mubr.bf16.mxu0 0
      %2804 = vmatmul.mubr.bf16.gmra.mrb[0].mxu0 %v2646
      %v2805 = vpop.f32.mrb[0].mxu0
      %v2806 = vadd.f32 0.0, %v2805
      %v2807 = vpop.f32.mrb[0].mxu0
      %v2808 = vpop.f32.mrb[0].mxu0
      %v2809 = vadd.f32 0.0, %v2808
      %v2810 = vpop.f32.mrb[0].mxu0
      %2811 = vdwg.mxu0
      %v2812 = vadd.f32 %v2086, %v2686
      %v2813 = vadd.f32 %v2087, %v2689
      %v2814 = vadd.f32 %v2088, %v2694
      %v2815 = vadd.f32 %v2089, %v2697
      %v2816 = vadd.f32 %v2090, %v2702
      %v2817 = vadd.f32 %v2091, %v2705
      %v2818 = vadd.f32 %v2092, %v2710
      %v2819 = vadd.f32 %v2093, %v2713
      %v2820 = vadd.f32 %v2094, %v2718
      %v2821 = vadd.f32 %v2095, %v2721
      %v2822 = vadd.f32 %v2096, %v2726
      %v2823 = vadd.f32 %v2097, %v2729
      %v2824 = vadd.f32 %v2098, %v2734
      %v2825 = vadd.f32 %v2099, %v2737
      %v2826 = vadd.f32 %v2100, %v2742
      %v2827 = vadd.f32 %v2101, %v2745
      %v2828 = vadd.f32 %v2102, %v2750
      %v2829 = vadd.f32 %v2103, %v2753
      %v2830 = vadd.f32 %v2104, %v2758
      %v2831 = vadd.f32 %v2105, %v2761
      %v2832 = vadd.f32 %v2106, %v2766
      %v2833 = vadd.f32 %v2107, %v2769
      %v2834 = vadd.f32 %v2108, %v2774
      %v2835 = vadd.f32 %v2109, %v2777
      %v2836 = vadd.f32 %v2110, %v2782
      %v2837 = vadd.f32 %v2111, %v2785
      %v2838 = vadd.f32 %v2112, %v2790
      %v2839 = vadd.f32 %v2113, %v2793
      %v2840 = vadd.f32 %v2114, %v2798
      %v2841 = vadd.f32 %v2115, %v2801
      %v2842 = vadd.f32 %v2116, %v2806
      %v2843 = vadd.f32 %v2117, %v2809
      %v2844 = vld [vmem:[%s1759] sm:$0xe]
      %v2845 = vld [vmem:[%s1759 + $0xc] sm:$0xe]
      %v2846 = vld [vmem:[%s1759 + $0x18] sm:$0xe]
      %v2847 = vld [vmem:[%s1759 + $0x24] sm:$0xe]
      %v2848 = vld [vmem:[%s1759 + $0x30] sm:$0xe]
      %v2849 = vld [vmem:[%s1759 + $0x3c] sm:$0xe]
      %v2850 = vld [vmem:[%s1759 + $0x48] sm:$0xe]
      %v2851 = vld [vmem:[%s1759 + $0x54] sm:$0xe]
      %v2852 = vld [vmem:[%s1759 + $0x60] sm:$0xe]
      %v2853 = vld [vmem:[%s1759 + $0x6c] sm:$0xe]
      %v2854 = vld [vmem:[%s1759 + $0x78] sm:$0xe]
      %v2855 = vld [vmem:[%s1759 + $0x84] sm:$0xe]
      %v2856 = vld [vmem:[%s1759 + $0x90] sm:$0xe]
      %v2857 = vld [vmem:[%s1759 + $0x9c] sm:$0xe]
      %v2858 = vld [vmem:[%s1759 + $0xa8] sm:$0xe]
      %v2859 = vld [vmem:[%s1759 + $0xb4] sm:$0xe]
      %v2908 = vrot.slane %v2844, 5
      %v2909 = vrot.slane %v2908, 4
      %v2910 = vrot.slane %v2119, 5
      %v2911 = vsel %vm1352, %v2909, %v2910
      %v2912 = vrot.slane %v2910, 4
      %v2913 = vrot.slane %v2120, 5
      %v2914 = vsel %vm1352, %v2912, %v2913
      %v2915 = vrot.slane %v2845, 5
      %v2916 = vrot.slane %v2915, 4
      %v2917 = vrot.slane %v2122, 5
      %v2918 = vsel %vm1352, %v2916, %v2917
      %v2919 = vrot.slane %v2917, 4
      %v2920 = vrot.slane %v2123, 5
      %v2921 = vsel %vm1352, %v2919, %v2920
      %v2922 = vrot.slane %v2846, 5
      %v2923 = vrot.slane %v2922, 4
      %v2924 = vrot.slane %v2125, 5
      %v2925 = vsel %vm1352, %v2923, %v2924
      %v2926 = vrot.slane %v2924, 4
      %v2927 = vrot.slane %v2126, 5
      %v2928 = vsel %vm1352, %v2926, %v2927
      %v2929 = vrot.slane %v2847, 5
      %v2930 = vrot.slane %v2929, 4
      %v2931 = vrot.slane %v2128, 5
      %v2932 = vsel %vm1352, %v2930, %v2931
      %v2933 = vrot.slane %v2931, 4
      %v2934 = vrot.slane %v2129, 5
      %v2935 = vsel %vm1352, %v2933, %v2934
      %v2936 = vrot.slane %v2848, 5
      %v2937 = vrot.slane %v2936, 4
      %v2938 = vrot.slane %v2131, 5
      %v2939 = vsel %vm1352, %v2937, %v2938
      %v2940 = vrot.slane %v2938, 4
      %v2941 = vrot.slane %v2132, 5
      %v2942 = vsel %vm1352, %v2940, %v2941
      %v2943 = vrot.slane %v2849, 5
      %v2944 = vrot.slane %v2943, 4
      %v2945 = vrot.slane %v2134, 5
      %v2946 = vsel %vm1352, %v2944, %v2945
      %v2947 = vrot.slane %v2945, 4
      %v2948 = vrot.slane %v2135, 5
      %v2949 = vsel %vm1352, %v2947, %v2948
      %v2950 = vrot.slane %v2850, 5
      %v2951 = vrot.slane %v2950, 4
      %v2952 = vrot.slane %v2137, 5
      %v2953 = vsel %vm1352, %v2951, %v2952
      %v2954 = vrot.slane %v2952, 4
      %v2955 = vrot.slane %v2138, 5
      %v2956 = vsel %vm1352, %v2954, %v2955
      %v2957 = vrot.slane %v2851, 5
      %v2958 = vrot.slane %v2957, 4
      %v2959 = vrot.slane %v2140, 5
      %v2960 = vsel %vm1352, %v2958, %v2959
      %v2961 = vrot.slane %v2959, 4
      %v2962 = vrot.slane %v2141, 5
      %v2963 = vsel %vm1352, %v2961, %v2962
      %v2964 = vrot.slane %v2852, 5
      %v2965 = vrot.slane %v2964, 4
      %v2966 = vrot.slane %v2143, 5
      %v2967 = vsel %vm1352, %v2965, %v2966
      %v2968 = vrot.slane %v2966, 4
      %v2969 = vrot.slane %v2144, 5
      %v2970 = vsel %vm1352, %v2968, %v2969
      %v2971 = vrot.slane %v2853, 5
      %v2972 = vrot.slane %v2971, 4
      %v2973 = vrot.slane %v2146, 5
      %v2974 = vsel %vm1352, %v2972, %v2973
      %v2975 = vrot.slane %v2973, 4
      %v2976 = vrot.slane %v2147, 5
      %v2977 = vsel %vm1352, %v2975, %v2976
      %v2978 = vrot.slane %v2854, 5
      %v2979 = vrot.slane %v2978, 4
      %v2980 = vrot.slane %v2149, 5
      %v2981 = vsel %vm1352, %v2979, %v2980
      %v2982 = vrot.slane %v2980, 4
      %v2983 = vrot.slane %v2150, 5
      %v2984 = vsel %vm1352, %v2982, %v2983
      %v2985 = vrot.slane %v2855, 5
      %v2986 = vrot.slane %v2985, 4
      %v2987 = vrot.slane %v2152, 5
      %v2988 = vsel %vm1352, %v2986, %v2987
      %v2989 = vrot.slane %v2987, 4
      %v2990 = vrot.slane %v2153, 5
      %v2991 = vsel %vm1352, %v2989, %v2990
      %v2992 = vrot.slane %v2856, 5
      %v2993 = vrot.slane %v2992, 4
      %v2994 = vrot.slane %v2155, 5
      %v2995 = vsel %vm1352, %v2993, %v2994
      %v2996 = vrot.slane %v2994, 4
      %v2997 = vrot.slane %v2156, 5
      %v2998 = vsel %vm1352, %v2996, %v2997
      %v2999 = vrot.slane %v2857, 5
      %v3000 = vrot.slane %v2999, 4
      %v3001 = vrot.slane %v2158, 5
      %v3002 = vsel %vm1352, %v3000, %v3001
      %v3003 = vrot.slane %v3001, 4
      %v3004 = vrot.slane %v2159, 5
      %v3005 = vsel %vm1352, %v3003, %v3004
      %v3006 = vrot.slane %v2858, 5
      %v3007 = vrot.slane %v3006, 4
      %v3008 = vrot.slane %v2161, 5
      %v3009 = vsel %vm1352, %v3007, %v3008
      %v3010 = vrot.slane %v3008, 4
      %v3011 = vrot.slane %v2162, 5
      %v3012 = vsel %vm1352, %v3010, %v3011
      %v3013 = vrot.slane %v2859, 5
      %v3014 = vrot.slane %v3013, 4
      %v3015 = vrot.slane %v2164, 5
      %v3016 = vsel %vm1352, %v3014, %v3015
      %v3017 = vrot.slane %v3015, 4
      %v3018 = vrot.slane %v2165, 5
      %v3019 = vsel %vm1352, %v3017, %v3018
      %s3020 = scalar_lea.vmem %s285, 20
      %v3021 = vld [vmem:[%s3020] sm:$0xf]
      %v3022 = vunpack.c.l.b16 %v2911
      %v3023 = vunpack.c.l.b16 %v2914
      %v3024 = vunpack.c.l.b16 %v2918
      %v3025 = vunpack.c.l.b16 %v2921
      %v3026 = vunpack.c.l.b16 %v2925
      %v3027 = vunpack.c.l.b16 %v2928
      %v3028 = vunpack.c.l.b16 %v2932
      %v3029 = vunpack.c.l.b16 %v2935
      %v3030 = vunpack.c.l.b16 %v2939
      %v3031 = vunpack.c.l.b16 %v2942
      %v3032 = vunpack.c.l.b16 %v2946
      %v3033 = vunpack.c.l.b16 %v2949
      %v3034 = vunpack.c.l.b16 %v2953
      %v3035 = vunpack.c.l.b16 %v2956
      %v3036 = vunpack.c.l.b16 %v2960
      %v3037 = vunpack.c.l.b16 %v2963
      %v3038 = vunpack.c.l.b16 %v2967
      %v3039 = vunpack.c.l.b16 %v2970
      %v3040 = vunpack.c.l.b16 %v2974
      %v3041 = vunpack.c.l.b16 %v2977
      %v3042 = vunpack.c.l.b16 %v2981
      %v3043 = vunpack.c.l.b16 %v2984
      %v3044 = vunpack.c.l.b16 %v2988
      %v3045 = vunpack.c.l.b16 %v2991
      %v3046 = vunpack.c.l.b16 %v2995
      %v3047 = vunpack.c.l.b16 %v2998
      %v3048 = vunpack.c.l.b16 %v3002
      %v3049 = vunpack.c.l.b16 %v3005
      %v3050 = vunpack.c.l.b16 %v3009
      %v3051 = vunpack.c.l.b16 %v3012
      %v3052 = vunpack.c.l.b16 %v3016
      %v3053 = vunpack.c.l.b16 %v3019
      %v3054 = vpack.c.b16 %v3023, %v3022
      %v3055 = vpack.c.b16 %v3025, %v3024
      %v3056 = vpack.c.b16 %v3027, %v3026
      %v3057 = vpack.c.b16 %v3029, %v3028
      %v3058 = vpack.c.b16 %v3031, %v3030
      %v3059 = vpack.c.b16 %v3033, %v3032
      %v3060 = vpack.c.b16 %v3035, %v3034
      %v3061 = vpack.c.b16 %v3037, %v3036
      %v3062 = vpack.c.b16 %v3039, %v3038
      %v3063 = vpack.c.b16 %v3041, %v3040
      %v3064 = vpack.c.b16 %v3043, %v3042
      %v3065 = vpack.c.b16 %v3045, %v3044
      %v3066 = vpack.c.b16 %v3047, %v3046
      %v3067 = vpack.c.b16 %v3049, %v3048
      %v3068 = vpack.c.b16 %v3051, %v3050
      %v3069 = vpack.c.b16 %v3053, %v3052
      %v3071 = vsel %vm796, %v3054, 0
      %v3074 = vsel %vm796, %v3055, 0
      %v3077 = vsel %vm796, %v3056, 0
      %v3080 = vsel %vm796, %v3057, 0
      %v3083 = vsel %vm796, %v3058, 0
      %v3086 = vsel %vm796, %v3059, 0
      %v3089 = vsel %vm796, %v3060, 0
      %v3092 = vsel %vm796, %v3061, 0
      %v3095 = vsel %vm796, %v3062, 0
      %v3098 = vsel %vm796, %v3063, 0
      %v3101 = vsel %vm796, %v3064, 0
      %v3104 = vsel %vm796, %v3065, 0
      %v3107 = vsel %vm796, %v3066, 0
      %v3110 = vsel %vm796, %v3067, 0
      %v3113 = vsel %vm796, %v3068, 0
      %v3116 = vsel %vm796, %v3069, 0
      %v3119 = vsel %vm845, %v3021, 0
      %3121 = vmatprep.subr.bf16.mxu0 0
      %3122 = vmatpush1.bf16.msra.mxu0 %v3119
      %3123 = vmatprep.subr.bf16.mxu0 0
      %3124 = vmatpush1.bf16.msra.mxu0 0
      %3125 = vmatprep.subr.bf16.mxu0 0
      %3126 = vmatpush1.bf16.msra.mxu0 0
      %3127 = vmatprep.subr.bf16.mxu0 0
      %3128 = vmatpush1.bf16.msra.mxu0 0
      %3129 = vmatprep.subr.bf16.mxu0 0
      %3130 = vmatpush1.bf16.msra.mxu0 0
      %3131 = vmatprep.subr.bf16.mxu0 0
      %3132 = vmatpush1.bf16.msra.mxu0 0
      %3133 = vmatprep.subr.bf16.mxu0 0
      %3134 = vmatpush1.bf16.msra.mxu0 0
      %3135 = vmatprep.subr.bf16.mxu0 0
      %3136 = vmatpush1.bf16.msra.mxu0 0
      %3137 = vmatprep.subr.bf16.mxu0 0
      %3138 = vmatpush1.bf16.msra.mxu0 0
      %3139 = vmatprep.subr.bf16.mxu0 0
      %3140 = vmatpush1.bf16.msra.mxu0 0
      %3141 = vmatprep.subr.bf16.mxu0 0
      %3142 = vmatpush1.bf16.msra.mxu0 0
      %3143 = vmatprep.subr.bf16.mxu0 0
      %3144 = vmatpush1.bf16.msra.mxu0 0
      %3145 = vmatprep.subr.bf16.mxu0 0
      %3146 = vmatpush1.bf16.msra.mxu0 0
      %3147 = vmatprep.subr.bf16.mxu0 0
      %3148 = vmatpush1.bf16.msra.mxu0 0
      %3149 = vmatprep.subr.bf16.mxu0 0
      %3150 = vmatpush1.bf16.msra.mxu0 0
      %3151 = vmatprep.subr.bf16.mxu0 0
      %3152 = vmatpush1.bf16.msra.mxu0 0
      %3153 = vmatprep.mubr.bf16.mxu0 0
      %3154 = vmatmul.mubr.bf16.gmra.mrb[0].mxu0 %v3071
      %v3155 = vpop.f32.mrb[0].mxu0
      %v3156 = vadd.f32 0.0, %v3155
      %v3157 = vpop.f32.mrb[0].mxu0
      %v3158 = vpop.f32.mrb[0].mxu0
      %v3159 = vadd.f32 0.0, %v3158
      %v3160 = vpop.f32.mrb[0].mxu0
      %3161 = vmatprep.mubr.bf16.mxu0 0
      %3162 = vmatmul.mubr.bf16.gmra.mrb[0].mxu0 %v3074
      %v3163 = vpop.f32.mrb[0].mxu0
      %v3164 = vadd.f32 0.0, %v3163
      %v3165 = vpop.f32.mrb[0].mxu0
      %v3166 = vpop.f32.mrb[0].mxu0
      %v3167 = vadd.f32 0.0, %v3166
      %v3168 = vpop.f32.mrb[0].mxu0
      %3169 = vmatprep.mubr.bf16.mxu0 0
      %3170 = vmatmul.mubr.bf16.gmra.mrb[0].mxu0 %v3077
      %v3171 = vpop.f32.mrb[0].mxu0
      %v3172 = vadd.f32 0.0, %v3171
      %v3173 = vpop.f32.mrb[0].mxu0
      %v3174 = vpop.f32.mrb[0].mxu0
      %v3175 = vadd.f32 0.0, %v3174
      %v3176 = vpop.f32.mrb[0].mxu0
      %3177 = vmatprep.mubr.bf16.mxu0 0
      %3178 = vmatmul.mubr.bf16.gmra.mrb[0].mxu0 %v3080
      %v3179 = vpop.f32.mrb[0].mxu0
      %v3180 = vadd.f32 0.0, %v3179
      %v3181 = vpop.f32.mrb[0].mxu0
      %v3182 = vpop.f32.mrb[0].mxu0
      %v3183 = vadd.f32 0.0, %v3182
      %v3184 = vpop.f32.mrb[0].mxu0
      %3185 = vmatprep.mubr.bf16.mxu0 0
      %3186 = vmatmul.mubr.bf16.gmra.mrb[0].mxu0 %v3083
      %v3187 = vpop.f32.mrb[0].mxu0
      %v3188 = vadd.f32 0.0, %v3187
      %v3189 = vpop.f32.mrb[0].mxu0
      %v3190 = vpop.f32.mrb[0].mxu0
      %v3191 = vadd.f32 0.0, %v3190
      %v3192 = vpop.f32.mrb[0].mxu0
      %3193 = vmatprep.mubr.bf16.mxu0 0
      %3194 = vmatmul.mubr.bf16.gmra.mrb[0].mxu0 %v3086
      %v3195 = vpop.f32.mrb[0].mxu0
      %v3196 = vadd.f32 0.0, %v3195
      %v3197 = vpop.f32.mrb[0].mxu0
      %v3198 = vpop.f32.mrb[0].mxu0
      %v3199 = vadd.f32 0.0, %v3198
      %v3200 = vpop.f32.mrb[0].mxu0
      %3201 = vmatprep.mubr.bf16.mxu0 0
      %3202 = vmatmul.mubr.bf16.gmra.mrb[0].mxu0 %v3089
      %v3203 = vpop.f32.mrb[0].mxu0
      %v3204 = vadd.f32 0.0, %v3203
      %v3205 = vpop.f32.mrb[0].mxu0
      %v3206 = vpop.f32.mrb[0].mxu0
      %v3207 = vadd.f32 0.0, %v3206
      %v3208 = vpop.f32.mrb[0].mxu0
      %3209 = vmatprep.mubr.bf16.mxu0 0
      %3210 = vmatmul.mubr.bf16.gmra.mrb[0].mxu0 %v3092
      %v3211 = vpop.f32.mrb[0].mxu0
      %v3212 = vadd.f32 0.0, %v3211
      %v3213 = vpop.f32.mrb[0].mxu0
      %v3214 = vpop.f32.mrb[0].mxu0
      %v3215 = vadd.f32 0.0, %v3214
      %v3216 = vpop.f32.mrb[0].mxu0
      %3217 = vmatprep.mubr.bf16.mxu0 0
      %3218 = vmatmul.mubr.bf16.gmra.mrb[0].mxu0 %v3095
      %v3219 = vpop.f32.mrb[0].mxu0
      %v3220 = vadd.f32 0.0, %v3219
      %v3221 = vpop.f32.mrb[0].mxu0
      %v3222 = vpop.f32.mrb[0].mxu0
      %v3223 = vadd.f32 0.0, %v3222
      %v3224 = vpop.f32.mrb[0].mxu0
      %3225 = vmatprep.mubr.bf16.mxu0 0
      %3226 = vmatmul.mubr.bf16.gmra.mrb[0].mxu0 %v3098
      %v3227 = vpop.f32.mrb[0].mxu0
      %v3228 = vadd.f32 0.0, %v3227
      %v3229 = vpop.f32.mrb[0].mxu0
      %v3230 = vpop.f32.mrb[0].mxu0
      %v3231 = vadd.f32 0.0, %v3230
      %v3232 = vpop.f32.mrb[0].mxu0
      %3233 = vmatprep.mubr.bf16.mxu0 0
      %3234 = vmatmul.mubr.bf16.gmra.mrb[0].mxu0 %v3101
      %v3235 = vpop.f32.mrb[0].mxu0
      %v3236 = vadd.f32 0.0, %v3235
      %v3237 = vpop.f32.mrb[0].mxu0
      %v3238 = vpop.f32.mrb[0].mxu0
      %v3239 = vadd.f32 0.0, %v3238
      %v3240 = vpop.f32.mrb[0].mxu0
      %3241 = vmatprep.mubr.bf16.mxu0 0
      %3242 = vmatmul.mubr.bf16.gmra.mrb[0].mxu0 %v3104
      %v3243 = vpop.f32.mrb[0].mxu0
      %v3244 = vadd.f32 0.0, %v3243
      %v3245 = vpop.f32.mrb[0].mxu0
      %v3246 = vpop.f32.mrb[0].mxu0
      %v3247 = vadd.f32 0.0, %v3246
      %v3248 = vpop.f32.mrb[0].mxu0
      %3249 = vmatprep.mubr.bf16.mxu0 0
      %3250 = vmatmul.mubr.bf16.gmra.mrb[0].mxu0 %v3107
      %v3251 = vpop.f32.mrb[0].mxu0
      %v3252 = vadd.f32 0.0, %v3251
      %v3253 = vpop.f32.mrb[0].mxu0
      %v3254 = vpop.f32.mrb[0].mxu0
      %v3255 = vadd.f32 0.0, %v3254
      %v3256 = vpop.f32.mrb[0].mxu0
      %3257 = vmatprep.mubr.bf16.mxu0 0
      %3258 = vmatmul.mubr.bf16.gmra.mrb[0].mxu0 %v3110
      %v3259 = vpop.f32.mrb[0].mxu0
      %v3260 = vadd.f32 0.0, %v3259
      %v3261 = vpop.f32.mrb[0].mxu0
      %v3262 = vpop.f32.mrb[0].mxu0
      %v3263 = vadd.f32 0.0, %v3262
      %v3264 = vpop.f32.mrb[0].mxu0
      %3265 = vmatprep.mubr.bf16.mxu0 0
      %3266 = vmatmul.mubr.bf16.gmra.mrb[0].mxu0 %v3113
      %v3267 = vpop.f32.mrb[0].mxu0
      %v3268 = vadd.f32 0.0, %v3267
      %v3269 = vpop.f32.mrb[0].mxu0
      %v3270 = vpop.f32.mrb[0].mxu0
      %v3271 = vadd.f32 0.0, %v3270
      %v3272 = vpop.f32.mrb[0].mxu0
      %3273 = vmatprep.mubr.bf16.mxu0 0
      %3274 = vmatmul.mubr.bf16.gmra.mrb[0].mxu0 %v3116
      %v3275 = vpop.f32.mrb[0].mxu0
      %v3276 = vadd.f32 0.0, %v3275
      %v3277 = vpop.f32.mrb[0].mxu0
      %v3278 = vpop.f32.mrb[0].mxu0
      %v3279 = vadd.f32 0.0, %v3278
      %v3280 = vpop.f32.mrb[0].mxu0
      %3281 = vdwg.mxu0
      %v3282 = vadd.f32 %v2812, %v3156
      %v3283 = vadd.f32 %v2813, %v3159
      %v3284 = vadd.f32 %v2814, %v3164
      %v3285 = vadd.f32 %v2815, %v3167
      %v3286 = vadd.f32 %v2816, %v3172
      %v3287 = vadd.f32 %v2817, %v3175
      %v3288 = vadd.f32 %v2818, %v3180
      %v3289 = vadd.f32 %v2819, %v3183
      %v3290 = vadd.f32 %v2820, %v3188
      %v3291 = vadd.f32 %v2821, %v3191
      %v3292 = vadd.f32 %v2822, %v3196
      %v3293 = vadd.f32 %v2823, %v3199
      %v3294 = vadd.f32 %v2824, %v3204
      %v3295 = vadd.f32 %v2825, %v3207
      %v3296 = vadd.f32 %v2826, %v3212
      %v3297 = vadd.f32 %v2827, %v3215
      %v3298 = vadd.f32 %v2828, %v3220
      %v3299 = vadd.f32 %v2829, %v3223
      %v3300 = vadd.f32 %v2830, %v3228
      %v3301 = vadd.f32 %v2831, %v3231
      %v3302 = vadd.f32 %v2832, %v3236
      %v3303 = vadd.f32 %v2833, %v3239
      %v3304 = vadd.f32 %v2834, %v3244
      %v3305 = vadd.f32 %v2835, %v3247
      %v3306 = vadd.f32 %v2836, %v3252
      %v3307 = vadd.f32 %v2837, %v3255
      %v3308 = vadd.f32 %v2838, %v3260
      %v3309 = vadd.f32 %v2839, %v3263
      %v3310 = vadd.f32 %v2840, %v3268
      %v3311 = vadd.f32 %v2841, %v3271
      %v3312 = vadd.f32 %v2842, %v3276
      %v3313 = vadd.f32 %v2843, %v3279
      %s3314 = scalar_lea.vmem %s281, 24
      %v3315 = vld [vmem:[%s3314] sm:$0xf]
      %v3316 = vld [vmem:[%s3314 + $0x4] sm:$0xf]
      %v3317 = vld [vmem:[%s3314 + $0xc] sm:$0xf]
      %v3318 = vld [vmem:[%s3314 + $0x10] sm:$0xf]
      %v3319 = vld [vmem:[%s3314 + $0x18] sm:$0xf]
      %v3320 = vld [vmem:[%s3314 + $0x1c] sm:$0xf]
      %v3321 = vld [vmem:[%s3314 + $0x24] sm:$0xf]
      %v3322 = vld [vmem:[%s3314 + $0x28] sm:$0xf]
      %v3323 = vld [vmem:[%s3314 + $0x30] sm:$0xf]
      %v3324 = vld [vmem:[%s3314 + $0x34] sm:$0xf]
      %v3325 = vld [vmem:[%s3314 + $0x3c] sm:$0xf]
      %v3326 = vld [vmem:[%s3314 + $0x40] sm:$0xf]
      %v3327 = vld [vmem:[%s3314 + $0x48] sm:$0xf]
      %v3328 = vld [vmem:[%s3314 + $0x4c] sm:$0xf]
      %v3329 = vld [vmem:[%s3314 + $0x54] sm:$0xf]
      %v3330 = vld [vmem:[%s3314 + $0x58] sm:$0xf]
      %v3331 = vld [vmem:[%s3314 + $0x60] sm:$0xf]
      %v3332 = vld [vmem:[%s3314 + $0x64] sm:$0xf]
      %v3333 = vld [vmem:[%s3314 + $0x6c] sm:$0xf]
      %v3334 = vld [vmem:[%s3314 + $0x70] sm:$0xf]
      %v3335 = vld [vmem:[%s3314 + $0x78] sm:$0xf]
      %v3336 = vld [vmem:[%s3314 + $0x7c] sm:$0xf]
      %v3337 = vld [vmem:[%s3314 + $0x84] sm:$0xf]
      %v3338 = vld [vmem:[%s3314 + $0x88] sm:$0xf]
      %v3339 = vld [vmem:[%s3314 + $0x90] sm:$0xf]
      %v3340 = vld [vmem:[%s3314 + $0x94] sm:$0xf]
      %v3341 = vld [vmem:[%s3314 + $0x9c] sm:$0xf]
      %v3342 = vld [vmem:[%s3314 + $0xa0] sm:$0xf]
      %v3343 = vld [vmem:[%s3314 + $0xa8] sm:$0xf]
      %v3344 = vld [vmem:[%s3314 + $0xac] sm:$0xf]
      %v3345 = vld [vmem:[%s3314 + $0xb4] sm:$0xf]
      %v3346 = vld [vmem:[%s3314 + $0xb8] sm:$0xf]
      %s3347 = scalar_lea.vmem %s285, 24
      %v3348 = vld [vmem:[%s3347] sm:$0xf]
      %v3381 = vunpack.c.l.b16 %v3315
      %v3382 = vunpack.c.l.b16 %v3316
      %v3383 = vunpack.c.l.b16 %v3317
      %v3384 = vunpack.c.l.b16 %v3318
      %v3385 = vunpack.c.l.b16 %v3319
      %v3386 = vunpack.c.l.b16 %v3320
      %v3387 = vunpack.c.l.b16 %v3321
      %v3388 = vunpack.c.l.b16 %v3322
      %v3389 = vunpack.c.l.b16 %v3323
      %v3390 = vunpack.c.l.b16 %v3324
      %v3391 = vunpack.c.l.b16 %v3325
      %v3392 = vunpack.c.l.b16 %v3326
      %v3393 = vunpack.c.l.b16 %v3327
      %v3394 = vunpack.c.l.b16 %v3328
      %v3395 = vunpack.c.l.b16 %v3329
      %v3396 = vunpack.c.l.b16 %v3330
      %v3397 = vunpack.c.l.b16 %v3331
      %v3398 = vunpack.c.l.b16 %v3332
      %v3399 = vunpack.c.l.b16 %v3333
      %v3400 = vunpack.c.l.b16 %v3334
      %v3401 = vunpack.c.l.b16 %v3335
      %v3402 = vunpack.c.l.b16 %v3336
      %v3403 = vunpack.c.l.b16 %v3337
      %v3404 = vunpack.c.l.b16 %v3338
      %v3405 = vunpack.c.l.b16 %v3339
      %v3406 = vunpack.c.l.b16 %v3340
      %v3407 = vunpack.c.l.b16 %v3341
      %v3408 = vunpack.c.l.b16 %v3342
      %v3409 = vunpack.c.l.b16 %v3343
      %v3410 = vunpack.c.l.b16 %v3344
      %v3411 = vunpack.c.l.b16 %v3345
      %v3412 = vunpack.c.l.b16 %v3346
      %v3413 = vpack.c.b16 %v3382, %v3381
      %v3414 = vpack.c.b16 %v3384, %v3383
      %v3415 = vpack.c.b16 %v3386, %v3385
      %v3416 = vpack.c.b16 %v3388, %v3387
      %v3417 = vpack.c.b16 %v3390, %v3389
      %v3418 = vpack.c.b16 %v3392, %v3391
      %v3419 = vpack.c.b16 %v3394, %v3393
      %v3420 = vpack.c.b16 %v3396, %v3395
      %v3421 = vpack.c.b16 %v3398, %v3397
      %v3422 = vpack.c.b16 %v3400, %v3399
      %v3423 = vpack.c.b16 %v3402, %v3401
      %v3424 = vpack.c.b16 %v3404, %v3403
      %v3425 = vpack.c.b16 %v3406, %v3405
      %v3426 = vpack.c.b16 %v3408, %v3407
      %v3427 = vpack.c.b16 %v3410, %v3409
      %v3428 = vpack.c.b16 %v3412, %v3411
      %v3430 = vsel %vm796, %v3413, 0
      %v3433 = vsel %vm796, %v3414, 0
      %v3436 = vsel %vm796, %v3415, 0
      %v3439 = vsel %vm796, %v3416, 0
      %v3442 = vsel %vm796, %v3417, 0
      %v3445 = vsel %vm796, %v3418, 0
      %v3448 = vsel %vm796, %v3419, 0
      %v3451 = vsel %vm796, %v3420, 0
      %v3454 = vsel %vm796, %v3421, 0
      %v3457 = vsel %vm796, %v3422, 0
      %v3460 = vsel %vm796, %v3423, 0
      %v3463 = vsel %vm796, %v3424, 0
      %v3466 = vsel %vm796, %v3425, 0
      %v3469 = vsel %vm796, %v3426, 0
      %v3472 = vsel %vm796, %v3427, 0
      %v3475 = vsel %vm796, %v3428, 0
      %v3478 = vsel %vm845, %v3348, 0
      %3480 = vmatprep.subr.bf16.mxu0 0
      %3481 = vmatpush1.bf16.msra.mxu0 %v3478
      %3482 = vmatprep.subr.bf16.mxu0 0
      %3483 = vmatpush1.bf16.msra.mxu0 0
      %3484 = vmatprep.subr.bf16.mxu0 0
      %3485 = vmatpush1.bf16.msra.mxu0 0
      %3486 = vmatprep.subr.bf16.mxu0 0
      %3487 = vmatpush1.bf16.msra.mxu0 0
      %3488 = vmatprep.subr.bf16.mxu0 0
      %3489 = vmatpush1.bf16.msra.mxu0 0
      %3490 = vmatprep.subr.bf16.mxu0 0
      %3491 = vmatpush1.bf16.msra.mxu0 0
      %3492 = vmatprep.subr.bf16.mxu0 0
      %3493 = vmatpush1.bf16.msra.mxu0 0
      %3494 = vmatprep.subr.bf16.mxu0 0
      %3495 = vmatpush1.bf16.msra.mxu0 0
      %3496 = vmatprep.subr.bf16.mxu0 0
      %3497 = vmatpush1.bf16.msra.mxu0 0
      %3498 = vmatprep.subr.bf16.mxu0 0
      %3499 = vmatpush1.bf16.msra.mxu0 0
      %3500 = vmatprep.subr.bf16.mxu0 0
      %3501 = vmatpush1.bf16.msra.mxu0 0
      %3502 = vmatprep.subr.bf16.mxu0 0
      %3503 = vmatpush1.bf16.msra.mxu0 0
      %3504 = vmatprep.subr.bf16.mxu0 0
      %3505 = vmatpush1.bf16.msra.mxu0 0
      %3506 = vmatprep.subr.bf16.mxu0 0
      %3507 = vmatpush1.bf16.msra.mxu0 0
      %3508 = vmatprep.subr.bf16.mxu0 0
      %3509 = vmatpush1.bf16.msra.mxu0 0
      %3510 = vmatprep.subr.bf16.mxu0 0
      %3511 = vmatpush1.bf16.msra.mxu0 0
      %3512 = vmatprep.mubr.bf16.mxu0 0
      %3513 = vmatmul.mubr.bf16.gmra.mrb[0].mxu0 %v3430
      %v3514 = vpop.f32.mrb[0].mxu0
      %v3515 = vadd.f32 0.0, %v3514
      %v3516 = vpop.f32.mrb[0].mxu0
      %v3517 = vpop.f32.mrb[0].mxu0
      %v3518 = vadd.f32 0.0, %v3517
      %v3519 = vpop.f32.mrb[0].mxu0
      %3520 = vmatprep.mubr.bf16.mxu0 0
      %3521 = vmatmul.mubr.bf16.gmra.mrb[0].mxu0 %v3433
      %v3522 = vpop.f32.mrb[0].mxu0
      %v3523 = vadd.f32 0.0, %v3522
      %v3524 = vpop.f32.mrb[0].mxu0
      %v3525 = vpop.f32.mrb[0].mxu0
      %v3526 = vadd.f32 0.0, %v3525
      %v3527 = vpop.f32.mrb[0].mxu0
      %3528 = vmatprep.mubr.bf16.mxu0 0
      %3529 = vmatmul.mubr.bf16.gmra.mrb[0].mxu0 %v3436
      %v3530 = vpop.f32.mrb[0].mxu0
      %v3531 = vadd.f32 0.0, %v3530
      %v3532 = vpop.f32.mrb[0].mxu0
      %v3533 = vpop.f32.mrb[0].mxu0
      %v3534 = vadd.f32 0.0, %v3533
      %v3535 = vpop.f32.mrb[0].mxu0
      %3536 = vmatprep.mubr.bf16.mxu0 0
      %3537 = vmatmul.mubr.bf16.gmra.mrb[0].mxu0 %v3439
      %v3538 = vpop.f32.mrb[0].mxu0
      %v3539 = vadd.f32 0.0, %v3538
      %v3540 = vpop.f32.mrb[0].mxu0
      %v3541 = vpop.f32.mrb[0].mxu0
      %v3542 = vadd.f32 0.0, %v3541
      %v3543 = vpop.f32.mrb[0].mxu0
      %3544 = vmatprep.mubr.bf16.mxu0 0
      %3545 = vmatmul.mubr.bf16.gmra.mrb[0].mxu0 %v3442
      %v3546 = vpop.f32.mrb[0].mxu0
      %v3547 = vadd.f32 0.0, %v3546
      %v3548 = vpop.f32.mrb[0].mxu0
      %v3549 = vpop.f32.mrb[0].mxu0
      %v3550 = vadd.f32 0.0, %v3549
      %v3551 = vpop.f32.mrb[0].mxu0
      %3552 = vmatprep.mubr.bf16.mxu0 0
      %3553 = vmatmul.mubr.bf16.gmra.mrb[0].mxu0 %v3445
      %v3554 = vpop.f32.mrb[0].mxu0
      %v3555 = vadd.f32 0.0, %v3554
      %v3556 = vpop.f32.mrb[0].mxu0
      %v3557 = vpop.f32.mrb[0].mxu0
      %v3558 = vadd.f32 0.0, %v3557
      %v3559 = vpop.f32.mrb[0].mxu0
      %3560 = vmatprep.mubr.bf16.mxu0 0
      %3561 = vmatmul.mubr.bf16.gmra.mrb[0].mxu0 %v3448
      %v3562 = vpop.f32.mrb[0].mxu0
      %v3563 = vadd.f32 0.0, %v3562
      %v3564 = vpop.f32.mrb[0].mxu0
      %v3565 = vpop.f32.mrb[0].mxu0
      %v3566 = vadd.f32 0.0, %v3565
      %v3567 = vpop.f32.mrb[0].mxu0
      %3568 = vmatprep.mubr.bf16.mxu0 0
      %3569 = vmatmul.mubr.bf16.gmra.mrb[0].mxu0 %v3451
      %v3570 = vpop.f32.mrb[0].mxu0
      %v3571 = vadd.f32 0.0, %v3570
      %v3572 = vpop.f32.mrb[0].mxu0
      %v3573 = vpop.f32.mrb[0].mxu0
      %v3574 = vadd.f32 0.0, %v3573
      %v3575 = vpop.f32.mrb[0].mxu0
      %3576 = vmatprep.mubr.bf16.mxu0 0
      %3577 = vmatmul.mubr.bf16.gmra.mrb[0].mxu0 %v3454
      %v3578 = vpop.f32.mrb[0].mxu0
      %v3579 = vadd.f32 0.0, %v3578
      %v3580 = vpop.f32.mrb[0].mxu0
      %v3581 = vpop.f32.mrb[0].mxu0
      %v3582 = vadd.f32 0.0, %v3581
      %v3583 = vpop.f32.mrb[0].mxu0
      %3584 = vmatprep.mubr.bf16.mxu0 0
      %3585 = vmatmul.mubr.bf16.gmra.mrb[0].mxu0 %v3457
      %v3586 = vpop.f32.mrb[0].mxu0
      %v3587 = vadd.f32 0.0, %v3586
      %v3588 = vpop.f32.mrb[0].mxu0
      %v3589 = vpop.f32.mrb[0].mxu0
      %v3590 = vadd.f32 0.0, %v3589
      %v3591 = vpop.f32.mrb[0].mxu0
      %3592 = vmatprep.mubr.bf16.mxu0 0
      %3593 = vmatmul.mubr.bf16.gmra.mrb[0].mxu0 %v3460
      %v3594 = vpop.f32.mrb[0].mxu0
      %v3595 = vadd.f32 0.0, %v3594
      %v3596 = vpop.f32.mrb[0].mxu0
      %v3597 = vpop.f32.mrb[0].mxu0
      %v3598 = vadd.f32 0.0, %v3597
      %v3599 = vpop.f32.mrb[0].mxu0
      %3600 = vmatprep.mubr.bf16.mxu0 0
      %3601 = vmatmul.mubr.bf16.gmra.mrb[0].mxu0 %v3463
      %v3602 = vpop.f32.mrb[0].mxu0
      %v3603 = vadd.f32 0.0, %v3602
      %v3604 = vpop.f32.mrb[0].mxu0
      %v3605 = vpop.f32.mrb[0].mxu0
      %v3606 = vadd.f32 0.0, %v3605
      %v3607 = vpop.f32.mrb[0].mxu0
      %3608 = vmatprep.mubr.bf16.mxu0 0
      %3609 = vmatmul.mubr.bf16.gmra.mrb[0].mxu0 %v3466
      %v3610 = vpop.f32.mrb[0].mxu0
      %v3611 = vadd.f32 0.0, %v3610
      %v3612 = vpop.f32.mrb[0].mxu0
      %v3613 = vpop.f32.mrb[0].mxu0
      %v3614 = vadd.f32 0.0, %v3613
      %v3615 = vpop.f32.mrb[0].mxu0
      %3616 = vmatprep.mubr.bf16.mxu0 0
      %3617 = vmatmul.mubr.bf16.gmra.mrb[0].mxu0 %v3469
      %v3618 = vpop.f32.mrb[0].mxu0
      %v3619 = vadd.f32 0.0, %v3618
      %v3620 = vpop.f32.mrb[0].mxu0
      %v3621 = vpop.f32.mrb[0].mxu0
      %v3622 = vadd.f32 0.0, %v3621
      %v3623 = vpop.f32.mrb[0].mxu0
      %3624 = vmatprep.mubr.bf16.mxu0 0
      %3625 = vmatmul.mubr.bf16.gmra.mrb[0].mxu0 %v3472
      %v3626 = vpop.f32.mrb[0].mxu0
      %v3627 = vadd.f32 0.0, %v3626
      %v3628 = vpop.f32.mrb[0].mxu0
      %v3629 = vpop.f32.mrb[0].mxu0
      %v3630 = vadd.f32 0.0, %v3629
      %v3631 = vpop.f32.mrb[0].mxu0
      %3632 = vmatprep.mubr.bf16.mxu0 0
      %3633 = vmatmul.mubr.bf16.gmra.mrb[0].mxu0 %v3475
      %v3634 = vpop.f32.mrb[0].mxu0
      %v3635 = vadd.f32 0.0, %v3634
      %v3636 = vpop.f32.mrb[0].mxu0
      %v3637 = vpop.f32.mrb[0].mxu0
      %v3638 = vadd.f32 0.0, %v3637
      %v3639 = vpop.f32.mrb[0].mxu0
      %3640 = vdwg.mxu0
      %v3641 = vadd.f32 %v3282, %v3515
      %v3642 = vadd.f32 %v3283, %v3518
      %v3643 = vadd.f32 %v3284, %v3523
      %v3644 = vadd.f32 %v3285, %v3526
      %v3645 = vadd.f32 %v3286, %v3531
      %v3646 = vadd.f32 %v3287, %v3534
      %v3647 = vadd.f32 %v3288, %v3539
      %v3648 = vadd.f32 %v3289, %v3542
      %v3649 = vadd.f32 %v3290, %v3547
      %v3650 = vadd.f32 %v3291, %v3550
      %v3651 = vadd.f32 %v3292, %v3555
      %v3652 = vadd.f32 %v3293, %v3558
      %v3653 = vadd.f32 %v3294, %v3563
      %v3654 = vadd.f32 %v3295, %v3566
      %v3655 = vadd.f32 %v3296, %v3571
      %v3656 = vadd.f32 %v3297, %v3574
      %v3657 = vadd.f32 %v3298, %v3579
      %v3658 = vadd.f32 %v3299, %v3582
      %v3659 = vadd.f32 %v3300, %v3587
      %v3660 = vadd.f32 %v3301, %v3590
      %v3661 = vadd.f32 %v3302, %v3595
      %v3662 = vadd.f32 %v3303, %v3598
      %v3663 = vadd.f32 %v3304, %v3603
      %v3664 = vadd.f32 %v3305, %v3606
      %v3665 = vadd.f32 %v3306, %v3611
      %v3666 = vadd.f32 %v3307, %v3614
      %v3667 = vadd.f32 %v3308, %v3619
      %v3668 = vadd.f32 %v3309, %v3622
      %v3669 = vadd.f32 %v3310, %v3627
      %v3670 = vadd.f32 %v3311, %v3630
      %v3671 = vadd.f32 %v3312, %v3635
      %v3672 = vadd.f32 %v3313, %v3638
      %v3673 = vld [vmem:[%s3314] sm:$0xf]
      %v3674 = vld [vmem:[%s3314 + $0x4] sm:$0xf]
      %v3675 = vld [vmem:[%s3314 + $0x8] sm:$0x1]
      %v3676 = vld [vmem:[%s3314 + $0xc] sm:$0xf]
      %v3677 = vld [vmem:[%s3314 + $0x10] sm:$0xf]
      %v3678 = vld [vmem:[%s3314 + $0x14] sm:$0x1]
      %v3679 = vld [vmem:[%s3314 + $0x18] sm:$0xf]
      %v3680 = vld [vmem:[%s3314 + $0x1c] sm:$0xf]
      %v3681 = vld [vmem:[%s3314 + $0x20] sm:$0x1]
      %v3682 = vld [vmem:[%s3314 + $0x24] sm:$0xf]
      %v3683 = vld [vmem:[%s3314 + $0x28] sm:$0xf]
      %v3684 = vld [vmem:[%s3314 + $0x2c] sm:$0x1]
      %v3685 = vld [vmem:[%s3314 + $0x30] sm:$0xf]
      %v3686 = vld [vmem:[%s3314 + $0x34] sm:$0xf]
      %v3687 = vld [vmem:[%s3314 + $0x38] sm:$0x1]
      %v3688 = vld [vmem:[%s3314 + $0x3c] sm:$0xf]
      %v3689 = vld [vmem:[%s3314 + $0x40] sm:$0xf]
      %v3690 = vld [vmem:[%s3314 + $0x44] sm:$0x1]
      %v3691 = vld [vmem:[%s3314 + $0x48] sm:$0xf]
      %v3692 = vld [vmem:[%s3314 + $0x4c] sm:$0xf]
      %v3693 = vld [vmem:[%s3314 + $0x50] sm:$0x1]
      %v3694 = vld [vmem:[%s3314 + $0x54] sm:$0xf]
      %v3695 = vld [vmem:[%s3314 + $0x58] sm:$0xf]
      %v3696 = vld [vmem:[%s3314 + $0x5c] sm:$0x1]
      %v3697 = vld [vmem:[%s3314 + $0x60] sm:$0xf]
      %v3698 = vld [vmem:[%s3314 + $0x64] sm:$0xf]
      %v3699 = vld [vmem:[%s3314 + $0x68] sm:$0x1]
      %v3700 = vld [vmem:[%s3314 + $0x6c] sm:$0xf]
      %v3701 = vld [vmem:[%s3314 + $0x70] sm:$0xf]
      %v3702 = vld [vmem:[%s3314 + $0x74] sm:$0x1]
      %v3703 = vld [vmem:[%s3314 + $0x78] sm:$0xf]
      %v3704 = vld [vmem:[%s3314 + $0x7c] sm:$0xf]
      %v3705 = vld [vmem:[%s3314 + $0x80] sm:$0x1]
      %v3706 = vld [vmem:[%s3314 + $0x84] sm:$0xf]
      %v3707 = vld [vmem:[%s3314 + $0x88] sm:$0xf]
      %v3708 = vld [vmem:[%s3314 + $0x8c] sm:$0x1]
      %v3709 = vld [vmem:[%s3314 + $0x90] sm:$0xf]
      %v3710 = vld [vmem:[%s3314 + $0x94] sm:$0xf]
      %v3711 = vld [vmem:[%s3314 + $0x98] sm:$0x1]
      %v3712 = vld [vmem:[%s3314 + $0x9c] sm:$0xf]
      %v3713 = vld [vmem:[%s3314 + $0xa0] sm:$0xf]
      %v3714 = vld [vmem:[%s3314 + $0xa4] sm:$0x1]
      %v3715 = vld [vmem:[%s3314 + $0xa8] sm:$0xf]
      %v3716 = vld [vmem:[%s3314 + $0xac] sm:$0xf]
      %v3717 = vld [vmem:[%s3314 + $0xb0] sm:$0x1]
      %v3718 = vld [vmem:[%s3314 + $0xb4] sm:$0xf]
      %v3719 = vld [vmem:[%s3314 + $0xb8] sm:$0xf]
      %v3720 = vld [vmem:[%s3314 + $0xbc] sm:$0x1]
      %v3722 = vshrl.u32 %v3673, 16
      %v3724 = vrot.slane %v3722, 4
      %v3725 = vshll.u32 %v3673, 16
      %v3727 = vrot.slane %v3725, 5
      %v3728 = vor.u32 %v3724, %v3727
      %v3729 = vrot.slane %v3728, 4
      %v3731 = vshll.u32 %v3674, 16
      %v3733 = vrot.slane %v3731, 5
      %v3734 = vsel %vm361, %v3729, %v3733
      %v3735 = vshrl.u32 %v3674, 16
      %v3737 = vrot.slane %v3735, 4
      %v3738 = vor.u32 %v3737, %v3733
      %v3739 = vrot.slane %v3738, 4
      %v3741 = vshll.u32 %v3675, 16
      %v3743 = vrot.slane %v3741, 5
      %v3744 = vsel %vm361, %v3739, %v3743
      %v3746 = vshrl.u32 %v3676, 16
      %v3748 = vrot.slane %v3746, 4
      %v3749 = vshll.u32 %v3676, 16
      %v3751 = vrot.slane %v3749, 5
      %v3752 = vor.u32 %v3748, %v3751
      %v3753 = vrot.slane %v3752, 4
      %v3755 = vshll.u32 %v3677, 16
      %v3757 = vrot.slane %v3755, 5
      %v3758 = vsel %vm361, %v3753, %v3757
      %v3759 = vshrl.u32 %v3677, 16
      %v3761 = vrot.slane %v3759, 4
      %v3762 = vor.u32 %v3761, %v3757
      %v3763 = vrot.slane %v3762, 4
      %v3765 = vshll.u32 %v3678, 16
      %v3767 = vrot.slane %v3765, 5
      %v3768 = vsel %vm361, %v3763, %v3767
      %v3770 = vshrl.u32 %v3679, 16
      %v3772 = vrot.slane %v3770, 4
      %v3773 = vshll.u32 %v3679, 16
      %v3775 = vrot.slane %v3773, 5
      %v3776 = vor.u32 %v3772, %v3775
      %v3777 = vrot.slane %v3776, 4
      %v3779 = vshll.u32 %v3680, 16
      %v3781 = vrot.slane %v3779, 5
      %v3782 = vsel %vm361, %v3777, %v3781
      %v3783 = vshrl.u32 %v3680, 16
      %v3785 = vrot.slane %v3783, 4
      %v3786 = vor.u32 %v3785, %v3781
      %v3787 = vrot.slane %v3786, 4
      %v3789 = vshll.u32 %v3681, 16
      %v3791 = vrot.slane %v3789, 5
      %v3792 = vsel %vm361, %v3787, %v3791
      %v3794 = vshrl.u32 %v3682, 16
      %v3796 = vrot.slane %v3794, 4
      %v3797 = vshll.u32 %v3682, 16
      %v3799 = vrot.slane %v3797, 5
      %v3800 = vor.u32 %v3796, %v3799
      %v3801 = vrot.slane %v3800, 4
      %v3803 = vshll.u32 %v3683, 16
      %v3805 = vrot.slane %v3803, 5
      %v3806 = vsel %vm361, %v3801, %v3805
      %v3807 = vshrl.u32 %v3683, 16
      %v3809 = vrot.slane %v3807, 4
      %v3810 = vor.u32 %v3809, %v3805
      %v3811 = vrot.slane %v3810, 4
      %v3813 = vshll.u32 %v3684, 16
      %v3815 = vrot.slane %v3813, 5
      %v3816 = vsel %vm361, %v3811, %v3815
      %v3818 = vshrl.u32 %v3685, 16
      %v3820 = vrot.slane %v3818, 4
      %v3821 = vshll.u32 %v3685, 16
      %v3823 = vrot.slane %v3821, 5
      %v3824 = vor.u32 %v3820, %v3823
      %v3825 = vrot.slane %v3824, 4
      %v3827 = vshll.u32 %v3686, 16
      %v3829 = vrot.slane %v3827, 5
      %v3830 = vsel %vm361, %v3825, %v3829
      %v3831 = vshrl.u32 %v3686, 16
      %v3833 = vrot.slane %v3831, 4
      %v3834 = vor.u32 %v3833, %v3829
      %v3835 = vrot.slane %v3834, 4
      %v3837 = vshll.u32 %v3687, 16
      %v3839 = vrot.slane %v3837, 5
      %v3840 = vsel %vm361, %v3835, %v3839
      %v3842 = vshrl.u32 %v3688, 16
      %v3844 = vrot.slane %v3842, 4
      %v3845 = vshll.u32 %v3688, 16
      %v3847 = vrot.slane %v3845, 5
      %v3848 = vor.u32 %v3844, %v3847
      %v3849 = vrot.slane %v3848, 4
      %v3851 = vshll.u32 %v3689, 16
      %v3853 = vrot.slane %v3851, 5
      %v3854 = vsel %vm361, %v3849, %v3853
      %v3855 = vshrl.u32 %v3689, 16
      %v3857 = vrot.slane %v3855, 4
      %v3858 = vor.u32 %v3857, %v3853
      %v3859 = vrot.slane %v3858, 4
      %v3861 = vshll.u32 %v3690, 16
      %v3863 = vrot.slane %v3861, 5
      %v3864 = vsel %vm361, %v3859, %v3863
      %v3866 = vshrl.u32 %v3691, 16
      %v3868 = vrot.slane %v3866, 4
      %v3869 = vshll.u32 %v3691, 16
      %v3871 = vrot.slane %v3869, 5
      %v3872 = vor.u32 %v3868, %v3871
      %v3873 = vrot.slane %v3872, 4
      %v3875 = vshll.u32 %v3692, 16
      %v3877 = vrot.slane %v3875, 5
      %v3878 = vsel %vm361, %v3873, %v3877
      %v3879 = vshrl.u32 %v3692, 16
      %v3881 = vrot.slane %v3879, 4
      %v3882 = vor.u32 %v3881, %v3877
      %v3883 = vrot.slane %v3882, 4
      %v3885 = vshll.u32 %v3693, 16
      %v3887 = vrot.slane %v3885, 5
      %v3888 = vsel %vm361, %v3883, %v3887
      %v3890 = vshrl.u32 %v3694, 16
      %v3892 = vrot.slane %v3890, 4
      %v3893 = vshll.u32 %v3694, 16
      %v3895 = vrot.slane %v3893, 5
      %v3896 = vor.u32 %v3892, %v3895
      %v3897 = vrot.slane %v3896, 4
      %v3899 = vshll.u32 %v3695, 16
      %v3901 = vrot.slane %v3899, 5
      %v3902 = vsel %vm361, %v3897, %v3901
      %v3903 = vshrl.u32 %v3695, 16
      %v3905 = vrot.slane %v3903, 4
      %v3906 = vor.u32 %v3905, %v3901
      %v3907 = vrot.slane %v3906, 4
      %v3909 = vshll.u32 %v3696, 16
      %v3911 = vrot.slane %v3909, 5
      %v3912 = vsel %vm361, %v3907, %v3911
      %v3914 = vshrl.u32 %v3697, 16
      %v3916 = vrot.slane %v3914, 4
      %v3917 = vshll.u32 %v3697, 16
      %v3919 = vrot.slane %v3917, 5
      %v3920 = vor.u32 %v3916, %v3919
      %v3921 = vrot.slane %v3920, 4
      %v3923 = vshll.u32 %v3698, 16
      %v3925 = vrot.slane %v3923, 5
      %v3926 = vsel %vm361, %v3921, %v3925
      %v3927 = vshrl.u32 %v3698, 16
      %v3929 = vrot.slane %v3927, 4
      %v3930 = vor.u32 %v3929, %v3925
      %v3931 = vrot.slane %v3930, 4
      %v3933 = vshll.u32 %v3699, 16
      %v3935 = vrot.slane %v3933, 5
      %v3936 = vsel %vm361, %v3931, %v3935
      %v3938 = vshrl.u32 %v3700, 16
      %v3940 = vrot.slane %v3938, 4
      %v3941 = vshll.u32 %v3700, 16
      %v3943 = vrot.slane %v3941, 5
      %v3944 = vor.u32 %v3940, %v3943
      %v3945 = vrot.slane %v3944, 4
      %v3947 = vshll.u32 %v3701, 16
      %v3949 = vrot.slane %v3947, 5
      %v3950 = vsel %vm361, %v3945, %v3949
      %v3951 = vshrl.u32 %v3701, 16
      %v3953 = vrot.slane %v3951, 4
      %v3954 = vor.u32 %v3953, %v3949
      %v3955 = vrot.slane %v3954, 4
      %v3957 = vshll.u32 %v3702, 16
      %v3959 = vrot.slane %v3957, 5
      %v3960 = vsel %vm361, %v3955, %v3959
      %v3962 = vshrl.u32 %v3703, 16
      %v3964 = vrot.slane %v3962, 4
      %v3965 = vshll.u32 %v3703, 16
      %v3967 = vrot.slane %v3965, 5
      %v3968 = vor.u32 %v3964, %v3967
      %v3969 = vrot.slane %v3968, 4
      %v3971 = vshll.u32 %v3704, 16
      %v3973 = vrot.slane %v3971, 5
      %v3974 = vsel %vm361, %v3969, %v3973
      %v3975 = vshrl.u32 %v3704, 16
      %v3977 = vrot.slane %v3975, 4
      %v3978 = vor.u32 %v3977, %v3973
      %v3979 = vrot.slane %v3978, 4
      %v3981 = vshll.u32 %v3705, 16
      %v3983 = vrot.slane %v3981, 5
      %v3984 = vsel %vm361, %v3979, %v3983
      %v3986 = vshrl.u32 %v3706, 16
      %v3988 = vrot.slane %v3986, 4
      %v3989 = vshll.u32 %v3706, 16
      %v3991 = vrot.slane %v3989, 5
      %v3992 = vor.u32 %v3988, %v3991
      %v3993 = vrot.slane %v3992, 4
      %v3995 = vshll.u32 %v3707, 16
      %v3997 = vrot.slane %v3995, 5
      %v3998 = vsel %vm361, %v3993, %v3997
      %v3999 = vshrl.u32 %v3707, 16
      %v4001 = vrot.slane %v3999, 4
      %v4002 = vor.u32 %v4001, %v3997
      %v4003 = vrot.slane %v4002, 4
      %v4005 = vshll.u32 %v3708, 16
      %v4007 = vrot.slane %v4005, 5
      %v4008 = vsel %vm361, %v4003, %v4007
      %v4010 = vshrl.u32 %v3709, 16
      %v4012 = vrot.slane %v4010, 4
      %v4013 = vshll.u32 %v3709, 16
      %v4015 = vrot.slane %v4013, 5
      %v4016 = vor.u32 %v4012, %v4015
      %v4017 = vrot.slane %v4016, 4
      %v4019 = vshll.u32 %v3710, 16
      %v4021 = vrot.slane %v4019, 5
      %v4022 = vsel %vm361, %v4017, %v4021
      %v4023 = vshrl.u32 %v3710, 16
      %v4025 = vrot.slane %v4023, 4
      %v4026 = vor.u32 %v4025, %v4021
      %v4027 = vrot.slane %v4026, 4
      %v4029 = vshll.u32 %v3711, 16
      %v4031 = vrot.slane %v4029, 5
      %v4032 = vsel %vm361, %v4027, %v4031
      %v4034 = vshrl.u32 %v3712, 16
      %v4036 = vrot.slane %v4034, 4
      %v4037 = vshll.u32 %v3712, 16
      %v4039 = vrot.slane %v4037, 5
      %v4040 = vor.u32 %v4036, %v4039
      %v4041 = vrot.slane %v4040, 4
      %v4043 = vshll.u32 %v3713, 16
      %v4045 = vrot.slane %v4043, 5
      %v4046 = vsel %vm361, %v4041, %v4045
      %v4047 = vshrl.u32 %v3713, 16
      %v4049 = vrot.slane %v4047, 4
      %v4050 = vor.u32 %v4049, %v4045
      %v4051 = vrot.slane %v4050, 4
      %v4053 = vshll.u32 %v3714, 16
      %v4055 = vrot.slane %v4053, 5
      %v4056 = vsel %vm361, %v4051, %v4055
      %v4058 = vshrl.u32 %v3715, 16
      %v4060 = vrot.slane %v4058, 4
      %v4061 = vshll.u32 %v3715, 16
      %v4063 = vrot.slane %v4061, 5
      %v4064 = vor.u32 %v4060, %v4063
      %v4065 = vrot.slane %v4064, 4
      %v4067 = vshll.u32 %v3716, 16
      %v4069 = vrot.slane %v4067, 5
      %v4070 = vsel %vm361, %v4065, %v4069
      %v4071 = vshrl.u32 %v3716, 16
      %v4073 = vrot.slane %v4071, 4
      %v4074 = vor.u32 %v4073, %v4069
      %v4075 = vrot.slane %v4074, 4
      %v4077 = vshll.u32 %v3717, 16
      %v4079 = vrot.slane %v4077, 5
      %v4080 = vsel %vm361, %v4075, %v4079
      %v4082 = vshrl.u32 %v3718, 16
      %v4084 = vrot.slane %v4082, 4
      %v4085 = vshll.u32 %v3718, 16
      %v4087 = vrot.slane %v4085, 5
      %v4088 = vor.u32 %v4084, %v4087
      %v4089 = vrot.slane %v4088, 4
      %v4091 = vshll.u32 %v3719, 16
      %v4093 = vrot.slane %v4091, 5
      %v4094 = vsel %vm361, %v4089, %v4093
      %v4095 = vshrl.u32 %v3719, 16
      %v4097 = vrot.slane %v4095, 4
      %v4098 = vor.u32 %v4097, %v4093
      %v4099 = vrot.slane %v4098, 4
      %v4101 = vshll.u32 %v3720, 16
      %v4103 = vrot.slane %v4101, 5
      %v4104 = vsel %vm361, %v4099, %v4103
      %s4105 = scalar_lea.vmem %s285, 28
      %v4106 = vld [vmem:[%s4105] sm:$0xf]
      %v4107 = vunpack.c.l.b16 %v3734
      %v4108 = vunpack.c.l.b16 %v3744
      %v4109 = vunpack.c.l.b16 %v3758
      %v4110 = vunpack.c.l.b16 %v3768
      %v4111 = vunpack.c.l.b16 %v3782
      %v4112 = vunpack.c.l.b16 %v3792
      %v4113 = vunpack.c.l.b16 %v3806
      %v4114 = vunpack.c.l.b16 %v3816
      %v4115 = vunpack.c.l.b16 %v3830
      %v4116 = vunpack.c.l.b16 %v3840
      %v4117 = vunpack.c.l.b16 %v3854
      %v4118 = vunpack.c.l.b16 %v3864
      %v4119 = vunpack.c.l.b16 %v3878
      %v4120 = vunpack.c.l.b16 %v3888
      %v4121 = vunpack.c.l.b16 %v3902
      %v4122 = vunpack.c.l.b16 %v3912
      %v4123 = vunpack.c.l.b16 %v3926
      %v4124 = vunpack.c.l.b16 %v3936
      %v4125 = vunpack.c.l.b16 %v3950
      %v4126 = vunpack.c.l.b16 %v3960
      %v4127 = vunpack.c.l.b16 %v3974
      %v4128 = vunpack.c.l.b16 %v3984
      %v4129 = vunpack.c.l.b16 %v3998
      %v4130 = vunpack.c.l.b16 %v4008
      %v4131 = vunpack.c.l.b16 %v4022
      %v4132 = vunpack.c.l.b16 %v4032
      %v4133 = vunpack.c.l.b16 %v4046
      %v4134 = vunpack.c.l.b16 %v4056
      %v4135 = vunpack.c.l.b16 %v4070
      %v4136 = vunpack.c.l.b16 %v4080
      %v4137 = vunpack.c.l.b16 %v4094
      %v4138 = vunpack.c.l.b16 %v4104
      %v4139 = vpack.c.b16 %v4108, %v4107
      %v4140 = vpack.c.b16 %v4110, %v4109
      %v4141 = vpack.c.b16 %v4112, %v4111
      %v4142 = vpack.c.b16 %v4114, %v4113
      %v4143 = vpack.c.b16 %v4116, %v4115
      %v4144 = vpack.c.b16 %v4118, %v4117
      %v4145 = vpack.c.b16 %v4120, %v4119
      %v4146 = vpack.c.b16 %v4122, %v4121
      %v4147 = vpack.c.b16 %v4124, %v4123
      %v4148 = vpack.c.b16 %v4126, %v4125
      %v4149 = vpack.c.b16 %v4128, %v4127
      %v4150 = vpack.c.b16 %v4130, %v4129
      %v4151 = vpack.c.b16 %v4132, %v4131
      %v4152 = vpack.c.b16 %v4134, %v4133
      %v4153 = vpack.c.b16 %v4136, %v4135
      %v4154 = vpack.c.b16 %v4138, %v4137
      %v4156 = vsel %vm796, %v4139, 0
      %v4159 = vsel %vm796, %v4140, 0
      %v4162 = vsel %vm796, %v4141, 0
      %v4165 = vsel %vm796, %v4142, 0
      %v4168 = vsel %vm796, %v4143, 0
      %v4171 = vsel %vm796, %v4144, 0
      %v4174 = vsel %vm796, %v4145, 0
      %v4177 = vsel %vm796, %v4146, 0
      %v4180 = vsel %vm796, %v4147, 0
      %v4183 = vsel %vm796, %v4148, 0
      %v4186 = vsel %vm796, %v4149, 0
      %v4189 = vsel %vm796, %v4150, 0
      %v4192 = vsel %vm796, %v4151, 0
      %v4195 = vsel %vm796, %v4152, 0
      %v4198 = vsel %vm796, %v4153, 0
      %v4201 = vsel %vm796, %v4154, 0
      %v4204 = vsel %vm845, %v4106, 0
      %4206 = vmatprep.subr.bf16.mxu0 0
      %4207 = vmatpush1.bf16.msra.mxu0 %v4204
      %4208 = vmatprep.subr.bf16.mxu0 0
      %4209 = vmatpush1.bf16.msra.mxu0 0
      %4210 = vmatprep.subr.bf16.mxu0 0
      %4211 = vmatpush1.bf16.msra.mxu0 0
      %4212 = vmatprep.subr.bf16.mxu0 0
      %4213 = vmatpush1.bf16.msra.mxu0 0
      %4214 = vmatprep.subr.bf16.mxu0 0
      %4215 = vmatpush1.bf16.msra.mxu0 0
      %4216 = vmatprep.subr.bf16.mxu0 0
      %4217 = vmatpush1.bf16.msra.mxu0 0
      %4218 = vmatprep.subr.bf16.mxu0 0
      %4219 = vmatpush1.bf16.msra.mxu0 0
      %4220 = vmatprep.subr.bf16.mxu0 0
      %4221 = vmatpush1.bf16.msra.mxu0 0
      %4222 = vmatprep.subr.bf16.mxu0 0
      %4223 = vmatpush1.bf16.msra.mxu0 0
      %4224 = vmatprep.subr.bf16.mxu0 0
      %4225 = vmatpush1.bf16.msra.mxu0 0
      %4226 = vmatprep.subr.bf16.mxu0 0
      %4227 = vmatpush1.bf16.msra.mxu0 0
      %4228 = vmatprep.subr.bf16.mxu0 0
      %4229 = vmatpush1.bf16.msra.mxu0 0
      %4230 = vmatprep.subr.bf16.mxu0 0
      %4231 = vmatpush1.bf16.msra.mxu0 0
      %4232 = vmatprep.subr.bf16.mxu0 0
      %4233 = vmatpush1.bf16.msra.mxu0 0
      %4234 = vmatprep.subr.bf16.mxu0 0
      %4235 = vmatpush1.bf16.msra.mxu0 0
      %4236 = vmatprep.subr.bf16.mxu0 0
      %4237 = vmatpush1.bf16.msra.mxu0 0
      %4238 = vmatprep.mubr.bf16.mxu0 0
      %4239 = vmatmul.mubr.bf16.gmra.mrb[0].mxu0 %v4156
      %v4240 = vpop.f32.mrb[0].mxu0
      %v4241 = vadd.f32 0.0, %v4240
      %v4242 = vpop.f32.mrb[0].mxu0
      %v4243 = vpop.f32.mrb[0].mxu0
      %v4244 = vadd.f32 0.0, %v4243
      %v4245 = vpop.f32.mrb[0].mxu0
      %4246 = vmatprep.mubr.bf16.mxu0 0
      %4247 = vmatmul.mubr.bf16.gmra.mrb[0].mxu0 %v4159
      %v4248 = vpop.f32.mrb[0].mxu0
      %v4249 = vadd.f32 0.0, %v4248
      %v4250 = vpop.f32.mrb[0].mxu0
      %v4251 = vpop.f32.mrb[0].mxu0
      %v4252 = vadd.f32 0.0, %v4251
      %v4253 = vpop.f32.mrb[0].mxu0
      %4254 = vmatprep.mubr.bf16.mxu0 0
      %4255 = vmatmul.mubr.bf16.gmra.mrb[0].mxu0 %v4162
      %v4256 = vpop.f32.mrb[0].mxu0
      %v4257 = vadd.f32 0.0, %v4256
      %v4258 = vpop.f32.mrb[0].mxu0
      %v4259 = vpop.f32.mrb[0].mxu0
      %v4260 = vadd.f32 0.0, %v4259
      %v4261 = vpop.f32.mrb[0].mxu0
      %4262 = vmatprep.mubr.bf16.mxu0 0
      %4263 = vmatmul.mubr.bf16.gmra.mrb[0].mxu0 %v4165
      %v4264 = vpop.f32.mrb[0].mxu0
      %v4265 = vadd.f32 0.0, %v4264
      %v4266 = vpop.f32.mrb[0].mxu0
      %v4267 = vpop.f32.mrb[0].mxu0
      %v4268 = vadd.f32 0.0, %v4267
      %v4269 = vpop.f32.mrb[0].mxu0
      %4270 = vmatprep.mubr.bf16.mxu0 0
      %4271 = vmatmul.mubr.bf16.gmra.mrb[0].mxu0 %v4168
      %v4272 = vpop.f32.mrb[0].mxu0
      %v4273 = vadd.f32 0.0, %v4272
      %v4274 = vpop.f32.mrb[0].mxu0
      %v4275 = vpop.f32.mrb[0].mxu0
      %v4276 = vadd.f32 0.0, %v4275
      %v4277 = vpop.f32.mrb[0].mxu0
      %4278 = vmatprep.mubr.bf16.mxu0 0
      %4279 = vmatmul.mubr.bf16.gmra.mrb[0].mxu0 %v4171
      %v4280 = vpop.f32.mrb[0].mxu0
      %v4281 = vadd.f32 0.0, %v4280
      %v4282 = vpop.f32.mrb[0].mxu0
      %v4283 = vpop.f32.mrb[0].mxu0
      %v4284 = vadd.f32 0.0, %v4283
      %v4285 = vpop.f32.mrb[0].mxu0
      %4286 = vmatprep.mubr.bf16.mxu0 0
      %4287 = vmatmul.mubr.bf16.gmra.mrb[0].mxu0 %v4174
      %v4288 = vpop.f32.mrb[0].mxu0
      %v4289 = vadd.f32 0.0, %v4288
      %v4290 = vpop.f32.mrb[0].mxu0
      %v4291 = vpop.f32.mrb[0].mxu0
      %v4292 = vadd.f32 0.0, %v4291
      %v4293 = vpop.f32.mrb[0].mxu0
      %4294 = vmatprep.mubr.bf16.mxu0 0
      %4295 = vmatmul.mubr.bf16.gmra.mrb[0].mxu0 %v4177
      %v4296 = vpop.f32.mrb[0].mxu0
      %v4297 = vadd.f32 0.0, %v4296
      %v4298 = vpop.f32.mrb[0].mxu0
      %v4299 = vpop.f32.mrb[0].mxu0
      %v4300 = vadd.f32 0.0, %v4299
      %v4301 = vpop.f32.mrb[0].mxu0
      %4302 = vmatprep.mubr.bf16.mxu0 0
      %4303 = vmatmul.mubr.bf16.gmra.mrb[0].mxu0 %v4180
      %v4304 = vpop.f32.mrb[0].mxu0
      %v4305 = vadd.f32 0.0, %v4304
      %v4306 = vpop.f32.mrb[0].mxu0
      %v4307 = vpop.f32.mrb[0].mxu0
      %v4308 = vadd.f32 0.0, %v4307
      %v4309 = vpop.f32.mrb[0].mxu0
      %4310 = vmatprep.mubr.bf16.mxu0 0
      %4311 = vmatmul.mubr.bf16.gmra.mrb[0].mxu0 %v4183
      %v4312 = vpop.f32.mrb[0].mxu0
      %v4313 = vadd.f32 0.0, %v4312
      %v4314 = vpop.f32.mrb[0].mxu0
      %v4315 = vpop.f32.mrb[0].mxu0
      %v4316 = vadd.f32 0.0, %v4315
      %v4317 = vpop.f32.mrb[0].mxu0
      %4318 = vmatprep.mubr.bf16.mxu0 0
      %4319 = vmatmul.mubr.bf16.gmra.mrb[0].mxu0 %v4186
      %v4320 = vpop.f32.mrb[0].mxu0
      %v4321 = vadd.f32 0.0, %v4320
      %v4322 = vpop.f32.mrb[0].mxu0
      %v4323 = vpop.f32.mrb[0].mxu0
      %v4324 = vadd.f32 0.0, %v4323
      %v4325 = vpop.f32.mrb[0].mxu0
      %4326 = vmatprep.mubr.bf16.mxu0 0
      %4327 = vmatmul.mubr.bf16.gmra.mrb[0].mxu0 %v4189
      %v4328 = vpop.f32.mrb[0].mxu0
      %v4329 = vadd.f32 0.0, %v4328
      %v4330 = vpop.f32.mrb[0].mxu0
      %v4331 = vpop.f32.mrb[0].mxu0
      %v4332 = vadd.f32 0.0, %v4331
      %v4333 = vpop.f32.mrb[0].mxu0
      %4334 = vmatprep.mubr.bf16.mxu0 0
      %4335 = vmatmul.mubr.bf16.gmra.mrb[0].mxu0 %v4192
      %v4336 = vpop.f32.mrb[0].mxu0
      %v4337 = vadd.f32 0.0, %v4336
      %v4338 = vpop.f32.mrb[0].mxu0
      %v4339 = vpop.f32.mrb[0].mxu0
      %v4340 = vadd.f32 0.0, %v4339
      %v4341 = vpop.f32.mrb[0].mxu0
      %4342 = vmatprep.mubr.bf16.mxu0 0
      %4343 = vmatmul.mubr.bf16.gmra.mrb[0].mxu0 %v4195
      %v4344 = vpop.f32.mrb[0].mxu0
      %v4345 = vadd.f32 0.0, %v4344
      %v4346 = vpop.f32.mrb[0].mxu0
      %v4347 = vpop.f32.mrb[0].mxu0
      %v4348 = vadd.f32 0.0, %v4347
      %v4349 = vpop.f32.mrb[0].mxu0
      %4350 = vmatprep.mubr.bf16.mxu0 0
      %4351 = vmatmul.mubr.bf16.gmra.mrb[0].mxu0 %v4198
      %v4352 = vpop.f32.mrb[0].mxu0
      %v4353 = vadd.f32 0.0, %v4352
      %v4354 = vpop.f32.mrb[0].mxu0
      %v4355 = vpop.f32.mrb[0].mxu0
      %v4356 = vadd.f32 0.0, %v4355
      %v4357 = vpop.f32.mrb[0].mxu0
      %4358 = vmatprep.mubr.bf16.mxu0 0
      %4359 = vmatmul.mubr.bf16.gmra.mrb[0].mxu0 %v4201
      %v4360 = vpop.f32.mrb[0].mxu0
      %v4361 = vadd.f32 0.0, %v4360
      %v4362 = vpop.f32.mrb[0].mxu0
      %v4363 = vpop.f32.mrb[0].mxu0
      %v4364 = vadd.f32 0.0, %v4363
      %v4365 = vpop.f32.mrb[0].mxu0
      %4366 = vdwg.mxu0
      %v4367 = vadd.f32 %v3641, %v4241
      %v4368 = vadd.f32 %v3642, %v4244
      %v4369 = vadd.f32 %v3643, %v4249
      %v4370 = vadd.f32 %v3644, %v4252
      %v4371 = vadd.f32 %v3645, %v4257
      %v4372 = vadd.f32 %v3646, %v4260
      %v4373 = vadd.f32 %v3647, %v4265
      %v4374 = vadd.f32 %v3648, %v4268
      %v4375 = vadd.f32 %v3649, %v4273
      %v4376 = vadd.f32 %v3650, %v4276
      %v4377 = vadd.f32 %v3651, %v4281
      %v4378 = vadd.f32 %v3652, %v4284
      %v4379 = vadd.f32 %v3653, %v4289
      %v4380 = vadd.f32 %v3654, %v4292
      %v4381 = vadd.f32 %v3655, %v4297
      %v4382 = vadd.f32 %v3656, %v4300
      %v4383 = vadd.f32 %v3657, %v4305
      %v4384 = vadd.f32 %v3658, %v4308
      %v4385 = vadd.f32 %v3659, %v4313
      %v4386 = vadd.f32 %v3660, %v4316
      %v4387 = vadd.f32 %v3661, %v4321
      %v4388 = vadd.f32 %v3662, %v4324
      %v4389 = vadd.f32 %v3663, %v4329
      %v4390 = vadd.f32 %v3664, %v4332
      %v4391 = vadd.f32 %v3665, %v4337
      %v4392 = vadd.f32 %v3666, %v4340
      %v4393 = vadd.f32 %v3667, %v4345
      %v4394 = vadd.f32 %v3668, %v4348
      %v4395 = vadd.f32 %v3669, %v4353
      %v4396 = vadd.f32 %v3670, %v4356
      %v4397 = vadd.f32 %v3671, %v4361
      %v4398 = vadd.f32 %v3672, %v4364
      %v4399 = vld [vmem:[%s3314] sm:$0xe]
      %v4400 = vld [vmem:[%s3314 + $0xc] sm:$0xe]
      %v4401 = vld [vmem:[%s3314 + $0x18] sm:$0xe]
      %v4402 = vld [vmem:[%s3314 + $0x24] sm:$0xe]
      %v4403 = vld [vmem:[%s3314 + $0x30] sm:$0xe]
      %v4404 = vld [vmem:[%s3314 + $0x3c] sm:$0xe]
      %v4405 = vld [vmem:[%s3314 + $0x48] sm:$0xe]
      %v4406 = vld [vmem:[%s3314 + $0x54] sm:$0xe]
      %v4407 = vld [vmem:[%s3314 + $0x60] sm:$0xe]
      %v4408 = vld [vmem:[%s3314 + $0x6c] sm:$0xe]
      %v4409 = vld [vmem:[%s3314 + $0x78] sm:$0xe]
      %v4410 = vld [vmem:[%s3314 + $0x84] sm:$0xe]
      %v4411 = vld [vmem:[%s3314 + $0x90] sm:$0xe]
      %v4412 = vld [vmem:[%s3314 + $0x9c] sm:$0xe]
      %v4413 = vld [vmem:[%s3314 + $0xa8] sm:$0xe]
      %v4414 = vld [vmem:[%s3314 + $0xb4] sm:$0xe]
      %v4463 = vrot.slane %v4399, 5
      %v4464 = vrot.slane %v4463, 4
      %v4465 = vrot.slane %v3674, 5
      %v4466 = vsel %vm1352, %v4464, %v4465
      %v4467 = vrot.slane %v4465, 4
      %v4468 = vrot.slane %v3675, 5
      %v4469 = vsel %vm1352, %v4467, %v4468
      %v4470 = vrot.slane %v4400, 5
      %v4471 = vrot.slane %v4470, 4
      %v4472 = vrot.slane %v3677, 5
      %v4473 = vsel %vm1352, %v4471, %v4472
      %v4474 = vrot.slane %v4472, 4
      %v4475 = vrot.slane %v3678, 5
      %v4476 = vsel %vm1352, %v4474, %v4475
      %v4477 = vrot.slane %v4401, 5
      %v4478 = vrot.slane %v4477, 4
      %v4479 = vrot.slane %v3680, 5
      %v4480 = vsel %vm1352, %v4478, %v4479
      %v4481 = vrot.slane %v4479, 4
      %v4482 = vrot.slane %v3681, 5
      %v4483 = vsel %vm1352, %v4481, %v4482
      %v4484 = vrot.slane %v4402, 5
      %v4485 = vrot.slane %v4484, 4
      %v4486 = vrot.slane %v3683, 5
      %v4487 = vsel %vm1352, %v4485, %v4486
      %v4488 = vrot.slane %v4486, 4
      %v4489 = vrot.slane %v3684, 5
      %v4490 = vsel %vm1352, %v4488, %v4489
      %v4491 = vrot.slane %v4403, 5
      %v4492 = vrot.slane %v4491, 4
      %v4493 = vrot.slane %v3686, 5
      %v4494 = vsel %vm1352, %v4492, %v4493
      %v4495 = vrot.slane %v4493, 4
      %v4496 = vrot.slane %v3687, 5
      %v4497 = vsel %vm1352, %v4495, %v4496
      %v4498 = vrot.slane %v4404, 5
      %v4499 = vrot.slane %v4498, 4
      %v4500 = vrot.slane %v3689, 5
      %v4501 = vsel %vm1352, %v4499, %v4500
      %v4502 = vrot.slane %v4500, 4
      %v4503 = vrot.slane %v3690, 5
      %v4504 = vsel %vm1352, %v4502, %v4503
      %v4505 = vrot.slane %v4405, 5
      %v4506 = vrot.slane %v4505, 4
      %v4507 = vrot.slane %v3692, 5
      %v4508 = vsel %vm1352, %v4506, %v4507
      %v4509 = vrot.slane %v4507, 4
      %v4510 = vrot.slane %v3693, 5
      %v4511 = vsel %vm1352, %v4509, %v4510
      %v4512 = vrot.slane %v4406, 5
      %v4513 = vrot.slane %v4512, 4
      %v4514 = vrot.slane %v3695, 5
      %v4515 = vsel %vm1352, %v4513, %v4514
      %v4516 = vrot.slane %v4514, 4
      %v4517 = vrot.slane %v3696, 5
      %v4518 = vsel %vm1352, %v4516, %v4517
      %v4519 = vrot.slane %v4407, 5
      %v4520 = vrot.slane %v4519, 4
      %v4521 = vrot.slane %v3698, 5
      %v4522 = vsel %vm1352, %v4520, %v4521
      %v4523 = vrot.slane %v4521, 4
      %v4524 = vrot.slane %v3699, 5
      %v4525 = vsel %vm1352, %v4523, %v4524
      %v4526 = vrot.slane %v4408, 5
      %v4527 = vrot.slane %v4526, 4
      %v4528 = vrot.slane %v3701, 5
      %v4529 = vsel %vm1352, %v4527, %v4528
      %v4530 = vrot.slane %v4528, 4
      %v4531 = vrot.slane %v3702, 5
      %v4532 = vsel %vm1352, %v4530, %v4531
      %v4533 = vrot.slane %v4409, 5
      %v4534 = vrot.slane %v4533, 4
      %v4535 = vrot.slane %v3704, 5
      %v4536 = vsel %vm1352, %v4534, %v4535
      %v4537 = vrot.slane %v4535, 4
      %v4538 = vrot.slane %v3705, 5
      %v4539 = vsel %vm1352, %v4537, %v4538
      %v4540 = vrot.slane %v4410, 5
      %v4541 = vrot.slane %v4540, 4
      %v4542 = vrot.slane %v3707, 5
      %v4543 = vsel %vm1352, %v4541, %v4542
      %v4544 = vrot.slane %v4542, 4
      %v4545 = vrot.slane %v3708, 5
      %v4546 = vsel %vm1352, %v4544, %v4545
      %v4547 = vrot.slane %v4411, 5
      %v4548 = vrot.slane %v4547, 4
      %v4549 = vrot.slane %v3710, 5
      %v4550 = vsel %vm1352, %v4548, %v4549
      %v4551 = vrot.slane %v4549, 4
      %v4552 = vrot.slane %v3711, 5
      %v4553 = vsel %vm1352, %v4551, %v4552
      %v4554 = vrot.slane %v4412, 5
      %v4555 = vrot.slane %v4554, 4
      %v4556 = vrot.slane %v3713, 5
      %v4557 = vsel %vm1352, %v4555, %v4556
      %v4558 = vrot.slane %v4556, 4
      %v4559 = vrot.slane %v3714, 5
      %v4560 = vsel %vm1352, %v4558, %v4559
      %v4561 = vrot.slane %v4413, 5
      %v4562 = vrot.slane %v4561, 4
      %v4563 = vrot.slane %v3716, 5
      %v4564 = vsel %vm1352, %v4562, %v4563
      %v4565 = vrot.slane %v4563, 4
      %v4566 = vrot.slane %v3717, 5
      %v4567 = vsel %vm1352, %v4565, %v4566
      %v4568 = vrot.slane %v4414, 5
      %v4569 = vrot.slane %v4568, 4
      %v4570 = vrot.slane %v3719, 5
      %v4571 = vsel %vm1352, %v4569, %v4570
      %v4572 = vrot.slane %v4570, 4
      %v4573 = vrot.slane %v3720, 5
      %v4574 = vsel %vm1352, %v4572, %v4573
      %s4575 = scalar_lea.vmem %s285, 32
      %v4576 = vld [vmem:[%s4575] sm:$0xf]
      %v4577 = vunpack.c.l.b16 %v4466
      %v4578 = vunpack.c.l.b16 %v4469
      %v4579 = vunpack.c.l.b16 %v4473
      %v4580 = vunpack.c.l.b16 %v4476
      %v4581 = vunpack.c.l.b16 %v4480
      %v4582 = vunpack.c.l.b16 %v4483
      %v4583 = vunpack.c.l.b16 %v4487
      %v4584 = vunpack.c.l.b16 %v4490
      %v4585 = vunpack.c.l.b16 %v4494
      %v4586 = vunpack.c.l.b16 %v4497
      %v4587 = vunpack.c.l.b16 %v4501
      %v4588 = vunpack.c.l.b16 %v4504
      %v4589 = vunpack.c.l.b16 %v4508
      %v4590 = vunpack.c.l.b16 %v4511
      %v4591 = vunpack.c.l.b16 %v4515
      %v4592 = vunpack.c.l.b16 %v4518
      %v4593 = vunpack.c.l.b16 %v4522
      %v4594 = vunpack.c.l.b16 %v4525
      %v4595 = vunpack.c.l.b16 %v4529
      %v4596 = vunpack.c.l.b16 %v4532
      %v4597 = vunpack.c.l.b16 %v4536
      %v4598 = vunpack.c.l.b16 %v4539
      %v4599 = vunpack.c.l.b16 %v4543
      %v4600 = vunpack.c.l.b16 %v4546
      %v4601 = vunpack.c.l.b16 %v4550
      %v4602 = vunpack.c.l.b16 %v4553
      %v4603 = vunpack.c.l.b16 %v4557
      %v4604 = vunpack.c.l.b16 %v4560
      %v4605 = vunpack.c.l.b16 %v4564
      %v4606 = vunpack.c.l.b16 %v4567
      %v4607 = vunpack.c.l.b16 %v4571
      %v4608 = vunpack.c.l.b16 %v4574
      %v4609 = vpack.c.b16 %v4578, %v4577
      %v4610 = vpack.c.b16 %v4580, %v4579
      %v4611 = vpack.c.b16 %v4582, %v4581
      %v4612 = vpack.c.b16 %v4584, %v4583
      %v4613 = vpack.c.b16 %v4586, %v4585
      %v4614 = vpack.c.b16 %v4588, %v4587
      %v4615 = vpack.c.b16 %v4590, %v4589
      %v4616 = vpack.c.b16 %v4592, %v4591
      %v4617 = vpack.c.b16 %v4594, %v4593
      %v4618 = vpack.c.b16 %v4596, %v4595
      %v4619 = vpack.c.b16 %v4598, %v4597
      %v4620 = vpack.c.b16 %v4600, %v4599
      %v4621 = vpack.c.b16 %v4602, %v4601
      %v4622 = vpack.c.b16 %v4604, %v4603
      %v4623 = vpack.c.b16 %v4606, %v4605
      %v4624 = vpack.c.b16 %v4608, %v4607
      %v4626 = vsel %vm796, %v4609, 0
      %v4629 = vsel %vm796, %v4610, 0
      %v4632 = vsel %vm796, %v4611, 0
      %v4635 = vsel %vm796, %v4612, 0
      %v4638 = vsel %vm796, %v4613, 0
      %v4641 = vsel %vm796, %v4614, 0
      %v4644 = vsel %vm796, %v4615, 0
      %v4647 = vsel %vm796, %v4616, 0
      %v4650 = vsel %vm796, %v4617, 0
      %v4653 = vsel %vm796, %v4618, 0
      %v4656 = vsel %vm796, %v4619, 0
      %v4659 = vsel %vm796, %v4620, 0
      %v4662 = vsel %vm796, %v4621, 0
      %v4665 = vsel %vm796, %v4622, 0
      %v4668 = vsel %vm796, %v4623, 0
      %v4671 = vsel %vm796, %v4624, 0
      %v4674 = vsel %vm845, %v4576, 0
      %4676 = vmatprep.subr.bf16.mxu0 0
      %4677 = vmatpush1.bf16.msra.mxu0 %v4674
      %4678 = vmatprep.subr.bf16.mxu0 0
      %4679 = vmatpush1.bf16.msra.mxu0 0
      %4680 = vmatprep.subr.bf16.mxu0 0
      %4681 = vmatpush1.bf16.msra.mxu0 0
      %4682 = vmatprep.subr.bf16.mxu0 0
      %4683 = vmatpush1.bf16.msra.mxu0 0
      %4684 = vmatprep.subr.bf16.mxu0 0
      %4685 = vmatpush1.bf16.msra.mxu0 0
      %4686 = vmatprep.subr.bf16.mxu0 0
      %4687 = vmatpush1.bf16.msra.mxu0 0
      %4688 = vmatprep.subr.bf16.mxu0 0
      %4689 = vmatpush1.bf16.msra.mxu0 0
      %4690 = vmatprep.subr.bf16.mxu0 0
      %4691 = vmatpush1.bf16.msra.mxu0 0
      %4692 = vmatprep.subr.bf16.mxu0 0
      %4693 = vmatpush1.bf16.msra.mxu0 0
      %4694 = vmatprep.subr.bf16.mxu0 0
      %4695 = vmatpush1.bf16.msra.mxu0 0
      %4696 = vmatprep.subr.bf16.mxu0 0
      %4697 = vmatpush1.bf16.msra.mxu0 0
      %4698 = vmatprep.subr.bf16.mxu0 0
      %4699 = vmatpush1.bf16.msra.mxu0 0
      %4700 = vmatprep.subr.bf16.mxu0 0
      %4701 = vmatpush1.bf16.msra.mxu0 0
      %4702 = vmatprep.subr.bf16.mxu0 0
      %4703 = vmatpush1.bf16.msra.mxu0 0
      %4704 = vmatprep.subr.bf16.mxu0 0
      %4705 = vmatpush1.bf16.msra.mxu0 0
      %4706 = vmatprep.subr.bf16.mxu0 0
      %4707 = vmatpush1.bf16.msra.mxu0 0
      %4708 = vmatprep.mubr.bf16.mxu0 0
      %4709 = vmatmul.mubr.bf16.gmra.mrb[0].mxu0 %v4626
      %v4710 = vpop.f32.mrb[0].mxu0
      %v4711 = vadd.f32 0.0, %v4710
      %v4712 = vpop.f32.mrb[0].mxu0
      %v4713 = vpop.f32.mrb[0].mxu0
      %v4714 = vadd.f32 0.0, %v4713
      %v4715 = vpop.f32.mrb[0].mxu0
      %4716 = vmatprep.mubr.bf16.mxu0 0
      %4717 = vmatmul.mubr.bf16.gmra.mrb[0].mxu0 %v4629
      %v4718 = vpop.f32.mrb[0].mxu0
      %v4719 = vadd.f32 0.0, %v4718
      %v4720 = vpop.f32.mrb[0].mxu0
      %v4721 = vpop.f32.mrb[0].mxu0
      %v4722 = vadd.f32 0.0, %v4721
      %v4723 = vpop.f32.mrb[0].mxu0
      %4724 = vmatprep.mubr.bf16.mxu0 0
      %4725 = vmatmul.mubr.bf16.gmra.mrb[0].mxu0 %v4632
      %v4726 = vpop.f32.mrb[0].mxu0
      %v4727 = vadd.f32 0.0, %v4726
      %v4728 = vpop.f32.mrb[0].mxu0
      %v4729 = vpop.f32.mrb[0].mxu0
      %v4730 = vadd.f32 0.0, %v4729
      %v4731 = vpop.f32.mrb[0].mxu0
      %4732 = vmatprep.mubr.bf16.mxu0 0
      %4733 = vmatmul.mubr.bf16.gmra.mrb[0].mxu0 %v4635
      %v4734 = vpop.f32.mrb[0].mxu0
      %v4735 = vadd.f32 0.0, %v4734
      %v4736 = vpop.f32.mrb[0].mxu0
      %v4737 = vpop.f32.mrb[0].mxu0
      %v4738 = vadd.f32 0.0, %v4737
      %v4739 = vpop.f32.mrb[0].mxu0
      %4740 = vmatprep.mubr.bf16.mxu0 0
      %4741 = vmatmul.mubr.bf16.gmra.mrb[0].mxu0 %v4638
      %v4742 = vpop.f32.mrb[0].mxu0
      %v4743 = vadd.f32 0.0, %v4742
      %v4744 = vpop.f32.mrb[0].mxu0
      %v4745 = vpop.f32.mrb[0].mxu0
      %v4746 = vadd.f32 0.0, %v4745
      %v4747 = vpop.f32.mrb[0].mxu0
      %4748 = vmatprep.mubr.bf16.mxu0 0
      %4749 = vmatmul.mubr.bf16.gmra.mrb[0].mxu0 %v4641
      %v4750 = vpop.f32.mrb[0].mxu0
      %v4751 = vadd.f32 0.0, %v4750
      %v4752 = vpop.f32.mrb[0].mxu0
      %v4753 = vpop.f32.mrb[0].mxu0
      %v4754 = vadd.f32 0.0, %v4753
      %v4755 = vpop.f32.mrb[0].mxu0
      %4756 = vmatprep.mubr.bf16.mxu0 0
      %4757 = vmatmul.mubr.bf16.gmra.mrb[0].mxu0 %v4644
      %v4758 = vpop.f32.mrb[0].mxu0
      %v4759 = vadd.f32 0.0, %v4758
      %v4760 = vpop.f32.mrb[0].mxu0
      %v4761 = vpop.f32.mrb[0].mxu0
      %v4762 = vadd.f32 0.0, %v4761
      %v4763 = vpop.f32.mrb[0].mxu0
      %4764 = vmatprep.mubr.bf16.mxu0 0
      %4765 = vmatmul.mubr.bf16.gmra.mrb[0].mxu0 %v4647
      %v4766 = vpop.f32.mrb[0].mxu0
      %v4767 = vadd.f32 0.0, %v4766
      %v4768 = vpop.f32.mrb[0].mxu0
      %v4769 = vpop.f32.mrb[0].mxu0
      %v4770 = vadd.f32 0.0, %v4769
      %v4771 = vpop.f32.mrb[0].mxu0
      %4772 = vmatprep.mubr.bf16.mxu0 0
      %4773 = vmatmul.mubr.bf16.gmra.mrb[0].mxu0 %v4650
      %v4774 = vpop.f32.mrb[0].mxu0
      %v4775 = vadd.f32 0.0, %v4774
      %v4776 = vpop.f32.mrb[0].mxu0
      %v4777 = vpop.f32.mrb[0].mxu0
      %v4778 = vadd.f32 0.0, %v4777
      %v4779 = vpop.f32.mrb[0].mxu0
      %4780 = vmatprep.mubr.bf16.mxu0 0
      %4781 = vmatmul.mubr.bf16.gmra.mrb[0].mxu0 %v4653
      %v4782 = vpop.f32.mrb[0].mxu0
      %v4783 = vadd.f32 0.0, %v4782
      %v4784 = vpop.f32.mrb[0].mxu0
      %v4785 = vpop.f32.mrb[0].mxu0
      %v4786 = vadd.f32 0.0, %v4785
      %v4787 = vpop.f32.mrb[0].mxu0
      %4788 = vmatprep.mubr.bf16.mxu0 0
      %4789 = vmatmul.mubr.bf16.gmra.mrb[0].mxu0 %v4656
      %v4790 = vpop.f32.mrb[0].mxu0
      %v4791 = vadd.f32 0.0, %v4790
      %v4792 = vpop.f32.mrb[0].mxu0
      %v4793 = vpop.f32.mrb[0].mxu0
      %v4794 = vadd.f32 0.0, %v4793
      %v4795 = vpop.f32.mrb[0].mxu0
      %4796 = vmatprep.mubr.bf16.mxu0 0
      %4797 = vmatmul.mubr.bf16.gmra.mrb[0].mxu0 %v4659
      %v4798 = vpop.f32.mrb[0].mxu0
      %v4799 = vadd.f32 0.0, %v4798
      %v4800 = vpop.f32.mrb[0].mxu0
      %v4801 = vpop.f32.mrb[0].mxu0
      %v4802 = vadd.f32 0.0, %v4801
      %v4803 = vpop.f32.mrb[0].mxu0
      %4804 = vmatprep.mubr.bf16.mxu0 0
      %4805 = vmatmul.mubr.bf16.gmra.mrb[0].mxu0 %v4662
      %v4806 = vpop.f32.mrb[0].mxu0
      %v4807 = vadd.f32 0.0, %v4806
      %v4808 = vpop.f32.mrb[0].mxu0
      %v4809 = vpop.f32.mrb[0].mxu0
      %v4810 = vadd.f32 0.0, %v4809
      %v4811 = vpop.f32.mrb[0].mxu0
      %4812 = vmatprep.mubr.bf16.mxu0 0
      %4813 = vmatmul.mubr.bf16.gmra.mrb[0].mxu0 %v4665
      %v4814 = vpop.f32.mrb[0].mxu0
      %v4815 = vadd.f32 0.0, %v4814
      %v4816 = vpop.f32.mrb[0].mxu0
      %v4817 = vpop.f32.mrb[0].mxu0
      %v4818 = vadd.f32 0.0, %v4817
      %v4819 = vpop.f32.mrb[0].mxu0
      %4820 = vmatprep.mubr.bf16.mxu0 0
      %4821 = vmatmul.mubr.bf16.gmra.mrb[0].mxu0 %v4668
      %v4822 = vpop.f32.mrb[0].mxu0
      %v4823 = vadd.f32 0.0, %v4822
      %v4824 = vpop.f32.mrb[0].mxu0
      %v4825 = vpop.f32.mrb[0].mxu0
      %v4826 = vadd.f32 0.0, %v4825
      %v4827 = vpop.f32.mrb[0].mxu0
      %4828 = vmatprep.mubr.bf16.mxu0 0
      %4829 = vmatmul.mubr.bf16.gmra.mrb[0].mxu0 %v4671
      %v4830 = vpop.f32.mrb[0].mxu0
      %v4831 = vadd.f32 0.0, %v4830
      %v4832 = vpop.f32.mrb[0].mxu0
      %v4833 = vpop.f32.mrb[0].mxu0
      %v4834 = vadd.f32 0.0, %v4833
      %v4835 = vpop.f32.mrb[0].mxu0
      %4836 = vdwg.mxu0
      %v4837 = vadd.f32 %v4367, %v4711
      %v4838 = vadd.f32 %v4368, %v4714
      %v4839 = vadd.f32 %v4369, %v4719
      %v4840 = vadd.f32 %v4370, %v4722
      %v4841 = vadd.f32 %v4371, %v4727
      %v4842 = vadd.f32 %v4372, %v4730
      %v4843 = vadd.f32 %v4373, %v4735
      %v4844 = vadd.f32 %v4374, %v4738
      %v4845 = vadd.f32 %v4375, %v4743
      %v4846 = vadd.f32 %v4376, %v4746
      %v4847 = vadd.f32 %v4377, %v4751
      %v4848 = vadd.f32 %v4378, %v4754
      %v4849 = vadd.f32 %v4379, %v4759
      %v4850 = vadd.f32 %v4380, %v4762
      %v4851 = vadd.f32 %v4381, %v4767
      %v4852 = vadd.f32 %v4382, %v4770
      %v4853 = vadd.f32 %v4383, %v4775
      %v4854 = vadd.f32 %v4384, %v4778
      %v4855 = vadd.f32 %v4385, %v4783
      %v4856 = vadd.f32 %v4386, %v4786
      %v4857 = vadd.f32 %v4387, %v4791
      %v4858 = vadd.f32 %v4388, %v4794
      %v4859 = vadd.f32 %v4389, %v4799
      %v4860 = vadd.f32 %v4390, %v4802
      %v4861 = vadd.f32 %v4391, %v4807
      %v4862 = vadd.f32 %v4392, %v4810
      %v4863 = vadd.f32 %v4393, %v4815
      %v4864 = vadd.f32 %v4394, %v4818
      %v4865 = vadd.f32 %v4395, %v4823
      %v4866 = vadd.f32 %v4396, %v4826
      %v4867 = vadd.f32 %v4397, %v4831
      %v4868 = vadd.f32 %v4398, %v4834
      %v4869 = vld [vmem:[%s288] sm:$0x1]
      %v4871 = vlaneseq
      %v4872 = vshrl.u32 %v4871, 7
      %v4873 = vsub.s32 0, %v4872
      %v4874 = vrot.slane %v4869, %v4873
      %v4876 = vadd.f32 %v4837, %v4874
      %v4877 = vadd.f32 %v4838, %v4874
      %v4878 = vadd.f32 %v4839, %v4874
      %v4879 = vadd.f32 %v4840, %v4874
      %v4880 = vadd.f32 %v4841, %v4874
      %v4881 = vadd.f32 %v4842, %v4874
      %v4882 = vadd.f32 %v4843, %v4874
      %v4883 = vadd.f32 %v4844, %v4874
      %v4884 = vadd.f32 %v4845, %v4874
      %v4885 = vadd.f32 %v4846, %v4874
      %v4886 = vadd.f32 %v4847, %v4874
      %v4887 = vadd.f32 %v4848, %v4874
      %v4888 = vadd.f32 %v4849, %v4874
      %v4889 = vadd.f32 %v4850, %v4874
      %v4890 = vadd.f32 %v4851, %v4874
      %v4891 = vadd.f32 %v4852, %v4874
      %v4892 = vadd.f32 %v4853, %v4874
      %v4893 = vadd.f32 %v4854, %v4874
      %v4894 = vadd.f32 %v4855, %v4874
      %v4895 = vadd.f32 %v4856, %v4874
      %v4896 = vadd.f32 %v4857, %v4874
      %v4897 = vadd.f32 %v4858, %v4874
      %v4898 = vadd.f32 %v4859, %v4874
      %v4899 = vadd.f32 %v4860, %v4874
      %v4900 = vadd.f32 %v4861, %v4874
      %v4901 = vadd.f32 %v4862, %v4874
      %v4902 = vadd.f32 %v4863, %v4874
      %v4903 = vadd.f32 %v4864, %v4874
      %v4904 = vadd.f32 %v4865, %v4874
      %v4905 = vadd.f32 %v4866, %v4874
      %v4906 = vadd.f32 %v4867, %v4874
      %v4907 = vadd.f32 %v4868, %v4874
      %4908 = vst [vmem:[%s296] sm:$0xff] %v4876
      %4909 = vst [vmem:[%s296 + $0x8] sm:$0xff] %v4877
      %4910 = vst [vmem:[%s296 + $0x10] sm:$0xff] %v4878
      %4911 = vst [vmem:[%s296 + $0x18] sm:$0xff] %v4879
      %4912 = vst [vmem:[%s296 + $0x20] sm:$0xff] %v4880
      %4913 = vst [vmem:[%s296 + $0x28] sm:$0xff] %v4881
      %4914 = vst [vmem:[%s296 + $0x30] sm:$0xff] %v4882
      %4915 = vst [vmem:[%s296 + $0x38] sm:$0xff] %v4883
      %4916 = vst [vmem:[%s296 + $0x40] sm:$0xff] %v4884
      %4917 = vst [vmem:[%s296 + $0x48] sm:$0xff] %v4885
      %4918 = vst [vmem:[%s296 + $0x50] sm:$0xff] %v4886
      %4919 = vst [vmem:[%s296 + $0x58] sm:$0xff] %v4887
      %4920 = vst [vmem:[%s296 + $0x60] sm:$0xff] %v4888
      %4921 = vst [vmem:[%s296 + $0x68] sm:$0xff] %v4889
      %4922 = vst [vmem:[%s296 + $0x70] sm:$0xff] %v4890
      %4923 = vst [vmem:[%s296 + $0x78] sm:$0xff] %v4891
      %4924 = vst [vmem:[%s296 + $0x80] sm:$0xff] %v4892
      %4925 = vst [vmem:[%s296 + $0x88] sm:$0xff] %v4893
      %4926 = vst [vmem:[%s296 + $0x90] sm:$0xff] %v4894
      %4927 = vst [vmem:[%s296 + $0x98] sm:$0xff] %v4895
      %4928 = vst [vmem:[%s296 + $0xa0] sm:$0xff] %v4896
      %4929 = vst [vmem:[%s296 + $0xa8] sm:$0xff] %v4897
      %4930 = vst [vmem:[%s296 + $0xb0] sm:$0xff] %v4898
      %4931 = vst [vmem:[%s296 + $0xb8] sm:$0xff] %v4899
      %4932 = vst [vmem:[%s296 + $0xc0] sm:$0xff] %v4900
      %4933 = vst [vmem:[%s296 + $0xc8] sm:$0xff] %v4901
      %4934 = vst [vmem:[%s296 + $0xd0] sm:$0xff] %v4902
      %4935 = vst [vmem:[%s296 + $0xd8] sm:$0xff] %v4903
      %4936 = vst [vmem:[%s296 + $0xe0] sm:$0xff] %v4904
      %4937 = vst [vmem:[%s296 + $0xe8] sm:$0xff] %v4905
      %4938 = vst [vmem:[%s296 + $0xf0] sm:$0xff] %v4906
      %4939 = vst [vmem:[%s296 + $0xf8] sm:$0xff] %v4907
      %v4940 = vadd.f32 %v4876, %v4877
      %v4941 = vadd.f32 %v4940, %v4878
      %v4942 = vadd.f32 %v4941, %v4879
      %v4943 = vadd.f32 %v4942, %v4880
      %v4944 = vadd.f32 %v4943, %v4881
      %v4945 = vadd.f32 %v4944, %v4882
      %v4946 = vadd.f32 %v4945, %v4883
      %v4947 = vadd.f32 %v4946, %v4884
      %v4948 = vadd.f32 %v4947, %v4885
      %v4949 = vadd.f32 %v4948, %v4886
      %v4950 = vadd.f32 %v4949, %v4887
      %v4951 = vadd.f32 %v4950, %v4888
      %v4952 = vadd.f32 %v4951, %v4889
      %v4953 = vadd.f32 %v4952, %v4890
      %v4954 = vadd.f32 %v4953, %v4891
      %v4955 = vadd.f32 %v4954, %v4892
      %v4956 = vadd.f32 %v4955, %v4893
      %v4957 = vadd.f32 %v4956, %v4894
      %v4958 = vadd.f32 %v4957, %v4895
      %v4959 = vadd.f32 %v4958, %v4896
      %v4960 = vadd.f32 %v4959, %v4897
      %v4961 = vadd.f32 %v4960, %v4898
      %v4962 = vadd.f32 %v4961, %v4899
      %v4963 = vadd.f32 %v4962, %v4900
      %v4964 = vadd.f32 %v4963, %v4901
      %v4965 = vadd.f32 %v4964, %v4902
      %v4966 = vadd.f32 %v4965, %v4903
      %v4967 = vadd.f32 %v4966, %v4904
      %v4968 = vadd.f32 %v4967, %v4905
      %v4969 = vadd.f32 %v4968, %v4906
      %v4970 = vadd.f32 %v4969, %v4907
      %v4971 = vrot.slane %v4970, 4
      %v4972 = vadd.f32 %v4970, %v4971
      %v4973 = vrot.slane %v4972, 2
      %v4974 = vadd.f32 %v4972, %v4973
      %v4975 = vrot.slane %v4974, 1
      %v4976 = vadd.f32 %v4974, %v4975
      %4977 = vst [vmem:[%s302] sm:$0x1] %v4976
      %v4978 = vmul.f32 %v4876, %v4876
      %v4979 = vmul.f32 %v4877, %v4877
      %v4980 = vmul.f32 %v4878, %v4878
      %v4981 = vmul.f32 %v4879, %v4879
      %v4982 = vmul.f32 %v4880, %v4880
      %v4983 = vmul.f32 %v4881, %v4881
      %v4984 = vmul.f32 %v4882, %v4882
      %v4985 = vmul.f32 %v4883, %v4883
      %v4986 = vmul.f32 %v4884, %v4884
      %v4987 = vmul.f32 %v4885, %v4885
      %v4988 = vmul.f32 %v4886, %v4886
      %v4989 = vmul.f32 %v4887, %v4887
      %v4990 = vmul.f32 %v4888, %v4888
      %v4991 = vmul.f32 %v4889, %v4889
      %v4992 = vmul.f32 %v4890, %v4890
      %v4993 = vmul.f32 %v4891, %v4891
      %v4994 = vmul.f32 %v4892, %v4892
      %v4995 = vmul.f32 %v4893, %v4893
      %v4996 = vmul.f32 %v4894, %v4894
      %v4997 = vmul.f32 %v4895, %v4895
      %v4998 = vmul.f32 %v4896, %v4896
      %v4999 = vmul.f32 %v4897, %v4897
      %v5000 = vmul.f32 %v4898, %v4898
      %v5001 = vmul.f32 %v4899, %v4899
      %v5002 = vmul.f32 %v4900, %v4900
      %v5003 = vmul.f32 %v4901, %v4901
      %v5004 = vmul.f32 %v4902, %v4902
      %v5005 = vmul.f32 %v4903, %v4903
      %v5006 = vmul.f32 %v4904, %v4904
      %v5007 = vmul.f32 %v4905, %v4905
      %v5008 = vmul.f32 %v4906, %v4906
      %v5009 = vmul.f32 %v4907, %v4907
      %v5010 = vadd.f32 %v4978, %v4979
      %v5011 = vadd.f32 %v5010, %v4980
      %v5012 = vadd.f32 %v5011, %v4981
      %v5013 = vadd.f32 %v5012, %v4982
      %v5014 = vadd.f32 %v5013, %v4983
      %v5015 = vadd.f32 %v5014, %v4984
      %v5016 = vadd.f32 %v5015, %v4985
      %v5017 = vadd.f32 %v5016, %v4986
      %v5018 = vadd.f32 %v5017, %v4987
      %v5019 = vadd.f32 %v5018, %v4988
      %v5020 = vadd.f32 %v5019, %v4989
      %v5021 = vadd.f32 %v5020, %v4990
      %v5022 = vadd.f32 %v5021, %v4991
      %v5023 = vadd.f32 %v5022, %v4992
      %v5024 = vadd.f32 %v5023, %v4993
      %v5025 = vadd.f32 %v5024, %v4994
      %v5026 = vadd.f32 %v5025, %v4995
      %v5027 = vadd.f32 %v5026, %v4996
      %v5028 = vadd.f32 %v5027, %v4997
      %v5029 = vadd.f32 %v5028, %v4998
      %v5030 = vadd.f32 %v5029, %v4999
      %v5031 = vadd.f32 %v5030, %v5000
      %v5032 = vadd.f32 %v5031, %v5001
      %v5033 = vadd.f32 %v5032, %v5002
      %v5034 = vadd.f32 %v5033, %v5003
      %v5035 = vadd.f32 %v5034, %v5004
      %v5036 = vadd.f32 %v5035, %v5005
      %v5037 = vadd.f32 %v5036, %v5006
      %v5038 = vadd.f32 %v5037, %v5007
      %v5039 = vadd.f32 %v5038, %v5008
      %v5040 = vadd.f32 %v5039, %v5009
      %v5041 = vrot.slane %v5040, 4
      %v5042 = vadd.f32 %v5040, %v5041
      %v5043 = vrot.slane %v5042, 2
      %v5044 = vadd.f32 %v5042, %v5043
      %v5045 = vrot.slane %v5044, 1
      %v5046 = vadd.f32 %v5044, %v5045
      %5047 = vst [vmem:[%s308] sm:$0x1] %v5046
      %p5048 = scmp.lt.s32.totalorder %s21, 1
      %s5049 = scalar_select %p5048, %s21, 1
      %p5050 = scmp.lt.s32.totalorder %s22, 0
      %s5051 = scalar_select %p5050, %s22, 0
      %s5052 = smul.addr %s5049, 32
      %s5053 = sadd.s32 %s5051, %s5052
      %s5054 = smul.addr %s5053, 8
      %s5055 = scalar_lea.vmem %s3, %s5054
      %p5056 = scmp.lt.s32.totalorder %s21, 1
      %s5057 = scalar_select %p5056, %s21, 1
      %p5058 = scmp.lt.s32.totalorder %s22, 0
      %s5059 = scalar_select %p5058, %s22, 0
      %s5060 = sadd.s32 %s5059, %s5057
      %s5061 = scalar_lea.vmem %s4, %s5060
      %p5062 = scmp.lt.s32.totalorder %s21, 1
      %s5063 = scalar_select %p5062, %s21, 1
      %p5064 = scmp.lt.s32.totalorder %s22, 0
      %s5065 = scalar_select %p5064, %s22, 0
      %s5066 = sadd.s32 %s5065, %s5063
      %s5067 = scalar_lea.vmem %s5, %s5066
      // Predicated region
      $region33: #{a_call__.5} parent=31 // pred_check
        %p5068 = pneg %p127
      $region34: #{a_call__.5} parent=31 // pred_check_branch
        %5070 = sbr.rel (%p5068) target = $region36
      $region35: #{a_call__.5} parent=31 // pred_region
        _
      $region36: #{a_call__.5} parent=31 // pred_fallthru
        _
      // Predicated region
      $region37: #{a_call__.5} parent=31 // pred_check
        %p5071 = pneg %p155
      $region38: #{a_call__.5} parent=31 // pred_check_branch
        %5073 = sbr.rel (%p5071) target = $region40
      $region39: #{a_call__.5} parent=31 // pred_region
        _
      $region40: #{a_call__.5} parent=31 // pred_fallthru
        _
      // Predicated region
      $region41: #{a_call__.5} parent=31 // pred_check
        %p5074 = pneg %p183
      $region42: #{a_call__.5} parent=31 // pred_check_branch
        %5076 = sbr.rel (%p5074) target = $region44
      $region43: #{a_call__.5} parent=31 // pred_region
        _
      $region44: #{a_call__.5} parent=31 // pred_fallthru
        _
    $region32: #{a_call__.5} parent=5 // pred_fallthru
      _
    %p5077 = scmp.le.s32.totalorder 2, %s12
    // Predicated region
    $region45: #{a_call__.5} parent=5 // pred_check
      %p5078 = pneg %p5077
    $region46: #{a_call__.5} parent=5 // pred_check_branch
      %5080 = sbr.rel (%p5078) target = $region48
    $region47: #{a_call__.5} parent=5 // pred_region
      %s5081 = ssub.s32 %s12, 2
      // Predicated region
      $region49: #{a_call__.5} parent=47 // pred_check
        %p5082 = pneg %p133
      $region50: #{a_call__.5} parent=47 // pred_check_branch
        %5084 = sbr.rel (%p5082) target = $region52
      $region51: #{a_call__.5} parent=47 // pred_region
        %p5085 = scmp.lt.s32.totalorder %s23, 1
        %s5086 = scalar_select %p5085, %s23, 1
        %p5087 = scmp.lt.s32.totalorder %s24, 0
        %s5088 = scalar_select %p5087, %s24, 0
        %s5089 = smul.addr %s5086, 32
        %s5090 = sadd.s32 %s5088, %s5089
        %s5091 = smul.addr %s5090, 8
        %s5092 = scalar_lea.vmem %s3, %s5091
      $region52: #{a_call__.5} parent=47 // pred_fallthru
        _
      // Predicated region
      $region53: #{a_call__.5} parent=47 // pred_check
        %p5093 = pneg %p161
      $region54: #{a_call__.5} parent=47 // pred_check_branch
        %5095 = sbr.rel (%p5093) target = $region56
      $region55: #{a_call__.5} parent=47 // pred_region
        %p5096 = scmp.lt.s32.totalorder %s23, 1
        %s5097 = scalar_select %p5096, %s23, 1
        %p5098 = scmp.lt.s32.totalorder %s24, 0
        %s5099 = scalar_select %p5098, %s24, 0
        %s5100 = sadd.s32 %s5099, %s5097
        %s5101 = scalar_lea.vmem %s4, %s5100
      $region56: #{a_call__.5} parent=47 // pred_fallthru
        _
      // Predicated region
      $region57: #{a_call__.5} parent=47 // pred_check
        %p5102 = pneg %p189
      $region58: #{a_call__.5} parent=47 // pred_check_branch
        %5104 = sbr.rel (%p5102) target = $region60
      $region59: #{a_call__.5} parent=47 // pred_region
        %p5105 = scmp.lt.s32.totalorder %s23, 1
        %s5106 = scalar_select %p5105, %s23, 1
        %p5107 = scmp.lt.s32.totalorder %s24, 0
        %s5108 = scalar_select %p5107, %s24, 0
        %s5109 = sadd.s32 %s5108, %s5106
        %s5110 = scalar_lea.vmem %s5, %s5109
      $region60: #{a_call__.5} parent=47 // pred_fallthru
        _
    $region48: #{a_call__.5} parent=5 // pred_fallthru
      _
  $region6: #{a_call__.5} parent=0 // loop_footer
    %s16 = sadd.s32 1, %s12
  $region7: #{a_call__.5} parent=0 // loop_footer_branch
    %11 = sbr.rel target = $region3
  $region8: #{a_call__.5} parent=0 // loop_exit
    _

</llo_original>
